<compile_context>
chip_gen: v6e
topology: v6e:2x2x1
jax: 0.10.0
libtpu: 0.0.40
codegen_flags: <defaults>
</compile_context>

<pallas_src>
import jax
import jax.numpy as jnp
import numpy as np
from jax import lax
from jax.experimental import pallas as pl
from jax.experimental.pallas import tpu as pltpu

EX = 4          # Bottleneck.ex
BN_EPS = 1e-5
LANE = 128


# ----------------------------------------------------------------------------- kernel

def _bottleneck_kernel(x_ref, w1_ref, b1_ref, w2_ref, b2_ref, w3_ref, b3_ref, o_ref):
    # x_ref : (TB, H, W, Cp)  bf16   TB batch elements per grid step
    # w1_ref: (Cp, Pp)     bf16   b1_ref: (1, Pp) f32   conv1 + bn1 folded
    # w2_ref: (3, 3*Pp, Pp) bf16  b2_ref: (1, Pp) f32   conv2(3x3) + bn2 folded, per-row im2col
    # w3_ref: (Pp, Cp)     bf16   b3_ref: (1, Cp) f32   conv3 + bn3 + survival prob folded
    # o_ref : (TB, H, W, Cp)  bf16
    TB, H, W, Cp = x_ref.shape
    Pp = w1_ref.shape[1]
    M = TB * H * W

    # conv1 (1x1) + folded BN1 + ReLU; cast to bf16 ONCE, before any tap is built.
    h1 = jnp.dot(x_ref[...].reshape(M, Cp), w1_ref[...],
                 preferred_element_type=jnp.float32)
    h1 = jnp.maximum(h1 + b1_ref[...], 0.0).astype(jnp.bfloat16)
    h1 = h1.reshape(TB, H, W, Pp)

    # shift-with-zero-fill taps (slice + concat); all bf16.
    def shift_h(t, dy):       # result[:, i] = t[:, i + dy], zero outside
        if dy == 0:
            return t
        z = jnp.zeros((TB, 1, W, Pp), t.dtype)
        if dy == 1:
            return jnp.concatenate([t[:, 1:], z], axis=1)
        return jnp.concatenate([z, t[:, :H - 1]], axis=1)

    def shift_w(t, dx):       # result[:, :, j] = t[:, :, j + dx], zero outside
        if dx == 0:
            return t
        z = jnp.zeros((TB, H, 1, Pp), t.dtype)
        if dx == 1:
            return jnp.concatenate([t[:, :, 1:], z], axis=2)
        return jnp.concatenate([z, t[:, :, :W - 1]], axis=2)

    # conv2 (3x3, stride 1, pad 1) + folded BN2 + ReLU.
    # Three matmuls of K = 3*Pp (one per kernel row dy), f32 accumulation: only 3 taps and
    # one (M, 3*Pp) bf16 row are ever live, instead of a 9-way concat + K = 9*Pp operand.
    h2 = None
    for r, dy in enumerate((-1, 0, 1)):               # r = dy + 1 matches w2_ref rows
        t_dy = shift_h(h1, dy)
        row = jnp.concatenate([shift_w(t_dy, dx) for dx in (-1, 0, 1)], axis=-1)
        part = jnp.dot(row.reshape(M, 3 * Pp), w2_ref[r],
                       preferred_element_type=jnp.float32)
        h2 = part if h2 is None else h2 + part
    h2 = jnp.maximum(h2 + b2_ref[...], 0.0).astype(jnp.bfloat16)      # (M, Pp)

    # conv3 (1x1) + folded BN3 (survival prob already folded into w3/b3).
    h3 = jnp.dot(h2, w3_ref[...], preferred_element_type=jnp.float32) + b3_ref[...]

    # residual add + ReLU (re-read the resident x block: keeps its live range short).
    res = x_ref[...].astype(jnp.float32).reshape(M, Cp)
    out = jnp.maximum(h3 + res, 0.0)
    o_ref[...] = out.reshape(TB, H, W, Cp).astype(o_ref.dtype)


# ----------------------------------------------------------------------------- wrapper

def _round_up(n, m):
    return ((n + m - 1) // m) * m


def _pad_axis(a, axis, n):
    pad = n - a.shape[axis]
    if pad == 0:
        return a
    widths = [(0, 0)] * a.ndim
    widths[axis] = (0, pad)
    return jnp.pad(a, widths)


def _tpu_generation():
    """(physical VMEM bytes per TensorCore, #TensorCores that can share the batch grid)."""
    kind = ""
    try:
        kind = jax.devices()[0].device_kind.lower()
    except Exception:
        pass
    is_v7 = "7" in kind
    vmem = (64 << 20) if is_v7 else (128 << 20)
    try:
        cap = getattr(pltpu.get_tpu_info(), "vmem_capacity_bytes", None)
        if cap:
            vmem = min(vmem, int(cap))
    except Exception:
        pass
    return vmem, (2 if is_v7 else 1)


def _vmem_bytes_per_step(tb, H, W, Cp, Pp):
    """Peak-VMEM estimate for one grid step: double-buffered x/out blocks, (double-buffered)
    weights, and the live conv2/conv3 intermediates with all-bf16 taps."""
    M = tb * H * W
    io_blocks = 2 * (M * Cp * 2) * 2                              # x(bf16) + out(bf16), 2 bufs each
    weights = 2 * ((Cp * Pp + 9 * Pp * Pp + Pp * Cp) * 2 + (2 * Pp + Cp) * 4)
    inter = M * (22 * Pp + 8 * Cp)                                # h1/taps/row bf16 + acc/h3/res f32
    return io_blocks + weights + inter


def _pick_tb(B, H, W, Cp, Pp, vmem_budget, min_steps=1):
    """Largest divisor of B whose per-step live set fits the budget while leaving at least
    `min_steps` grid steps (keeps both v7x TensorCores busy)."""
    best = 1
    for d in range(1, B + 1):
        if B % d:
            continue
        if d > 1 and B // d < min_steps:
            break
        if _vmem_bytes_per_step(d, H, W, Cp, Pp) > vmem_budget:
            break
        best = d
    return best


def bottleneck_forward(x_nchw, params, prob):
    """x_nchw: (B, Cin, H, W) float32; Cin must equal planes*EX (shortcut=None)."""
    B, Cin, H, W = x_nchw.shape
    P = params["w1"].shape[1]
    Cout = params["w3"].shape[1]
    assert Cin == Cout, "shortcut=None requires inplanes == planes * ex"

    Cp = _round_up(Cin, LANE)
    Pp = _round_up(P, LANE)

    # NHWC, channels padded to a lane multiple, bf16 activations for MXU / halved DMA.
    x_nhwc = jnp.transpose(x_nchw, (0, 2, 3, 1)).astype(jnp.float32)
    x_p = _pad_axis(x_nhwc, 3, Cp).astype(jnp.bfloat16)

    # One-time weight transforms (BN scale already folded in params; prob folded here).
    w1 = _pad_axis(_pad_axis(params["w1"], 0, Cp), 1, Pp).astype(jnp.bfloat16)    # (Cp, Pp)
    b1 = _pad_axis(params["b1"], 0, Pp)[None, :].astype(jnp.float32)              # (1, Pp)
    w2 = _pad_axis(_pad_axis(params["w2"], 2, Pp), 3, Pp)                         # (3,3,Pp,Pp)
    w2 = w2.reshape(3, 3 * Pp, Pp).astype(jnp.bfloat16)                           # (ky, kx*cin, cout)
    b2 = _pad_axis(params["b2"], 0, Pp)[None, :].astype(jnp.float32)              # (1, Pp)
    w3 = (_pad_axis(_pad_axis(params["w3"], 0, Pp), 1, Cp) * prob).astype(jnp.bfloat16)
    b3 = (_pad_axis(params["b3"], 0, Cp) * prob)[None, :].astype(jnp.float32)     # (1, Cp)

    # Per-generation VMEM budgeting + megacore-aware batch tile.
    phys_vmem, n_cores = _tpu_generation()
    vmem_limit = min(phys_vmem * 3 // 4, 100 << 20)     # ~48 MiB on v7x, ~96 MiB on v5e/v6e
    TB = _pick_tb(B, H, W, Cp, Pp, vmem_budget=int(vmem_limit * 0.6), min_steps=n_cores)
    grid = (B // TB,)

    flops = 2 * B * H * W * (Cp * Pp + 9 * Pp * Pp + Pp * Cp)
    bytes_accessed = (x_p.size * 2 + B * H * W * Cp * 2
                      + (w1.size + w2.size + w3.size) * 2
                      + (b1.size + b2.size + b3.size) * 4)

    const2 = lambda b: (0, 0)
    const3 = lambda b: (0, 0, 0)

    out_p = pl.pallas_call(
        _bottleneck_kernel,
        out_shape=jax.ShapeDtypeStruct((B, H, W, Cp), jnp.bfloat16),
        grid_spec=pltpu.PrefetchScalarGridSpec(
            num_scalar_prefetch=0,
            grid=grid,
            in_specs=[
                pl.BlockSpec((TB, H, W, Cp), lambda b: (b, 0, 0, 0)),   # x
                pl.BlockSpec((Cp, Pp), const2),                         # w1 (bn1-folded)
                pl.BlockSpec((1, Pp), const2),                          # b1
                pl.BlockSpec((3, 3 * Pp, Pp), const3),                  # w2 (bn2-folded, per-row)
                pl.BlockSpec((1, Pp), const2),                          # b2
                pl.BlockSpec((Pp, Cp), const2),                         # w3 (bn3 + prob folded)
                pl.BlockSpec((1, Cp), const2),                          # b3 (* prob)
            ],
            out_specs=pl.BlockSpec((TB, H, W, Cp), lambda b: (b, 0, 0, 0)),
        ),
        compiler_params=pltpu.CompilerParams(
            dimension_semantics=("parallel",),
            vmem_limit_bytes=int(vmem_limit)),
        cost_estimate=pl.CostEstimate(flops=flops, transcendentals=0,
                                      bytes_accessed=int(bytes_accessed)),
    )(x_p, w1, b1, w2, b2, w3, b3)

    out = out_p[..., :Cout].astype(jnp.float32)
    return jnp.transpose(out, (0, 3, 1, 2))


# ----------------------------------------------------------------------------- params

def make_params(key, inplanes, planes):
    """Deterministic synthetic parameters; BN(eval) scale/bias folded into conv weights."""
    cout = planes * EX
    ks = jax.random.split(key, 18)
    f = jnp.float32

    c1_w = 0.2 * jax.random.normal(ks[0], (planes, inplanes), f)        # (O, I) 1x1
    c1_b = 0.1 * jax.random.normal(ks[1], (planes,), f)
    c2_w = 0.2 * jax.random.normal(ks[2], (planes, planes, 3, 3), f)    # (O, I, kh, kw)
    c2_b = 0.1 * jax.random.normal(ks[3], (planes,), f)
    c3_w = 0.2 * jax.random.normal(ks[4], (cout, planes), f)            # (O, I) 1x1
    c3_b = 0.1 * jax.random.normal(ks[5], (cout,), f)

    def bn(kg, kb, km, kv, n):
        gamma = 1.0 + 0.1 * jax.random.normal(kg, (n,), f)
        beta = 0.1 * jax.random.normal(kb, (n,), f)
        mean = 0.1 * jax.random.normal(km, (n,), f)
        var = jax.random.uniform(kv, (n,), f, 0.5, 1.5)
        return gamma, beta, mean, var

    bn1 = bn(ks[6], ks[7], ks[8], ks[9], planes)
    bn2 = bn(ks[10], ks[11], ks[12], ks[13], planes)
    bn3 = bn(ks[14], ks[15], ks[16], ks[17], cout)

    def fold(gamma, beta, mean, var, conv_b):
        s = gamma / jnp.sqrt(var + BN_EPS)
        b = s * conv_b + beta - s * mean
        return s, b

    s1, b1 = fold(*bn1, c1_b)
    s2, b2 = fold(*bn2, c2_b)
    s3, b3 = fold(*bn3, c3_b)

    params = dict(
        w1=c1_w.T * s1[None, :],                                        # (Cin, P)
        b1=b1,                                                          # (P,)
        w2=jnp.transpose(c2_w, (2, 3, 1, 0)) * s2[None, None, None, :], # (ky,kx,cin,cout)
        b2=b2,                                                          # (P,)
        w3=c3_w.T * s3[None, :],                                        # (P, Cout)
        b3=b3,                                                          # (Cout,)
    )
    raw = dict(c1_w=c1_w, c1_b=c1_b, c2_w=c2_w, c2_b=c2_b, c3_w=c3_w, c3_b=c3_b,
               bn1=bn1, bn2=bn2, bn3=bn3)
    return params, raw


# ----------------------------------------------------------------------------- reference

def reference_forward(x_nchw, raw, prob):
    """Pure-JAX f32 reference matching the PyTorch eval-mode forward (shortcut=None)."""
    x = jnp.transpose(x_nchw, (0, 2, 3, 1))   # NHWC
    dn = ("NHWC", "HWIO", "NHWC")

    def bn_apply(y, g, be, m, v):
        return g * (y - m) / jnp.sqrt(v + BN_EPS) + be

    w1 = jnp.transpose(raw["c1_w"], (1, 0))[None, None]            # (1,1,Cin,P)
    w2 = jnp.transpose(raw["c2_w"], (2, 3, 1, 0))                  # (3,3,P,P)
    w3 = jnp.transpose(raw["c3_w"], (1, 0))[None, None]            # (1,1,P,Cout)

    h = lax.conv_general_dilated(x, w1, (1, 1), "VALID", dimension_numbers=dn) + raw["c1_b"]
    h = jax.nn.relu(bn_apply(h, *raw["bn1"]))
    h = lax.conv_general_dilated(h, w2, (1, 1), ((1, 1), (1, 1)), dimension_numbers=dn) + raw["c2_b"]
    h = jax.nn.relu(bn_apply(h, *raw["bn2"]))
    h = lax.conv_general_dilated(h, w3, (1, 1), "VALID", dimension_numbers=dn) + raw["c3_b"]
    h = bn_apply(h, *raw["bn3"])
    out = jax.nn.relu(h * prob + x)
    return jnp.transpose(out, (0, 3, 1, 2))


if __name__ == "__main__":
    key = jax.random.PRNGKey(0)
    kx, kp = jax.random.split(key)

    planes = 4
    inplanes = planes * EX          # 16, so identity add works with shortcut=None
    B, H, W = 4, 16, 16
    prob = 0.8

    x = jax.random.normal(kx, (B, inplanes, H, W), jnp.float32)   # NCHW like PyTorch
    params, raw = make_params(kp, inplanes, planes)

    out = jax.block_until_ready(bottleneck_forward(x, params, prob))
    ref = jax.block_until_ready(reference_forward(x, raw, prob))

    assert out.shape == (B, planes * EX, H, W)
    # bf16 matmul operands + bf16 output store -> looser tolerance than the f32 reference
    np.testing.assert_allclose(np.asarray(out), np.asarray(ref), atol=5e-2, rtol=5e-2)

    print("KERNEL_OK")
</pallas_src>

<mosaic_0001>
module attributes {stable_mosaic.version = 11 : i64} {
  func.func @_bottleneck_kernel(%arg0: i32, %arg1: memref<4x16x16x128xbf16, #tpu.memory_space<vmem>>, %arg2: memref<128x128xbf16, #tpu.memory_space<vmem>>, %arg3: memref<1x128xf32, #tpu.memory_space<vmem>>, %arg4: memref<3x384x128xbf16, #tpu.memory_space<vmem>>, %arg5: memref<1x128xf32, #tpu.memory_space<vmem>>, %arg6: memref<128x128xbf16, #tpu.memory_space<vmem>>, %arg7: memref<1x128xf32, #tpu.memory_space<vmem>>, %arg8: memref<4x16x16x128xbf16, #tpu.memory_space<vmem>>) attributes {dimension_semantics = [#tpu.dimension_semantics<parallel>], iteration_bounds = array<i64: 1>, scalar_prefetch = 0 : i64, scratch_operands = 0 : i64, tpu.core_type = #tpu.core_type<tc>, window_params = [{transform_indices = @transform_0, window_bounds = array<i64: 4, 16, 16, 128>}, {pipeline_mode = #tpu.pipeline_mode<synchronous>, transform_indices = @transform_1, window_bounds = array<i64: 128, 128>}, {pipeline_mode = #tpu.pipeline_mode<synchronous>, transform_indices = @transform_2, window_bounds = array<i64: 1, 128>}, {pipeline_mode = #tpu.pipeline_mode<synchronous>, transform_indices = @transform_3, window_bounds = array<i64: 3, 384, 128>}, {pipeline_mode = #tpu.pipeline_mode<synchronous>, transform_indices = @transform_4, window_bounds = array<i64: 1, 128>}, {pipeline_mode = #tpu.pipeline_mode<synchronous>, transform_indices = @transform_5, window_bounds = array<i64: 128, 128>}, {pipeline_mode = #tpu.pipeline_mode<synchronous>, transform_indices = @transform_6, window_bounds = array<i64: 1, 128>}, {transform_indices = @transform_7, window_bounds = array<i64: 4, 16, 16, 128>}]} {
    %c0 = arith.constant 0 : index
    %c0_0 = arith.constant 0 : index
    %c0_1 = arith.constant 0 : index
    %c0_2 = arith.constant 0 : index
    %0 = vector.load %arg1[%c0, %c0_0, %c0_1, %c0_2] : memref<4x16x16x128xbf16, #tpu.memory_space<vmem>>, vector<4x16x16x128xbf16>
    %1 = vector.shape_cast %0 : vector<4x16x16x128xbf16> to vector<1024x128xbf16>
    %c0_3 = arith.constant 0 : index
    %c0_4 = arith.constant 0 : index
    %2 = vector.load %arg2[%c0_3, %c0_4] : memref<128x128xbf16, #tpu.memory_space<vmem>>, vector<128x128xbf16>
    %cst = arith.constant dense<0.000000e+00> : vector<1024x128xf32>
    %3 = tpu.matmul %1, %2, %cst {dimension_numbers = #tpu.dot_dimension_numbers<[1], [0], [0], [1], [0, 0, 1, 1], [], []>} : vector<1024x128xbf16>, vector<128x128xbf16>, vector<1024x128xf32> -> vector<1024x128xf32>
    %c0_5 = arith.constant 0 : index
    %c0_6 = arith.constant 0 : index
    %4 = vector.load %arg3[%c0_5, %c0_6] : memref<1x128xf32, #tpu.memory_space<vmem>>, vector<1x128xf32>
    %5 = vector.broadcast %4 : vector<1x128xf32> to vector<1024x128xf32>
    %6 = arith.addf %3, %5 : vector<1024x128xf32>
    %cst_7 = arith.constant 0.000000e+00 : f32
    %7 = vector.broadcast %cst_7 : f32 to vector<1024x128xf32>
    %8 = arith.maximumf %6, %7 : vector<1024x128xf32>
    %9 = arith.truncf %8 : vector<1024x128xf32> to vector<1024x128xbf16>
    %10 = vector.shape_cast %9 : vector<1024x128xbf16> to vector<4x16x16x128xbf16>
    %cst_8 = arith.constant 0.000000e+00 : bf16
    %11 = vector.broadcast %cst_8 : bf16 to vector<4x1x16x128xbf16>
    %12 = vector.extract_strided_slice %10 {offsets = [0, 0, 0, 0], sizes = [4, 15, 16, 128], strides = [1, 1, 1, 1]} : vector<4x16x16x128xbf16> to vector<4x15x16x128xbf16>
    %13 = tpu.concatenate %11, %12 in 1 : vector<4x1x16x128xbf16>, vector<4x15x16x128xbf16> -> vector<4x16x16x128xbf16>
    %cst_9 = arith.constant 0.000000e+00 : bf16
    %14 = vector.broadcast %cst_9 : bf16 to vector<4x16x1x128xbf16>
    %15 = vector.extract_strided_slice %13 {offsets = [0, 0, 0, 0], sizes = [4, 16, 15, 128], strides = [1, 1, 1, 1]} : vector<4x16x16x128xbf16> to vector<4x16x15x128xbf16>
    %16 = tpu.concatenate %14, %15 in 2 : vector<4x16x1x128xbf16>, vector<4x16x15x128xbf16> -> vector<4x16x16x128xbf16>
    %cst_10 = arith.constant 0.000000e+00 : bf16
    %17 = vector.broadcast %cst_10 : bf16 to vector<4x16x1x128xbf16>
    %18 = vector.extract_strided_slice %13 {offsets = [0, 0, 1, 0], sizes = [4, 16, 15, 128], strides = [1, 1, 1, 1]} : vector<4x16x16x128xbf16> to vector<4x16x15x128xbf16>
    %19 = tpu.concatenate %18, %17 in 2 : vector<4x16x15x128xbf16>, vector<4x16x1x128xbf16> -> vector<4x16x16x128xbf16>
    %20 = tpu.concatenate %16, %13, %19 in 3 : vector<4x16x16x128xbf16>, vector<4x16x16x128xbf16>, vector<4x16x16x128xbf16> -> vector<4x16x16x384xbf16>
    %21 = vector.shape_cast %20 : vector<4x16x16x384xbf16> to vector<1024x384xbf16>
    %c0_11 = arith.constant 0 : index
    %c0_12 = arith.constant 0 : index
    %c0_13 = arith.constant 0 : index
    %22 = vector.load %arg4[%c0_11, %c0_12, %c0_13] : memref<3x384x128xbf16, #tpu.memory_space<vmem>>, vector<1x384x128xbf16>
    %23 = vector.shape_cast %22 : vector<1x384x128xbf16> to vector<384x128xbf16>
    %cst_14 = arith.constant dense<0.000000e+00> : vector<1024x128xf32>
    %24 = tpu.matmul %21, %23, %cst_14 {dimension_numbers = #tpu.dot_dimension_numbers<[1], [0], [0], [1], [0, 0, 1, 1], [], []>} : vector<1024x384xbf16>, vector<384x128xbf16>, vector<1024x128xf32> -> vector<1024x128xf32>
    %cst_15 = arith.constant 0.000000e+00 : bf16
    %25 = vector.broadcast %cst_15 : bf16 to vector<4x16x1x128xbf16>
    %26 = vector.extract_strided_slice %10 {offsets = [0, 0, 0, 0], sizes = [4, 16, 15, 128], strides = [1, 1, 1, 1]} : vector<4x16x16x128xbf16> to vector<4x16x15x128xbf16>
    %27 = tpu.concatenate %25, %26 in 2 : vector<4x16x1x128xbf16>, vector<4x16x15x128xbf16> -> vector<4x16x16x128xbf16>
    %cst_16 = arith.constant 0.000000e+00 : bf16
    %28 = vector.broadcast %cst_16 : bf16 to vector<4x16x1x128xbf16>
    %29 = vector.extract_strided_slice %10 {offsets = [0, 0, 1, 0], sizes = [4, 16, 15, 128], strides = [1, 1, 1, 1]} : vector<4x16x16x128xbf16> to vector<4x16x15x128xbf16>
    %30 = tpu.concatenate %29, %28 in 2 : vector<4x16x15x128xbf16>, vector<4x16x1x128xbf16> -> vector<4x16x16x128xbf16>
    %31 = tpu.concatenate %27, %10, %30 in 3 : vector<4x16x16x128xbf16>, vector<4x16x16x128xbf16>, vector<4x16x16x128xbf16> -> vector<4x16x16x384xbf16>
    %32 = vector.shape_cast %31 : vector<4x16x16x384xbf16> to vector<1024x384xbf16>
    %c1 = arith.constant 1 : index
    %c0_17 = arith.constant 0 : index
    %c0_18 = arith.constant 0 : index
    %33 = vector.load %arg4[%c1, %c0_17, %c0_18] : memref<3x384x128xbf16, #tpu.memory_space<vmem>>, vector<1x384x128xbf16>
    %34 = vector.shape_cast %33 : vector<1x384x128xbf16> to vector<384x128xbf16>
    %cst_19 = arith.constant dense<0.000000e+00> : vector<1024x128xf32>
    %35 = tpu.matmul %32, %34, %cst_19 {dimension_numbers = #tpu.dot_dimension_numbers<[1], [0], [0], [1], [0, 0, 1, 1], [], []>} : vector<1024x384xbf16>, vector<384x128xbf16>, vector<1024x128xf32> -> vector<1024x128xf32>
    %36 = arith.addf %24, %35 : vector<1024x128xf32>
    %cst_20 = arith.constant 0.000000e+00 : bf16
    %37 = vector.broadcast %cst_20 : bf16 to vector<4x1x16x128xbf16>
    %38 = vector.extract_strided_slice %10 {offsets = [0, 1, 0, 0], sizes = [4, 15, 16, 128], strides = [1, 1, 1, 1]} : vector<4x16x16x128xbf16> to vector<4x15x16x128xbf16>
    %39 = tpu.concatenate %38, %37 in 1 : vector<4x15x16x128xbf16>, vector<4x1x16x128xbf16> -> vector<4x16x16x128xbf16>
    %cst_21 = arith.constant 0.000000e+00 : bf16
    %40 = vector.broadcast %cst_21 : bf16 to vector<4x16x1x128xbf16>
    %41 = vector.extract_strided_slice %39 {offsets = [0, 0, 0, 0], sizes = [4, 16, 15, 128], strides = [1, 1, 1, 1]} : vector<4x16x16x128xbf16> to vector<4x16x15x128xbf16>
    %42 = tpu.concatenate %40, %41 in 2 : vector<4x16x1x128xbf16>, vector<4x16x15x128xbf16> -> vector<4x16x16x128xbf16>
    %cst_22 = arith.constant 0.000000e+00 : bf16
    %43 = vector.broadcast %cst_22 : bf16 to vector<4x16x1x128xbf16>
    %44 = vector.extract_strided_slice %39 {offsets = [0, 0, 1, 0], sizes = [4, 16, 15, 128], strides = [1, 1, 1, 1]} : vector<4x16x16x128xbf16> to vector<4x16x15x128xbf16>
    %45 = tpu.concatenate %44, %43 in 2 : vector<4x16x15x128xbf16>, vector<4x16x1x128xbf16> -> vector<4x16x16x128xbf16>
    %46 = tpu.concatenate %42, %39, %45 in 3 : vector<4x16x16x128xbf16>, vector<4x16x16x128xbf16>, vector<4x16x16x128xbf16> -> vector<4x16x16x384xbf16>
    %47 = vector.shape_cast %46 : vector<4x16x16x384xbf16> to vector<1024x384xbf16>
    %c2 = arith.constant 2 : index
    %c0_23 = arith.constant 0 : index
    %c0_24 = arith.constant 0 : index
    %48 = vector.load %arg4[%c2, %c0_23, %c0_24] : memref<3x384x128xbf16, #tpu.memory_space<vmem>>, vector<1x384x128xbf16>
    %49 = vector.shape_cast %48 : vector<1x384x128xbf16> to vector<384x128xbf16>
    %cst_25 = arith.constant dense<0.000000e+00> : vector<1024x128xf32>
    %50 = tpu.matmul %47, %49, %cst_25 {dimension_numbers = #tpu.dot_dimension_numbers<[1], [0], [0], [1], [0, 0, 1, 1], [], []>} : vector<1024x384xbf16>, vector<384x128xbf16>, vector<1024x128xf32> -> vector<1024x128xf32>
    %51 = arith.addf %36, %50 : vector<1024x128xf32>
    %c0_26 = arith.constant 0 : index
    %c0_27 = arith.constant 0 : index
    %52 = vector.load %arg5[%c0_26, %c0_27] : memref<1x128xf32, #tpu.memory_space<vmem>>, vector<1x128xf32>
    %53 = vector.broadcast %52 : vector<1x128xf32> to vector<1024x128xf32>
    %54 = arith.addf %51, %53 : vector<1024x128xf32>
    %cst_28 = arith.constant 0.000000e+00 : f32
    %55 = vector.broadcast %cst_28 : f32 to vector<1024x128xf32>
    %56 = arith.maximumf %54, %55 : vector<1024x128xf32>
    %57 = arith.truncf %56 : vector<1024x128xf32> to vector<1024x128xbf16>
    %c0_29 = arith.constant 0 : index
    %c0_30 = arith.constant 0 : index
    %58 = vector.load %arg6[%c0_29, %c0_30] : memref<128x128xbf16, #tpu.memory_space<vmem>>, vector<128x128xbf16>
    %cst_31 = arith.constant dense<0.000000e+00> : vector<1024x128xf32>
    %59 = tpu.matmul %57, %58, %cst_31 {dimension_numbers = #tpu.dot_dimension_numbers<[1], [0], [0], [1], [0, 0, 1, 1], [], []>} : vector<1024x128xbf16>, vector<128x128xbf16>, vector<1024x128xf32> -> vector<1024x128xf32>
    %c0_32 = arith.constant 0 : index
    %c0_33 = arith.constant 0 : index
    %60 = vector.load %arg7[%c0_32, %c0_33] : memref<1x128xf32, #tpu.memory_space<vmem>>, vector<1x128xf32>
    %61 = vector.broadcast %60 : vector<1x128xf32> to vector<1024x128xf32>
    %62 = arith.addf %59, %61 : vector<1024x128xf32>
    %c0_34 = arith.constant 0 : index
    %c0_35 = arith.constant 0 : index
    %c0_36 = arith.constant 0 : index
    %c0_37 = arith.constant 0 : index
    %63 = vector.load %arg1[%c0_34, %c0_35, %c0_36, %c0_37] : memref<4x16x16x128xbf16, #tpu.memory_space<vmem>>, vector<4x16x16x128xbf16>
    %64 = arith.extf %63 : vector<4x16x16x128xbf16> to vector<4x16x16x128xf32>
    %65 = vector.shape_cast %64 : vector<4x16x16x128xf32> to vector<1024x128xf32>
    %66 = arith.addf %62, %65 : vector<1024x128xf32>
    %cst_38 = arith.constant 0.000000e+00 : f32
    %67 = vector.broadcast %cst_38 : f32 to vector<1024x128xf32>
    %68 = arith.maximumf %66, %67 : vector<1024x128xf32>
    %69 = vector.shape_cast %68 : vector<1024x128xf32> to vector<4x16x16x128xf32>
    %70 = arith.truncf %69 : vector<4x16x16x128xf32> to vector<4x16x16x128xbf16>
    %c0_39 = arith.constant 0 : index
    %c0_40 = arith.constant 0 : index
    %c0_41 = arith.constant 0 : index
    %c0_42 = arith.constant 0 : index
    %71 = vector.load %arg8[%c0_39, %c0_40, %c0_41, %c0_42] : memref<4x16x16x128xbf16, #tpu.memory_space<vmem>>, vector<4x16x16x128xbf16>
    tpu.vector_store %arg8[%c0_39, %c0_40, %c0_41, %c0_42], %70 {strides = array<i32>} : memref<4x16x16x128xbf16, #tpu.memory_space<vmem>>, vector<4x16x16x128xbf16>,
    return
  }
  func.func @transform_0(%arg0: i32) -> (i32, i32, i32, i32) {
    %c0_i32 = arith.constant 0 : i32
    %c0_i32_0 = arith.constant 0 : i32
    %c0_i32_1 = arith.constant 0 : i32
    %c0_i32_2 = arith.constant 0 : i32
    return %arg0, %c0_i32, %c0_i32_0, %c0_i32_1 : i32, i32, i32, i32
  }
  func.func @transform_1(%arg0: i32) -> (i32, i32) {
    %c0_i32 = arith.constant 0 : i32
    %c0_i32_0 = arith.constant 0 : i32
    %c0_i32_1 = arith.constant 0 : i32
    return %c0_i32, %c0_i32_0 : i32, i32
  }
  func.func @transform_2(%arg0: i32) -> (i32, i32) {
    %c0_i32 = arith.constant 0 : i32
    %c0_i32_0 = arith.constant 0 : i32
    %c0_i32_1 = arith.constant 0 : i32
    return %c0_i32, %c0_i32_0 : i32, i32
  }
  func.func @transform_3(%arg0: i32) -> (i32, i32, i32) {
    %c0_i32 = arith.constant 0 : i32
    %c0_i32_0 = arith.constant 0 : i32
    %c0_i32_1 = arith.constant 0 : i32
    %c0_i32_2 = arith.constant 0 : i32
    return %c0_i32, %c0_i32_0, %c0_i32_1 : i32, i32, i32
  }
  func.func @transform_4(%arg0: i32) -> (i32, i32) {
    %c0_i32 = arith.constant 0 : i32
    %c0_i32_0 = arith.constant 0 : i32
    %c0_i32_1 = arith.constant 0 : i32
    return %c0_i32, %c0_i32_0 : i32, i32
  }
  func.func @transform_5(%arg0: i32) -> (i32, i32) {
    %c0_i32 = arith.constant 0 : i32
    %c0_i32_0 = arith.constant 0 : i32
    %c0_i32_1 = arith.constant 0 : i32
    return %c0_i32, %c0_i32_0 : i32, i32
  }
  func.func @transform_6(%arg0: i32) -> (i32, i32) {
    %c0_i32 = arith.constant 0 : i32
    %c0_i32_0 = arith.constant 0 : i32
    %c0_i32_1 = arith.constant 0 : i32
    return %c0_i32, %c0_i32_0 : i32, i32
  }
  func.func @transform_7(%arg0: i32) -> (i32, i32, i32, i32) {
    %c0_i32 = arith.constant 0 : i32
    %c0_i32_0 = arith.constant 0 : i32
    %c0_i32_1 = arith.constant 0 : i32
    %c0_i32_2 = arith.constant 0 : i32
    return %arg0, %c0_i32, %c0_i32_0, %c0_i32_1 : i32, i32, i32, i32
  }
}

</mosaic_0001>

<llo_original>
// kernel: tpu_custom_call.1
$region0: #{tpu_custom_call.1}
  #allocation0 [shape = 'u32[]', space=smem, size = 0x4, offset = 0x4, fixed_abs, tag = 'smem constant byte address 0x4 - core index']
  #allocation1 [shape = 'u32[144,128]{1,0:T(1,128)}', space=vmem, size = 0x12000, scoped, tag = 'internal scratch']
  %s0 = inlined_call_operand.hbm [shape: bf16[4,16,16,128], index: 0, kind: input, shape index: {}]
  %s1 = inlined_call_operand.hbm [shape: bf16[128,128], index: 1, kind: input, shape index: {}]
  %s2 = inlined_call_operand.vmem [shape: f32[1,128], index: 2, kind: input, shape index: {}]
  %s3 = inlined_call_operand.hbm [shape: bf16[3,384,128], index: 3, kind: input, shape index: {}]
  %s4 = inlined_call_operand.vmem [shape: f32[1,128], index: 4, kind: input, shape index: {}]
  %s5 = inlined_call_operand.hbm [shape: bf16[128,128], index: 5, kind: input, shape index: {}]
  %s6 = inlined_call_operand.vmem [shape: f32[1,128], index: 6, kind: input, shape index: {}]
  %s7 = inlined_call_operand.hbm [shape: bf16[4,16,16,128], index: 7, kind: output, shape index: {}]
  %s8 = sld [smem:[#allocation0]]
  $region54: #{tpu_custom_call.1} parent=0
    _
  %s10 = ssub.s32 1, %s8
  %s11 = scalar_select 0, %s10, %s8
  $region1: #{tpu_custom_call.1} parent=0
    #allocation2 [shape = 'u8[262144]{0}', space=vmem, size = 0x40000, scoped, tag = 'input window, operand 0, single buffered']
    #allocation3 [shape = 's32[1]{0}', space=sflag, size = 0x4, scoped, tag = 'scoped memory for tpu_custom_call.1']
    #allocation4 [shape = 's32[1]{0}', space=sflag, size = 0x4, scoped, tag = 'scoped memory for tpu_custom_call.1']
    #allocation5 [shape = 'u8[32768]{0}', space=vmem, size = 0x8000, scoped, tag = 'input window, operand 1, single buffered']
    #allocation6 [shape = 's32[1]{0}', space=sflag, size = 0x4, scoped, tag = 'scoped memory for tpu_custom_call.1']
    #allocation7 [shape = 'u8[294912]{0}', space=vmem, size = 0x48000, scoped, tag = 'input window, operand 3, single buffered']
    #allocation8 [shape = 'u8[32768]{0}', space=vmem, size = 0x8000, scoped, tag = 'input window, operand 5, single buffered']
    #allocation9 [shape = 's32[1]{0}', space=sflag, size = 0x4, scoped, tag = 'scoped memory for tpu_custom_call.1']
    #allocation10 [shape = 'u8[262144]{0}', space=vmem, size = 0x40000, scoped, tag = 'output window, operand 0, single buffered']
    %12 = vsyncpa [#allocation3], 0
    %13 = vsyncpa [#allocation6], 0
    %14 = vsyncpa [#allocation9], 0
    %15 = vsyncpa [#allocation4], 0
    // Predicated region
    $region2: #{tpu_custom_call.1} parent=1 // pred_check
      _
    $region3: #{tpu_custom_call.1} parent=1 // pred_check_branch
      %17 = sbr.rel (0) target = $region5
    $region4: #{tpu_custom_call.1} parent=1 // pred_region
      %s19 = ssub.s32 8192, 8192
      %20 = vsyncadd [#allocation3], %s19
      %s21 = sshll.u32 [#allocation2], 4
      %s22 = int_to_ptr.vmem [resolvable:$true] %s21
      %27 = dma.hbm_to_vmem [thread:$0]  %s0, 8192, %s22, [#allocation3], 64, 64, 4
    $region5: #{tpu_custom_call.1} parent=1 // pred_fallthru
      _
    // Predicated region
    $region6: #{tpu_custom_call.1} parent=1 // pred_check
      _
    $region7: #{tpu_custom_call.1} parent=1 // pred_check_branch
      %29 = sbr.rel (0) target = $region9
    $region8: #{tpu_custom_call.1} parent=1 // pred_region
      %s31 = ssub.s32 1024, 1024
      %32 = vsyncadd [#allocation6], %s31
      %s33 = sshll.u32 [#allocation5], 4
      %s34 = int_to_ptr.vmem [resolvable:$true] %s33
      %39 = dma.hbm_to_vmem [thread:$0]  %s1, 1024, %s34, [#allocation6], 64, 64, 4
    $region9: #{tpu_custom_call.1} parent=1 // pred_fallthru
      _
    // Predicated region
    $region10: #{tpu_custom_call.1} parent=1 // pred_check
      _
    $region11: #{tpu_custom_call.1} parent=1 // pred_check_branch
      %41 = sbr.rel (0) target = $region13
    $region12: #{tpu_custom_call.1} parent=1 // pred_region
      _
    $region13: #{tpu_custom_call.1} parent=1 // pred_fallthru
      _
    // Predicated region
    $region14: #{tpu_custom_call.1} parent=1 // pred_check
      _
    $region15: #{tpu_custom_call.1} parent=1 // pred_check_branch
      %43 = sbr.rel (0) target = $region17
    $region16: #{tpu_custom_call.1} parent=1 // pred_region
      %s45 = ssub.s32 9216, 9216
      %46 = vsyncadd [#allocation6], %s45
      %s47 = sshll.u32 [#allocation7], 4
      %s48 = int_to_ptr.vmem [resolvable:$true] %s47
      %53 = dma.hbm_to_vmem [thread:$0]  %s3, 9216, %s48, [#allocation6], 64, 64, 4
    $region17: #{tpu_custom_call.1} parent=1 // pred_fallthru
      _
    // Predicated region
    $region18: #{tpu_custom_call.1} parent=1 // pred_check
      _
    $region19: #{tpu_custom_call.1} parent=1 // pred_check_branch
      %55 = sbr.rel (0) target = $region21
    $region20: #{tpu_custom_call.1} parent=1 // pred_region
      _
    $region21: #{tpu_custom_call.1} parent=1 // pred_fallthru
      _
    // Predicated region
    $region22: #{tpu_custom_call.1} parent=1 // pred_check
      _
    $region23: #{tpu_custom_call.1} parent=1 // pred_check_branch
      %57 = sbr.rel (0) target = $region25
    $region24: #{tpu_custom_call.1} parent=1 // pred_region
      %s59 = ssub.s32 1024, 1024
      %60 = vsyncadd [#allocation9], %s59
      %s61 = sshll.u32 [#allocation8], 4
      %s62 = int_to_ptr.vmem [resolvable:$true] %s61
      %67 = dma.hbm_to_vmem [thread:$0]  %s5, 1024, %s62, [#allocation9], 64, 64, 4
    $region25: #{tpu_custom_call.1} parent=1 // pred_fallthru
      _
    // Predicated region
    $region26: #{tpu_custom_call.1} parent=1 // pred_check
      _
    $region27: #{tpu_custom_call.1} parent=1 // pred_check_branch
      %69 = sbr.rel (0) target = $region29
    $region28: #{tpu_custom_call.1} parent=1 // pred_region
      _
    $region29: #{tpu_custom_call.1} parent=1 // pred_fallthru
      _
    // Predicated region
    $region30: #{tpu_custom_call.1} parent=1 // pred_check
      _
    $region31: #{tpu_custom_call.1} parent=1 // pred_check_branch
      %71 = sbr.rel (0) target = $region33
    $region32: #{tpu_custom_call.1} parent=1 // pred_region
      %72 = dma.done [#allocation3], 8192
    $region33: #{tpu_custom_call.1} parent=1 // pred_fallthru
      _
    // Predicated region
    $region34: #{tpu_custom_call.1} parent=1 // pred_check
      _
    $region35: #{tpu_custom_call.1} parent=1 // pred_check_branch
      %74 = sbr.rel (0) target = $region37
    $region36: #{tpu_custom_call.1} parent=1 // pred_region
      %75 = dma.done [#allocation6], 1024
    $region37: #{tpu_custom_call.1} parent=1 // pred_fallthru
      _
    // Predicated region
    $region38: #{tpu_custom_call.1} parent=1 // pred_check
      _
    $region39: #{tpu_custom_call.1} parent=1 // pred_check_branch
      %77 = sbr.rel (0) target = $region41
    $region40: #{tpu_custom_call.1} parent=1 // pred_region
      %78 = dma.done [#allocation6], 9216
    $region41: #{tpu_custom_call.1} parent=1 // pred_fallthru
      _
    // Predicated region
    $region42: #{tpu_custom_call.1} parent=1 // pred_check
      _
    $region43: #{tpu_custom_call.1} parent=1 // pred_check_branch
      %80 = sbr.rel (0) target = $region45
    $region44: #{tpu_custom_call.1} parent=1 // pred_region
      %81 = dma.done [#allocation9], 1024
    $region45: #{tpu_custom_call.1} parent=1 // pred_fallthru
      _
    %v83 = vld [vmem:[#allocation2] sm:$0xf]
    %v84 = vld [vmem:[#allocation2 + $0x4] sm:$0xf]
    %v85 = vld [vmem:[#allocation2 + $0x8] sm:$0xf]
    %v86 = vld [vmem:[#allocation2 + $0xc] sm:$0xf]
    %v87 = vld [vmem:[#allocation2 + $0x10] sm:$0xf]
    %v88 = vld [vmem:[#allocation2 + $0x14] sm:$0xf]
    %v89 = vld [vmem:[#allocation2 + $0x18] sm:$0xf]
    %v90 = vld [vmem:[#allocation2 + $0x1c] sm:$0xf]
    %v91 = vld [vmem:[#allocation2 + $0x20] sm:$0xf]
    %v92 = vld [vmem:[#allocation2 + $0x24] sm:$0xf]
    %v93 = vld [vmem:[#allocation2 + $0x28] sm:$0xf]
    %v94 = vld [vmem:[#allocation2 + $0x2c] sm:$0xf]
    %v95 = vld [vmem:[#allocation2 + $0x30] sm:$0xf]
    %v96 = vld [vmem:[#allocation2 + $0x34] sm:$0xf]
    %v97 = vld [vmem:[#allocation2 + $0x38] sm:$0xf]
    %v98 = vld [vmem:[#allocation2 + $0x3c] sm:$0xf]
    %v99 = vld [vmem:[#allocation2 + $0x40] sm:$0xf]
    %v100 = vld [vmem:[#allocation2 + $0x44] sm:$0xf]
    %v101 = vld [vmem:[#allocation2 + $0x48] sm:$0xf]
    %v102 = vld [vmem:[#allocation2 + $0x4c] sm:$0xf]
    %v103 = vld [vmem:[#allocation2 + $0x50] sm:$0xf]
    %v104 = vld [vmem:[#allocation2 + $0x54] sm:$0xf]
    %v105 = vld [vmem:[#allocation2 + $0x58] sm:$0xf]
    %v106 = vld [vmem:[#allocation2 + $0x5c] sm:$0xf]
    %v107 = vld [vmem:[#allocation2 + $0x60] sm:$0xf]
    %v108 = vld [vmem:[#allocation2 + $0x64] sm:$0xf]
    %v109 = vld [vmem:[#allocation2 + $0x68] sm:$0xf]
    %v110 = vld [vmem:[#allocation2 + $0x6c] sm:$0xf]
    %v111 = vld [vmem:[#allocation2 + $0x70] sm:$0xf]
    %v112 = vld [vmem:[#allocation2 + $0x74] sm:$0xf]
    %v113 = vld [vmem:[#allocation2 + $0x78] sm:$0xf]
    %v114 = vld [vmem:[#allocation2 + $0x7c] sm:$0xf]
    %v115 = vld [vmem:[#allocation2 + $0x80] sm:$0xf]
    %v116 = vld [vmem:[#allocation2 + $0x84] sm:$0xf]
    %v117 = vld [vmem:[#allocation2 + $0x88] sm:$0xf]
    %v118 = vld [vmem:[#allocation2 + $0x8c] sm:$0xf]
    %v119 = vld [vmem:[#allocation2 + $0x90] sm:$0xf]
    %v120 = vld [vmem:[#allocation2 + $0x94] sm:$0xf]
    %v121 = vld [vmem:[#allocation2 + $0x98] sm:$0xf]
    %v122 = vld [vmem:[#allocation2 + $0x9c] sm:$0xf]
    %v123 = vld [vmem:[#allocation2 + $0xa0] sm:$0xf]
    %v124 = vld [vmem:[#allocation2 + $0xa4] sm:$0xf]
    %v125 = vld [vmem:[#allocation2 + $0xa8] sm:$0xf]
    %v126 = vld [vmem:[#allocation2 + $0xac] sm:$0xf]
    %v127 = vld [vmem:[#allocation2 + $0xb0] sm:$0xf]
    %v128 = vld [vmem:[#allocation2 + $0xb4] sm:$0xf]
    %v129 = vld [vmem:[#allocation2 + $0xb8] sm:$0xf]
    %v130 = vld [vmem:[#allocation2 + $0xbc] sm:$0xf]
    %v131 = vld [vmem:[#allocation2 + $0xc0] sm:$0xf]
    %v132 = vld [vmem:[#allocation2 + $0xc4] sm:$0xf]
    %v133 = vld [vmem:[#allocation2 + $0xc8] sm:$0xf]
    %v134 = vld [vmem:[#allocation2 + $0xcc] sm:$0xf]
    %v135 = vld [vmem:[#allocation2 + $0xd0] sm:$0xf]
    %v136 = vld [vmem:[#allocation2 + $0xd4] sm:$0xf]
    %v137 = vld [vmem:[#allocation2 + $0xd8] sm:$0xf]
    %v138 = vld [vmem:[#allocation2 + $0xdc] sm:$0xf]
    %v139 = vld [vmem:[#allocation2 + $0xe0] sm:$0xf]
    %v140 = vld [vmem:[#allocation2 + $0xe4] sm:$0xf]
    %v141 = vld [vmem:[#allocation2 + $0xe8] sm:$0xf]
    %v142 = vld [vmem:[#allocation2 + $0xec] sm:$0xf]
    %v143 = vld [vmem:[#allocation2 + $0xf0] sm:$0xf]
    %v144 = vld [vmem:[#allocation2 + $0xf4] sm:$0xf]
    %v145 = vld [vmem:[#allocation2 + $0xf8] sm:$0xf]
    %v146 = vld [vmem:[#allocation2 + $0xfc] sm:$0xf]
    %v147 = vld [vmem:[#allocation2 + $0x100] sm:$0xf]
    %v148 = vld [vmem:[#allocation2 + $0x104] sm:$0xf]
    %v149 = vld [vmem:[#allocation2 + $0x108] sm:$0xf]
    %v150 = vld [vmem:[#allocation2 + $0x10c] sm:$0xf]
    %v151 = vld [vmem:[#allocation2 + $0x110] sm:$0xf]
    %v152 = vld [vmem:[#allocation2 + $0x114] sm:$0xf]
    %v153 = vld [vmem:[#allocation2 + $0x118] sm:$0xf]
    %v154 = vld [vmem:[#allocation2 + $0x11c] sm:$0xf]
    %v155 = vld [vmem:[#allocation2 + $0x120] sm:$0xf]
    %v156 = vld [vmem:[#allocation2 + $0x124] sm:$0xf]
    %v157 = vld [vmem:[#allocation2 + $0x128] sm:$0xf]
    %v158 = vld [vmem:[#allocation2 + $0x12c] sm:$0xf]
    %v159 = vld [vmem:[#allocation2 + $0x130] sm:$0xf]
    %v160 = vld [vmem:[#allocation2 + $0x134] sm:$0xf]
    %v161 = vld [vmem:[#allocation2 + $0x138] sm:$0xf]
    %v162 = vld [vmem:[#allocation2 + $0x13c] sm:$0xf]
    %v163 = vld [vmem:[#allocation2 + $0x140] sm:$0xf]
    %v164 = vld [vmem:[#allocation2 + $0x144] sm:$0xf]
    %v165 = vld [vmem:[#allocation2 + $0x148] sm:$0xf]
    %v166 = vld [vmem:[#allocation2 + $0x14c] sm:$0xf]
    %v167 = vld [vmem:[#allocation2 + $0x150] sm:$0xf]
    %v168 = vld [vmem:[#allocation2 + $0x154] sm:$0xf]
    %v169 = vld [vmem:[#allocation2 + $0x158] sm:$0xf]
    %v170 = vld [vmem:[#allocation2 + $0x15c] sm:$0xf]
    %v171 = vld [vmem:[#allocation2 + $0x160] sm:$0xf]
    %v172 = vld [vmem:[#allocation2 + $0x164] sm:$0xf]
    %v173 = vld [vmem:[#allocation2 + $0x168] sm:$0xf]
    %v174 = vld [vmem:[#allocation2 + $0x16c] sm:$0xf]
    %v175 = vld [vmem:[#allocation2 + $0x170] sm:$0xf]
    %v176 = vld [vmem:[#allocation2 + $0x174] sm:$0xf]
    %v177 = vld [vmem:[#allocation2 + $0x178] sm:$0xf]
    %v178 = vld [vmem:[#allocation2 + $0x17c] sm:$0xf]
    %v179 = vld [vmem:[#allocation2 + $0x180] sm:$0xf]
    %v180 = vld [vmem:[#allocation2 + $0x184] sm:$0xf]
    %v181 = vld [vmem:[#allocation2 + $0x188] sm:$0xf]
    %v182 = vld [vmem:[#allocation2 + $0x18c] sm:$0xf]
    %v183 = vld [vmem:[#allocation2 + $0x190] sm:$0xf]
    %v184 = vld [vmem:[#allocation2 + $0x194] sm:$0xf]
    %v185 = vld [vmem:[#allocation2 + $0x198] sm:$0xf]
    %v186 = vld [vmem:[#allocation2 + $0x19c] sm:$0xf]
    %v187 = vld [vmem:[#allocation2 + $0x1a0] sm:$0xf]
    %v188 = vld [vmem:[#allocation2 + $0x1a4] sm:$0xf]
    %v189 = vld [vmem:[#allocation2 + $0x1a8] sm:$0xf]
    %v190 = vld [vmem:[#allocation2 + $0x1ac] sm:$0xf]
    %v191 = vld [vmem:[#allocation2 + $0x1b0] sm:$0xf]
    %v192 = vld [vmem:[#allocation2 + $0x1b4] sm:$0xf]
    %v193 = vld [vmem:[#allocation2 + $0x1b8] sm:$0xf]
    %v194 = vld [vmem:[#allocation2 + $0x1bc] sm:$0xf]
    %v195 = vld [vmem:[#allocation2 + $0x1c0] sm:$0xf]
    %v196 = vld [vmem:[#allocation2 + $0x1c4] sm:$0xf]
    %v197 = vld [vmem:[#allocation2 + $0x1c8] sm:$0xf]
    %v198 = vld [vmem:[#allocation2 + $0x1cc] sm:$0xf]
    %v199 = vld [vmem:[#allocation2 + $0x1d0] sm:$0xf]
    %v200 = vld [vmem:[#allocation2 + $0x1d4] sm:$0xf]
    %v201 = vld [vmem:[#allocation2 + $0x1d8] sm:$0xf]
    %v202 = vld [vmem:[#allocation2 + $0x1dc] sm:$0xf]
    %v203 = vld [vmem:[#allocation2 + $0x1e0] sm:$0xf]
    %v204 = vld [vmem:[#allocation2 + $0x1e4] sm:$0xf]
    %v205 = vld [vmem:[#allocation2 + $0x1e8] sm:$0xf]
    %v206 = vld [vmem:[#allocation2 + $0x1ec] sm:$0xf]
    %v207 = vld [vmem:[#allocation2 + $0x1f0] sm:$0xf]
    %v208 = vld [vmem:[#allocation2 + $0x1f4] sm:$0xf]
    %v209 = vld [vmem:[#allocation2 + $0x1f8] sm:$0xf]
    %v210 = vld [vmem:[#allocation2 + $0x1fc] sm:$0xf]
    %v211 = vld [vmem:[#allocation5] sm:$0xf]
    %v212 = vld [vmem:[#allocation5 + $0x4] sm:$0xf]
    %v213 = vld [vmem:[#allocation5 + $0x8] sm:$0xf]
    %v214 = vld [vmem:[#allocation5 + $0xc] sm:$0xf]
    %v215 = vld [vmem:[#allocation5 + $0x10] sm:$0xf]
    %v216 = vld [vmem:[#allocation5 + $0x14] sm:$0xf]
    %v217 = vld [vmem:[#allocation5 + $0x18] sm:$0xf]
    %v218 = vld [vmem:[#allocation5 + $0x1c] sm:$0xf]
    %v219 = vld [vmem:[#allocation5 + $0x20] sm:$0xf]
    %v220 = vld [vmem:[#allocation5 + $0x24] sm:$0xf]
    %v221 = vld [vmem:[#allocation5 + $0x28] sm:$0xf]
    %v222 = vld [vmem:[#allocation5 + $0x2c] sm:$0xf]
    %v223 = vld [vmem:[#allocation5 + $0x30] sm:$0xf]
    %v224 = vld [vmem:[#allocation5 + $0x34] sm:$0xf]
    %v225 = vld [vmem:[#allocation5 + $0x38] sm:$0xf]
    %v226 = vld [vmem:[#allocation5 + $0x3c] sm:$0xf]
    %v227 = vld [vmem:[%s2] sm:$0x1]
    %v229 = vlaneseq
    %v230 = vshrl.u32 %v229, 7
    %v231 = vsub.s32 0, %v230
    %v232 = vrot.slane %v227, %v231
    %v362 = vunpack.c.l.b16 %v83
    %v363 = vunpack.c.l.b16 %v84
    %v364 = vunpack.c.l.b16 %v85
    %v365 = vunpack.c.l.b16 %v86
    %v366 = vunpack.c.l.b16 %v87
    %v367 = vunpack.c.l.b16 %v88
    %v368 = vunpack.c.l.b16 %v89
    %v369 = vunpack.c.l.b16 %v90
    %v370 = vunpack.c.l.b16 %v91
    %v371 = vunpack.c.l.b16 %v92
    %v372 = vunpack.c.l.b16 %v93
    %v373 = vunpack.c.l.b16 %v94
    %v374 = vunpack.c.l.b16 %v95
    %v375 = vunpack.c.l.b16 %v96
    %v376 = vunpack.c.l.b16 %v97
    %v377 = vunpack.c.l.b16 %v98
    %v378 = vunpack.c.l.b16 %v99
    %v379 = vunpack.c.l.b16 %v100
    %v380 = vunpack.c.l.b16 %v101
    %v381 = vunpack.c.l.b16 %v102
    %v382 = vunpack.c.l.b16 %v103
    %v383 = vunpack.c.l.b16 %v104
    %v384 = vunpack.c.l.b16 %v105
    %v385 = vunpack.c.l.b16 %v106
    %v386 = vunpack.c.l.b16 %v107
    %v387 = vunpack.c.l.b16 %v108
    %v388 = vunpack.c.l.b16 %v109
    %v389 = vunpack.c.l.b16 %v110
    %v390 = vunpack.c.l.b16 %v111
    %v391 = vunpack.c.l.b16 %v112
    %v392 = vunpack.c.l.b16 %v113
    %v393 = vunpack.c.l.b16 %v114
    %v394 = vunpack.c.l.b16 %v115
    %v395 = vunpack.c.l.b16 %v116
    %v396 = vunpack.c.l.b16 %v117
    %v397 = vunpack.c.l.b16 %v118
    %v398 = vunpack.c.l.b16 %v119
    %v399 = vunpack.c.l.b16 %v120
    %v400 = vunpack.c.l.b16 %v121
    %v401 = vunpack.c.l.b16 %v122
    %v402 = vunpack.c.l.b16 %v123
    %v403 = vunpack.c.l.b16 %v124
    %v404 = vunpack.c.l.b16 %v125
    %v405 = vunpack.c.l.b16 %v126
    %v406 = vunpack.c.l.b16 %v127
    %v407 = vunpack.c.l.b16 %v128
    %v408 = vunpack.c.l.b16 %v129
    %v409 = vunpack.c.l.b16 %v130
    %v410 = vunpack.c.l.b16 %v131
    %v411 = vunpack.c.l.b16 %v132
    %v412 = vunpack.c.l.b16 %v133
    %v413 = vunpack.c.l.b16 %v134
    %v414 = vunpack.c.l.b16 %v135
    %v415 = vunpack.c.l.b16 %v136
    %v416 = vunpack.c.l.b16 %v137
    %v417 = vunpack.c.l.b16 %v138
    %v418 = vunpack.c.l.b16 %v139
    %v419 = vunpack.c.l.b16 %v140
    %v420 = vunpack.c.l.b16 %v141
    %v421 = vunpack.c.l.b16 %v142
    %v422 = vunpack.c.l.b16 %v143
    %v423 = vunpack.c.l.b16 %v144
    %v424 = vunpack.c.l.b16 %v145
    %v425 = vunpack.c.l.b16 %v146
    %v426 = vunpack.c.l.b16 %v147
    %v427 = vunpack.c.l.b16 %v148
    %v428 = vunpack.c.l.b16 %v149
    %v429 = vunpack.c.l.b16 %v150
    %v430 = vunpack.c.l.b16 %v151
    %v431 = vunpack.c.l.b16 %v152
    %v432 = vunpack.c.l.b16 %v153
    %v433 = vunpack.c.l.b16 %v154
    %v434 = vunpack.c.l.b16 %v155
    %v435 = vunpack.c.l.b16 %v156
    %v436 = vunpack.c.l.b16 %v157
    %v437 = vunpack.c.l.b16 %v158
    %v438 = vunpack.c.l.b16 %v159
    %v439 = vunpack.c.l.b16 %v160
    %v440 = vunpack.c.l.b16 %v161
    %v441 = vunpack.c.l.b16 %v162
    %v442 = vunpack.c.l.b16 %v163
    %v443 = vunpack.c.l.b16 %v164
    %v444 = vunpack.c.l.b16 %v165
    %v445 = vunpack.c.l.b16 %v166
    %v446 = vunpack.c.l.b16 %v167
    %v447 = vunpack.c.l.b16 %v168
    %v448 = vunpack.c.l.b16 %v169
    %v449 = vunpack.c.l.b16 %v170
    %v450 = vunpack.c.l.b16 %v171
    %v451 = vunpack.c.l.b16 %v172
    %v452 = vunpack.c.l.b16 %v173
    %v453 = vunpack.c.l.b16 %v174
    %v454 = vunpack.c.l.b16 %v175
    %v455 = vunpack.c.l.b16 %v176
    %v456 = vunpack.c.l.b16 %v177
    %v457 = vunpack.c.l.b16 %v178
    %v458 = vunpack.c.l.b16 %v179
    %v459 = vunpack.c.l.b16 %v180
    %v460 = vunpack.c.l.b16 %v181
    %v461 = vunpack.c.l.b16 %v182
    %v462 = vunpack.c.l.b16 %v183
    %v463 = vunpack.c.l.b16 %v184
    %v464 = vunpack.c.l.b16 %v185
    %v465 = vunpack.c.l.b16 %v186
    %v466 = vunpack.c.l.b16 %v187
    %v467 = vunpack.c.l.b16 %v188
    %v468 = vunpack.c.l.b16 %v189
    %v469 = vunpack.c.l.b16 %v190
    %v470 = vunpack.c.l.b16 %v191
    %v471 = vunpack.c.l.b16 %v192
    %v472 = vunpack.c.l.b16 %v193
    %v473 = vunpack.c.l.b16 %v194
    %v474 = vunpack.c.l.b16 %v195
    %v475 = vunpack.c.l.b16 %v196
    %v476 = vunpack.c.l.b16 %v197
    %v477 = vunpack.c.l.b16 %v198
    %v478 = vunpack.c.l.b16 %v199
    %v479 = vunpack.c.l.b16 %v200
    %v480 = vunpack.c.l.b16 %v201
    %v481 = vunpack.c.l.b16 %v202
    %v482 = vunpack.c.l.b16 %v203
    %v483 = vunpack.c.l.b16 %v204
    %v484 = vunpack.c.l.b16 %v205
    %v485 = vunpack.c.l.b16 %v206
    %v486 = vunpack.c.l.b16 %v207
    %v487 = vunpack.c.l.b16 %v208
    %v488 = vunpack.c.l.b16 %v209
    %v489 = vunpack.c.l.b16 %v210
    %v490 = vpack.c.b16 %v363, %v362
    %v491 = vpack.c.b16 %v365, %v364
    %v492 = vpack.c.b16 %v367, %v366
    %v493 = vpack.c.b16 %v369, %v368
    %v494 = vpack.c.b16 %v371, %v370
    %v495 = vpack.c.b16 %v373, %v372
    %v496 = vpack.c.b16 %v375, %v374
    %v497 = vpack.c.b16 %v377, %v376
    %v498 = vpack.c.b16 %v379, %v378
    %v499 = vpack.c.b16 %v381, %v380
    %v500 = vpack.c.b16 %v383, %v382
    %v501 = vpack.c.b16 %v385, %v384
    %v502 = vpack.c.b16 %v387, %v386
    %v503 = vpack.c.b16 %v389, %v388
    %v504 = vpack.c.b16 %v391, %v390
    %v505 = vpack.c.b16 %v393, %v392
    %v506 = vpack.c.b16 %v395, %v394
    %v507 = vpack.c.b16 %v397, %v396
    %v508 = vpack.c.b16 %v399, %v398
    %v509 = vpack.c.b16 %v401, %v400
    %v510 = vpack.c.b16 %v403, %v402
    %v511 = vpack.c.b16 %v405, %v404
    %v512 = vpack.c.b16 %v407, %v406
    %v513 = vpack.c.b16 %v409, %v408
    %v514 = vpack.c.b16 %v411, %v410
    %v515 = vpack.c.b16 %v413, %v412
    %v516 = vpack.c.b16 %v415, %v414
    %v517 = vpack.c.b16 %v417, %v416
    %v518 = vpack.c.b16 %v419, %v418
    %v519 = vpack.c.b16 %v421, %v420
    %v520 = vpack.c.b16 %v423, %v422
    %v521 = vpack.c.b16 %v425, %v424
    %v522 = vpack.c.b16 %v427, %v426
    %v523 = vpack.c.b16 %v429, %v428
    %v524 = vpack.c.b16 %v431, %v430
    %v525 = vpack.c.b16 %v433, %v432
    %v526 = vpack.c.b16 %v435, %v434
    %v527 = vpack.c.b16 %v437, %v436
    %v528 = vpack.c.b16 %v439, %v438
    %v529 = vpack.c.b16 %v441, %v440
    %v530 = vpack.c.b16 %v443, %v442
    %v531 = vpack.c.b16 %v445, %v444
    %v532 = vpack.c.b16 %v447, %v446
    %v533 = vpack.c.b16 %v449, %v448
    %v534 = vpack.c.b16 %v451, %v450
    %v535 = vpack.c.b16 %v453, %v452
    %v536 = vpack.c.b16 %v455, %v454
    %v537 = vpack.c.b16 %v457, %v456
    %v538 = vpack.c.b16 %v459, %v458
    %v539 = vpack.c.b16 %v461, %v460
    %v540 = vpack.c.b16 %v463, %v462
    %v541 = vpack.c.b16 %v465, %v464
    %v542 = vpack.c.b16 %v467, %v466
    %v543 = vpack.c.b16 %v469, %v468
    %v544 = vpack.c.b16 %v471, %v470
    %v545 = vpack.c.b16 %v473, %v472
    %v546 = vpack.c.b16 %v475, %v474
    %v547 = vpack.c.b16 %v477, %v476
    %v548 = vpack.c.b16 %v479, %v478
    %v549 = vpack.c.b16 %v481, %v480
    %v550 = vpack.c.b16 %v483, %v482
    %v551 = vpack.c.b16 %v485, %v484
    %v552 = vpack.c.b16 %v487, %v486
    %v553 = vpack.c.b16 %v489, %v488
    %v634 = vunpack.c.l.b16 %v211
    %v635 = vunpack.c.l.b16 %v212
    %v636 = vunpack.c.l.b16 %v213
    %v637 = vunpack.c.l.b16 %v214
    %v638 = vunpack.c.l.b16 %v215
    %v639 = vunpack.c.l.b16 %v216
    %v640 = vunpack.c.l.b16 %v217
    %v641 = vunpack.c.l.b16 %v218
    %v642 = vunpack.c.l.b16 %v219
    %v643 = vunpack.c.l.b16 %v220
    %v644 = vunpack.c.l.b16 %v221
    %v645 = vunpack.c.l.b16 %v222
    %v646 = vunpack.c.l.b16 %v223
    %v647 = vunpack.c.l.b16 %v224
    %v648 = vunpack.c.l.b16 %v225
    %v649 = vunpack.c.l.b16 %v226
    %v650 = vpack.c.b16 %v635, %v634
    %v651 = vpack.c.b16 %v637, %v636
    %v652 = vpack.c.b16 %v639, %v638
    %v653 = vpack.c.b16 %v641, %v640
    %v654 = vpack.c.b16 %v643, %v642
    %v655 = vpack.c.b16 %v645, %v644
    %v656 = vpack.c.b16 %v647, %v646
    %v657 = vpack.c.b16 %v649, %v648
    %666 = vmatprep.subr.bf16.mxu0 0
    %667 = vmatpush1.bf16.msra.mxu0 %v657
    %668 = vmatprep.subr.bf16.mxu0 0
    %669 = vmatpush1.bf16.msra.mxu0 %v656
    %670 = vmatprep.subr.bf16.mxu0 0
    %671 = vmatpush1.bf16.msra.mxu0 %v655
    %672 = vmatprep.subr.bf16.mxu0 0
    %673 = vmatpush1.bf16.msra.mxu0 %v654
    %674 = vmatprep.subr.bf16.mxu0 0
    %675 = vmatpush1.bf16.msra.mxu0 %v653
    %676 = vmatprep.subr.bf16.mxu0 0
    %677 = vmatpush1.bf16.msra.mxu0 %v652
    %678 = vmatprep.subr.bf16.mxu0 0
    %679 = vmatpush1.bf16.msra.mxu0 %v651
    %680 = vmatprep.subr.bf16.mxu0 0
    %681 = vmatpush1.bf16.msra.mxu0 %v650
    %682 = vmatprep.subr.bf16.mxu0 0
    %683 = vmatpush2.bf16.msra.mxu0 0
    %684 = vmatprep.subr.bf16.mxu0 0
    %685 = vmatpush2.bf16.msra.mxu0 0
    %686 = vmatprep.subr.bf16.mxu0 0
    %687 = vmatpush2.bf16.msra.mxu0 0
    %688 = vmatprep.subr.bf16.mxu0 0
    %689 = vmatpush2.bf16.msra.mxu0 0
    %690 = vmatprep.subr.bf16.mxu0 0
    %691 = vmatpush2.bf16.msra.mxu0 0
    %692 = vmatprep.subr.bf16.mxu0 0
    %693 = vmatpush2.bf16.msra.mxu0 0
    %694 = vmatprep.subr.bf16.mxu0 0
    %695 = vmatpush2.bf16.msra.mxu0 0
    %696 = vmatprep.subr.bf16.mxu0 0
    %697 = vmatpush2.bf16.msra.mxu0 0
    %698 = vmatprep.mubr.bf16.mxu0 0
    %699 = vmatmul.mubr.bf16.gmra.mxu0 %v490
    %v700 = vpop.f32.mrf.mxu0
    %v701 = vadd.f32 %v232, %v700
    %v702 = vpop.f32.mrf.mxu0
    %v703 = vpop.f32.mrf.mxu0
    %v704 = vadd.f32 %v232, %v703
    %v705 = vpop.f32.mrf.mxu0
    %706 = vmatprep.mubr.bf16.mxu0 0
    %707 = vmatmul.mubr.bf16.gmra.mxu0 %v491
    %v708 = vpop.f32.mrf.mxu0
    %v709 = vadd.f32 %v232, %v708
    %v710 = vpop.f32.mrf.mxu0
    %v711 = vpop.f32.mrf.mxu0
    %v712 = vadd.f32 %v232, %v711
    %v713 = vpop.f32.mrf.mxu0
    %714 = vmatprep.mubr.bf16.mxu0 0
    %715 = vmatmul.mubr.bf16.gmra.mxu0 %v492
    %v716 = vpop.f32.mrf.mxu0
    %v717 = vadd.f32 %v232, %v716
    %v718 = vpop.f32.mrf.mxu0
    %v719 = vpop.f32.mrf.mxu0
    %v720 = vadd.f32 %v232, %v719
    %v721 = vpop.f32.mrf.mxu0
    %722 = vmatprep.mubr.bf16.mxu0 0
    %723 = vmatmul.mubr.bf16.gmra.mxu0 %v493
    %v724 = vpop.f32.mrf.mxu0
    %v725 = vadd.f32 %v232, %v724
    %v726 = vpop.f32.mrf.mxu0
    %v727 = vpop.f32.mrf.mxu0
    %v728 = vadd.f32 %v232, %v727
    %v729 = vpop.f32.mrf.mxu0
    %730 = vmatprep.mubr.bf16.mxu0 0
    %731 = vmatmul.mubr.bf16.gmra.mxu0 %v494
    %v732 = vpop.f32.mrf.mxu0
    %v733 = vadd.f32 %v232, %v732
    %v734 = vpop.f32.mrf.mxu0
    %v735 = vpop.f32.mrf.mxu0
    %v736 = vadd.f32 %v232, %v735
    %v737 = vpop.f32.mrf.mxu0
    %738 = vmatprep.mubr.bf16.mxu0 0
    %739 = vmatmul.mubr.bf16.gmra.mxu0 %v495
    %v740 = vpop.f32.mrf.mxu0
    %v741 = vadd.f32 %v232, %v740
    %v742 = vpop.f32.mrf.mxu0
    %v743 = vpop.f32.mrf.mxu0
    %v744 = vadd.f32 %v232, %v743
    %v745 = vpop.f32.mrf.mxu0
    %746 = vmatprep.mubr.bf16.mxu0 0
    %747 = vmatmul.mubr.bf16.gmra.mxu0 %v496
    %v748 = vpop.f32.mrf.mxu0
    %v749 = vadd.f32 %v232, %v748
    %v750 = vpop.f32.mrf.mxu0
    %v751 = vpop.f32.mrf.mxu0
    %v752 = vadd.f32 %v232, %v751
    %v753 = vpop.f32.mrf.mxu0
    %754 = vmatprep.mubr.bf16.mxu0 0
    %755 = vmatmul.mubr.bf16.gmra.mxu0 %v497
    %v756 = vpop.f32.mrf.mxu0
    %v757 = vadd.f32 %v232, %v756
    %v758 = vpop.f32.mrf.mxu0
    %v759 = vpop.f32.mrf.mxu0
    %v760 = vadd.f32 %v232, %v759
    %v761 = vpop.f32.mrf.mxu0
    %762 = vmatprep.mubr.bf16.mxu0 0
    %763 = vmatmul.mubr.bf16.gmra.mxu0 %v498
    %v764 = vpop.f32.mrf.mxu0
    %v765 = vadd.f32 %v232, %v764
    %v766 = vpop.f32.mrf.mxu0
    %v767 = vpop.f32.mrf.mxu0
    %v768 = vadd.f32 %v232, %v767
    %v769 = vpop.f32.mrf.mxu0
    %770 = vmatprep.mubr.bf16.mxu0 0
    %771 = vmatmul.mubr.bf16.gmra.mxu0 %v499
    %v772 = vpop.f32.mrf.mxu0
    %v773 = vadd.f32 %v232, %v772
    %v774 = vpop.f32.mrf.mxu0
    %v775 = vpop.f32.mrf.mxu0
    %v776 = vadd.f32 %v232, %v775
    %v777 = vpop.f32.mrf.mxu0
    %778 = vmatprep.mubr.bf16.mxu0 0
    %779 = vmatmul.mubr.bf16.gmra.mxu0 %v500
    %v780 = vpop.f32.mrf.mxu0
    %v781 = vadd.f32 %v232, %v780
    %v782 = vpop.f32.mrf.mxu0
    %v783 = vpop.f32.mrf.mxu0
    %v784 = vadd.f32 %v232, %v783
    %v785 = vpop.f32.mrf.mxu0
    %786 = vmatprep.mubr.bf16.mxu0 0
    %787 = vmatmul.mubr.bf16.gmra.mxu0 %v501
    %v788 = vpop.f32.mrf.mxu0
    %v789 = vadd.f32 %v232, %v788
    %v790 = vpop.f32.mrf.mxu0
    %v791 = vpop.f32.mrf.mxu0
    %v792 = vadd.f32 %v232, %v791
    %v793 = vpop.f32.mrf.mxu0
    %794 = vmatprep.mubr.bf16.mxu0 0
    %795 = vmatmul.mubr.bf16.gmra.mxu0 %v502
    %v796 = vpop.f32.mrf.mxu0
    %v797 = vadd.f32 %v232, %v796
    %v798 = vpop.f32.mrf.mxu0
    %v799 = vpop.f32.mrf.mxu0
    %v800 = vadd.f32 %v232, %v799
    %v801 = vpop.f32.mrf.mxu0
    %802 = vmatprep.mubr.bf16.mxu0 0
    %803 = vmatmul.mubr.bf16.gmra.mxu0 %v503
    %v804 = vpop.f32.mrf.mxu0
    %v805 = vadd.f32 %v232, %v804
    %v806 = vpop.f32.mrf.mxu0
    %v807 = vpop.f32.mrf.mxu0
    %v808 = vadd.f32 %v232, %v807
    %v809 = vpop.f32.mrf.mxu0
    %810 = vmatprep.mubr.bf16.mxu0 0
    %811 = vmatmul.mubr.bf16.gmra.mxu0 %v504
    %v812 = vpop.f32.mrf.mxu0
    %v813 = vadd.f32 %v232, %v812
    %v814 = vpop.f32.mrf.mxu0
    %v815 = vpop.f32.mrf.mxu0
    %v816 = vadd.f32 %v232, %v815
    %v817 = vpop.f32.mrf.mxu0
    %818 = vmatprep.mubr.bf16.mxu0 0
    %819 = vmatmul.mubr.bf16.gmra.mxu0 %v505
    %v820 = vpop.f32.mrf.mxu0
    %v821 = vadd.f32 %v232, %v820
    %v822 = vpop.f32.mrf.mxu0
    %v823 = vpop.f32.mrf.mxu0
    %v824 = vadd.f32 %v232, %v823
    %v825 = vpop.f32.mrf.mxu0
    %826 = vmatprep.mubr.bf16.mxu0 0
    %827 = vmatmul.mubr.bf16.gmra.mxu0 %v506
    %v828 = vpop.f32.mrf.mxu0
    %v829 = vadd.f32 %v232, %v828
    %v830 = vpop.f32.mrf.mxu0
    %v831 = vpop.f32.mrf.mxu0
    %v832 = vadd.f32 %v232, %v831
    %v833 = vpop.f32.mrf.mxu0
    %834 = vmatprep.mubr.bf16.mxu0 0
    %835 = vmatmul.mubr.bf16.gmra.mxu0 %v507
    %v836 = vpop.f32.mrf.mxu0
    %v837 = vadd.f32 %v232, %v836
    %v838 = vpop.f32.mrf.mxu0
    %v839 = vpop.f32.mrf.mxu0
    %v840 = vadd.f32 %v232, %v839
    %v841 = vpop.f32.mrf.mxu0
    %842 = vmatprep.mubr.bf16.mxu0 0
    %843 = vmatmul.mubr.bf16.gmra.mxu0 %v508
    %v844 = vpop.f32.mrf.mxu0
    %v845 = vadd.f32 %v232, %v844
    %v846 = vpop.f32.mrf.mxu0
    %v847 = vpop.f32.mrf.mxu0
    %v848 = vadd.f32 %v232, %v847
    %v849 = vpop.f32.mrf.mxu0
    %850 = vmatprep.mubr.bf16.mxu0 0
    %851 = vmatmul.mubr.bf16.gmra.mxu0 %v509
    %v852 = vpop.f32.mrf.mxu0
    %v853 = vadd.f32 %v232, %v852
    %v854 = vpop.f32.mrf.mxu0
    %v855 = vpop.f32.mrf.mxu0
    %v856 = vadd.f32 %v232, %v855
    %v857 = vpop.f32.mrf.mxu0
    %858 = vmatprep.mubr.bf16.mxu0 0
    %859 = vmatmul.mubr.bf16.gmra.mxu0 %v510
    %v860 = vpop.f32.mrf.mxu0
    %v861 = vadd.f32 %v232, %v860
    %v862 = vpop.f32.mrf.mxu0
    %v863 = vpop.f32.mrf.mxu0
    %v864 = vadd.f32 %v232, %v863
    %v865 = vpop.f32.mrf.mxu0
    %866 = vmatprep.mubr.bf16.mxu0 0
    %867 = vmatmul.mubr.bf16.gmra.mxu0 %v511
    %v868 = vpop.f32.mrf.mxu0
    %v869 = vadd.f32 %v232, %v868
    %v870 = vpop.f32.mrf.mxu0
    %v871 = vpop.f32.mrf.mxu0
    %v872 = vadd.f32 %v232, %v871
    %v873 = vpop.f32.mrf.mxu0
    %874 = vmatprep.mubr.bf16.mxu0 0
    %875 = vmatmul.mubr.bf16.gmra.mxu0 %v512
    %v876 = vpop.f32.mrf.mxu0
    %v877 = vadd.f32 %v232, %v876
    %v878 = vpop.f32.mrf.mxu0
    %v879 = vpop.f32.mrf.mxu0
    %v880 = vadd.f32 %v232, %v879
    %v881 = vpop.f32.mrf.mxu0
    %882 = vmatprep.mubr.bf16.mxu0 0
    %883 = vmatmul.mubr.bf16.gmra.mxu0 %v513
    %v884 = vpop.f32.mrf.mxu0
    %v885 = vadd.f32 %v232, %v884
    %v886 = vpop.f32.mrf.mxu0
    %v887 = vpop.f32.mrf.mxu0
    %v888 = vadd.f32 %v232, %v887
    %v889 = vpop.f32.mrf.mxu0
    %890 = vmatprep.mubr.bf16.mxu0 0
    %891 = vmatmul.mubr.bf16.gmra.mxu0 %v514
    %v892 = vpop.f32.mrf.mxu0
    %v893 = vadd.f32 %v232, %v892
    %v894 = vpop.f32.mrf.mxu0
    %v895 = vpop.f32.mrf.mxu0
    %v896 = vadd.f32 %v232, %v895
    %v897 = vpop.f32.mrf.mxu0
    %898 = vmatprep.mubr.bf16.mxu0 0
    %899 = vmatmul.mubr.bf16.gmra.mxu0 %v515
    %v900 = vpop.f32.mrf.mxu0
    %v901 = vadd.f32 %v232, %v900
    %v902 = vpop.f32.mrf.mxu0
    %v903 = vpop.f32.mrf.mxu0
    %v904 = vadd.f32 %v232, %v903
    %v905 = vpop.f32.mrf.mxu0
    %906 = vmatprep.mubr.bf16.mxu0 0
    %907 = vmatmul.mubr.bf16.gmra.mxu0 %v516
    %v908 = vpop.f32.mrf.mxu0
    %v909 = vadd.f32 %v232, %v908
    %v910 = vpop.f32.mrf.mxu0
    %v911 = vpop.f32.mrf.mxu0
    %v912 = vadd.f32 %v232, %v911
    %v913 = vpop.f32.mrf.mxu0
    %914 = vmatprep.mubr.bf16.mxu0 0
    %915 = vmatmul.mubr.bf16.gmra.mxu0 %v517
    %v916 = vpop.f32.mrf.mxu0
    %v917 = vadd.f32 %v232, %v916
    %v918 = vpop.f32.mrf.mxu0
    %v919 = vpop.f32.mrf.mxu0
    %v920 = vadd.f32 %v232, %v919
    %v921 = vpop.f32.mrf.mxu0
    %922 = vmatprep.mubr.bf16.mxu0 0
    %923 = vmatmul.mubr.bf16.gmra.mxu0 %v518
    %v924 = vpop.f32.mrf.mxu0
    %v925 = vadd.f32 %v232, %v924
    %v926 = vpop.f32.mrf.mxu0
    %v927 = vpop.f32.mrf.mxu0
    %v928 = vadd.f32 %v232, %v927
    %v929 = vpop.f32.mrf.mxu0
    %930 = vmatprep.mubr.bf16.mxu0 0
    %931 = vmatmul.mubr.bf16.gmra.mxu0 %v519
    %v932 = vpop.f32.mrf.mxu0
    %v933 = vadd.f32 %v232, %v932
    %v934 = vpop.f32.mrf.mxu0
    %v935 = vpop.f32.mrf.mxu0
    %v936 = vadd.f32 %v232, %v935
    %v937 = vpop.f32.mrf.mxu0
    %938 = vmatprep.mubr.bf16.mxu0 0
    %939 = vmatmul.mubr.bf16.gmra.mxu0 %v520
    %v940 = vpop.f32.mrf.mxu0
    %v941 = vadd.f32 %v232, %v940
    %v942 = vpop.f32.mrf.mxu0
    %v943 = vpop.f32.mrf.mxu0
    %v944 = vadd.f32 %v232, %v943
    %v945 = vpop.f32.mrf.mxu0
    %946 = vmatprep.mubr.bf16.mxu0 0
    %947 = vmatmul.mubr.bf16.gmra.mxu0 %v521
    %v948 = vpop.f32.mrf.mxu0
    %v949 = vadd.f32 %v232, %v948
    %v950 = vpop.f32.mrf.mxu0
    %v951 = vpop.f32.mrf.mxu0
    %v952 = vadd.f32 %v232, %v951
    %v953 = vpop.f32.mrf.mxu0
    %954 = vmatprep.mubr.bf16.mxu0 0
    %955 = vmatmul.mubr.bf16.gmra.mxu0 %v522
    %v956 = vpop.f32.mrf.mxu0
    %v957 = vadd.f32 %v232, %v956
    %v958 = vpop.f32.mrf.mxu0
    %v959 = vpop.f32.mrf.mxu0
    %v960 = vadd.f32 %v232, %v959
    %v961 = vpop.f32.mrf.mxu0
    %962 = vmatprep.mubr.bf16.mxu0 0
    %963 = vmatmul.mubr.bf16.gmra.mxu0 %v523
    %v964 = vpop.f32.mrf.mxu0
    %v965 = vadd.f32 %v232, %v964
    %v966 = vpop.f32.mrf.mxu0
    %v967 = vpop.f32.mrf.mxu0
    %v968 = vadd.f32 %v232, %v967
    %v969 = vpop.f32.mrf.mxu0
    %970 = vmatprep.mubr.bf16.mxu0 0
    %971 = vmatmul.mubr.bf16.gmra.mxu0 %v524
    %v972 = vpop.f32.mrf.mxu0
    %v973 = vadd.f32 %v232, %v972
    %v974 = vpop.f32.mrf.mxu0
    %v975 = vpop.f32.mrf.mxu0
    %v976 = vadd.f32 %v232, %v975
    %v977 = vpop.f32.mrf.mxu0
    %978 = vmatprep.mubr.bf16.mxu0 0
    %979 = vmatmul.mubr.bf16.gmra.mxu0 %v525
    %v980 = vpop.f32.mrf.mxu0
    %v981 = vadd.f32 %v232, %v980
    %v982 = vpop.f32.mrf.mxu0
    %v983 = vpop.f32.mrf.mxu0
    %v984 = vadd.f32 %v232, %v983
    %v985 = vpop.f32.mrf.mxu0
    %986 = vmatprep.mubr.bf16.mxu0 0
    %987 = vmatmul.mubr.bf16.gmra.mxu0 %v526
    %v988 = vpop.f32.mrf.mxu0
    %v989 = vadd.f32 %v232, %v988
    %v990 = vpop.f32.mrf.mxu0
    %v991 = vpop.f32.mrf.mxu0
    %v992 = vadd.f32 %v232, %v991
    %v993 = vpop.f32.mrf.mxu0
    %994 = vmatprep.mubr.bf16.mxu0 0
    %995 = vmatmul.mubr.bf16.gmra.mxu0 %v527
    %v996 = vpop.f32.mrf.mxu0
    %v997 = vadd.f32 %v232, %v996
    %v998 = vpop.f32.mrf.mxu0
    %v999 = vpop.f32.mrf.mxu0
    %v1000 = vadd.f32 %v232, %v999
    %v1001 = vpop.f32.mrf.mxu0
    %1002 = vmatprep.mubr.bf16.mxu0 0
    %1003 = vmatmul.mubr.bf16.gmra.mxu0 %v528
    %v1004 = vpop.f32.mrf.mxu0
    %v1005 = vadd.f32 %v232, %v1004
    %v1006 = vpop.f32.mrf.mxu0
    %v1007 = vpop.f32.mrf.mxu0
    %v1008 = vadd.f32 %v232, %v1007
    %v1009 = vpop.f32.mrf.mxu0
    %1010 = vmatprep.mubr.bf16.mxu0 0
    %1011 = vmatmul.mubr.bf16.gmra.mxu0 %v529
    %v1012 = vpop.f32.mrf.mxu0
    %v1013 = vadd.f32 %v232, %v1012
    %v1014 = vpop.f32.mrf.mxu0
    %v1015 = vpop.f32.mrf.mxu0
    %v1016 = vadd.f32 %v232, %v1015
    %v1017 = vpop.f32.mrf.mxu0
    %1018 = vmatprep.mubr.bf16.mxu0 0
    %1019 = vmatmul.mubr.bf16.gmra.mxu0 %v530
    %v1020 = vpop.f32.mrf.mxu0
    %v1021 = vadd.f32 %v232, %v1020
    %v1022 = vpop.f32.mrf.mxu0
    %v1023 = vpop.f32.mrf.mxu0
    %v1024 = vadd.f32 %v232, %v1023
    %v1025 = vpop.f32.mrf.mxu0
    %1026 = vmatprep.mubr.bf16.mxu0 0
    %1027 = vmatmul.mubr.bf16.gmra.mxu0 %v531
    %v1028 = vpop.f32.mrf.mxu0
    %v1029 = vadd.f32 %v232, %v1028
    %v1030 = vpop.f32.mrf.mxu0
    %v1031 = vpop.f32.mrf.mxu0
    %v1032 = vadd.f32 %v232, %v1031
    %v1033 = vpop.f32.mrf.mxu0
    %1034 = vmatprep.mubr.bf16.mxu0 0
    %1035 = vmatmul.mubr.bf16.gmra.mxu0 %v532
    %v1036 = vpop.f32.mrf.mxu0
    %v1037 = vadd.f32 %v232, %v1036
    %v1038 = vpop.f32.mrf.mxu0
    %v1039 = vpop.f32.mrf.mxu0
    %v1040 = vadd.f32 %v232, %v1039
    %v1041 = vpop.f32.mrf.mxu0
    %1042 = vmatprep.mubr.bf16.mxu0 0
    %1043 = vmatmul.mubr.bf16.gmra.mxu0 %v533
    %v1044 = vpop.f32.mrf.mxu0
    %v1045 = vadd.f32 %v232, %v1044
    %v1046 = vpop.f32.mrf.mxu0
    %v1047 = vpop.f32.mrf.mxu0
    %v1048 = vadd.f32 %v232, %v1047
    %v1049 = vpop.f32.mrf.mxu0
    %1050 = vmatprep.mubr.bf16.mxu0 0
    %1051 = vmatmul.mubr.bf16.gmra.mxu0 %v534
    %v1052 = vpop.f32.mrf.mxu0
    %v1053 = vadd.f32 %v232, %v1052
    %v1054 = vpop.f32.mrf.mxu0
    %v1055 = vpop.f32.mrf.mxu0
    %v1056 = vadd.f32 %v232, %v1055
    %v1057 = vpop.f32.mrf.mxu0
    %1058 = vmatprep.mubr.bf16.mxu0 0
    %1059 = vmatmul.mubr.bf16.gmra.mxu0 %v535
    %v1060 = vpop.f32.mrf.mxu0
    %v1061 = vadd.f32 %v232, %v1060
    %v1062 = vpop.f32.mrf.mxu0
    %v1063 = vpop.f32.mrf.mxu0
    %v1064 = vadd.f32 %v232, %v1063
    %v1065 = vpop.f32.mrf.mxu0
    %1066 = vmatprep.mubr.bf16.mxu0 0
    %1067 = vmatmul.mubr.bf16.gmra.mxu0 %v536
    %v1068 = vpop.f32.mrf.mxu0
    %v1069 = vadd.f32 %v232, %v1068
    %v1070 = vpop.f32.mrf.mxu0
    %v1071 = vpop.f32.mrf.mxu0
    %v1072 = vadd.f32 %v232, %v1071
    %v1073 = vpop.f32.mrf.mxu0
    %1074 = vmatprep.mubr.bf16.mxu0 0
    %1075 = vmatmul.mubr.bf16.gmra.mxu0 %v537
    %v1076 = vpop.f32.mrf.mxu0
    %v1077 = vadd.f32 %v232, %v1076
    %v1078 = vpop.f32.mrf.mxu0
    %v1079 = vpop.f32.mrf.mxu0
    %v1080 = vadd.f32 %v232, %v1079
    %v1081 = vpop.f32.mrf.mxu0
    %1082 = vmatprep.mubr.bf16.mxu0 0
    %1083 = vmatmul.mubr.bf16.gmra.mxu0 %v538
    %v1084 = vpop.f32.mrf.mxu0
    %v1085 = vadd.f32 %v232, %v1084
    %v1086 = vpop.f32.mrf.mxu0
    %v1087 = vpop.f32.mrf.mxu0
    %v1088 = vadd.f32 %v232, %v1087
    %v1089 = vpop.f32.mrf.mxu0
    %1090 = vmatprep.mubr.bf16.mxu0 0
    %1091 = vmatmul.mubr.bf16.gmra.mxu0 %v539
    %v1092 = vpop.f32.mrf.mxu0
    %v1093 = vadd.f32 %v232, %v1092
    %v1094 = vpop.f32.mrf.mxu0
    %v1095 = vpop.f32.mrf.mxu0
    %v1096 = vadd.f32 %v232, %v1095
    %v1097 = vpop.f32.mrf.mxu0
    %1098 = vmatprep.mubr.bf16.mxu0 0
    %1099 = vmatmul.mubr.bf16.gmra.mxu0 %v540
    %v1100 = vpop.f32.mrf.mxu0
    %v1101 = vadd.f32 %v232, %v1100
    %v1102 = vpop.f32.mrf.mxu0
    %v1103 = vpop.f32.mrf.mxu0
    %v1104 = vadd.f32 %v232, %v1103
    %v1105 = vpop.f32.mrf.mxu0
    %1106 = vmatprep.mubr.bf16.mxu0 0
    %1107 = vmatmul.mubr.bf16.gmra.mxu0 %v541
    %v1108 = vpop.f32.mrf.mxu0
    %v1109 = vadd.f32 %v232, %v1108
    %v1110 = vpop.f32.mrf.mxu0
    %v1111 = vpop.f32.mrf.mxu0
    %v1112 = vadd.f32 %v232, %v1111
    %v1113 = vpop.f32.mrf.mxu0
    %1114 = vmatprep.mubr.bf16.mxu0 0
    %1115 = vmatmul.mubr.bf16.gmra.mxu0 %v542
    %v1116 = vpop.f32.mrf.mxu0
    %v1117 = vadd.f32 %v232, %v1116
    %v1118 = vpop.f32.mrf.mxu0
    %v1119 = vpop.f32.mrf.mxu0
    %v1120 = vadd.f32 %v232, %v1119
    %v1121 = vpop.f32.mrf.mxu0
    %1122 = vmatprep.mubr.bf16.mxu0 0
    %1123 = vmatmul.mubr.bf16.gmra.mxu0 %v543
    %v1124 = vpop.f32.mrf.mxu0
    %v1125 = vadd.f32 %v232, %v1124
    %v1126 = vpop.f32.mrf.mxu0
    %v1127 = vpop.f32.mrf.mxu0
    %v1128 = vadd.f32 %v232, %v1127
    %v1129 = vpop.f32.mrf.mxu0
    %1130 = vmatprep.mubr.bf16.mxu0 0
    %1131 = vmatmul.mubr.bf16.gmra.mxu0 %v544
    %v1132 = vpop.f32.mrf.mxu0
    %v1133 = vadd.f32 %v232, %v1132
    %v1134 = vpop.f32.mrf.mxu0
    %v1135 = vpop.f32.mrf.mxu0
    %v1136 = vadd.f32 %v232, %v1135
    %v1137 = vpop.f32.mrf.mxu0
    %1138 = vmatprep.mubr.bf16.mxu0 0
    %1139 = vmatmul.mubr.bf16.gmra.mxu0 %v545
    %v1140 = vpop.f32.mrf.mxu0
    %v1141 = vadd.f32 %v232, %v1140
    %v1142 = vpop.f32.mrf.mxu0
    %v1143 = vpop.f32.mrf.mxu0
    %v1144 = vadd.f32 %v232, %v1143
    %v1145 = vpop.f32.mrf.mxu0
    %1146 = vmatprep.mubr.bf16.mxu0 0
    %1147 = vmatmul.mubr.bf16.gmra.mxu0 %v546
    %v1148 = vpop.f32.mrf.mxu0
    %v1149 = vadd.f32 %v232, %v1148
    %v1150 = vpop.f32.mrf.mxu0
    %v1151 = vpop.f32.mrf.mxu0
    %v1152 = vadd.f32 %v232, %v1151
    %v1153 = vpop.f32.mrf.mxu0
    %1154 = vmatprep.mubr.bf16.mxu0 0
    %1155 = vmatmul.mubr.bf16.gmra.mxu0 %v547
    %v1156 = vpop.f32.mrf.mxu0
    %v1157 = vadd.f32 %v232, %v1156
    %v1158 = vpop.f32.mrf.mxu0
    %v1159 = vpop.f32.mrf.mxu0
    %v1160 = vadd.f32 %v232, %v1159
    %v1161 = vpop.f32.mrf.mxu0
    %1162 = vmatprep.mubr.bf16.mxu0 0
    %1163 = vmatmul.mubr.bf16.gmra.mxu0 %v548
    %v1164 = vpop.f32.mrf.mxu0
    %v1165 = vadd.f32 %v232, %v1164
    %v1166 = vpop.f32.mrf.mxu0
    %v1167 = vpop.f32.mrf.mxu0
    %v1168 = vadd.f32 %v232, %v1167
    %v1169 = vpop.f32.mrf.mxu0
    %1170 = vmatprep.mubr.bf16.mxu0 0
    %1171 = vmatmul.mubr.bf16.gmra.mxu0 %v549
    %v1172 = vpop.f32.mrf.mxu0
    %v1173 = vadd.f32 %v232, %v1172
    %v1174 = vpop.f32.mrf.mxu0
    %v1175 = vpop.f32.mrf.mxu0
    %v1176 = vadd.f32 %v232, %v1175
    %v1177 = vpop.f32.mrf.mxu0
    %1178 = vmatprep.mubr.bf16.mxu0 0
    %1179 = vmatmul.mubr.bf16.gmra.mxu0 %v550
    %v1180 = vpop.f32.mrf.mxu0
    %v1181 = vadd.f32 %v232, %v1180
    %v1182 = vpop.f32.mrf.mxu0
    %v1183 = vpop.f32.mrf.mxu0
    %v1184 = vadd.f32 %v232, %v1183
    %v1185 = vpop.f32.mrf.mxu0
    %1186 = vmatprep.mubr.bf16.mxu0 0
    %1187 = vmatmul.mubr.bf16.gmra.mxu0 %v551
    %v1188 = vpop.f32.mrf.mxu0
    %v1189 = vadd.f32 %v232, %v1188
    %v1190 = vpop.f32.mrf.mxu0
    %v1191 = vpop.f32.mrf.mxu0
    %v1192 = vadd.f32 %v232, %v1191
    %v1193 = vpop.f32.mrf.mxu0
    %1194 = vmatprep.mubr.bf16.mxu0 0
    %1195 = vmatmul.mubr.bf16.gmra.mxu0 %v552
    %v1196 = vpop.f32.mrf.mxu0
    %v1197 = vadd.f32 %v232, %v1196
    %v1198 = vpop.f32.mrf.mxu0
    %v1199 = vpop.f32.mrf.mxu0
    %v1200 = vadd.f32 %v232, %v1199
    %v1201 = vpop.f32.mrf.mxu0
    %1202 = vmatprep.mubr.bf16.mxu0 0
    %1203 = vmatmul.mubr.bf16.gmra.mxu0 %v553
    %v1204 = vpop.f32.mrf.mxu0
    %v1205 = vadd.f32 %v232, %v1204
    %v1206 = vpop.f32.mrf.mxu0
    %v1207 = vpop.f32.mrf.mxu0
    %v1208 = vadd.f32 %v232, %v1207
    %v1209 = vpop.f32.mrf.mxu0
    %1210 = vdwg.mxu0
    %v1211 = vmax.f32 %v701, 0.0
    %v1212 = vmax.f32 %v704, 0.0
    %v1213 = vmax.f32 %v709, 0.0
    %v1214 = vmax.f32 %v712, 0.0
    %v1215 = vmax.f32 %v717, 0.0
    %v1216 = vmax.f32 %v720, 0.0
    %v1217 = vmax.f32 %v725, 0.0
    %v1218 = vmax.f32 %v728, 0.0
    %v1219 = vmax.f32 %v733, 0.0
    %v1220 = vmax.f32 %v736, 0.0
    %v1221 = vmax.f32 %v741, 0.0
    %v1222 = vmax.f32 %v744, 0.0
    %v1223 = vmax.f32 %v749, 0.0
    %v1224 = vmax.f32 %v752, 0.0
    %v1225 = vmax.f32 %v757, 0.0
    %v1226 = vmax.f32 %v760, 0.0
    %v1227 = vmax.f32 %v765, 0.0
    %v1228 = vmax.f32 %v768, 0.0
    %v1229 = vmax.f32 %v773, 0.0
    %v1230 = vmax.f32 %v776, 0.0
    %v1231 = vmax.f32 %v781, 0.0
    %v1232 = vmax.f32 %v784, 0.0
    %v1233 = vmax.f32 %v789, 0.0
    %v1234 = vmax.f32 %v792, 0.0
    %v1235 = vmax.f32 %v797, 0.0
    %v1236 = vmax.f32 %v800, 0.0
    %v1237 = vmax.f32 %v805, 0.0
    %v1238 = vmax.f32 %v808, 0.0
    %v1239 = vmax.f32 %v813, 0.0
    %v1240 = vmax.f32 %v816, 0.0
    %v1241 = vmax.f32 %v821, 0.0
    %v1242 = vmax.f32 %v824, 0.0
    %v1243 = vmax.f32 %v829, 0.0
    %v1244 = vmax.f32 %v832, 0.0
    %v1245 = vmax.f32 %v837, 0.0
    %v1246 = vmax.f32 %v840, 0.0
    %v1247 = vmax.f32 %v845, 0.0
    %v1248 = vmax.f32 %v848, 0.0
    %v1249 = vmax.f32 %v853, 0.0
    %v1250 = vmax.f32 %v856, 0.0
    %v1251 = vmax.f32 %v861, 0.0
    %v1252 = vmax.f32 %v864, 0.0
    %v1253 = vmax.f32 %v869, 0.0
    %v1254 = vmax.f32 %v872, 0.0
    %v1255 = vmax.f32 %v877, 0.0
    %v1256 = vmax.f32 %v880, 0.0
    %v1257 = vmax.f32 %v885, 0.0
    %v1258 = vmax.f32 %v888, 0.0
    %v1259 = vmax.f32 %v893, 0.0
    %v1260 = vmax.f32 %v896, 0.0
    %v1261 = vmax.f32 %v901, 0.0
    %v1262 = vmax.f32 %v904, 0.0
    %v1263 = vmax.f32 %v909, 0.0
    %v1264 = vmax.f32 %v912, 0.0
    %v1265 = vmax.f32 %v917, 0.0
    %v1266 = vmax.f32 %v920, 0.0
    %v1267 = vmax.f32 %v925, 0.0
    %v1268 = vmax.f32 %v928, 0.0
    %v1269 = vmax.f32 %v933, 0.0
    %v1270 = vmax.f32 %v936, 0.0
    %v1271 = vmax.f32 %v941, 0.0
    %v1272 = vmax.f32 %v944, 0.0
    %v1273 = vmax.f32 %v949, 0.0
    %v1274 = vmax.f32 %v952, 0.0
    %v1275 = vmax.f32 %v957, 0.0
    %v1276 = vmax.f32 %v960, 0.0
    %v1277 = vmax.f32 %v965, 0.0
    %v1278 = vmax.f32 %v968, 0.0
    %v1279 = vmax.f32 %v973, 0.0
    %v1280 = vmax.f32 %v976, 0.0
    %v1281 = vmax.f32 %v981, 0.0
    %v1282 = vmax.f32 %v984, 0.0
    %v1283 = vmax.f32 %v989, 0.0
    %v1284 = vmax.f32 %v992, 0.0
    %v1285 = vmax.f32 %v997, 0.0
    %v1286 = vmax.f32 %v1000, 0.0
    %v1287 = vmax.f32 %v1005, 0.0
    %v1288 = vmax.f32 %v1008, 0.0
    %v1289 = vmax.f32 %v1013, 0.0
    %v1290 = vmax.f32 %v1016, 0.0
    %v1291 = vmax.f32 %v1021, 0.0
    %v1292 = vmax.f32 %v1024, 0.0
    %v1293 = vmax.f32 %v1029, 0.0
    %v1294 = vmax.f32 %v1032, 0.0
    %v1295 = vmax.f32 %v1037, 0.0
    %v1296 = vmax.f32 %v1040, 0.0
    %v1297 = vmax.f32 %v1045, 0.0
    %v1298 = vmax.f32 %v1048, 0.0
    %v1299 = vmax.f32 %v1053, 0.0
    %v1300 = vmax.f32 %v1056, 0.0
    %v1301 = vmax.f32 %v1061, 0.0
    %v1302 = vmax.f32 %v1064, 0.0
    %v1303 = vmax.f32 %v1069, 0.0
    %v1304 = vmax.f32 %v1072, 0.0
    %v1305 = vmax.f32 %v1077, 0.0
    %v1306 = vmax.f32 %v1080, 0.0
    %v1307 = vmax.f32 %v1085, 0.0
    %v1308 = vmax.f32 %v1088, 0.0
    %v1309 = vmax.f32 %v1093, 0.0
    %v1310 = vmax.f32 %v1096, 0.0
    %v1311 = vmax.f32 %v1101, 0.0
    %v1312 = vmax.f32 %v1104, 0.0
    %v1313 = vmax.f32 %v1109, 0.0
    %v1314 = vmax.f32 %v1112, 0.0
    %v1315 = vmax.f32 %v1117, 0.0
    %v1316 = vmax.f32 %v1120, 0.0
    %v1317 = vmax.f32 %v1125, 0.0
    %v1318 = vmax.f32 %v1128, 0.0
    %v1319 = vmax.f32 %v1133, 0.0
    %v1320 = vmax.f32 %v1136, 0.0
    %v1321 = vmax.f32 %v1141, 0.0
    %v1322 = vmax.f32 %v1144, 0.0
    %v1323 = vmax.f32 %v1149, 0.0
    %v1324 = vmax.f32 %v1152, 0.0
    %v1325 = vmax.f32 %v1157, 0.0
    %v1326 = vmax.f32 %v1160, 0.0
    %v1327 = vmax.f32 %v1165, 0.0
    %v1328 = vmax.f32 %v1168, 0.0
    %v1329 = vmax.f32 %v1173, 0.0
    %v1330 = vmax.f32 %v1176, 0.0
    %v1331 = vmax.f32 %v1181, 0.0
    %v1332 = vmax.f32 %v1184, 0.0
    %v1333 = vmax.f32 %v1189, 0.0
    %v1334 = vmax.f32 %v1192, 0.0
    %v1335 = vmax.f32 %v1197, 0.0
    %v1336 = vmax.f32 %v1200, 0.0
    %v1337 = vmax.f32 %v1205, 0.0
    %v1338 = vmax.f32 %v1208, 0.0
    %v1339 = vpack.c.bf16 %v1212, %v1211
    %v1340 = vpack.c.bf16 %v1214, %v1213
    %v1341 = vpack.c.bf16 %v1216, %v1215
    %v1342 = vpack.c.bf16 %v1218, %v1217
    %v1343 = vpack.c.bf16 %v1220, %v1219
    %v1344 = vpack.c.bf16 %v1222, %v1221
    %v1345 = vpack.c.bf16 %v1224, %v1223
    %v1346 = vpack.c.bf16 %v1226, %v1225
    %v1347 = vpack.c.bf16 %v1228, %v1227
    %v1348 = vpack.c.bf16 %v1230, %v1229
    %v1349 = vpack.c.bf16 %v1232, %v1231
    %v1350 = vpack.c.bf16 %v1234, %v1233
    %v1351 = vpack.c.bf16 %v1236, %v1235
    %v1352 = vpack.c.bf16 %v1238, %v1237
    %v1353 = vpack.c.bf16 %v1240, %v1239
    %v1354 = vpack.c.bf16 %v1242, %v1241
    %v1355 = vpack.c.bf16 %v1244, %v1243
    %v1356 = vpack.c.bf16 %v1246, %v1245
    %v1357 = vpack.c.bf16 %v1248, %v1247
    %v1358 = vpack.c.bf16 %v1250, %v1249
    %v1359 = vpack.c.bf16 %v1252, %v1251
    %v1360 = vpack.c.bf16 %v1254, %v1253
    %v1361 = vpack.c.bf16 %v1256, %v1255
    %v1362 = vpack.c.bf16 %v1258, %v1257
    %v1363 = vpack.c.bf16 %v1260, %v1259
    %v1364 = vpack.c.bf16 %v1262, %v1261
    %v1365 = vpack.c.bf16 %v1264, %v1263
    %v1366 = vpack.c.bf16 %v1266, %v1265
    %v1367 = vpack.c.bf16 %v1268, %v1267
    %v1368 = vpack.c.bf16 %v1270, %v1269
    %v1369 = vpack.c.bf16 %v1272, %v1271
    %v1370 = vpack.c.bf16 %v1274, %v1273
    %v1371 = vpack.c.bf16 %v1276, %v1275
    %v1372 = vpack.c.bf16 %v1278, %v1277
    %v1373 = vpack.c.bf16 %v1280, %v1279
    %v1374 = vpack.c.bf16 %v1282, %v1281
    %v1375 = vpack.c.bf16 %v1284, %v1283
    %v1376 = vpack.c.bf16 %v1286, %v1285
    %v1377 = vpack.c.bf16 %v1288, %v1287
    %v1378 = vpack.c.bf16 %v1290, %v1289
    %v1379 = vpack.c.bf16 %v1292, %v1291
    %v1380 = vpack.c.bf16 %v1294, %v1293
    %v1381 = vpack.c.bf16 %v1296, %v1295
    %v1382 = vpack.c.bf16 %v1298, %v1297
    %v1383 = vpack.c.bf16 %v1300, %v1299
    %v1384 = vpack.c.bf16 %v1302, %v1301
    %v1385 = vpack.c.bf16 %v1304, %v1303
    %v1386 = vpack.c.bf16 %v1306, %v1305
    %v1387 = vpack.c.bf16 %v1308, %v1307
    %v1388 = vpack.c.bf16 %v1310, %v1309
    %v1389 = vpack.c.bf16 %v1312, %v1311
    %v1390 = vpack.c.bf16 %v1314, %v1313
    %v1391 = vpack.c.bf16 %v1316, %v1315
    %v1392 = vpack.c.bf16 %v1318, %v1317
    %v1393 = vpack.c.bf16 %v1320, %v1319
    %v1394 = vpack.c.bf16 %v1322, %v1321
    %v1395 = vpack.c.bf16 %v1324, %v1323
    %v1396 = vpack.c.bf16 %v1326, %v1325
    %v1397 = vpack.c.bf16 %v1328, %v1327
    %v1398 = vpack.c.bf16 %v1330, %v1329
    %v1399 = vpack.c.bf16 %v1332, %v1331
    %v1400 = vpack.c.bf16 %v1334, %v1333
    %v1401 = vpack.c.bf16 %v1336, %v1335
    %v1402 = vpack.c.bf16 %v1338, %v1337
    %v1404 = vshrl.u32 0, 16
    %v1406 = vrot.slane %v1404, 7
    %v1407 = vshll.u32 0, 16
    %v1409 = vor.u32 %v1406, %v1407
    %v1411 = vshrl.u32 %v1339, 16
    %v1413 = vrot.slane %v1411, 7
    %v1414 = vshll.u32 %v1339, 16
    %v1416 = vor.u32 %v1413, %v1414
    %v1418 = vshrl.u32 %v1340, 16
    %v1420 = vrot.slane %v1418, 7
    %v1421 = vshll.u32 %v1340, 16
    %v1423 = vor.u32 %v1420, %v1421
    %v1425 = vshrl.u32 %v1341, 16
    %v1427 = vrot.slane %v1425, 7
    %v1428 = vshll.u32 %v1341, 16
    %v1430 = vor.u32 %v1427, %v1428
    %v1432 = vshrl.u32 %v1342, 16
    %v1434 = vrot.slane %v1432, 7
    %v1435 = vshll.u32 %v1342, 16
    %v1437 = vor.u32 %v1434, %v1435
    %v1439 = vshrl.u32 %v1343, 16
    %v1441 = vrot.slane %v1439, 7
    %v1442 = vshll.u32 %v1343, 16
    %v1444 = vor.u32 %v1441, %v1442
    %v1446 = vshrl.u32 %v1344, 16
    %v1448 = vrot.slane %v1446, 7
    %v1449 = vshll.u32 %v1344, 16
    %v1451 = vor.u32 %v1448, %v1449
    %v1453 = vshrl.u32 %v1345, 16
    %v1455 = vrot.slane %v1453, 7
    %v1456 = vshll.u32 %v1345, 16
    %v1458 = vor.u32 %v1455, %v1456
    %v1460 = vshrl.u32 %v1346, 16
    %v1462 = vrot.slane %v1460, 7
    %v1463 = vshll.u32 %v1346, 16
    %v1465 = vor.u32 %v1462, %v1463
    %v1467 = vshrl.u32 %v1347, 16
    %v1469 = vrot.slane %v1467, 7
    %v1470 = vshll.u32 %v1347, 16
    %v1472 = vor.u32 %v1469, %v1470
    %v1474 = vshrl.u32 %v1348, 16
    %v1476 = vrot.slane %v1474, 7
    %v1477 = vshll.u32 %v1348, 16
    %v1479 = vor.u32 %v1476, %v1477
    %v1481 = vshrl.u32 %v1349, 16
    %v1483 = vrot.slane %v1481, 7
    %v1484 = vshll.u32 %v1349, 16
    %v1486 = vor.u32 %v1483, %v1484
    %v1488 = vshrl.u32 %v1350, 16
    %v1490 = vrot.slane %v1488, 7
    %v1491 = vshll.u32 %v1350, 16
    %v1493 = vor.u32 %v1490, %v1491
    %v1495 = vshrl.u32 %v1351, 16
    %v1497 = vrot.slane %v1495, 7
    %v1498 = vshll.u32 %v1351, 16
    %v1500 = vor.u32 %v1497, %v1498
    %v1502 = vshrl.u32 %v1352, 16
    %v1504 = vrot.slane %v1502, 7
    %v1505 = vshll.u32 %v1352, 16
    %v1507 = vor.u32 %v1504, %v1505
    %v1509 = vshrl.u32 %v1353, 16
    %v1511 = vrot.slane %v1509, 7
    %v1512 = vshll.u32 %v1353, 16
    %v1514 = vor.u32 %v1511, %v1512
    %v1516 = vshrl.u32 %v1355, 16
    %v1518 = vrot.slane %v1516, 7
    %v1519 = vshll.u32 %v1355, 16
    %v1521 = vor.u32 %v1518, %v1519
    %v1523 = vshrl.u32 %v1356, 16
    %v1525 = vrot.slane %v1523, 7
    %v1526 = vshll.u32 %v1356, 16
    %v1528 = vor.u32 %v1525, %v1526
    %v1530 = vshrl.u32 %v1357, 16
    %v1532 = vrot.slane %v1530, 7
    %v1533 = vshll.u32 %v1357, 16
    %v1535 = vor.u32 %v1532, %v1533
    %v1537 = vshrl.u32 %v1358, 16
    %v1539 = vrot.slane %v1537, 7
    %v1540 = vshll.u32 %v1358, 16
    %v1542 = vor.u32 %v1539, %v1540
    %v1544 = vshrl.u32 %v1359, 16
    %v1546 = vrot.slane %v1544, 7
    %v1547 = vshll.u32 %v1359, 16
    %v1549 = vor.u32 %v1546, %v1547
    %v1551 = vshrl.u32 %v1360, 16
    %v1553 = vrot.slane %v1551, 7
    %v1554 = vshll.u32 %v1360, 16
    %v1556 = vor.u32 %v1553, %v1554
    %v1558 = vshrl.u32 %v1361, 16
    %v1560 = vrot.slane %v1558, 7
    %v1561 = vshll.u32 %v1361, 16
    %v1563 = vor.u32 %v1560, %v1561
    %v1565 = vshrl.u32 %v1362, 16
    %v1567 = vrot.slane %v1565, 7
    %v1568 = vshll.u32 %v1362, 16
    %v1570 = vor.u32 %v1567, %v1568
    %v1572 = vshrl.u32 %v1363, 16
    %v1574 = vrot.slane %v1572, 7
    %v1575 = vshll.u32 %v1363, 16
    %v1577 = vor.u32 %v1574, %v1575
    %v1579 = vshrl.u32 %v1364, 16
    %v1581 = vrot.slane %v1579, 7
    %v1582 = vshll.u32 %v1364, 16
    %v1584 = vor.u32 %v1581, %v1582
    %v1586 = vshrl.u32 %v1365, 16
    %v1588 = vrot.slane %v1586, 7
    %v1589 = vshll.u32 %v1365, 16
    %v1591 = vor.u32 %v1588, %v1589
    %v1593 = vshrl.u32 %v1366, 16
    %v1595 = vrot.slane %v1593, 7
    %v1596 = vshll.u32 %v1366, 16
    %v1598 = vor.u32 %v1595, %v1596
    %v1600 = vshrl.u32 %v1367, 16
    %v1602 = vrot.slane %v1600, 7
    %v1603 = vshll.u32 %v1367, 16
    %v1605 = vor.u32 %v1602, %v1603
    %v1607 = vshrl.u32 %v1368, 16
    %v1609 = vrot.slane %v1607, 7
    %v1610 = vshll.u32 %v1368, 16
    %v1612 = vor.u32 %v1609, %v1610
    %v1614 = vshrl.u32 %v1369, 16
    %v1616 = vrot.slane %v1614, 7
    %v1617 = vshll.u32 %v1369, 16
    %v1619 = vor.u32 %v1616, %v1617
    %v1621 = vshrl.u32 %v1371, 16
    %v1623 = vrot.slane %v1621, 7
    %v1624 = vshll.u32 %v1371, 16
    %v1626 = vor.u32 %v1623, %v1624
    %v1628 = vshrl.u32 %v1372, 16
    %v1630 = vrot.slane %v1628, 7
    %v1631 = vshll.u32 %v1372, 16
    %v1633 = vor.u32 %v1630, %v1631
    %v1635 = vshrl.u32 %v1373, 16
    %v1637 = vrot.slane %v1635, 7
    %v1638 = vshll.u32 %v1373, 16
    %v1640 = vor.u32 %v1637, %v1638
    %v1642 = vshrl.u32 %v1374, 16
    %v1644 = vrot.slane %v1642, 7
    %v1645 = vshll.u32 %v1374, 16
    %v1647 = vor.u32 %v1644, %v1645
    %v1649 = vshrl.u32 %v1375, 16
    %v1651 = vrot.slane %v1649, 7
    %v1652 = vshll.u32 %v1375, 16
    %v1654 = vor.u32 %v1651, %v1652
    %v1656 = vshrl.u32 %v1376, 16
    %v1658 = vrot.slane %v1656, 7
    %v1659 = vshll.u32 %v1376, 16
    %v1661 = vor.u32 %v1658, %v1659
    %v1663 = vshrl.u32 %v1377, 16
    %v1665 = vrot.slane %v1663, 7
    %v1666 = vshll.u32 %v1377, 16
    %v1668 = vor.u32 %v1665, %v1666
    %v1670 = vshrl.u32 %v1378, 16
    %v1672 = vrot.slane %v1670, 7
    %v1673 = vshll.u32 %v1378, 16
    %v1675 = vor.u32 %v1672, %v1673
    %v1677 = vshrl.u32 %v1379, 16
    %v1679 = vrot.slane %v1677, 7
    %v1680 = vshll.u32 %v1379, 16
    %v1682 = vor.u32 %v1679, %v1680
    %v1684 = vshrl.u32 %v1380, 16
    %v1686 = vrot.slane %v1684, 7
    %v1687 = vshll.u32 %v1380, 16
    %v1689 = vor.u32 %v1686, %v1687
    %v1691 = vshrl.u32 %v1381, 16
    %v1693 = vrot.slane %v1691, 7
    %v1694 = vshll.u32 %v1381, 16
    %v1696 = vor.u32 %v1693, %v1694
    %v1698 = vshrl.u32 %v1382, 16
    %v1700 = vrot.slane %v1698, 7
    %v1701 = vshll.u32 %v1382, 16
    %v1703 = vor.u32 %v1700, %v1701
    %v1705 = vshrl.u32 %v1383, 16
    %v1707 = vrot.slane %v1705, 7
    %v1708 = vshll.u32 %v1383, 16
    %v1710 = vor.u32 %v1707, %v1708
    %v1712 = vshrl.u32 %v1384, 16
    %v1714 = vrot.slane %v1712, 7
    %v1715 = vshll.u32 %v1384, 16
    %v1717 = vor.u32 %v1714, %v1715
    %v1719 = vshrl.u32 %v1385, 16
    %v1721 = vrot.slane %v1719, 7
    %v1722 = vshll.u32 %v1385, 16
    %v1724 = vor.u32 %v1721, %v1722
    %v1726 = vshrl.u32 %v1387, 16
    %v1728 = vrot.slane %v1726, 7
    %v1729 = vshll.u32 %v1387, 16
    %v1731 = vor.u32 %v1728, %v1729
    %v1733 = vshrl.u32 %v1388, 16
    %v1735 = vrot.slane %v1733, 7
    %v1736 = vshll.u32 %v1388, 16
    %v1738 = vor.u32 %v1735, %v1736
    %v1740 = vshrl.u32 %v1389, 16
    %v1742 = vrot.slane %v1740, 7
    %v1743 = vshll.u32 %v1389, 16
    %v1745 = vor.u32 %v1742, %v1743
    %v1747 = vshrl.u32 %v1390, 16
    %v1749 = vrot.slane %v1747, 7
    %v1750 = vshll.u32 %v1390, 16
    %v1752 = vor.u32 %v1749, %v1750
    %v1754 = vshrl.u32 %v1391, 16
    %v1756 = vrot.slane %v1754, 7
    %v1757 = vshll.u32 %v1391, 16
    %v1759 = vor.u32 %v1756, %v1757
    %v1761 = vshrl.u32 %v1392, 16
    %v1763 = vrot.slane %v1761, 7
    %v1764 = vshll.u32 %v1392, 16
    %v1766 = vor.u32 %v1763, %v1764
    %v1768 = vshrl.u32 %v1393, 16
    %v1770 = vrot.slane %v1768, 7
    %v1771 = vshll.u32 %v1393, 16
    %v1773 = vor.u32 %v1770, %v1771
    %v1775 = vshrl.u32 %v1394, 16
    %v1777 = vrot.slane %v1775, 7
    %v1778 = vshll.u32 %v1394, 16
    %v1780 = vor.u32 %v1777, %v1778
    %v1782 = vshrl.u32 %v1395, 16
    %v1784 = vrot.slane %v1782, 7
    %v1785 = vshll.u32 %v1395, 16
    %v1787 = vor.u32 %v1784, %v1785
    %v1789 = vshrl.u32 %v1396, 16
    %v1791 = vrot.slane %v1789, 7
    %v1792 = vshll.u32 %v1396, 16
    %v1794 = vor.u32 %v1791, %v1792
    %v1796 = vshrl.u32 %v1397, 16
    %v1798 = vrot.slane %v1796, 7
    %v1799 = vshll.u32 %v1397, 16
    %v1801 = vor.u32 %v1798, %v1799
    %v1803 = vshrl.u32 %v1398, 16
    %v1805 = vrot.slane %v1803, 7
    %v1806 = vshll.u32 %v1398, 16
    %v1808 = vor.u32 %v1805, %v1806
    %v1810 = vshrl.u32 %v1399, 16
    %v1812 = vrot.slane %v1810, 7
    %v1813 = vshll.u32 %v1399, 16
    %v1815 = vor.u32 %v1812, %v1813
    %v1817 = vshrl.u32 %v1400, 16
    %v1819 = vrot.slane %v1817, 7
    %v1820 = vshll.u32 %v1400, 16
    %v1822 = vor.u32 %v1819, %v1820
    %v1824 = vshrl.u32 %v1401, 16
    %v1826 = vrot.slane %v1824, 7
    %v1827 = vshll.u32 %v1401, 16
    %v1829 = vor.u32 %v1826, %v1827
    %vm1891 = vcmask 1040384
    %vm1892 = vsmask.f32 256
    %vm1893 = vmand %vm1891, %vm1892
    %v1894 = vsel %vm1893, 0, %v1409
    %v1895 = vsel %vm1893, 0, %v1416
    %v1896 = vsel %vm1893, 0, %v1423
    %v1897 = vsel %vm1893, 0, %v1430
    %v1898 = vsel %vm1893, 0, %v1437
    %v1899 = vsel %vm1893, 0, %v1444
    %v1900 = vsel %vm1893, 0, %v1451
    %v1901 = vsel %vm1893, 0, %v1458
    %v1902 = vsel %vm1893, 0, %v1465
    %v1903 = vsel %vm1893, 0, %v1472
    %v1904 = vsel %vm1893, 0, %v1479
    %v1905 = vsel %vm1893, 0, %v1486
    %v1906 = vsel %vm1893, 0, %v1493
    %v1907 = vsel %vm1893, 0, %v1500
    %v1908 = vsel %vm1893, 0, %v1507
    %v1909 = vsel %vm1893, 0, %v1514
    %v1910 = vsel %vm1893, 0, %v1521
    %v1911 = vsel %vm1893, 0, %v1528
    %v1912 = vsel %vm1893, 0, %v1535
    %v1913 = vsel %vm1893, 0, %v1542
    %v1914 = vsel %vm1893, 0, %v1549
    %v1915 = vsel %vm1893, 0, %v1556
    %v1916 = vsel %vm1893, 0, %v1563
    %v1917 = vsel %vm1893, 0, %v1570
    %v1918 = vsel %vm1893, 0, %v1577
    %v1919 = vsel %vm1893, 0, %v1584
    %v1920 = vsel %vm1893, 0, %v1591
    %v1921 = vsel %vm1893, 0, %v1598
    %v1922 = vsel %vm1893, 0, %v1605
    %v1923 = vsel %vm1893, 0, %v1612
    %v1924 = vsel %vm1893, 0, %v1619
    %v1925 = vsel %vm1893, 0, %v1626
    %v1926 = vsel %vm1893, 0, %v1633
    %v1927 = vsel %vm1893, 0, %v1640
    %v1928 = vsel %vm1893, 0, %v1647
    %v1929 = vsel %vm1893, 0, %v1654
    %v1930 = vsel %vm1893, 0, %v1661
    %v1931 = vsel %vm1893, 0, %v1668
    %v1932 = vsel %vm1893, 0, %v1675
    %v1933 = vsel %vm1893, 0, %v1682
    %v1934 = vsel %vm1893, 0, %v1689
    %v1935 = vsel %vm1893, 0, %v1696
    %v1936 = vsel %vm1893, 0, %v1703
    %v1937 = vsel %vm1893, 0, %v1710
    %v1938 = vsel %vm1893, 0, %v1717
    %v1939 = vsel %vm1893, 0, %v1724
    %v1940 = vsel %vm1893, 0, %v1731
    %v1941 = vsel %vm1893, 0, %v1738
    %v1942 = vsel %vm1893, 0, %v1745
    %v1943 = vsel %vm1893, 0, %v1752
    %v1944 = vsel %vm1893, 0, %v1759
    %v1945 = vsel %vm1893, 0, %v1766
    %v1946 = vsel %vm1893, 0, %v1773
    %v1947 = vsel %vm1893, 0, %v1780
    %v1948 = vsel %vm1893, 0, %v1787
    %v1949 = vsel %vm1893, 0, %v1794
    %v1950 = vsel %vm1893, 0, %v1801
    %v1951 = vsel %vm1893, 0, %v1808
    %v1952 = vsel %vm1893, 0, %v1815
    %v1953 = vsel %vm1893, 0, %v1822
    %v1954 = vsel %vm1893, 0, %v1829
    %v1955 = vrot.slane %v1407, 1
    %v1956 = vor.u32 %v1404, %v1955
    %v1957 = vrot.slane %v1414, 1
    %v1958 = vor.u32 %v1411, %v1957
    %v1959 = vrot.slane %v1421, 1
    %v1960 = vor.u32 %v1418, %v1959
    %v1961 = vrot.slane %v1428, 1
    %v1962 = vor.u32 %v1425, %v1961
    %v1963 = vrot.slane %v1435, 1
    %v1964 = vor.u32 %v1432, %v1963
    %v1965 = vrot.slane %v1442, 1
    %v1966 = vor.u32 %v1439, %v1965
    %v1967 = vrot.slane %v1449, 1
    %v1968 = vor.u32 %v1446, %v1967
    %v1969 = vrot.slane %v1456, 1
    %v1970 = vor.u32 %v1453, %v1969
    %v1971 = vrot.slane %v1463, 1
    %v1972 = vor.u32 %v1460, %v1971
    %v1973 = vrot.slane %v1470, 1
    %v1974 = vor.u32 %v1467, %v1973
    %v1975 = vrot.slane %v1477, 1
    %v1976 = vor.u32 %v1474, %v1975
    %v1977 = vrot.slane %v1484, 1
    %v1978 = vor.u32 %v1481, %v1977
    %v1979 = vrot.slane %v1491, 1
    %v1980 = vor.u32 %v1488, %v1979
    %v1981 = vrot.slane %v1498, 1
    %v1982 = vor.u32 %v1495, %v1981
    %v1983 = vrot.slane %v1505, 1
    %v1984 = vor.u32 %v1502, %v1983
    %v1985 = vrot.slane %v1512, 1
    %v1986 = vor.u32 %v1509, %v1985
    %v1987 = vrot.slane %v1519, 1
    %v1988 = vor.u32 %v1516, %v1987
    %v1989 = vrot.slane %v1526, 1
    %v1990 = vor.u32 %v1523, %v1989
    %v1991 = vrot.slane %v1533, 1
    %v1992 = vor.u32 %v1530, %v1991
    %v1993 = vrot.slane %v1540, 1
    %v1994 = vor.u32 %v1537, %v1993
    %v1995 = vrot.slane %v1547, 1
    %v1996 = vor.u32 %v1544, %v1995
    %v1997 = vrot.slane %v1554, 1
    %v1998 = vor.u32 %v1551, %v1997
    %v1999 = vrot.slane %v1561, 1
    %v2000 = vor.u32 %v1558, %v1999
    %v2001 = vrot.slane %v1568, 1
    %v2002 = vor.u32 %v1565, %v2001
    %v2003 = vrot.slane %v1575, 1
    %v2004 = vor.u32 %v1572, %v2003
    %v2005 = vrot.slane %v1582, 1
    %v2006 = vor.u32 %v1579, %v2005
    %v2007 = vrot.slane %v1589, 1
    %v2008 = vor.u32 %v1586, %v2007
    %v2009 = vrot.slane %v1596, 1
    %v2010 = vor.u32 %v1593, %v2009
    %v2011 = vrot.slane %v1603, 1
    %v2012 = vor.u32 %v1600, %v2011
    %v2013 = vrot.slane %v1610, 1
    %v2014 = vor.u32 %v1607, %v2013
    %v2015 = vrot.slane %v1617, 1
    %v2016 = vor.u32 %v1614, %v2015
    %v2017 = vrot.slane %v1624, 1
    %v2018 = vor.u32 %v1621, %v2017
    %v2019 = vrot.slane %v1631, 1
    %v2020 = vor.u32 %v1628, %v2019
    %v2021 = vrot.slane %v1638, 1
    %v2022 = vor.u32 %v1635, %v2021
    %v2023 = vrot.slane %v1645, 1
    %v2024 = vor.u32 %v1642, %v2023
    %v2025 = vrot.slane %v1652, 1
    %v2026 = vor.u32 %v1649, %v2025
    %v2027 = vrot.slane %v1659, 1
    %v2028 = vor.u32 %v1656, %v2027
    %v2029 = vrot.slane %v1666, 1
    %v2030 = vor.u32 %v1663, %v2029
    %v2031 = vrot.slane %v1673, 1
    %v2032 = vor.u32 %v1670, %v2031
    %v2033 = vrot.slane %v1680, 1
    %v2034 = vor.u32 %v1677, %v2033
    %v2035 = vrot.slane %v1687, 1
    %v2036 = vor.u32 %v1684, %v2035
    %v2037 = vrot.slane %v1694, 1
    %v2038 = vor.u32 %v1691, %v2037
    %v2039 = vrot.slane %v1701, 1
    %v2040 = vor.u32 %v1698, %v2039
    %v2041 = vrot.slane %v1708, 1
    %v2042 = vor.u32 %v1705, %v2041
    %v2043 = vrot.slane %v1715, 1
    %v2044 = vor.u32 %v1712, %v2043
    %v2045 = vrot.slane %v1722, 1
    %v2046 = vor.u32 %v1719, %v2045
    %v2047 = vrot.slane %v1729, 1
    %v2048 = vor.u32 %v1726, %v2047
    %v2049 = vrot.slane %v1736, 1
    %v2050 = vor.u32 %v1733, %v2049
    %v2051 = vrot.slane %v1743, 1
    %v2052 = vor.u32 %v1740, %v2051
    %v2053 = vrot.slane %v1750, 1
    %v2054 = vor.u32 %v1747, %v2053
    %v2055 = vrot.slane %v1757, 1
    %v2056 = vor.u32 %v1754, %v2055
    %v2057 = vrot.slane %v1764, 1
    %v2058 = vor.u32 %v1761, %v2057
    %v2059 = vrot.slane %v1771, 1
    %v2060 = vor.u32 %v1768, %v2059
    %v2061 = vrot.slane %v1778, 1
    %v2062 = vor.u32 %v1775, %v2061
    %v2063 = vrot.slane %v1785, 1
    %v2064 = vor.u32 %v1782, %v2063
    %v2065 = vrot.slane %v1792, 1
    %v2066 = vor.u32 %v1789, %v2065
    %v2067 = vrot.slane %v1799, 1
    %v2068 = vor.u32 %v1796, %v2067
    %v2069 = vrot.slane %v1806, 1
    %v2070 = vor.u32 %v1803, %v2069
    %v2071 = vrot.slane %v1813, 1
    %v2072 = vor.u32 %v1810, %v2071
    %v2073 = vrot.slane %v1820, 1
    %v2074 = vor.u32 %v1817, %v2073
    %v2075 = vrot.slane %v1827, 1
    %v2076 = vor.u32 %v1824, %v2075
    %vm2138 = vcmask 1047552
    %vm2139 = vsmask.f32 7424
    %vm2140 = vmand %vm2138, %vm2139
    %v2141 = vsel %vm2140, %v1956, 0
    %v2142 = vsel %vm2140, %v1958, 0
    %v2143 = vsel %vm2140, %v1960, 0
    %v2144 = vsel %vm2140, %v1962, 0
    %v2145 = vsel %vm2140, %v1964, 0
    %v2146 = vsel %vm2140, %v1966, 0
    %v2147 = vsel %vm2140, %v1968, 0
    %v2148 = vsel %vm2140, %v1970, 0
    %v2149 = vsel %vm2140, %v1972, 0
    %v2150 = vsel %vm2140, %v1974, 0
    %v2151 = vsel %vm2140, %v1976, 0
    %v2152 = vsel %vm2140, %v1978, 0
    %v2153 = vsel %vm2140, %v1980, 0
    %v2154 = vsel %vm2140, %v1982, 0
    %v2155 = vsel %vm2140, %v1984, 0
    %v2156 = vsel %vm2140, %v1986, 0
    %v2157 = vsel %vm2140, %v1988, 0
    %v2158 = vsel %vm2140, %v1990, 0
    %v2159 = vsel %vm2140, %v1992, 0
    %v2160 = vsel %vm2140, %v1994, 0
    %v2161 = vsel %vm2140, %v1996, 0
    %v2162 = vsel %vm2140, %v1998, 0
    %v2163 = vsel %vm2140, %v2000, 0
    %v2164 = vsel %vm2140, %v2002, 0
    %v2165 = vsel %vm2140, %v2004, 0
    %v2166 = vsel %vm2140, %v2006, 0
    %v2167 = vsel %vm2140, %v2008, 0
    %v2168 = vsel %vm2140, %v2010, 0
    %v2169 = vsel %vm2140, %v2012, 0
    %v2170 = vsel %vm2140, %v2014, 0
    %v2171 = vsel %vm2140, %v2016, 0
    %v2172 = vsel %vm2140, %v2018, 0
    %v2173 = vsel %vm2140, %v2020, 0
    %v2174 = vsel %vm2140, %v2022, 0
    %v2175 = vsel %vm2140, %v2024, 0
    %v2176 = vsel %vm2140, %v2026, 0
    %v2177 = vsel %vm2140, %v2028, 0
    %v2178 = vsel %vm2140, %v2030, 0
    %v2179 = vsel %vm2140, %v2032, 0
    %v2180 = vsel %vm2140, %v2034, 0
    %v2181 = vsel %vm2140, %v2036, 0
    %v2182 = vsel %vm2140, %v2038, 0
    %v2183 = vsel %vm2140, %v2040, 0
    %v2184 = vsel %vm2140, %v2042, 0
    %v2185 = vsel %vm2140, %v2044, 0
    %v2186 = vsel %vm2140, %v2046, 0
    %v2187 = vsel %vm2140, %v2048, 0
    %v2188 = vsel %vm2140, %v2050, 0
    %v2189 = vsel %vm2140, %v2052, 0
    %v2190 = vsel %vm2140, %v2054, 0
    %v2191 = vsel %vm2140, %v2056, 0
    %v2192 = vsel %vm2140, %v2058, 0
    %v2193 = vsel %vm2140, %v2060, 0
    %v2194 = vsel %vm2140, %v2062, 0
    %v2195 = vsel %vm2140, %v2064, 0
    %v2196 = vsel %vm2140, %v2066, 0
    %v2197 = vsel %vm2140, %v2068, 0
    %v2198 = vsel %vm2140, %v2070, 0
    %v2199 = vsel %vm2140, %v2072, 0
    %v2200 = vsel %vm2140, %v2074, 0
    %v2201 = vsel %vm2140, %v2076, 0
    %v2202 = vld [vmem:[#allocation7] sm:$0xf]
    %v2203 = vld [vmem:[#allocation7 + $0x4] sm:$0xf]
    %v2204 = vld [vmem:[#allocation7 + $0x8] sm:$0xf]
    %v2205 = vld [vmem:[#allocation7 + $0xc] sm:$0xf]
    %v2206 = vld [vmem:[#allocation7 + $0x10] sm:$0xf]
    %v2207 = vld [vmem:[#allocation7 + $0x14] sm:$0xf]
    %v2208 = vld [vmem:[#allocation7 + $0x18] sm:$0xf]
    %v2209 = vld [vmem:[#allocation7 + $0x1c] sm:$0xf]
    %v2210 = vld [vmem:[#allocation7 + $0x20] sm:$0xf]
    %v2211 = vld [vmem:[#allocation7 + $0x24] sm:$0xf]
    %v2212 = vld [vmem:[#allocation7 + $0x28] sm:$0xf]
    %v2213 = vld [vmem:[#allocation7 + $0x2c] sm:$0xf]
    %v2214 = vld [vmem:[#allocation7 + $0x30] sm:$0xf]
    %v2215 = vld [vmem:[#allocation7 + $0x34] sm:$0xf]
    %v2216 = vld [vmem:[#allocation7 + $0x38] sm:$0xf]
    %v2217 = vld [vmem:[#allocation7 + $0x3c] sm:$0xf]
    %v2218 = vld [vmem:[#allocation7 + $0x40] sm:$0xf]
    %v2219 = vld [vmem:[#allocation7 + $0x44] sm:$0xf]
    %v2220 = vld [vmem:[#allocation7 + $0x48] sm:$0xf]
    %v2221 = vld [vmem:[#allocation7 + $0x4c] sm:$0xf]
    %v2222 = vld [vmem:[#allocation7 + $0x50] sm:$0xf]
    %v2223 = vld [vmem:[#allocation7 + $0x54] sm:$0xf]
    %v2224 = vld [vmem:[#allocation7 + $0x58] sm:$0xf]
    %v2225 = vld [vmem:[#allocation7 + $0x5c] sm:$0xf]
    %v2226 = vld [vmem:[#allocation7 + $0x60] sm:$0xf]
    %v2227 = vld [vmem:[#allocation7 + $0x64] sm:$0xf]
    %v2228 = vld [vmem:[#allocation7 + $0x68] sm:$0xf]
    %v2229 = vld [vmem:[#allocation7 + $0x6c] sm:$0xf]
    %v2230 = vld [vmem:[#allocation7 + $0x70] sm:$0xf]
    %v2231 = vld [vmem:[#allocation7 + $0x74] sm:$0xf]
    %v2232 = vld [vmem:[#allocation7 + $0x78] sm:$0xf]
    %v2233 = vld [vmem:[#allocation7 + $0x7c] sm:$0xf]
    %v2234 = vld [vmem:[#allocation7 + $0x80] sm:$0xf]
    %v2235 = vld [vmem:[#allocation7 + $0x84] sm:$0xf]
    %v2236 = vld [vmem:[#allocation7 + $0x88] sm:$0xf]
    %v2237 = vld [vmem:[#allocation7 + $0x8c] sm:$0xf]
    %v2238 = vld [vmem:[#allocation7 + $0x90] sm:$0xf]
    %v2239 = vld [vmem:[#allocation7 + $0x94] sm:$0xf]
    %v2240 = vld [vmem:[#allocation7 + $0x98] sm:$0xf]
    %v2241 = vld [vmem:[#allocation7 + $0x9c] sm:$0xf]
    %v2242 = vld [vmem:[#allocation7 + $0xa0] sm:$0xf]
    %v2243 = vld [vmem:[#allocation7 + $0xa4] sm:$0xf]
    %v2244 = vld [vmem:[#allocation7 + $0xa8] sm:$0xf]
    %v2245 = vld [vmem:[#allocation7 + $0xac] sm:$0xf]
    %v2246 = vld [vmem:[#allocation7 + $0xb0] sm:$0xf]
    %v2247 = vld [vmem:[#allocation7 + $0xb4] sm:$0xf]
    %v2248 = vld [vmem:[#allocation7 + $0xb8] sm:$0xf]
    %v2249 = vld [vmem:[#allocation7 + $0xbc] sm:$0xf]
    %v2251 = vshrl.u32 %v1354, 16
    %v2253 = vrot.slane %v2251, 7
    %v2254 = vshll.u32 %v1354, 16
    %v2256 = vor.u32 %v2253, %v2254
    %v2258 = vshrl.u32 %v1370, 16
    %v2260 = vrot.slane %v2258, 7
    %v2261 = vshll.u32 %v1370, 16
    %v2263 = vor.u32 %v2260, %v2261
    %v2265 = vshrl.u32 %v1386, 16
    %v2267 = vrot.slane %v2265, 7
    %v2268 = vshll.u32 %v1386, 16
    %v2270 = vor.u32 %v2267, %v2268
    %v2272 = vshrl.u32 %v1402, 16
    %v2274 = vrot.slane %v2272, 7
    %v2275 = vshll.u32 %v1402, 16
    %v2277 = vor.u32 %v2274, %v2275
    %v2282 = vsel %vm1893, 0, %v2256
    %v2283 = vsel %vm1893, 0, %v2263
    %v2284 = vsel %vm1893, 0, %v2270
    %v2285 = vsel %vm1893, 0, %v2277
    %v2286 = vrot.slane %v2254, 1
    %v2287 = vor.u32 %v2251, %v2286
    %v2288 = vrot.slane %v2261, 1
    %v2289 = vor.u32 %v2258, %v2288
    %v2290 = vrot.slane %v2268, 1
    %v2291 = vor.u32 %v2265, %v2290
    %v2292 = vrot.slane %v2275, 1
    %v2293 = vor.u32 %v2272, %v2292
    %v2298 = vsel %vm2140, %v2287, 0
    %v2299 = vsel %vm2140, %v2289, 0
    %v2300 = vsel %vm2140, %v2291, 0
    %v2301 = vsel %vm2140, %v2293, 0
    %s2302 = scalar_lea.vmem [#allocation7], 192
    %v2303 = vld [vmem:[%s2302] sm:$0xf]
    %v2304 = vld [vmem:[%s2302 + $0x4] sm:$0xf]
    %v2305 = vld [vmem:[%s2302 + $0x8] sm:$0xf]
    %v2306 = vld [vmem:[%s2302 + $0xc] sm:$0xf]
    %v2307 = vld [vmem:[%s2302 + $0x10] sm:$0xf]
    %v2308 = vld [vmem:[%s2302 + $0x14] sm:$0xf]
    %v2309 = vld [vmem:[%s2302 + $0x18] sm:$0xf]
    %v2310 = vld [vmem:[%s2302 + $0x1c] sm:$0xf]
    %v2311 = vld [vmem:[%s2302 + $0x20] sm:$0xf]
    %v2312 = vld [vmem:[%s2302 + $0x24] sm:$0xf]
    %v2313 = vld [vmem:[%s2302 + $0x28] sm:$0xf]
    %v2314 = vld [vmem:[%s2302 + $0x2c] sm:$0xf]
    %v2315 = vld [vmem:[%s2302 + $0x30] sm:$0xf]
    %v2316 = vld [vmem:[%s2302 + $0x34] sm:$0xf]
    %v2317 = vld [vmem:[%s2302 + $0x38] sm:$0xf]
    %v2318 = vld [vmem:[%s2302 + $0x3c] sm:$0xf]
    %v2319 = vld [vmem:[%s2302 + $0x40] sm:$0xf]
    %v2320 = vld [vmem:[%s2302 + $0x44] sm:$0xf]
    %v2321 = vld [vmem:[%s2302 + $0x48] sm:$0xf]
    %v2322 = vld [vmem:[%s2302 + $0x4c] sm:$0xf]
    %v2323 = vld [vmem:[%s2302 + $0x50] sm:$0xf]
    %v2324 = vld [vmem:[%s2302 + $0x54] sm:$0xf]
    %v2325 = vld [vmem:[%s2302 + $0x58] sm:$0xf]
    %v2326 = vld [vmem:[%s2302 + $0x5c] sm:$0xf]
    %v2327 = vld [vmem:[%s2302 + $0x60] sm:$0xf]
    %v2328 = vld [vmem:[%s2302 + $0x64] sm:$0xf]
    %v2329 = vld [vmem:[%s2302 + $0x68] sm:$0xf]
    %v2330 = vld [vmem:[%s2302 + $0x6c] sm:$0xf]
    %v2331 = vld [vmem:[%s2302 + $0x70] sm:$0xf]
    %v2332 = vld [vmem:[%s2302 + $0x74] sm:$0xf]
    %v2333 = vld [vmem:[%s2302 + $0x78] sm:$0xf]
    %v2334 = vld [vmem:[%s2302 + $0x7c] sm:$0xf]
    %v2335 = vld [vmem:[%s2302 + $0x80] sm:$0xf]
    %v2336 = vld [vmem:[%s2302 + $0x84] sm:$0xf]
    %v2337 = vld [vmem:[%s2302 + $0x88] sm:$0xf]
    %v2338 = vld [vmem:[%s2302 + $0x8c] sm:$0xf]
    %v2339 = vld [vmem:[%s2302 + $0x90] sm:$0xf]
    %v2340 = vld [vmem:[%s2302 + $0x94] sm:$0xf]
    %v2341 = vld [vmem:[%s2302 + $0x98] sm:$0xf]
    %v2342 = vld [vmem:[%s2302 + $0x9c] sm:$0xf]
    %v2343 = vld [vmem:[%s2302 + $0xa0] sm:$0xf]
    %v2344 = vld [vmem:[%s2302 + $0xa4] sm:$0xf]
    %v2345 = vld [vmem:[%s2302 + $0xa8] sm:$0xf]
    %v2346 = vld [vmem:[%s2302 + $0xac] sm:$0xf]
    %v2347 = vld [vmem:[%s2302 + $0xb0] sm:$0xf]
    %v2348 = vld [vmem:[%s2302 + $0xb4] sm:$0xf]
    %v2349 = vld [vmem:[%s2302 + $0xb8] sm:$0xf]
    %v2350 = vld [vmem:[%s2302 + $0xbc] sm:$0xf]
    %v2399 = vunpack.c.l.b16 %v2303
    %v2400 = vunpack.c.l.b16 %v2304
    %v2401 = vunpack.c.l.b16 %v2305
    %v2402 = vunpack.c.l.b16 %v2306
    %v2403 = vunpack.c.l.b16 %v2307
    %v2404 = vunpack.c.l.b16 %v2308
    %v2405 = vunpack.c.l.b16 %v2309
    %v2406 = vunpack.c.l.b16 %v2310
    %v2407 = vunpack.c.l.b16 %v2311
    %v2408 = vunpack.c.l.b16 %v2312
    %v2409 = vunpack.c.l.b16 %v2313
    %v2410 = vunpack.c.l.b16 %v2314
    %v2411 = vunpack.c.l.b16 %v2315
    %v2412 = vunpack.c.l.b16 %v2316
    %v2413 = vunpack.c.l.b16 %v2317
    %v2414 = vunpack.c.l.b16 %v2318
    %v2415 = vunpack.c.l.b16 %v2319
    %v2416 = vunpack.c.l.b16 %v2320
    %v2417 = vunpack.c.l.b16 %v2321
    %v2418 = vunpack.c.l.b16 %v2322
    %v2419 = vunpack.c.l.b16 %v2323
    %v2420 = vunpack.c.l.b16 %v2324
    %v2421 = vunpack.c.l.b16 %v2325
    %v2422 = vunpack.c.l.b16 %v2326
    %v2423 = vunpack.c.l.b16 %v2327
    %v2424 = vunpack.c.l.b16 %v2328
    %v2425 = vunpack.c.l.b16 %v2329
    %v2426 = vunpack.c.l.b16 %v2330
    %v2427 = vunpack.c.l.b16 %v2331
    %v2428 = vunpack.c.l.b16 %v2332
    %v2429 = vunpack.c.l.b16 %v2333
    %v2430 = vunpack.c.l.b16 %v2334
    %v2431 = vunpack.c.l.b16 %v2335
    %v2432 = vunpack.c.l.b16 %v2336
    %v2433 = vunpack.c.l.b16 %v2337
    %v2434 = vunpack.c.l.b16 %v2338
    %v2435 = vunpack.c.l.b16 %v2339
    %v2436 = vunpack.c.l.b16 %v2340
    %v2437 = vunpack.c.l.b16 %v2341
    %v2438 = vunpack.c.l.b16 %v2342
    %v2439 = vunpack.c.l.b16 %v2343
    %v2440 = vunpack.c.l.b16 %v2344
    %v2441 = vunpack.c.l.b16 %v2345
    %v2442 = vunpack.c.l.b16 %v2346
    %v2443 = vunpack.c.l.b16 %v2347
    %v2444 = vunpack.c.l.b16 %v2348
    %v2445 = vunpack.c.l.b16 %v2349
    %v2446 = vunpack.c.l.b16 %v2350
    %v2447 = vpack.c.b16 %v2400, %v2399
    %v2448 = vpack.c.b16 %v2402, %v2401
    %v2449 = vpack.c.b16 %v2404, %v2403
    %v2450 = vpack.c.b16 %v2406, %v2405
    %v2451 = vpack.c.b16 %v2408, %v2407
    %v2452 = vpack.c.b16 %v2410, %v2409
    %v2453 = vpack.c.b16 %v2412, %v2411
    %v2454 = vpack.c.b16 %v2414, %v2413
    %v2455 = vpack.c.b16 %v2416, %v2415
    %v2456 = vpack.c.b16 %v2418, %v2417
    %v2457 = vpack.c.b16 %v2420, %v2419
    %v2458 = vpack.c.b16 %v2422, %v2421
    %v2459 = vpack.c.b16 %v2424, %v2423
    %v2460 = vpack.c.b16 %v2426, %v2425
    %v2461 = vpack.c.b16 %v2428, %v2427
    %v2462 = vpack.c.b16 %v2430, %v2429
    %v2463 = vpack.c.b16 %v2432, %v2431
    %v2464 = vpack.c.b16 %v2434, %v2433
    %v2465 = vpack.c.b16 %v2436, %v2435
    %v2466 = vpack.c.b16 %v2438, %v2437
    %v2467 = vpack.c.b16 %v2440, %v2439
    %v2468 = vpack.c.b16 %v2442, %v2441
    %v2469 = vpack.c.b16 %v2444, %v2443
    %v2470 = vpack.c.b16 %v2446, %v2445
    %2495 = vmatprep.subr.bf16.mxu0 0
    %2496 = vmatpush1.bf16.msra.mxu0 %v2454
    %2497 = vmatprep.subr.bf16.mxu0 0
    %2498 = vmatpush1.bf16.msra.mxu0 %v2453
    %2499 = vmatprep.subr.bf16.mxu0 0
    %2500 = vmatpush1.bf16.msra.mxu0 %v2452
    %2501 = vmatprep.subr.bf16.mxu0 0
    %2502 = vmatpush1.bf16.msra.mxu0 %v2451
    %2503 = vmatprep.subr.bf16.mxu0 0
    %2504 = vmatpush1.bf16.msra.mxu0 %v2450
    %2505 = vmatprep.subr.bf16.mxu0 0
    %2506 = vmatpush1.bf16.msra.mxu0 %v2449
    %2507 = vmatprep.subr.bf16.mxu0 0
    %2508 = vmatpush1.bf16.msra.mxu0 %v2448
    %2509 = vmatprep.subr.bf16.mxu0 0
    %2510 = vmatpush1.bf16.msra.mxu0 %v2447
    %2511 = vmatprep.subr.bf16.mxu0 0
    %2512 = vmatpush2.bf16.msra.mxu0 %v2462
    %2513 = vmatprep.subr.bf16.mxu0 0
    %2514 = vmatpush2.bf16.msra.mxu0 %v2461
    %2515 = vmatprep.subr.bf16.mxu0 0
    %2516 = vmatpush2.bf16.msra.mxu0 %v2460
    %2517 = vmatprep.subr.bf16.mxu0 0
    %2518 = vmatpush2.bf16.msra.mxu0 %v2459
    %2519 = vmatprep.subr.bf16.mxu0 0
    %2520 = vmatpush2.bf16.msra.mxu0 %v2458
    %2521 = vmatprep.subr.bf16.mxu0 0
    %2522 = vmatpush2.bf16.msra.mxu0 %v2457
    %2523 = vmatprep.subr.bf16.mxu0 0
    %2524 = vmatpush2.bf16.msra.mxu0 %v2456
    %2525 = vmatprep.subr.bf16.mxu0 0
    %2526 = vmatpush2.bf16.msra.mxu0 %v2455
    %2527 = vmatprep.mubr.bf16.mxu0 %v1339
    %2528 = vmatmul.mubr.bf16.gmra.mxu0 %v1895
    %v2529 = vpop.f32.mrf.mxu0
    %v2530 = vadd.f32 0.0, %v2529
    %v2531 = vpop.f32.mrf.mxu0
    %v2532 = vpop.f32.mrf.mxu0
    %v2533 = vadd.f32 0.0, %v2532
    %v2534 = vpop.f32.mrf.mxu0
    %2535 = vmatprep.mubr.bf16.mxu0 %v1340
    %2536 = vmatmul.mubr.bf16.gmra.mxu0 %v1896
    %v2537 = vpop.f32.mrf.mxu0
    %v2538 = vadd.f32 0.0, %v2537
    %v2539 = vpop.f32.mrf.mxu0
    %v2540 = vpop.f32.mrf.mxu0
    %v2541 = vadd.f32 0.0, %v2540
    %v2542 = vpop.f32.mrf.mxu0
    %2543 = vmatprep.mubr.bf16.mxu0 %v1341
    %2544 = vmatmul.mubr.bf16.gmra.mxu0 %v1897
    %v2545 = vpop.f32.mrf.mxu0
    %v2546 = vadd.f32 0.0, %v2545
    %v2547 = vpop.f32.mrf.mxu0
    %v2548 = vpop.f32.mrf.mxu0
    %v2549 = vadd.f32 0.0, %v2548
    %v2550 = vpop.f32.mrf.mxu0
    %2551 = vmatprep.mubr.bf16.mxu0 %v1342
    %2552 = vmatmul.mubr.bf16.gmra.mxu0 %v1898
    %v2553 = vpop.f32.mrf.mxu0
    %v2554 = vadd.f32 0.0, %v2553
    %v2555 = vpop.f32.mrf.mxu0
    %v2556 = vpop.f32.mrf.mxu0
    %v2557 = vadd.f32 0.0, %v2556
    %v2558 = vpop.f32.mrf.mxu0
    %2559 = vmatprep.mubr.bf16.mxu0 %v1343
    %2560 = vmatmul.mubr.bf16.gmra.mxu0 %v1899
    %v2561 = vpop.f32.mrf.mxu0
    %v2562 = vadd.f32 0.0, %v2561
    %v2563 = vpop.f32.mrf.mxu0
    %v2564 = vpop.f32.mrf.mxu0
    %v2565 = vadd.f32 0.0, %v2564
    %v2566 = vpop.f32.mrf.mxu0
    %2567 = vmatprep.mubr.bf16.mxu0 %v1344
    %2568 = vmatmul.mubr.bf16.gmra.mxu0 %v1900
    %v2569 = vpop.f32.mrf.mxu0
    %v2570 = vadd.f32 0.0, %v2569
    %v2571 = vpop.f32.mrf.mxu0
    %v2572 = vpop.f32.mrf.mxu0
    %v2573 = vadd.f32 0.0, %v2572
    %v2574 = vpop.f32.mrf.mxu0
    %2575 = vmatprep.mubr.bf16.mxu0 %v1345
    %2576 = vmatmul.mubr.bf16.gmra.mxu0 %v1901
    %v2577 = vpop.f32.mrf.mxu0
    %v2578 = vadd.f32 0.0, %v2577
    %v2579 = vpop.f32.mrf.mxu0
    %v2580 = vpop.f32.mrf.mxu0
    %v2581 = vadd.f32 0.0, %v2580
    %v2582 = vpop.f32.mrf.mxu0
    %2583 = vmatprep.mubr.bf16.mxu0 %v1346
    %2584 = vmatmul.mubr.bf16.gmra.mxu0 %v1902
    %v2585 = vpop.f32.mrf.mxu0
    %v2586 = vadd.f32 0.0, %v2585
    %v2587 = vpop.f32.mrf.mxu0
    %v2588 = vpop.f32.mrf.mxu0
    %v2589 = vadd.f32 0.0, %v2588
    %v2590 = vpop.f32.mrf.mxu0
    %2591 = vmatprep.mubr.bf16.mxu0 %v1347
    %2592 = vmatmul.mubr.bf16.gmra.mxu0 %v1903
    %v2593 = vpop.f32.mrf.mxu0
    %v2594 = vadd.f32 0.0, %v2593
    %v2595 = vpop.f32.mrf.mxu0
    %v2596 = vpop.f32.mrf.mxu0
    %v2597 = vadd.f32 0.0, %v2596
    %v2598 = vpop.f32.mrf.mxu0
    %2599 = vmatprep.mubr.bf16.mxu0 %v1348
    %2600 = vmatmul.mubr.bf16.gmra.mxu0 %v1904
    %v2601 = vpop.f32.mrf.mxu0
    %v2602 = vadd.f32 0.0, %v2601
    %v2603 = vpop.f32.mrf.mxu0
    %v2604 = vpop.f32.mrf.mxu0
    %v2605 = vadd.f32 0.0, %v2604
    %v2606 = vpop.f32.mrf.mxu0
    %2607 = vmatprep.mubr.bf16.mxu0 %v1349
    %2608 = vmatmul.mubr.bf16.gmra.mxu0 %v1905
    %v2609 = vpop.f32.mrf.mxu0
    %v2610 = vadd.f32 0.0, %v2609
    %v2611 = vpop.f32.mrf.mxu0
    %v2612 = vpop.f32.mrf.mxu0
    %v2613 = vadd.f32 0.0, %v2612
    %v2614 = vpop.f32.mrf.mxu0
    %2615 = vmatprep.mubr.bf16.mxu0 %v1350
    %2616 = vmatmul.mubr.bf16.gmra.mxu0 %v1906
    %v2617 = vpop.f32.mrf.mxu0
    %v2618 = vadd.f32 0.0, %v2617
    %v2619 = vpop.f32.mrf.mxu0
    %v2620 = vpop.f32.mrf.mxu0
    %v2621 = vadd.f32 0.0, %v2620
    %v2622 = vpop.f32.mrf.mxu0
    %2623 = vmatprep.mubr.bf16.mxu0 %v1351
    %2624 = vmatmul.mubr.bf16.gmra.mxu0 %v1907
    %v2625 = vpop.f32.mrf.mxu0
    %v2626 = vadd.f32 0.0, %v2625
    %v2627 = vpop.f32.mrf.mxu0
    %v2628 = vpop.f32.mrf.mxu0
    %v2629 = vadd.f32 0.0, %v2628
    %v2630 = vpop.f32.mrf.mxu0
    %2631 = vmatprep.mubr.bf16.mxu0 %v1352
    %2632 = vmatmul.mubr.bf16.gmra.mxu0 %v1908
    %v2633 = vpop.f32.mrf.mxu0
    %v2634 = vadd.f32 0.0, %v2633
    %v2635 = vpop.f32.mrf.mxu0
    %v2636 = vpop.f32.mrf.mxu0
    %v2637 = vadd.f32 0.0, %v2636
    %v2638 = vpop.f32.mrf.mxu0
    %2639 = vmatprep.mubr.bf16.mxu0 %v1353
    %2640 = vmatmul.mubr.bf16.gmra.mxu0 %v1909
    %v2641 = vpop.f32.mrf.mxu0
    %v2642 = vadd.f32 0.0, %v2641
    %v2643 = vpop.f32.mrf.mxu0
    %v2644 = vpop.f32.mrf.mxu0
    %v2645 = vadd.f32 0.0, %v2644
    %v2646 = vpop.f32.mrf.mxu0
    %2647 = vmatprep.mubr.bf16.mxu0 %v1354
    %2648 = vmatmul.mubr.bf16.gmra.mxu0 %v2282
    %v2649 = vpop.f32.mrf.mxu0
    %v2650 = vadd.f32 0.0, %v2649
    %v2651 = vpop.f32.mrf.mxu0
    %v2652 = vpop.f32.mrf.mxu0
    %v2653 = vadd.f32 0.0, %v2652
    %v2654 = vpop.f32.mrf.mxu0
    %2655 = vmatprep.mubr.bf16.mxu0 %v1355
    %2656 = vmatmul.mubr.bf16.gmra.mxu0 %v1910
    %v2657 = vpop.f32.mrf.mxu0
    %v2658 = vadd.f32 0.0, %v2657
    %v2659 = vpop.f32.mrf.mxu0
    %v2660 = vpop.f32.mrf.mxu0
    %v2661 = vadd.f32 0.0, %v2660
    %v2662 = vpop.f32.mrf.mxu0
    %2663 = vmatprep.mubr.bf16.mxu0 %v1356
    %2664 = vmatmul.mubr.bf16.gmra.mxu0 %v1911
    %v2665 = vpop.f32.mrf.mxu0
    %v2666 = vadd.f32 0.0, %v2665
    %v2667 = vpop.f32.mrf.mxu0
    %v2668 = vpop.f32.mrf.mxu0
    %v2669 = vadd.f32 0.0, %v2668
    %v2670 = vpop.f32.mrf.mxu0
    %2671 = vmatprep.mubr.bf16.mxu0 %v1357
    %2672 = vmatmul.mubr.bf16.gmra.mxu0 %v1912
    %v2673 = vpop.f32.mrf.mxu0
    %v2674 = vadd.f32 0.0, %v2673
    %v2675 = vpop.f32.mrf.mxu0
    %v2676 = vpop.f32.mrf.mxu0
    %v2677 = vadd.f32 0.0, %v2676
    %v2678 = vpop.f32.mrf.mxu0
    %2679 = vmatprep.mubr.bf16.mxu0 %v1358
    %2680 = vmatmul.mubr.bf16.gmra.mxu0 %v1913
    %v2681 = vpop.f32.mrf.mxu0
    %v2682 = vadd.f32 0.0, %v2681
    %v2683 = vpop.f32.mrf.mxu0
    %v2684 = vpop.f32.mrf.mxu0
    %v2685 = vadd.f32 0.0, %v2684
    %v2686 = vpop.f32.mrf.mxu0
    %2687 = vmatprep.mubr.bf16.mxu0 %v1359
    %2688 = vmatmul.mubr.bf16.gmra.mxu0 %v1914
    %v2689 = vpop.f32.mrf.mxu0
    %v2690 = vadd.f32 0.0, %v2689
    %v2691 = vpop.f32.mrf.mxu0
    %v2692 = vpop.f32.mrf.mxu0
    %v2693 = vadd.f32 0.0, %v2692
    %v2694 = vpop.f32.mrf.mxu0
    %2695 = vmatprep.mubr.bf16.mxu0 %v1360
    %2696 = vmatmul.mubr.bf16.gmra.mxu0 %v1915
    %v2697 = vpop.f32.mrf.mxu0
    %v2698 = vadd.f32 0.0, %v2697
    %v2699 = vpop.f32.mrf.mxu0
    %v2700 = vpop.f32.mrf.mxu0
    %v2701 = vadd.f32 0.0, %v2700
    %v2702 = vpop.f32.mrf.mxu0
    %2703 = vmatprep.mubr.bf16.mxu0 %v1361
    %2704 = vmatmul.mubr.bf16.gmra.mxu0 %v1916
    %v2705 = vpop.f32.mrf.mxu0
    %v2706 = vadd.f32 0.0, %v2705
    %v2707 = vpop.f32.mrf.mxu0
    %v2708 = vpop.f32.mrf.mxu0
    %v2709 = vadd.f32 0.0, %v2708
    %v2710 = vpop.f32.mrf.mxu0
    %2711 = vmatprep.mubr.bf16.mxu0 %v1362
    %2712 = vmatmul.mubr.bf16.gmra.mxu0 %v1917
    %v2713 = vpop.f32.mrf.mxu0
    %v2714 = vadd.f32 0.0, %v2713
    %v2715 = vpop.f32.mrf.mxu0
    %v2716 = vpop.f32.mrf.mxu0
    %v2717 = vadd.f32 0.0, %v2716
    %v2718 = vpop.f32.mrf.mxu0
    %2719 = vmatprep.mubr.bf16.mxu0 %v1363
    %2720 = vmatmul.mubr.bf16.gmra.mxu0 %v1918
    %v2721 = vpop.f32.mrf.mxu0
    %v2722 = vadd.f32 0.0, %v2721
    %v2723 = vpop.f32.mrf.mxu0
    %v2724 = vpop.f32.mrf.mxu0
    %v2725 = vadd.f32 0.0, %v2724
    %v2726 = vpop.f32.mrf.mxu0
    %2727 = vmatprep.mubr.bf16.mxu0 %v1364
    %2728 = vmatmul.mubr.bf16.gmra.mxu0 %v1919
    %v2729 = vpop.f32.mrf.mxu0
    %v2730 = vadd.f32 0.0, %v2729
    %v2731 = vpop.f32.mrf.mxu0
    %v2732 = vpop.f32.mrf.mxu0
    %v2733 = vadd.f32 0.0, %v2732
    %v2734 = vpop.f32.mrf.mxu0
    %2735 = vmatprep.mubr.bf16.mxu0 %v1365
    %2736 = vmatmul.mubr.bf16.gmra.mxu0 %v1920
    %v2737 = vpop.f32.mrf.mxu0
    %v2738 = vadd.f32 0.0, %v2737
    %v2739 = vpop.f32.mrf.mxu0
    %v2740 = vpop.f32.mrf.mxu0
    %v2741 = vadd.f32 0.0, %v2740
    %v2742 = vpop.f32.mrf.mxu0
    %2743 = vmatprep.mubr.bf16.mxu0 %v1366
    %2744 = vmatmul.mubr.bf16.gmra.mxu0 %v1921
    %v2745 = vpop.f32.mrf.mxu0
    %v2746 = vadd.f32 0.0, %v2745
    %v2747 = vpop.f32.mrf.mxu0
    %v2748 = vpop.f32.mrf.mxu0
    %v2749 = vadd.f32 0.0, %v2748
    %v2750 = vpop.f32.mrf.mxu0
    %2751 = vmatprep.mubr.bf16.mxu0 %v1367
    %2752 = vmatmul.mubr.bf16.gmra.mxu0 %v1922
    %v2753 = vpop.f32.mrf.mxu0
    %v2754 = vadd.f32 0.0, %v2753
    %v2755 = vpop.f32.mrf.mxu0
    %v2756 = vpop.f32.mrf.mxu0
    %v2757 = vadd.f32 0.0, %v2756
    %v2758 = vpop.f32.mrf.mxu0
    %2759 = vmatprep.mubr.bf16.mxu0 %v1368
    %2760 = vmatmul.mubr.bf16.gmra.mxu0 %v1923
    %v2761 = vpop.f32.mrf.mxu0
    %v2762 = vadd.f32 0.0, %v2761
    %v2763 = vpop.f32.mrf.mxu0
    %v2764 = vpop.f32.mrf.mxu0
    %v2765 = vadd.f32 0.0, %v2764
    %v2766 = vpop.f32.mrf.mxu0
    %2767 = vmatprep.mubr.bf16.mxu0 %v1369
    %2768 = vmatmul.mubr.bf16.gmra.mxu0 %v1924
    %v2769 = vpop.f32.mrf.mxu0
    %v2770 = vadd.f32 0.0, %v2769
    %v2771 = vpop.f32.mrf.mxu0
    %v2772 = vpop.f32.mrf.mxu0
    %v2773 = vadd.f32 0.0, %v2772
    %v2774 = vpop.f32.mrf.mxu0
    %2775 = vmatprep.mubr.bf16.mxu0 %v1370
    %2776 = vmatmul.mubr.bf16.gmra.mxu0 %v2283
    %v2777 = vpop.f32.mrf.mxu0
    %v2778 = vadd.f32 0.0, %v2777
    %v2779 = vpop.f32.mrf.mxu0
    %v2780 = vpop.f32.mrf.mxu0
    %v2781 = vadd.f32 0.0, %v2780
    %v2782 = vpop.f32.mrf.mxu0
    %2783 = vmatprep.mubr.bf16.mxu0 %v1371
    %2784 = vmatmul.mubr.bf16.gmra.mxu0 %v1925
    %v2785 = vpop.f32.mrf.mxu0
    %v2786 = vadd.f32 0.0, %v2785
    %v2787 = vpop.f32.mrf.mxu0
    %v2788 = vpop.f32.mrf.mxu0
    %v2789 = vadd.f32 0.0, %v2788
    %v2790 = vpop.f32.mrf.mxu0
    %2791 = vmatprep.mubr.bf16.mxu0 %v1372
    %2792 = vmatmul.mubr.bf16.gmra.mxu0 %v1926
    %v2793 = vpop.f32.mrf.mxu0
    %v2794 = vadd.f32 0.0, %v2793
    %v2795 = vpop.f32.mrf.mxu0
    %v2796 = vpop.f32.mrf.mxu0
    %v2797 = vadd.f32 0.0, %v2796
    %v2798 = vpop.f32.mrf.mxu0
    %2799 = vmatprep.mubr.bf16.mxu0 %v1373
    %2800 = vmatmul.mubr.bf16.gmra.mxu0 %v1927
    %v2801 = vpop.f32.mrf.mxu0
    %v2802 = vadd.f32 0.0, %v2801
    %v2803 = vpop.f32.mrf.mxu0
    %v2804 = vpop.f32.mrf.mxu0
    %v2805 = vadd.f32 0.0, %v2804
    %v2806 = vpop.f32.mrf.mxu0
    %2807 = vmatprep.mubr.bf16.mxu0 %v1374
    %2808 = vmatmul.mubr.bf16.gmra.mxu0 %v1928
    %v2809 = vpop.f32.mrf.mxu0
    %v2810 = vadd.f32 0.0, %v2809
    %v2811 = vpop.f32.mrf.mxu0
    %v2812 = vpop.f32.mrf.mxu0
    %v2813 = vadd.f32 0.0, %v2812
    %v2814 = vpop.f32.mrf.mxu0
    %2815 = vmatprep.mubr.bf16.mxu0 %v1375
    %2816 = vmatmul.mubr.bf16.gmra.mxu0 %v1929
    %v2817 = vpop.f32.mrf.mxu0
    %v2818 = vadd.f32 0.0, %v2817
    %v2819 = vpop.f32.mrf.mxu0
    %v2820 = vpop.f32.mrf.mxu0
    %v2821 = vadd.f32 0.0, %v2820
    %v2822 = vpop.f32.mrf.mxu0
    %2823 = vmatprep.mubr.bf16.mxu0 %v1376
    %2824 = vmatmul.mubr.bf16.gmra.mxu0 %v1930
    %v2825 = vpop.f32.mrf.mxu0
    %v2826 = vadd.f32 0.0, %v2825
    %v2827 = vpop.f32.mrf.mxu0
    %v2828 = vpop.f32.mrf.mxu0
    %v2829 = vadd.f32 0.0, %v2828
    %v2830 = vpop.f32.mrf.mxu0
    %2831 = vmatprep.mubr.bf16.mxu0 %v1377
    %2832 = vmatmul.mubr.bf16.gmra.mxu0 %v1931
    %v2833 = vpop.f32.mrf.mxu0
    %v2834 = vadd.f32 0.0, %v2833
    %v2835 = vpop.f32.mrf.mxu0
    %v2836 = vpop.f32.mrf.mxu0
    %v2837 = vadd.f32 0.0, %v2836
    %v2838 = vpop.f32.mrf.mxu0
    %2839 = vmatprep.mubr.bf16.mxu0 %v1378
    %2840 = vmatmul.mubr.bf16.gmra.mxu0 %v1932
    %v2841 = vpop.f32.mrf.mxu0
    %v2842 = vadd.f32 0.0, %v2841
    %v2843 = vpop.f32.mrf.mxu0
    %v2844 = vpop.f32.mrf.mxu0
    %v2845 = vadd.f32 0.0, %v2844
    %v2846 = vpop.f32.mrf.mxu0
    %2847 = vmatprep.mubr.bf16.mxu0 %v1379
    %2848 = vmatmul.mubr.bf16.gmra.mxu0 %v1933
    %v2849 = vpop.f32.mrf.mxu0
    %v2850 = vadd.f32 0.0, %v2849
    %v2851 = vpop.f32.mrf.mxu0
    %v2852 = vpop.f32.mrf.mxu0
    %v2853 = vadd.f32 0.0, %v2852
    %v2854 = vpop.f32.mrf.mxu0
    %2855 = vmatprep.mubr.bf16.mxu0 %v1380
    %2856 = vmatmul.mubr.bf16.gmra.mxu0 %v1934
    %v2857 = vpop.f32.mrf.mxu0
    %v2858 = vadd.f32 0.0, %v2857
    %v2859 = vpop.f32.mrf.mxu0
    %v2860 = vpop.f32.mrf.mxu0
    %v2861 = vadd.f32 0.0, %v2860
    %v2862 = vpop.f32.mrf.mxu0
    %2863 = vmatprep.mubr.bf16.mxu0 %v1381
    %2864 = vmatmul.mubr.bf16.gmra.mxu0 %v1935
    %v2865 = vpop.f32.mrf.mxu0
    %v2866 = vadd.f32 0.0, %v2865
    %v2867 = vpop.f32.mrf.mxu0
    %v2868 = vpop.f32.mrf.mxu0
    %v2869 = vadd.f32 0.0, %v2868
    %v2870 = vpop.f32.mrf.mxu0
    %2871 = vmatprep.mubr.bf16.mxu0 %v1382
    %2872 = vmatmul.mubr.bf16.gmra.mxu0 %v1936
    %v2873 = vpop.f32.mrf.mxu0
    %v2874 = vadd.f32 0.0, %v2873
    %v2875 = vpop.f32.mrf.mxu0
    %v2876 = vpop.f32.mrf.mxu0
    %v2877 = vadd.f32 0.0, %v2876
    %v2878 = vpop.f32.mrf.mxu0
    %2879 = vmatprep.mubr.bf16.mxu0 %v1383
    %2880 = vmatmul.mubr.bf16.gmra.mxu0 %v1937
    %v2881 = vpop.f32.mrf.mxu0
    %v2882 = vadd.f32 0.0, %v2881
    %v2883 = vpop.f32.mrf.mxu0
    %v2884 = vpop.f32.mrf.mxu0
    %v2885 = vadd.f32 0.0, %v2884
    %v2886 = vpop.f32.mrf.mxu0
    %2887 = vmatprep.mubr.bf16.mxu0 %v1384
    %2888 = vmatmul.mubr.bf16.gmra.mxu0 %v1938
    %v2889 = vpop.f32.mrf.mxu0
    %v2890 = vadd.f32 0.0, %v2889
    %v2891 = vpop.f32.mrf.mxu0
    %v2892 = vpop.f32.mrf.mxu0
    %v2893 = vadd.f32 0.0, %v2892
    %v2894 = vpop.f32.mrf.mxu0
    %2895 = vmatprep.mubr.bf16.mxu0 %v1385
    %2896 = vmatmul.mubr.bf16.gmra.mxu0 %v1939
    %v2897 = vpop.f32.mrf.mxu0
    %v2898 = vadd.f32 0.0, %v2897
    %v2899 = vpop.f32.mrf.mxu0
    %v2900 = vpop.f32.mrf.mxu0
    %v2901 = vadd.f32 0.0, %v2900
    %v2902 = vpop.f32.mrf.mxu0
    %2903 = vmatprep.mubr.bf16.mxu0 %v1386
    %2904 = vmatmul.mubr.bf16.gmra.mxu0 %v2284
    %v2905 = vpop.f32.mrf.mxu0
    %v2906 = vadd.f32 0.0, %v2905
    %v2907 = vpop.f32.mrf.mxu0
    %v2908 = vpop.f32.mrf.mxu0
    %v2909 = vadd.f32 0.0, %v2908
    %v2910 = vpop.f32.mrf.mxu0
    %2911 = vmatprep.mubr.bf16.mxu0 %v1387
    %2912 = vmatmul.mubr.bf16.gmra.mxu0 %v1940
    %v2913 = vpop.f32.mrf.mxu0
    %v2914 = vadd.f32 0.0, %v2913
    %v2915 = vpop.f32.mrf.mxu0
    %v2916 = vpop.f32.mrf.mxu0
    %v2917 = vadd.f32 0.0, %v2916
    %v2918 = vpop.f32.mrf.mxu0
    %2919 = vmatprep.mubr.bf16.mxu0 %v1388
    %2920 = vmatmul.mubr.bf16.gmra.mxu0 %v1941
    %v2921 = vpop.f32.mrf.mxu0
    %v2922 = vadd.f32 0.0, %v2921
    %v2923 = vpop.f32.mrf.mxu0
    %v2924 = vpop.f32.mrf.mxu0
    %v2925 = vadd.f32 0.0, %v2924
    %v2926 = vpop.f32.mrf.mxu0
    %2927 = vmatprep.mubr.bf16.mxu0 %v1389
    %2928 = vmatmul.mubr.bf16.gmra.mxu0 %v1942
    %v2929 = vpop.f32.mrf.mxu0
    %v2930 = vadd.f32 0.0, %v2929
    %v2931 = vpop.f32.mrf.mxu0
    %v2932 = vpop.f32.mrf.mxu0
    %v2933 = vadd.f32 0.0, %v2932
    %v2934 = vpop.f32.mrf.mxu0
    %2935 = vmatprep.mubr.bf16.mxu0 %v1390
    %2936 = vmatmul.mubr.bf16.gmra.mxu0 %v1943
    %v2937 = vpop.f32.mrf.mxu0
    %v2938 = vadd.f32 0.0, %v2937
    %v2939 = vpop.f32.mrf.mxu0
    %v2940 = vpop.f32.mrf.mxu0
    %v2941 = vadd.f32 0.0, %v2940
    %v2942 = vpop.f32.mrf.mxu0
    %2943 = vmatprep.mubr.bf16.mxu0 %v1391
    %2944 = vmatmul.mubr.bf16.gmra.mxu0 %v1944
    %v2945 = vpop.f32.mrf.mxu0
    %v2946 = vadd.f32 0.0, %v2945
    %v2947 = vpop.f32.mrf.mxu0
    %v2948 = vpop.f32.mrf.mxu0
    %v2949 = vadd.f32 0.0, %v2948
    %v2950 = vpop.f32.mrf.mxu0
    %2951 = vmatprep.mubr.bf16.mxu0 %v1392
    %2952 = vmatmul.mubr.bf16.gmra.mxu0 %v1945
    %v2953 = vpop.f32.mrf.mxu0
    %v2954 = vadd.f32 0.0, %v2953
    %v2955 = vpop.f32.mrf.mxu0
    %v2956 = vpop.f32.mrf.mxu0
    %v2957 = vadd.f32 0.0, %v2956
    %v2958 = vpop.f32.mrf.mxu0
    %2959 = vmatprep.mubr.bf16.mxu0 %v1393
    %2960 = vmatmul.mubr.bf16.gmra.mxu0 %v1946
    %v2961 = vpop.f32.mrf.mxu0
    %v2962 = vadd.f32 0.0, %v2961
    %v2963 = vpop.f32.mrf.mxu0
    %v2964 = vpop.f32.mrf.mxu0
    %v2965 = vadd.f32 0.0, %v2964
    %v2966 = vpop.f32.mrf.mxu0
    %2967 = vmatprep.mubr.bf16.mxu0 %v1394
    %2968 = vmatmul.mubr.bf16.gmra.mxu0 %v1947
    %v2969 = vpop.f32.mrf.mxu0
    %v2970 = vadd.f32 0.0, %v2969
    %v2971 = vpop.f32.mrf.mxu0
    %v2972 = vpop.f32.mrf.mxu0
    %v2973 = vadd.f32 0.0, %v2972
    %v2974 = vpop.f32.mrf.mxu0
    %2975 = vmatprep.mubr.bf16.mxu0 %v1395
    %2976 = vmatmul.mubr.bf16.gmra.mxu0 %v1948
    %v2977 = vpop.f32.mrf.mxu0
    %v2978 = vadd.f32 0.0, %v2977
    %v2979 = vpop.f32.mrf.mxu0
    %v2980 = vpop.f32.mrf.mxu0
    %v2981 = vadd.f32 0.0, %v2980
    %v2982 = vpop.f32.mrf.mxu0
    %2983 = vmatprep.mubr.bf16.mxu0 %v1396
    %2984 = vmatmul.mubr.bf16.gmra.mxu0 %v1949
    %v2985 = vpop.f32.mrf.mxu0
    %v2986 = vadd.f32 0.0, %v2985
    %v2987 = vpop.f32.mrf.mxu0
    %v2988 = vpop.f32.mrf.mxu0
    %v2989 = vadd.f32 0.0, %v2988
    %v2990 = vpop.f32.mrf.mxu0
    %2991 = vmatprep.mubr.bf16.mxu0 %v1397
    %2992 = vmatmul.mubr.bf16.gmra.mxu0 %v1950
    %v2993 = vpop.f32.mrf.mxu0
    %v2994 = vadd.f32 0.0, %v2993
    %v2995 = vpop.f32.mrf.mxu0
    %v2996 = vpop.f32.mrf.mxu0
    %v2997 = vadd.f32 0.0, %v2996
    %v2998 = vpop.f32.mrf.mxu0
    %2999 = vmatprep.mubr.bf16.mxu0 %v1398
    %3000 = vmatmul.mubr.bf16.gmra.mxu0 %v1951
    %v3001 = vpop.f32.mrf.mxu0
    %v3002 = vadd.f32 0.0, %v3001
    %v3003 = vpop.f32.mrf.mxu0
    %v3004 = vpop.f32.mrf.mxu0
    %v3005 = vadd.f32 0.0, %v3004
    %v3006 = vpop.f32.mrf.mxu0
    %3007 = vmatprep.mubr.bf16.mxu0 %v1399
    %3008 = vmatmul.mubr.bf16.gmra.mxu0 %v1952
    %v3009 = vpop.f32.mrf.mxu0
    %v3010 = vadd.f32 0.0, %v3009
    %v3011 = vpop.f32.mrf.mxu0
    %v3012 = vpop.f32.mrf.mxu0
    %v3013 = vadd.f32 0.0, %v3012
    %v3014 = vpop.f32.mrf.mxu0
    %3015 = vmatprep.mubr.bf16.mxu0 %v1400
    %3016 = vmatmul.mubr.bf16.gmra.mxu0 %v1953
    %v3017 = vpop.f32.mrf.mxu0
    %v3018 = vadd.f32 0.0, %v3017
    %v3019 = vpop.f32.mrf.mxu0
    %v3020 = vpop.f32.mrf.mxu0
    %v3021 = vadd.f32 0.0, %v3020
    %v3022 = vpop.f32.mrf.mxu0
    %3023 = vmatprep.mubr.bf16.mxu0 %v1401
    %3024 = vmatmul.mubr.bf16.gmra.mxu0 %v1954
    %v3025 = vpop.f32.mrf.mxu0
    %v3026 = vadd.f32 0.0, %v3025
    %v3027 = vpop.f32.mrf.mxu0
    %v3028 = vpop.f32.mrf.mxu0
    %v3029 = vadd.f32 0.0, %v3028
    %v3030 = vpop.f32.mrf.mxu0
    %3031 = vmatprep.mubr.bf16.mxu0 %v1402
    %3032 = vmatmul.mubr.bf16.gmra.mxu0 %v2285
    %v3033 = vpop.f32.mrf.mxu0
    %v3034 = vadd.f32 0.0, %v3033
    %v3035 = vpop.f32.mrf.mxu0
    %v3036 = vpop.f32.mrf.mxu0
    %v3037 = vadd.f32 0.0, %v3036
    %v3038 = vpop.f32.mrf.mxu0
    %3039 = vdwg.mxu0
    %3040 = vmatprep.subr.bf16.mxu0 0
    %3041 = vmatpush1.bf16.msra.mxu0 %v2470
    %3042 = vmatprep.subr.bf16.mxu0 0
    %3043 = vmatpush1.bf16.msra.mxu0 %v2469
    %3044 = vmatprep.subr.bf16.mxu0 0
    %3045 = vmatpush1.bf16.msra.mxu0 %v2468
    %3046 = vmatprep.subr.bf16.mxu0 0
    %3047 = vmatpush1.bf16.msra.mxu0 %v2467
    %3048 = vmatprep.subr.bf16.mxu0 0
    %3049 = vmatpush1.bf16.msra.mxu0 %v2466
    %3050 = vmatprep.subr.bf16.mxu0 0
    %3051 = vmatpush1.bf16.msra.mxu0 %v2465
    %3052 = vmatprep.subr.bf16.mxu0 0
    %3053 = vmatpush1.bf16.msra.mxu0 %v2464
    %3054 = vmatprep.subr.bf16.mxu0 0
    %3055 = vmatpush1.bf16.msra.mxu0 %v2463
    %3056 = vmatprep.subr.bf16.mxu0 0
    %3057 = vmatpush2.bf16.msra.mxu0 0
    %3058 = vmatprep.subr.bf16.mxu0 0
    %3059 = vmatpush2.bf16.msra.mxu0 0
    %3060 = vmatprep.subr.bf16.mxu0 0
    %3061 = vmatpush2.bf16.msra.mxu0 0
    %3062 = vmatprep.subr.bf16.mxu0 0
    %3063 = vmatpush2.bf16.msra.mxu0 0
    %3064 = vmatprep.subr.bf16.mxu0 0
    %3065 = vmatpush2.bf16.msra.mxu0 0
    %3066 = vmatprep.subr.bf16.mxu0 0
    %3067 = vmatpush2.bf16.msra.mxu0 0
    %3068 = vmatprep.subr.bf16.mxu0 0
    %3069 = vmatpush2.bf16.msra.mxu0 0
    %3070 = vmatprep.subr.bf16.mxu0 0
    %3071 = vmatpush2.bf16.msra.mxu0 0
    %3072 = vmatprep.mubr.bf16.mxu0 0
    %3073 = vmatmul.mubr.bf16.gmra.mxu0 %v2142
    %v3074 = vpop.f32.mrf.mxu0
    %v3075 = vadd.f32 %v2530, %v3074
    %v3076 = vpop.f32.mrf.mxu0
    %v3077 = vpop.f32.mrf.mxu0
    %v3078 = vadd.f32 %v2533, %v3077
    %v3079 = vpop.f32.mrf.mxu0
    %3080 = vmatprep.mubr.bf16.mxu0 0
    %3081 = vmatmul.mubr.bf16.gmra.mxu0 %v2143
    %v3082 = vpop.f32.mrf.mxu0
    %v3083 = vadd.f32 %v2538, %v3082
    %v3084 = vpop.f32.mrf.mxu0
    %v3085 = vpop.f32.mrf.mxu0
    %v3086 = vadd.f32 %v2541, %v3085
    %v3087 = vpop.f32.mrf.mxu0
    %3088 = vmatprep.mubr.bf16.mxu0 0
    %3089 = vmatmul.mubr.bf16.gmra.mxu0 %v2144
    %v3090 = vpop.f32.mrf.mxu0
    %v3091 = vadd.f32 %v2546, %v3090
    %v3092 = vpop.f32.mrf.mxu0
    %v3093 = vpop.f32.mrf.mxu0
    %v3094 = vadd.f32 %v2549, %v3093
    %v3095 = vpop.f32.mrf.mxu0
    %3096 = vmatprep.mubr.bf16.mxu0 0
    %3097 = vmatmul.mubr.bf16.gmra.mxu0 %v2145
    %v3098 = vpop.f32.mrf.mxu0
    %v3099 = vadd.f32 %v2554, %v3098
    %v3100 = vpop.f32.mrf.mxu0
    %v3101 = vpop.f32.mrf.mxu0
    %v3102 = vadd.f32 %v2557, %v3101
    %v3103 = vpop.f32.mrf.mxu0
    %3104 = vmatprep.mubr.bf16.mxu0 0
    %3105 = vmatmul.mubr.bf16.gmra.mxu0 %v2146
    %v3106 = vpop.f32.mrf.mxu0
    %v3107 = vadd.f32 %v2562, %v3106
    %v3108 = vpop.f32.mrf.mxu0
    %v3109 = vpop.f32.mrf.mxu0
    %v3110 = vadd.f32 %v2565, %v3109
    %v3111 = vpop.f32.mrf.mxu0
    %3112 = vmatprep.mubr.bf16.mxu0 0
    %3113 = vmatmul.mubr.bf16.gmra.mxu0 %v2147
    %v3114 = vpop.f32.mrf.mxu0
    %v3115 = vadd.f32 %v2570, %v3114
    %v3116 = vpop.f32.mrf.mxu0
    %v3117 = vpop.f32.mrf.mxu0
    %v3118 = vadd.f32 %v2573, %v3117
    %v3119 = vpop.f32.mrf.mxu0
    %3120 = vmatprep.mubr.bf16.mxu0 0
    %3121 = vmatmul.mubr.bf16.gmra.mxu0 %v2148
    %v3122 = vpop.f32.mrf.mxu0
    %v3123 = vadd.f32 %v2578, %v3122
    %v3124 = vpop.f32.mrf.mxu0
    %v3125 = vpop.f32.mrf.mxu0
    %v3126 = vadd.f32 %v2581, %v3125
    %v3127 = vpop.f32.mrf.mxu0
    %3128 = vmatprep.mubr.bf16.mxu0 0
    %3129 = vmatmul.mubr.bf16.gmra.mxu0 %v2149
    %v3130 = vpop.f32.mrf.mxu0
    %v3131 = vadd.f32 %v2586, %v3130
    %v3132 = vpop.f32.mrf.mxu0
    %v3133 = vpop.f32.mrf.mxu0
    %v3134 = vadd.f32 %v2589, %v3133
    %v3135 = vpop.f32.mrf.mxu0
    %3136 = vmatprep.mubr.bf16.mxu0 0
    %3137 = vmatmul.mubr.bf16.gmra.mxu0 %v2150
    %v3138 = vpop.f32.mrf.mxu0
    %v3139 = vadd.f32 %v2594, %v3138
    %v3140 = vpop.f32.mrf.mxu0
    %v3141 = vpop.f32.mrf.mxu0
    %v3142 = vadd.f32 %v2597, %v3141
    %v3143 = vpop.f32.mrf.mxu0
    %3144 = vmatprep.mubr.bf16.mxu0 0
    %3145 = vmatmul.mubr.bf16.gmra.mxu0 %v2151
    %v3146 = vpop.f32.mrf.mxu0
    %v3147 = vadd.f32 %v2602, %v3146
    %v3148 = vpop.f32.mrf.mxu0
    %v3149 = vpop.f32.mrf.mxu0
    %v3150 = vadd.f32 %v2605, %v3149
    %v3151 = vpop.f32.mrf.mxu0
    %3152 = vmatprep.mubr.bf16.mxu0 0
    %3153 = vmatmul.mubr.bf16.gmra.mxu0 %v2152
    %v3154 = vpop.f32.mrf.mxu0
    %v3155 = vadd.f32 %v2610, %v3154
    %v3156 = vpop.f32.mrf.mxu0
    %v3157 = vpop.f32.mrf.mxu0
    %v3158 = vadd.f32 %v2613, %v3157
    %v3159 = vpop.f32.mrf.mxu0
    %3160 = vmatprep.mubr.bf16.mxu0 0
    %3161 = vmatmul.mubr.bf16.gmra.mxu0 %v2153
    %v3162 = vpop.f32.mrf.mxu0
    %v3163 = vadd.f32 %v2618, %v3162
    %v3164 = vpop.f32.mrf.mxu0
    %v3165 = vpop.f32.mrf.mxu0
    %v3166 = vadd.f32 %v2621, %v3165
    %v3167 = vpop.f32.mrf.mxu0
    %3168 = vmatprep.mubr.bf16.mxu0 0
    %3169 = vmatmul.mubr.bf16.gmra.mxu0 %v2154
    %v3170 = vpop.f32.mrf.mxu0
    %v3171 = vadd.f32 %v2626, %v3170
    %v3172 = vpop.f32.mrf.mxu0
    %v3173 = vpop.f32.mrf.mxu0
    %v3174 = vadd.f32 %v2629, %v3173
    %v3175 = vpop.f32.mrf.mxu0
    %3176 = vmatprep.mubr.bf16.mxu0 0
    %3177 = vmatmul.mubr.bf16.gmra.mxu0 %v2155
    %v3178 = vpop.f32.mrf.mxu0
    %v3179 = vadd.f32 %v2634, %v3178
    %v3180 = vpop.f32.mrf.mxu0
    %v3181 = vpop.f32.mrf.mxu0
    %v3182 = vadd.f32 %v2637, %v3181
    %v3183 = vpop.f32.mrf.mxu0
    %3184 = vmatprep.mubr.bf16.mxu0 0
    %3185 = vmatmul.mubr.bf16.gmra.mxu0 %v2156
    %v3186 = vpop.f32.mrf.mxu0
    %v3187 = vadd.f32 %v2642, %v3186
    %v3188 = vpop.f32.mrf.mxu0
    %v3189 = vpop.f32.mrf.mxu0
    %v3190 = vadd.f32 %v2645, %v3189
    %v3191 = vpop.f32.mrf.mxu0
    %3192 = vmatprep.mubr.bf16.mxu0 0
    %3193 = vmatmul.mubr.bf16.gmra.mxu0 %v2298
    %v3194 = vpop.f32.mrf.mxu0
    %v3195 = vadd.f32 %v2650, %v3194
    %v3196 = vpop.f32.mrf.mxu0
    %v3197 = vpop.f32.mrf.mxu0
    %v3198 = vadd.f32 %v2653, %v3197
    %v3199 = vpop.f32.mrf.mxu0
    %3200 = vmatprep.mubr.bf16.mxu0 0
    %3201 = vmatmul.mubr.bf16.gmra.mxu0 %v2157
    %v3202 = vpop.f32.mrf.mxu0
    %v3203 = vadd.f32 %v2658, %v3202
    %v3204 = vpop.f32.mrf.mxu0
    %v3205 = vpop.f32.mrf.mxu0
    %v3206 = vadd.f32 %v2661, %v3205
    %v3207 = vpop.f32.mrf.mxu0
    %3208 = vmatprep.mubr.bf16.mxu0 0
    %3209 = vmatmul.mubr.bf16.gmra.mxu0 %v2158
    %v3210 = vpop.f32.mrf.mxu0
    %v3211 = vadd.f32 %v2666, %v3210
    %v3212 = vpop.f32.mrf.mxu0
    %v3213 = vpop.f32.mrf.mxu0
    %v3214 = vadd.f32 %v2669, %v3213
    %v3215 = vpop.f32.mrf.mxu0
    %3216 = vmatprep.mubr.bf16.mxu0 0
    %3217 = vmatmul.mubr.bf16.gmra.mxu0 %v2159
    %v3218 = vpop.f32.mrf.mxu0
    %v3219 = vadd.f32 %v2674, %v3218
    %v3220 = vpop.f32.mrf.mxu0
    %v3221 = vpop.f32.mrf.mxu0
    %v3222 = vadd.f32 %v2677, %v3221
    %v3223 = vpop.f32.mrf.mxu0
    %3224 = vmatprep.mubr.bf16.mxu0 0
    %3225 = vmatmul.mubr.bf16.gmra.mxu0 %v2160
    %v3226 = vpop.f32.mrf.mxu0
    %v3227 = vadd.f32 %v2682, %v3226
    %v3228 = vpop.f32.mrf.mxu0
    %v3229 = vpop.f32.mrf.mxu0
    %v3230 = vadd.f32 %v2685, %v3229
    %v3231 = vpop.f32.mrf.mxu0
    %3232 = vmatprep.mubr.bf16.mxu0 0
    %3233 = vmatmul.mubr.bf16.gmra.mxu0 %v2161
    %v3234 = vpop.f32.mrf.mxu0
    %v3235 = vadd.f32 %v2690, %v3234
    %v3236 = vpop.f32.mrf.mxu0
    %v3237 = vpop.f32.mrf.mxu0
    %v3238 = vadd.f32 %v2693, %v3237
    %v3239 = vpop.f32.mrf.mxu0
    %3240 = vmatprep.mubr.bf16.mxu0 0
    %3241 = vmatmul.mubr.bf16.gmra.mxu0 %v2162
    %v3242 = vpop.f32.mrf.mxu0
    %v3243 = vadd.f32 %v2698, %v3242
    %v3244 = vpop.f32.mrf.mxu0
    %v3245 = vpop.f32.mrf.mxu0
    %v3246 = vadd.f32 %v2701, %v3245
    %v3247 = vpop.f32.mrf.mxu0
    %3248 = vmatprep.mubr.bf16.mxu0 0
    %3249 = vmatmul.mubr.bf16.gmra.mxu0 %v2163
    %v3250 = vpop.f32.mrf.mxu0
    %v3251 = vadd.f32 %v2706, %v3250
    %v3252 = vpop.f32.mrf.mxu0
    %v3253 = vpop.f32.mrf.mxu0
    %v3254 = vadd.f32 %v2709, %v3253
    %v3255 = vpop.f32.mrf.mxu0
    %3256 = vmatprep.mubr.bf16.mxu0 0
    %3257 = vmatmul.mubr.bf16.gmra.mxu0 %v2164
    %v3258 = vpop.f32.mrf.mxu0
    %v3259 = vadd.f32 %v2714, %v3258
    %v3260 = vpop.f32.mrf.mxu0
    %v3261 = vpop.f32.mrf.mxu0
    %v3262 = vadd.f32 %v2717, %v3261
    %v3263 = vpop.f32.mrf.mxu0
    %3264 = vmatprep.mubr.bf16.mxu0 0
    %3265 = vmatmul.mubr.bf16.gmra.mxu0 %v2165
    %v3266 = vpop.f32.mrf.mxu0
    %v3267 = vadd.f32 %v2722, %v3266
    %v3268 = vpop.f32.mrf.mxu0
    %v3269 = vpop.f32.mrf.mxu0
    %v3270 = vadd.f32 %v2725, %v3269
    %v3271 = vpop.f32.mrf.mxu0
    %3272 = vmatprep.mubr.bf16.mxu0 0
    %3273 = vmatmul.mubr.bf16.gmra.mxu0 %v2166
    %v3274 = vpop.f32.mrf.mxu0
    %v3275 = vadd.f32 %v2730, %v3274
    %v3276 = vpop.f32.mrf.mxu0
    %v3277 = vpop.f32.mrf.mxu0
    %v3278 = vadd.f32 %v2733, %v3277
    %v3279 = vpop.f32.mrf.mxu0
    %3280 = vmatprep.mubr.bf16.mxu0 0
    %3281 = vmatmul.mubr.bf16.gmra.mxu0 %v2167
    %v3282 = vpop.f32.mrf.mxu0
    %v3283 = vadd.f32 %v2738, %v3282
    %v3284 = vpop.f32.mrf.mxu0
    %v3285 = vpop.f32.mrf.mxu0
    %v3286 = vadd.f32 %v2741, %v3285
    %v3287 = vpop.f32.mrf.mxu0
    %3288 = vmatprep.mubr.bf16.mxu0 0
    %3289 = vmatmul.mubr.bf16.gmra.mxu0 %v2168
    %v3290 = vpop.f32.mrf.mxu0
    %v3291 = vadd.f32 %v2746, %v3290
    %v3292 = vpop.f32.mrf.mxu0
    %v3293 = vpop.f32.mrf.mxu0
    %v3294 = vadd.f32 %v2749, %v3293
    %v3295 = vpop.f32.mrf.mxu0
    %3296 = vmatprep.mubr.bf16.mxu0 0
    %3297 = vmatmul.mubr.bf16.gmra.mxu0 %v2169
    %v3298 = vpop.f32.mrf.mxu0
    %v3299 = vadd.f32 %v2754, %v3298
    %v3300 = vpop.f32.mrf.mxu0
    %v3301 = vpop.f32.mrf.mxu0
    %v3302 = vadd.f32 %v2757, %v3301
    %v3303 = vpop.f32.mrf.mxu0
    %3304 = vmatprep.mubr.bf16.mxu0 0
    %3305 = vmatmul.mubr.bf16.gmra.mxu0 %v2170
    %v3306 = vpop.f32.mrf.mxu0
    %v3307 = vadd.f32 %v2762, %v3306
    %v3308 = vpop.f32.mrf.mxu0
    %v3309 = vpop.f32.mrf.mxu0
    %v3310 = vadd.f32 %v2765, %v3309
    %v3311 = vpop.f32.mrf.mxu0
    %3312 = vmatprep.mubr.bf16.mxu0 0
    %3313 = vmatmul.mubr.bf16.gmra.mxu0 %v2171
    %v3314 = vpop.f32.mrf.mxu0
    %v3315 = vadd.f32 %v2770, %v3314
    %v3316 = vpop.f32.mrf.mxu0
    %v3317 = vpop.f32.mrf.mxu0
    %v3318 = vadd.f32 %v2773, %v3317
    %v3319 = vpop.f32.mrf.mxu0
    %3320 = vmatprep.mubr.bf16.mxu0 0
    %3321 = vmatmul.mubr.bf16.gmra.mxu0 %v2299
    %v3322 = vpop.f32.mrf.mxu0
    %v3323 = vadd.f32 %v2778, %v3322
    %v3324 = vpop.f32.mrf.mxu0
    %v3325 = vpop.f32.mrf.mxu0
    %v3326 = vadd.f32 %v2781, %v3325
    %v3327 = vpop.f32.mrf.mxu0
    %3328 = vmatprep.mubr.bf16.mxu0 0
    %3329 = vmatmul.mubr.bf16.gmra.mxu0 %v2172
    %v3330 = vpop.f32.mrf.mxu0
    %v3331 = vadd.f32 %v2786, %v3330
    %v3332 = vpop.f32.mrf.mxu0
    %v3333 = vpop.f32.mrf.mxu0
    %v3334 = vadd.f32 %v2789, %v3333
    %v3335 = vpop.f32.mrf.mxu0
    %3336 = vmatprep.mubr.bf16.mxu0 0
    %3337 = vmatmul.mubr.bf16.gmra.mxu0 %v2173
    %v3338 = vpop.f32.mrf.mxu0
    %v3339 = vadd.f32 %v2794, %v3338
    %v3340 = vpop.f32.mrf.mxu0
    %v3341 = vpop.f32.mrf.mxu0
    %v3342 = vadd.f32 %v2797, %v3341
    %v3343 = vpop.f32.mrf.mxu0
    %3344 = vmatprep.mubr.bf16.mxu0 0
    %3345 = vmatmul.mubr.bf16.gmra.mxu0 %v2174
    %v3346 = vpop.f32.mrf.mxu0
    %v3347 = vadd.f32 %v2802, %v3346
    %v3348 = vpop.f32.mrf.mxu0
    %v3349 = vpop.f32.mrf.mxu0
    %v3350 = vadd.f32 %v2805, %v3349
    %v3351 = vpop.f32.mrf.mxu0
    %3352 = vmatprep.mubr.bf16.mxu0 0
    %3353 = vmatmul.mubr.bf16.gmra.mxu0 %v2175
    %v3354 = vpop.f32.mrf.mxu0
    %v3355 = vadd.f32 %v2810, %v3354
    %v3356 = vpop.f32.mrf.mxu0
    %v3357 = vpop.f32.mrf.mxu0
    %v3358 = vadd.f32 %v2813, %v3357
    %v3359 = vpop.f32.mrf.mxu0
    %3360 = vmatprep.mubr.bf16.mxu0 0
    %3361 = vmatmul.mubr.bf16.gmra.mxu0 %v2176
    %v3362 = vpop.f32.mrf.mxu0
    %v3363 = vadd.f32 %v2818, %v3362
    %v3364 = vpop.f32.mrf.mxu0
    %v3365 = vpop.f32.mrf.mxu0
    %v3366 = vadd.f32 %v2821, %v3365
    %v3367 = vpop.f32.mrf.mxu0
    %3368 = vmatprep.mubr.bf16.mxu0 0
    %3369 = vmatmul.mubr.bf16.gmra.mxu0 %v2177
    %v3370 = vpop.f32.mrf.mxu0
    %v3371 = vadd.f32 %v2826, %v3370
    %v3372 = vpop.f32.mrf.mxu0
    %v3373 = vpop.f32.mrf.mxu0
    %v3374 = vadd.f32 %v2829, %v3373
    %v3375 = vpop.f32.mrf.mxu0
    %3376 = vmatprep.mubr.bf16.mxu0 0
    %3377 = vmatmul.mubr.bf16.gmra.mxu0 %v2178
    %v3378 = vpop.f32.mrf.mxu0
    %v3379 = vadd.f32 %v2834, %v3378
    %v3380 = vpop.f32.mrf.mxu0
    %v3381 = vpop.f32.mrf.mxu0
    %v3382 = vadd.f32 %v2837, %v3381
    %v3383 = vpop.f32.mrf.mxu0
    %3384 = vmatprep.mubr.bf16.mxu0 0
    %3385 = vmatmul.mubr.bf16.gmra.mxu0 %v2179
    %v3386 = vpop.f32.mrf.mxu0
    %v3387 = vadd.f32 %v2842, %v3386
    %v3388 = vpop.f32.mrf.mxu0
    %v3389 = vpop.f32.mrf.mxu0
    %v3390 = vadd.f32 %v2845, %v3389
    %v3391 = vpop.f32.mrf.mxu0
    %3392 = vmatprep.mubr.bf16.mxu0 0
    %3393 = vmatmul.mubr.bf16.gmra.mxu0 %v2180
    %v3394 = vpop.f32.mrf.mxu0
    %v3395 = vadd.f32 %v2850, %v3394
    %v3396 = vpop.f32.mrf.mxu0
    %v3397 = vpop.f32.mrf.mxu0
    %v3398 = vadd.f32 %v2853, %v3397
    %v3399 = vpop.f32.mrf.mxu0
    %3400 = vmatprep.mubr.bf16.mxu0 0
    %3401 = vmatmul.mubr.bf16.gmra.mxu0 %v2181
    %v3402 = vpop.f32.mrf.mxu0
    %v3403 = vadd.f32 %v2858, %v3402
    %v3404 = vpop.f32.mrf.mxu0
    %v3405 = vpop.f32.mrf.mxu0
    %v3406 = vadd.f32 %v2861, %v3405
    %v3407 = vpop.f32.mrf.mxu0
    %3408 = vmatprep.mubr.bf16.mxu0 0
    %3409 = vmatmul.mubr.bf16.gmra.mxu0 %v2182
    %v3410 = vpop.f32.mrf.mxu0
    %v3411 = vadd.f32 %v2866, %v3410
    %v3412 = vpop.f32.mrf.mxu0
    %v3413 = vpop.f32.mrf.mxu0
    %v3414 = vadd.f32 %v2869, %v3413
    %v3415 = vpop.f32.mrf.mxu0
    %3416 = vmatprep.mubr.bf16.mxu0 0
    %3417 = vmatmul.mubr.bf16.gmra.mxu0 %v2183
    %v3418 = vpop.f32.mrf.mxu0
    %v3419 = vadd.f32 %v2874, %v3418
    %v3420 = vpop.f32.mrf.mxu0
    %v3421 = vpop.f32.mrf.mxu0
    %v3422 = vadd.f32 %v2877, %v3421
    %v3423 = vpop.f32.mrf.mxu0
    %3424 = vmatprep.mubr.bf16.mxu0 0
    %3425 = vmatmul.mubr.bf16.gmra.mxu0 %v2184
    %v3426 = vpop.f32.mrf.mxu0
    %v3427 = vadd.f32 %v2882, %v3426
    %v3428 = vpop.f32.mrf.mxu0
    %v3429 = vpop.f32.mrf.mxu0
    %v3430 = vadd.f32 %v2885, %v3429
    %v3431 = vpop.f32.mrf.mxu0
    %3432 = vmatprep.mubr.bf16.mxu0 0
    %3433 = vmatmul.mubr.bf16.gmra.mxu0 %v2185
    %v3434 = vpop.f32.mrf.mxu0
    %v3435 = vadd.f32 %v2890, %v3434
    %v3436 = vpop.f32.mrf.mxu0
    %v3437 = vpop.f32.mrf.mxu0
    %v3438 = vadd.f32 %v2893, %v3437
    %v3439 = vpop.f32.mrf.mxu0
    %3440 = vmatprep.mubr.bf16.mxu0 0
    %3441 = vmatmul.mubr.bf16.gmra.mxu0 %v2186
    %v3442 = vpop.f32.mrf.mxu0
    %v3443 = vadd.f32 %v2898, %v3442
    %v3444 = vpop.f32.mrf.mxu0
    %v3445 = vpop.f32.mrf.mxu0
    %v3446 = vadd.f32 %v2901, %v3445
    %v3447 = vpop.f32.mrf.mxu0
    %3448 = vmatprep.mubr.bf16.mxu0 0
    %3449 = vmatmul.mubr.bf16.gmra.mxu0 %v2300
    %v3450 = vpop.f32.mrf.mxu0
    %v3451 = vadd.f32 %v2906, %v3450
    %v3452 = vpop.f32.mrf.mxu0
    %v3453 = vpop.f32.mrf.mxu0
    %v3454 = vadd.f32 %v2909, %v3453
    %v3455 = vpop.f32.mrf.mxu0
    %3456 = vmatprep.mubr.bf16.mxu0 0
    %3457 = vmatmul.mubr.bf16.gmra.mxu0 %v2187
    %v3458 = vpop.f32.mrf.mxu0
    %v3459 = vadd.f32 %v2914, %v3458
    %v3460 = vpop.f32.mrf.mxu0
    %v3461 = vpop.f32.mrf.mxu0
    %v3462 = vadd.f32 %v2917, %v3461
    %v3463 = vpop.f32.mrf.mxu0
    %3464 = vmatprep.mubr.bf16.mxu0 0
    %3465 = vmatmul.mubr.bf16.gmra.mxu0 %v2188
    %v3466 = vpop.f32.mrf.mxu0
    %v3467 = vadd.f32 %v2922, %v3466
    %v3468 = vpop.f32.mrf.mxu0
    %v3469 = vpop.f32.mrf.mxu0
    %v3470 = vadd.f32 %v2925, %v3469
    %v3471 = vpop.f32.mrf.mxu0
    %3472 = vmatprep.mubr.bf16.mxu0 0
    %3473 = vmatmul.mubr.bf16.gmra.mxu0 %v2189
    %v3474 = vpop.f32.mrf.mxu0
    %v3475 = vadd.f32 %v2930, %v3474
    %v3476 = vpop.f32.mrf.mxu0
    %v3477 = vpop.f32.mrf.mxu0
    %v3478 = vadd.f32 %v2933, %v3477
    %v3479 = vpop.f32.mrf.mxu0
    %3480 = vmatprep.mubr.bf16.mxu0 0
    %3481 = vmatmul.mubr.bf16.gmra.mxu0 %v2190
    %v3482 = vpop.f32.mrf.mxu0
    %v3483 = vadd.f32 %v2938, %v3482
    %v3484 = vpop.f32.mrf.mxu0
    %v3485 = vpop.f32.mrf.mxu0
    %v3486 = vadd.f32 %v2941, %v3485
    %v3487 = vpop.f32.mrf.mxu0
    %3488 = vmatprep.mubr.bf16.mxu0 0
    %3489 = vmatmul.mubr.bf16.gmra.mxu0 %v2191
    %v3490 = vpop.f32.mrf.mxu0
    %v3491 = vadd.f32 %v2946, %v3490
    %v3492 = vpop.f32.mrf.mxu0
    %v3493 = vpop.f32.mrf.mxu0
    %v3494 = vadd.f32 %v2949, %v3493
    %v3495 = vpop.f32.mrf.mxu0
    %3496 = vmatprep.mubr.bf16.mxu0 0
    %3497 = vmatmul.mubr.bf16.gmra.mxu0 %v2192
    %v3498 = vpop.f32.mrf.mxu0
    %v3499 = vadd.f32 %v2954, %v3498
    %v3500 = vpop.f32.mrf.mxu0
    %v3501 = vpop.f32.mrf.mxu0
    %v3502 = vadd.f32 %v2957, %v3501
    %v3503 = vpop.f32.mrf.mxu0
    %3504 = vmatprep.mubr.bf16.mxu0 0
    %3505 = vmatmul.mubr.bf16.gmra.mxu0 %v2193
    %v3506 = vpop.f32.mrf.mxu0
    %v3507 = vadd.f32 %v2962, %v3506
    %v3508 = vpop.f32.mrf.mxu0
    %v3509 = vpop.f32.mrf.mxu0
    %v3510 = vadd.f32 %v2965, %v3509
    %v3511 = vpop.f32.mrf.mxu0
    %3512 = vmatprep.mubr.bf16.mxu0 0
    %3513 = vmatmul.mubr.bf16.gmra.mxu0 %v2194
    %v3514 = vpop.f32.mrf.mxu0
    %v3515 = vadd.f32 %v2970, %v3514
    %v3516 = vpop.f32.mrf.mxu0
    %v3517 = vpop.f32.mrf.mxu0
    %v3518 = vadd.f32 %v2973, %v3517
    %v3519 = vpop.f32.mrf.mxu0
    %3520 = vmatprep.mubr.bf16.mxu0 0
    %3521 = vmatmul.mubr.bf16.gmra.mxu0 %v2195
    %v3522 = vpop.f32.mrf.mxu0
    %v3523 = vadd.f32 %v2978, %v3522
    %v3524 = vpop.f32.mrf.mxu0
    %v3525 = vpop.f32.mrf.mxu0
    %v3526 = vadd.f32 %v2981, %v3525
    %v3527 = vpop.f32.mrf.mxu0
    %3528 = vmatprep.mubr.bf16.mxu0 0
    %3529 = vmatmul.mubr.bf16.gmra.mxu0 %v2196
    %v3530 = vpop.f32.mrf.mxu0
    %v3531 = vadd.f32 %v2986, %v3530
    %v3532 = vpop.f32.mrf.mxu0
    %v3533 = vpop.f32.mrf.mxu0
    %v3534 = vadd.f32 %v2989, %v3533
    %v3535 = vpop.f32.mrf.mxu0
    %3536 = vmatprep.mubr.bf16.mxu0 0
    %3537 = vmatmul.mubr.bf16.gmra.mxu0 %v2197
    %v3538 = vpop.f32.mrf.mxu0
    %v3539 = vadd.f32 %v2994, %v3538
    %v3540 = vpop.f32.mrf.mxu0
    %v3541 = vpop.f32.mrf.mxu0
    %v3542 = vadd.f32 %v2997, %v3541
    %v3543 = vpop.f32.mrf.mxu0
    %3544 = vmatprep.mubr.bf16.mxu0 0
    %3545 = vmatmul.mubr.bf16.gmra.mxu0 %v2198
    %v3546 = vpop.f32.mrf.mxu0
    %v3547 = vadd.f32 %v3002, %v3546
    %v3548 = vpop.f32.mrf.mxu0
    %v3549 = vpop.f32.mrf.mxu0
    %v3550 = vadd.f32 %v3005, %v3549
    %v3551 = vpop.f32.mrf.mxu0
    %3552 = vmatprep.mubr.bf16.mxu0 0
    %3553 = vmatmul.mubr.bf16.gmra.mxu0 %v2199
    %v3554 = vpop.f32.mrf.mxu0
    %v3555 = vadd.f32 %v3010, %v3554
    %v3556 = vpop.f32.mrf.mxu0
    %v3557 = vpop.f32.mrf.mxu0
    %v3558 = vadd.f32 %v3013, %v3557
    %v3559 = vpop.f32.mrf.mxu0
    %3560 = vmatprep.mubr.bf16.mxu0 0
    %3561 = vmatmul.mubr.bf16.gmra.mxu0 %v2200
    %v3562 = vpop.f32.mrf.mxu0
    %v3563 = vadd.f32 %v3018, %v3562
    %v3564 = vpop.f32.mrf.mxu0
    %v3565 = vpop.f32.mrf.mxu0
    %v3566 = vadd.f32 %v3021, %v3565
    %v3567 = vpop.f32.mrf.mxu0
    %3568 = vmatprep.mubr.bf16.mxu0 0
    %3569 = vmatmul.mubr.bf16.gmra.mxu0 %v2201
    %v3570 = vpop.f32.mrf.mxu0
    %v3571 = vadd.f32 %v3026, %v3570
    %v3572 = vpop.f32.mrf.mxu0
    %v3573 = vpop.f32.mrf.mxu0
    %v3574 = vadd.f32 %v3029, %v3573
    %v3575 = vpop.f32.mrf.mxu0
    %3576 = vmatprep.mubr.bf16.mxu0 0
    %3577 = vmatmul.mubr.bf16.gmra.mxu0 %v2301
    %v3578 = vpop.f32.mrf.mxu0
    %v3579 = vadd.f32 %v3034, %v3578
    %v3580 = vpop.f32.mrf.mxu0
    %v3581 = vpop.f32.mrf.mxu0
    %v3582 = vadd.f32 %v3037, %v3581
    %v3583 = vpop.f32.mrf.mxu0
    %3584 = vdwg.mxu0
    %v3633 = vunpack.c.l.b16 %v2202
    %v3634 = vunpack.c.l.b16 %v2203
    %v3635 = vunpack.c.l.b16 %v2204
    %v3636 = vunpack.c.l.b16 %v2205
    %v3637 = vunpack.c.l.b16 %v2206
    %v3638 = vunpack.c.l.b16 %v2207
    %v3639 = vunpack.c.l.b16 %v2208
    %v3640 = vunpack.c.l.b16 %v2209
    %v3641 = vunpack.c.l.b16 %v2210
    %v3642 = vunpack.c.l.b16 %v2211
    %v3643 = vunpack.c.l.b16 %v2212
    %v3644 = vunpack.c.l.b16 %v2213
    %v3645 = vunpack.c.l.b16 %v2214
    %v3646 = vunpack.c.l.b16 %v2215
    %v3647 = vunpack.c.l.b16 %v2216
    %v3648 = vunpack.c.l.b16 %v2217
    %v3649 = vunpack.c.l.b16 %v2218
    %v3650 = vunpack.c.l.b16 %v2219
    %v3651 = vunpack.c.l.b16 %v2220
    %v3652 = vunpack.c.l.b16 %v2221
    %v3653 = vunpack.c.l.b16 %v2222
    %v3654 = vunpack.c.l.b16 %v2223
    %v3655 = vunpack.c.l.b16 %v2224
    %v3656 = vunpack.c.l.b16 %v2225
    %v3657 = vunpack.c.l.b16 %v2226
    %v3658 = vunpack.c.l.b16 %v2227
    %v3659 = vunpack.c.l.b16 %v2228
    %v3660 = vunpack.c.l.b16 %v2229
    %v3661 = vunpack.c.l.b16 %v2230
    %v3662 = vunpack.c.l.b16 %v2231
    %v3663 = vunpack.c.l.b16 %v2232
    %v3664 = vunpack.c.l.b16 %v2233
    %v3665 = vunpack.c.l.b16 %v2234
    %v3666 = vunpack.c.l.b16 %v2235
    %v3667 = vunpack.c.l.b16 %v2236
    %v3668 = vunpack.c.l.b16 %v2237
    %v3669 = vunpack.c.l.b16 %v2238
    %v3670 = vunpack.c.l.b16 %v2239
    %v3671 = vunpack.c.l.b16 %v2240
    %v3672 = vunpack.c.l.b16 %v2241
    %v3673 = vunpack.c.l.b16 %v2242
    %v3674 = vunpack.c.l.b16 %v2243
    %v3675 = vunpack.c.l.b16 %v2244
    %v3676 = vunpack.c.l.b16 %v2245
    %v3677 = vunpack.c.l.b16 %v2246
    %v3678 = vunpack.c.l.b16 %v2247
    %v3679 = vunpack.c.l.b16 %v2248
    %v3680 = vunpack.c.l.b16 %v2249
    %v3681 = vpack.c.b16 %v3634, %v3633
    %v3682 = vpack.c.b16 %v3636, %v3635
    %v3683 = vpack.c.b16 %v3638, %v3637
    %v3684 = vpack.c.b16 %v3640, %v3639
    %v3685 = vpack.c.b16 %v3642, %v3641
    %v3686 = vpack.c.b16 %v3644, %v3643
    %v3687 = vpack.c.b16 %v3646, %v3645
    %v3688 = vpack.c.b16 %v3648, %v3647
    %v3689 = vpack.c.b16 %v3650, %v3649
    %v3690 = vpack.c.b16 %v3652, %v3651
    %v3691 = vpack.c.b16 %v3654, %v3653
    %v3692 = vpack.c.b16 %v3656, %v3655
    %v3693 = vpack.c.b16 %v3658, %v3657
    %v3694 = vpack.c.b16 %v3660, %v3659
    %v3695 = vpack.c.b16 %v3662, %v3661
    %v3696 = vpack.c.b16 %v3664, %v3663
    %v3697 = vpack.c.b16 %v3666, %v3665
    %v3698 = vpack.c.b16 %v3668, %v3667
    %v3699 = vpack.c.b16 %v3670, %v3669
    %v3700 = vpack.c.b16 %v3672, %v3671
    %v3701 = vpack.c.b16 %v3674, %v3673
    %v3702 = vpack.c.b16 %v3676, %v3675
    %v3703 = vpack.c.b16 %v3678, %v3677
    %v3704 = vpack.c.b16 %v3680, %v3679
    %3729 = vmatprep.subr.bf16.mxu0 0
    %3730 = vmatpush1.bf16.msra.mxu0 %v3688
    %3731 = vmatprep.subr.bf16.mxu0 0
    %3732 = vmatpush1.bf16.msra.mxu0 %v3687
    %3733 = vmatprep.subr.bf16.mxu0 0
    %3734 = vmatpush1.bf16.msra.mxu0 %v3686
    %3735 = vmatprep.subr.bf16.mxu0 0
    %3736 = vmatpush1.bf16.msra.mxu0 %v3685
    %3737 = vmatprep.subr.bf16.mxu0 0
    %3738 = vmatpush1.bf16.msra.mxu0 %v3684
    %3739 = vmatprep.subr.bf16.mxu0 0
    %3740 = vmatpush1.bf16.msra.mxu0 %v3683
    %3741 = vmatprep.subr.bf16.mxu0 0
    %3742 = vmatpush1.bf16.msra.mxu0 %v3682
    %3743 = vmatprep.subr.bf16.mxu0 0
    %3744 = vmatpush1.bf16.msra.mxu0 %v3681
    %3745 = vmatprep.subr.bf16.mxu0 0
    %3746 = vmatpush2.bf16.msra.mxu0 %v3696
    %3747 = vmatprep.subr.bf16.mxu0 0
    %3748 = vmatpush2.bf16.msra.mxu0 %v3695
    %3749 = vmatprep.subr.bf16.mxu0 0
    %3750 = vmatpush2.bf16.msra.mxu0 %v3694
    %3751 = vmatprep.subr.bf16.mxu0 0
    %3752 = vmatpush2.bf16.msra.mxu0 %v3693
    %3753 = vmatprep.subr.bf16.mxu0 0
    %3754 = vmatpush2.bf16.msra.mxu0 %v3692
    %3755 = vmatprep.subr.bf16.mxu0 0
    %3756 = vmatpush2.bf16.msra.mxu0 %v3691
    %3757 = vmatprep.subr.bf16.mxu0 0
    %3758 = vmatpush2.bf16.msra.mxu0 %v3690
    %3759 = vmatprep.subr.bf16.mxu0 0
    %3760 = vmatpush2.bf16.msra.mxu0 %v3689
    %3761 = vmatprep.mubr.bf16.mxu0 0
    %3762 = vmatmul.mubr.bf16.gmra.mxu0 %v1894
    %v3763 = vpop.f32.mrf.mxu0
    %v3764 = vadd.f32 %v3075, %v3763
    %v3765 = vpop.f32.mrf.mxu0
    %v3766 = vpop.f32.mrf.mxu0
    %v3767 = vadd.f32 %v3078, %v3766
    %v3768 = vpop.f32.mrf.mxu0
    %3769 = vmatprep.mubr.bf16.mxu0 %v1339
    %3770 = vmatmul.mubr.bf16.gmra.mxu0 %v1895
    %v3771 = vpop.f32.mrf.mxu0
    %v3772 = vadd.f32 %v3083, %v3771
    %v3773 = vpop.f32.mrf.mxu0
    %v3774 = vpop.f32.mrf.mxu0
    %v3775 = vadd.f32 %v3086, %v3774
    %v3776 = vpop.f32.mrf.mxu0
    %3777 = vmatprep.mubr.bf16.mxu0 %v1340
    %3778 = vmatmul.mubr.bf16.gmra.mxu0 %v1896
    %v3779 = vpop.f32.mrf.mxu0
    %v3780 = vadd.f32 %v3091, %v3779
    %v3781 = vpop.f32.mrf.mxu0
    %v3782 = vpop.f32.mrf.mxu0
    %v3783 = vadd.f32 %v3094, %v3782
    %v3784 = vpop.f32.mrf.mxu0
    %3785 = vmatprep.mubr.bf16.mxu0 %v1341
    %3786 = vmatmul.mubr.bf16.gmra.mxu0 %v1897
    %v3787 = vpop.f32.mrf.mxu0
    %v3788 = vadd.f32 %v3099, %v3787
    %v3789 = vpop.f32.mrf.mxu0
    %v3790 = vpop.f32.mrf.mxu0
    %v3791 = vadd.f32 %v3102, %v3790
    %v3792 = vpop.f32.mrf.mxu0
    %3793 = vmatprep.mubr.bf16.mxu0 %v1342
    %3794 = vmatmul.mubr.bf16.gmra.mxu0 %v1898
    %v3795 = vpop.f32.mrf.mxu0
    %v3796 = vadd.f32 %v3107, %v3795
    %v3797 = vpop.f32.mrf.mxu0
    %v3798 = vpop.f32.mrf.mxu0
    %v3799 = vadd.f32 %v3110, %v3798
    %v3800 = vpop.f32.mrf.mxu0
    %3801 = vmatprep.mubr.bf16.mxu0 %v1343
    %3802 = vmatmul.mubr.bf16.gmra.mxu0 %v1899
    %v3803 = vpop.f32.mrf.mxu0
    %v3804 = vadd.f32 %v3115, %v3803
    %v3805 = vpop.f32.mrf.mxu0
    %v3806 = vpop.f32.mrf.mxu0
    %v3807 = vadd.f32 %v3118, %v3806
    %v3808 = vpop.f32.mrf.mxu0
    %3809 = vmatprep.mubr.bf16.mxu0 %v1344
    %3810 = vmatmul.mubr.bf16.gmra.mxu0 %v1900
    %v3811 = vpop.f32.mrf.mxu0
    %v3812 = vadd.f32 %v3123, %v3811
    %v3813 = vpop.f32.mrf.mxu0
    %v3814 = vpop.f32.mrf.mxu0
    %v3815 = vadd.f32 %v3126, %v3814
    %v3816 = vpop.f32.mrf.mxu0
    %3817 = vmatprep.mubr.bf16.mxu0 %v1345
    %3818 = vmatmul.mubr.bf16.gmra.mxu0 %v1901
    %v3819 = vpop.f32.mrf.mxu0
    %v3820 = vadd.f32 %v3131, %v3819
    %v3821 = vpop.f32.mrf.mxu0
    %v3822 = vpop.f32.mrf.mxu0
    %v3823 = vadd.f32 %v3134, %v3822
    %v3824 = vpop.f32.mrf.mxu0
    %3825 = vmatprep.mubr.bf16.mxu0 %v1346
    %3826 = vmatmul.mubr.bf16.gmra.mxu0 %v1902
    %v3827 = vpop.f32.mrf.mxu0
    %v3828 = vadd.f32 %v3139, %v3827
    %v3829 = vpop.f32.mrf.mxu0
    %v3830 = vpop.f32.mrf.mxu0
    %v3831 = vadd.f32 %v3142, %v3830
    %v3832 = vpop.f32.mrf.mxu0
    %3833 = vmatprep.mubr.bf16.mxu0 %v1347
    %3834 = vmatmul.mubr.bf16.gmra.mxu0 %v1903
    %v3835 = vpop.f32.mrf.mxu0
    %v3836 = vadd.f32 %v3147, %v3835
    %v3837 = vpop.f32.mrf.mxu0
    %v3838 = vpop.f32.mrf.mxu0
    %v3839 = vadd.f32 %v3150, %v3838
    %v3840 = vpop.f32.mrf.mxu0
    %3841 = vmatprep.mubr.bf16.mxu0 %v1348
    %3842 = vmatmul.mubr.bf16.gmra.mxu0 %v1904
    %v3843 = vpop.f32.mrf.mxu0
    %v3844 = vadd.f32 %v3155, %v3843
    %v3845 = vpop.f32.mrf.mxu0
    %v3846 = vpop.f32.mrf.mxu0
    %v3847 = vadd.f32 %v3158, %v3846
    %v3848 = vpop.f32.mrf.mxu0
    %3849 = vmatprep.mubr.bf16.mxu0 %v1349
    %3850 = vmatmul.mubr.bf16.gmra.mxu0 %v1905
    %v3851 = vpop.f32.mrf.mxu0
    %v3852 = vadd.f32 %v3163, %v3851
    %v3853 = vpop.f32.mrf.mxu0
    %v3854 = vpop.f32.mrf.mxu0
    %v3855 = vadd.f32 %v3166, %v3854
    %v3856 = vpop.f32.mrf.mxu0
    %3857 = vmatprep.mubr.bf16.mxu0 %v1350
    %3858 = vmatmul.mubr.bf16.gmra.mxu0 %v1906
    %v3859 = vpop.f32.mrf.mxu0
    %v3860 = vadd.f32 %v3171, %v3859
    %v3861 = vpop.f32.mrf.mxu0
    %v3862 = vpop.f32.mrf.mxu0
    %v3863 = vadd.f32 %v3174, %v3862
    %v3864 = vpop.f32.mrf.mxu0
    %3865 = vmatprep.mubr.bf16.mxu0 %v1351
    %3866 = vmatmul.mubr.bf16.gmra.mxu0 %v1907
    %v3867 = vpop.f32.mrf.mxu0
    %v3868 = vadd.f32 %v3179, %v3867
    %v3869 = vpop.f32.mrf.mxu0
    %v3870 = vpop.f32.mrf.mxu0
    %v3871 = vadd.f32 %v3182, %v3870
    %v3872 = vpop.f32.mrf.mxu0
    %3873 = vmatprep.mubr.bf16.mxu0 %v1352
    %3874 = vmatmul.mubr.bf16.gmra.mxu0 %v1908
    %v3875 = vpop.f32.mrf.mxu0
    %v3876 = vadd.f32 %v3187, %v3875
    %v3877 = vpop.f32.mrf.mxu0
    %v3878 = vpop.f32.mrf.mxu0
    %v3879 = vadd.f32 %v3190, %v3878
    %v3880 = vpop.f32.mrf.mxu0
    %3881 = vmatprep.mubr.bf16.mxu0 %v1353
    %3882 = vmatmul.mubr.bf16.gmra.mxu0 %v1909
    %v3883 = vpop.f32.mrf.mxu0
    %v3884 = vadd.f32 %v3195, %v3883
    %v3885 = vpop.f32.mrf.mxu0
    %v3886 = vpop.f32.mrf.mxu0
    %v3887 = vadd.f32 %v3198, %v3886
    %v3888 = vpop.f32.mrf.mxu0
    %3889 = vmatprep.mubr.bf16.mxu0 0
    %3890 = vmatmul.mubr.bf16.gmra.mxu0 %v1894
    %v3891 = vpop.f32.mrf.mxu0
    %v3892 = vadd.f32 %v3203, %v3891
    %v3893 = vpop.f32.mrf.mxu0
    %v3894 = vpop.f32.mrf.mxu0
    %v3895 = vadd.f32 %v3206, %v3894
    %v3896 = vpop.f32.mrf.mxu0
    %3897 = vmatprep.mubr.bf16.mxu0 %v1355
    %3898 = vmatmul.mubr.bf16.gmra.mxu0 %v1910
    %v3899 = vpop.f32.mrf.mxu0
    %v3900 = vadd.f32 %v3211, %v3899
    %v3901 = vpop.f32.mrf.mxu0
    %v3902 = vpop.f32.mrf.mxu0
    %v3903 = vadd.f32 %v3214, %v3902
    %v3904 = vpop.f32.mrf.mxu0
    %3905 = vmatprep.mubr.bf16.mxu0 %v1356
    %3906 = vmatmul.mubr.bf16.gmra.mxu0 %v1911
    %v3907 = vpop.f32.mrf.mxu0
    %v3908 = vadd.f32 %v3219, %v3907
    %v3909 = vpop.f32.mrf.mxu0
    %v3910 = vpop.f32.mrf.mxu0
    %v3911 = vadd.f32 %v3222, %v3910
    %v3912 = vpop.f32.mrf.mxu0
    %3913 = vmatprep.mubr.bf16.mxu0 %v1357
    %3914 = vmatmul.mubr.bf16.gmra.mxu0 %v1912
    %v3915 = vpop.f32.mrf.mxu0
    %v3916 = vadd.f32 %v3227, %v3915
    %v3917 = vpop.f32.mrf.mxu0
    %v3918 = vpop.f32.mrf.mxu0
    %v3919 = vadd.f32 %v3230, %v3918
    %v3920 = vpop.f32.mrf.mxu0
    %3921 = vmatprep.mubr.bf16.mxu0 %v1358
    %3922 = vmatmul.mubr.bf16.gmra.mxu0 %v1913
    %v3923 = vpop.f32.mrf.mxu0
    %v3924 = vadd.f32 %v3235, %v3923
    %v3925 = vpop.f32.mrf.mxu0
    %v3926 = vpop.f32.mrf.mxu0
    %v3927 = vadd.f32 %v3238, %v3926
    %v3928 = vpop.f32.mrf.mxu0
    %3929 = vmatprep.mubr.bf16.mxu0 %v1359
    %3930 = vmatmul.mubr.bf16.gmra.mxu0 %v1914
    %v3931 = vpop.f32.mrf.mxu0
    %v3932 = vadd.f32 %v3243, %v3931
    %v3933 = vpop.f32.mrf.mxu0
    %v3934 = vpop.f32.mrf.mxu0
    %v3935 = vadd.f32 %v3246, %v3934
    %v3936 = vpop.f32.mrf.mxu0
    %3937 = vmatprep.mubr.bf16.mxu0 %v1360
    %3938 = vmatmul.mubr.bf16.gmra.mxu0 %v1915
    %v3939 = vpop.f32.mrf.mxu0
    %v3940 = vadd.f32 %v3251, %v3939
    %v3941 = vpop.f32.mrf.mxu0
    %v3942 = vpop.f32.mrf.mxu0
    %v3943 = vadd.f32 %v3254, %v3942
    %v3944 = vpop.f32.mrf.mxu0
    %3945 = vmatprep.mubr.bf16.mxu0 %v1361
    %3946 = vmatmul.mubr.bf16.gmra.mxu0 %v1916
    %v3947 = vpop.f32.mrf.mxu0
    %v3948 = vadd.f32 %v3259, %v3947
    %v3949 = vpop.f32.mrf.mxu0
    %v3950 = vpop.f32.mrf.mxu0
    %v3951 = vadd.f32 %v3262, %v3950
    %v3952 = vpop.f32.mrf.mxu0
    %3953 = vmatprep.mubr.bf16.mxu0 %v1362
    %3954 = vmatmul.mubr.bf16.gmra.mxu0 %v1917
    %v3955 = vpop.f32.mrf.mxu0
    %v3956 = vadd.f32 %v3267, %v3955
    %v3957 = vpop.f32.mrf.mxu0
    %v3958 = vpop.f32.mrf.mxu0
    %v3959 = vadd.f32 %v3270, %v3958
    %v3960 = vpop.f32.mrf.mxu0
    %3961 = vmatprep.mubr.bf16.mxu0 %v1363
    %3962 = vmatmul.mubr.bf16.gmra.mxu0 %v1918
    %v3963 = vpop.f32.mrf.mxu0
    %v3964 = vadd.f32 %v3275, %v3963
    %v3965 = vpop.f32.mrf.mxu0
    %v3966 = vpop.f32.mrf.mxu0
    %v3967 = vadd.f32 %v3278, %v3966
    %v3968 = vpop.f32.mrf.mxu0
    %3969 = vmatprep.mubr.bf16.mxu0 %v1364
    %3970 = vmatmul.mubr.bf16.gmra.mxu0 %v1919
    %v3971 = vpop.f32.mrf.mxu0
    %v3972 = vadd.f32 %v3283, %v3971
    %v3973 = vpop.f32.mrf.mxu0
    %v3974 = vpop.f32.mrf.mxu0
    %v3975 = vadd.f32 %v3286, %v3974
    %v3976 = vpop.f32.mrf.mxu0
    %3977 = vmatprep.mubr.bf16.mxu0 %v1365
    %3978 = vmatmul.mubr.bf16.gmra.mxu0 %v1920
    %v3979 = vpop.f32.mrf.mxu0
    %v3980 = vadd.f32 %v3291, %v3979
    %v3981 = vpop.f32.mrf.mxu0
    %v3982 = vpop.f32.mrf.mxu0
    %v3983 = vadd.f32 %v3294, %v3982
    %v3984 = vpop.f32.mrf.mxu0
    %3985 = vmatprep.mubr.bf16.mxu0 %v1366
    %3986 = vmatmul.mubr.bf16.gmra.mxu0 %v1921
    %v3987 = vpop.f32.mrf.mxu0
    %v3988 = vadd.f32 %v3299, %v3987
    %v3989 = vpop.f32.mrf.mxu0
    %v3990 = vpop.f32.mrf.mxu0
    %v3991 = vadd.f32 %v3302, %v3990
    %v3992 = vpop.f32.mrf.mxu0
    %3993 = vmatprep.mubr.bf16.mxu0 %v1367
    %3994 = vmatmul.mubr.bf16.gmra.mxu0 %v1922
    %v3995 = vpop.f32.mrf.mxu0
    %v3996 = vadd.f32 %v3307, %v3995
    %v3997 = vpop.f32.mrf.mxu0
    %v3998 = vpop.f32.mrf.mxu0
    %v3999 = vadd.f32 %v3310, %v3998
    %v4000 = vpop.f32.mrf.mxu0
    %4001 = vmatprep.mubr.bf16.mxu0 %v1368
    %4002 = vmatmul.mubr.bf16.gmra.mxu0 %v1923
    %v4003 = vpop.f32.mrf.mxu0
    %v4004 = vadd.f32 %v3315, %v4003
    %v4005 = vpop.f32.mrf.mxu0
    %v4006 = vpop.f32.mrf.mxu0
    %v4007 = vadd.f32 %v3318, %v4006
    %v4008 = vpop.f32.mrf.mxu0
    %4009 = vmatprep.mubr.bf16.mxu0 %v1369
    %4010 = vmatmul.mubr.bf16.gmra.mxu0 %v1924
    %v4011 = vpop.f32.mrf.mxu0
    %v4012 = vadd.f32 %v3323, %v4011
    %v4013 = vpop.f32.mrf.mxu0
    %v4014 = vpop.f32.mrf.mxu0
    %v4015 = vadd.f32 %v3326, %v4014
    %v4016 = vpop.f32.mrf.mxu0
    %4017 = vmatprep.mubr.bf16.mxu0 0
    %4018 = vmatmul.mubr.bf16.gmra.mxu0 %v1894
    %v4019 = vpop.f32.mrf.mxu0
    %v4020 = vadd.f32 %v3331, %v4019
    %v4021 = vpop.f32.mrf.mxu0
    %v4022 = vpop.f32.mrf.mxu0
    %v4023 = vadd.f32 %v3334, %v4022
    %v4024 = vpop.f32.mrf.mxu0
    %4025 = vmatprep.mubr.bf16.mxu0 %v1371
    %4026 = vmatmul.mubr.bf16.gmra.mxu0 %v1925
    %v4027 = vpop.f32.mrf.mxu0
    %v4028 = vadd.f32 %v3339, %v4027
    %v4029 = vpop.f32.mrf.mxu0
    %v4030 = vpop.f32.mrf.mxu0
    %v4031 = vadd.f32 %v3342, %v4030
    %v4032 = vpop.f32.mrf.mxu0
    %4033 = vmatprep.mubr.bf16.mxu0 %v1372
    %4034 = vmatmul.mubr.bf16.gmra.mxu0 %v1926
    %v4035 = vpop.f32.mrf.mxu0
    %v4036 = vadd.f32 %v3347, %v4035
    %v4037 = vpop.f32.mrf.mxu0
    %v4038 = vpop.f32.mrf.mxu0
    %v4039 = vadd.f32 %v3350, %v4038
    %v4040 = vpop.f32.mrf.mxu0
    %4041 = vmatprep.mubr.bf16.mxu0 %v1373
    %4042 = vmatmul.mubr.bf16.gmra.mxu0 %v1927
    %v4043 = vpop.f32.mrf.mxu0
    %v4044 = vadd.f32 %v3355, %v4043
    %v4045 = vpop.f32.mrf.mxu0
    %v4046 = vpop.f32.mrf.mxu0
    %v4047 = vadd.f32 %v3358, %v4046
    %v4048 = vpop.f32.mrf.mxu0
    %4049 = vmatprep.mubr.bf16.mxu0 %v1374
    %4050 = vmatmul.mubr.bf16.gmra.mxu0 %v1928
    %v4051 = vpop.f32.mrf.mxu0
    %v4052 = vadd.f32 %v3363, %v4051
    %v4053 = vpop.f32.mrf.mxu0
    %v4054 = vpop.f32.mrf.mxu0
    %v4055 = vadd.f32 %v3366, %v4054
    %v4056 = vpop.f32.mrf.mxu0
    %4057 = vmatprep.mubr.bf16.mxu0 %v1375
    %4058 = vmatmul.mubr.bf16.gmra.mxu0 %v1929
    %v4059 = vpop.f32.mrf.mxu0
    %v4060 = vadd.f32 %v3371, %v4059
    %v4061 = vpop.f32.mrf.mxu0
    %v4062 = vpop.f32.mrf.mxu0
    %v4063 = vadd.f32 %v3374, %v4062
    %v4064 = vpop.f32.mrf.mxu0
    %4065 = vmatprep.mubr.bf16.mxu0 %v1376
    %4066 = vmatmul.mubr.bf16.gmra.mxu0 %v1930
    %v4067 = vpop.f32.mrf.mxu0
    %v4068 = vadd.f32 %v3379, %v4067
    %v4069 = vpop.f32.mrf.mxu0
    %v4070 = vpop.f32.mrf.mxu0
    %v4071 = vadd.f32 %v3382, %v4070
    %v4072 = vpop.f32.mrf.mxu0
    %4073 = vmatprep.mubr.bf16.mxu0 %v1377
    %4074 = vmatmul.mubr.bf16.gmra.mxu0 %v1931
    %v4075 = vpop.f32.mrf.mxu0
    %v4076 = vadd.f32 %v3387, %v4075
    %v4077 = vpop.f32.mrf.mxu0
    %v4078 = vpop.f32.mrf.mxu0
    %v4079 = vadd.f32 %v3390, %v4078
    %v4080 = vpop.f32.mrf.mxu0
    %4081 = vmatprep.mubr.bf16.mxu0 %v1378
    %4082 = vmatmul.mubr.bf16.gmra.mxu0 %v1932
    %v4083 = vpop.f32.mrf.mxu0
    %v4084 = vadd.f32 %v3395, %v4083
    %v4085 = vpop.f32.mrf.mxu0
    %v4086 = vpop.f32.mrf.mxu0
    %v4087 = vadd.f32 %v3398, %v4086
    %v4088 = vpop.f32.mrf.mxu0
    %4089 = vmatprep.mubr.bf16.mxu0 %v1379
    %4090 = vmatmul.mubr.bf16.gmra.mxu0 %v1933
    %v4091 = vpop.f32.mrf.mxu0
    %v4092 = vadd.f32 %v3403, %v4091
    %v4093 = vpop.f32.mrf.mxu0
    %v4094 = vpop.f32.mrf.mxu0
    %v4095 = vadd.f32 %v3406, %v4094
    %v4096 = vpop.f32.mrf.mxu0
    %4097 = vmatprep.mubr.bf16.mxu0 %v1380
    %4098 = vmatmul.mubr.bf16.gmra.mxu0 %v1934
    %v4099 = vpop.f32.mrf.mxu0
    %v4100 = vadd.f32 %v3411, %v4099
    %v4101 = vpop.f32.mrf.mxu0
    %v4102 = vpop.f32.mrf.mxu0
    %v4103 = vadd.f32 %v3414, %v4102
    %v4104 = vpop.f32.mrf.mxu0
    %4105 = vmatprep.mubr.bf16.mxu0 %v1381
    %4106 = vmatmul.mubr.bf16.gmra.mxu0 %v1935
    %v4107 = vpop.f32.mrf.mxu0
    %v4108 = vadd.f32 %v3419, %v4107
    %v4109 = vpop.f32.mrf.mxu0
    %v4110 = vpop.f32.mrf.mxu0
    %v4111 = vadd.f32 %v3422, %v4110
    %v4112 = vpop.f32.mrf.mxu0
    %4113 = vmatprep.mubr.bf16.mxu0 %v1382
    %4114 = vmatmul.mubr.bf16.gmra.mxu0 %v1936
    %v4115 = vpop.f32.mrf.mxu0
    %v4116 = vadd.f32 %v3427, %v4115
    %v4117 = vpop.f32.mrf.mxu0
    %v4118 = vpop.f32.mrf.mxu0
    %v4119 = vadd.f32 %v3430, %v4118
    %v4120 = vpop.f32.mrf.mxu0
    %4121 = vmatprep.mubr.bf16.mxu0 %v1383
    %4122 = vmatmul.mubr.bf16.gmra.mxu0 %v1937
    %v4123 = vpop.f32.mrf.mxu0
    %v4124 = vadd.f32 %v3435, %v4123
    %v4125 = vpop.f32.mrf.mxu0
    %v4126 = vpop.f32.mrf.mxu0
    %v4127 = vadd.f32 %v3438, %v4126
    %v4128 = vpop.f32.mrf.mxu0
    %4129 = vmatprep.mubr.bf16.mxu0 %v1384
    %4130 = vmatmul.mubr.bf16.gmra.mxu0 %v1938
    %v4131 = vpop.f32.mrf.mxu0
    %v4132 = vadd.f32 %v3443, %v4131
    %v4133 = vpop.f32.mrf.mxu0
    %v4134 = vpop.f32.mrf.mxu0
    %v4135 = vadd.f32 %v3446, %v4134
    %v4136 = vpop.f32.mrf.mxu0
    %4137 = vmatprep.mubr.bf16.mxu0 %v1385
    %4138 = vmatmul.mubr.bf16.gmra.mxu0 %v1939
    %v4139 = vpop.f32.mrf.mxu0
    %v4140 = vadd.f32 %v3451, %v4139
    %v4141 = vpop.f32.mrf.mxu0
    %v4142 = vpop.f32.mrf.mxu0
    %v4143 = vadd.f32 %v3454, %v4142
    %v4144 = vpop.f32.mrf.mxu0
    %4145 = vmatprep.mubr.bf16.mxu0 0
    %4146 = vmatmul.mubr.bf16.gmra.mxu0 %v1894
    %v4147 = vpop.f32.mrf.mxu0
    %v4148 = vadd.f32 %v3459, %v4147
    %v4149 = vpop.f32.mrf.mxu0
    %v4150 = vpop.f32.mrf.mxu0
    %v4151 = vadd.f32 %v3462, %v4150
    %v4152 = vpop.f32.mrf.mxu0
    %4153 = vmatprep.mubr.bf16.mxu0 %v1387
    %4154 = vmatmul.mubr.bf16.gmra.mxu0 %v1940
    %v4155 = vpop.f32.mrf.mxu0
    %v4156 = vadd.f32 %v3467, %v4155
    %v4157 = vpop.f32.mrf.mxu0
    %v4158 = vpop.f32.mrf.mxu0
    %v4159 = vadd.f32 %v3470, %v4158
    %v4160 = vpop.f32.mrf.mxu0
    %4161 = vmatprep.mubr.bf16.mxu0 %v1388
    %4162 = vmatmul.mubr.bf16.gmra.mxu0 %v1941
    %v4163 = vpop.f32.mrf.mxu0
    %v4164 = vadd.f32 %v3475, %v4163
    %v4165 = vpop.f32.mrf.mxu0
    %v4166 = vpop.f32.mrf.mxu0
    %v4167 = vadd.f32 %v3478, %v4166
    %v4168 = vpop.f32.mrf.mxu0
    %4169 = vmatprep.mubr.bf16.mxu0 %v1389
    %4170 = vmatmul.mubr.bf16.gmra.mxu0 %v1942
    %v4171 = vpop.f32.mrf.mxu0
    %v4172 = vadd.f32 %v3483, %v4171
    %v4173 = vpop.f32.mrf.mxu0
    %v4174 = vpop.f32.mrf.mxu0
    %v4175 = vadd.f32 %v3486, %v4174
    %v4176 = vpop.f32.mrf.mxu0
    %4177 = vmatprep.mubr.bf16.mxu0 %v1390
    %4178 = vmatmul.mubr.bf16.gmra.mxu0 %v1943
    %v4179 = vpop.f32.mrf.mxu0
    %v4180 = vadd.f32 %v3491, %v4179
    %v4181 = vpop.f32.mrf.mxu0
    %v4182 = vpop.f32.mrf.mxu0
    %v4183 = vadd.f32 %v3494, %v4182
    %v4184 = vpop.f32.mrf.mxu0
    %4185 = vmatprep.mubr.bf16.mxu0 %v1391
    %4186 = vmatmul.mubr.bf16.gmra.mxu0 %v1944
    %v4187 = vpop.f32.mrf.mxu0
    %v4188 = vadd.f32 %v3499, %v4187
    %v4189 = vpop.f32.mrf.mxu0
    %v4190 = vpop.f32.mrf.mxu0
    %v4191 = vadd.f32 %v3502, %v4190
    %v4192 = vpop.f32.mrf.mxu0
    %4193 = vmatprep.mubr.bf16.mxu0 %v1392
    %4194 = vmatmul.mubr.bf16.gmra.mxu0 %v1945
    %v4195 = vpop.f32.mrf.mxu0
    %v4196 = vadd.f32 %v3507, %v4195
    %v4197 = vpop.f32.mrf.mxu0
    %v4198 = vpop.f32.mrf.mxu0
    %v4199 = vadd.f32 %v3510, %v4198
    %v4200 = vpop.f32.mrf.mxu0
    %4201 = vmatprep.mubr.bf16.mxu0 %v1393
    %4202 = vmatmul.mubr.bf16.gmra.mxu0 %v1946
    %v4203 = vpop.f32.mrf.mxu0
    %v4204 = vadd.f32 %v3515, %v4203
    %v4205 = vpop.f32.mrf.mxu0
    %v4206 = vpop.f32.mrf.mxu0
    %v4207 = vadd.f32 %v3518, %v4206
    %v4208 = vpop.f32.mrf.mxu0
    %4209 = vmatprep.mubr.bf16.mxu0 %v1394
    %4210 = vmatmul.mubr.bf16.gmra.mxu0 %v1947
    %v4211 = vpop.f32.mrf.mxu0
    %v4212 = vadd.f32 %v3523, %v4211
    %v4213 = vpop.f32.mrf.mxu0
    %v4214 = vpop.f32.mrf.mxu0
    %v4215 = vadd.f32 %v3526, %v4214
    %v4216 = vpop.f32.mrf.mxu0
    %4217 = vmatprep.mubr.bf16.mxu0 %v1395
    %4218 = vmatmul.mubr.bf16.gmra.mxu0 %v1948
    %v4219 = vpop.f32.mrf.mxu0
    %v4220 = vadd.f32 %v3531, %v4219
    %v4221 = vpop.f32.mrf.mxu0
    %v4222 = vpop.f32.mrf.mxu0
    %v4223 = vadd.f32 %v3534, %v4222
    %v4224 = vpop.f32.mrf.mxu0
    %4225 = vmatprep.mubr.bf16.mxu0 %v1396
    %4226 = vmatmul.mubr.bf16.gmra.mxu0 %v1949
    %v4227 = vpop.f32.mrf.mxu0
    %v4228 = vadd.f32 %v3539, %v4227
    %v4229 = vpop.f32.mrf.mxu0
    %v4230 = vpop.f32.mrf.mxu0
    %v4231 = vadd.f32 %v3542, %v4230
    %v4232 = vpop.f32.mrf.mxu0
    %4233 = vmatprep.mubr.bf16.mxu0 %v1397
    %4234 = vmatmul.mubr.bf16.gmra.mxu0 %v1950
    %v4235 = vpop.f32.mrf.mxu0
    %v4236 = vadd.f32 %v3547, %v4235
    %v4237 = vpop.f32.mrf.mxu0
    %v4238 = vpop.f32.mrf.mxu0
    %v4239 = vadd.f32 %v3550, %v4238
    %v4240 = vpop.f32.mrf.mxu0
    %4241 = vmatprep.mubr.bf16.mxu0 %v1398
    %4242 = vmatmul.mubr.bf16.gmra.mxu0 %v1951
    %v4243 = vpop.f32.mrf.mxu0
    %v4244 = vadd.f32 %v3555, %v4243
    %v4245 = vpop.f32.mrf.mxu0
    %v4246 = vpop.f32.mrf.mxu0
    %v4247 = vadd.f32 %v3558, %v4246
    %v4248 = vpop.f32.mrf.mxu0
    %4249 = vmatprep.mubr.bf16.mxu0 %v1399
    %4250 = vmatmul.mubr.bf16.gmra.mxu0 %v1952
    %v4251 = vpop.f32.mrf.mxu0
    %v4252 = vadd.f32 %v3563, %v4251
    %v4253 = vpop.f32.mrf.mxu0
    %v4254 = vpop.f32.mrf.mxu0
    %v4255 = vadd.f32 %v3566, %v4254
    %v4256 = vpop.f32.mrf.mxu0
    %4257 = vmatprep.mubr.bf16.mxu0 %v1400
    %4258 = vmatmul.mubr.bf16.gmra.mxu0 %v1953
    %v4259 = vpop.f32.mrf.mxu0
    %v4260 = vadd.f32 %v3571, %v4259
    %v4261 = vpop.f32.mrf.mxu0
    %v4262 = vpop.f32.mrf.mxu0
    %v4263 = vadd.f32 %v3574, %v4262
    %v4264 = vpop.f32.mrf.mxu0
    %4265 = vmatprep.mubr.bf16.mxu0 %v1401
    %4266 = vmatmul.mubr.bf16.gmra.mxu0 %v1954
    %v4267 = vpop.f32.mrf.mxu0
    %v4268 = vadd.f32 %v3579, %v4267
    %v4269 = vpop.f32.mrf.mxu0
    %v4270 = vpop.f32.mrf.mxu0
    %v4271 = vadd.f32 %v3582, %v4270
    %v4272 = vpop.f32.mrf.mxu0
    %4273 = vdwg.mxu0
    %4274 = vmatprep.subr.bf16.mxu0 0
    %4275 = vmatpush1.bf16.msra.mxu0 %v3704
    %4276 = vmatprep.subr.bf16.mxu0 0
    %4277 = vmatpush1.bf16.msra.mxu0 %v3703
    %4278 = vmatprep.subr.bf16.mxu0 0
    %4279 = vmatpush1.bf16.msra.mxu0 %v3702
    %4280 = vmatprep.subr.bf16.mxu0 0
    %4281 = vmatpush1.bf16.msra.mxu0 %v3701
    %4282 = vmatprep.subr.bf16.mxu0 0
    %4283 = vmatpush1.bf16.msra.mxu0 %v3700
    %4284 = vmatprep.subr.bf16.mxu0 0
    %4285 = vmatpush1.bf16.msra.mxu0 %v3699
    %4286 = vmatprep.subr.bf16.mxu0 0
    %4287 = vmatpush1.bf16.msra.mxu0 %v3698
    %4288 = vmatprep.subr.bf16.mxu0 0
    %4289 = vmatpush1.bf16.msra.mxu0 %v3697
    %4290 = vmatprep.subr.bf16.mxu0 0
    %4291 = vmatpush2.bf16.msra.mxu0 0
    %4292 = vmatprep.subr.bf16.mxu0 0
    %4293 = vmatpush2.bf16.msra.mxu0 0
    %4294 = vmatprep.subr.bf16.mxu0 0
    %4295 = vmatpush2.bf16.msra.mxu0 0
    %4296 = vmatprep.subr.bf16.mxu0 0
    %4297 = vmatpush2.bf16.msra.mxu0 0
    %4298 = vmatprep.subr.bf16.mxu0 0
    %4299 = vmatpush2.bf16.msra.mxu0 0
    %4300 = vmatprep.subr.bf16.mxu0 0
    %4301 = vmatpush2.bf16.msra.mxu0 0
    %4302 = vmatprep.subr.bf16.mxu0 0
    %4303 = vmatpush2.bf16.msra.mxu0 0
    %4304 = vmatprep.subr.bf16.mxu0 0
    %4305 = vmatpush2.bf16.msra.mxu0 0
    %4306 = vmatprep.mubr.bf16.mxu0 0
    %4307 = vmatmul.mubr.bf16.gmra.mxu0 %v2141
    %v4308 = vpop.f32.mrf.mxu0
    %v4309 = vadd.f32 %v3764, %v4308
    %v4310 = vpop.f32.mrf.mxu0
    %v4311 = vpop.f32.mrf.mxu0
    %v4312 = vadd.f32 %v3767, %v4311
    %v4313 = vpop.f32.mrf.mxu0
    %4314 = vmatprep.mubr.bf16.mxu0 0
    %4315 = vmatmul.mubr.bf16.gmra.mxu0 %v2142
    %v4316 = vpop.f32.mrf.mxu0
    %v4317 = vadd.f32 %v3772, %v4316
    %v4318 = vpop.f32.mrf.mxu0
    %v4319 = vpop.f32.mrf.mxu0
    %v4320 = vadd.f32 %v3775, %v4319
    %v4321 = vpop.f32.mrf.mxu0
    %4322 = vmatprep.mubr.bf16.mxu0 0
    %4323 = vmatmul.mubr.bf16.gmra.mxu0 %v2143
    %v4324 = vpop.f32.mrf.mxu0
    %v4325 = vadd.f32 %v3780, %v4324
    %v4326 = vpop.f32.mrf.mxu0
    %v4327 = vpop.f32.mrf.mxu0
    %v4328 = vadd.f32 %v3783, %v4327
    %v4329 = vpop.f32.mrf.mxu0
    %4330 = vmatprep.mubr.bf16.mxu0 0
    %4331 = vmatmul.mubr.bf16.gmra.mxu0 %v2144
    %v4332 = vpop.f32.mrf.mxu0
    %v4333 = vadd.f32 %v3788, %v4332
    %v4334 = vpop.f32.mrf.mxu0
    %v4335 = vpop.f32.mrf.mxu0
    %v4336 = vadd.f32 %v3791, %v4335
    %v4337 = vpop.f32.mrf.mxu0
    %4338 = vmatprep.mubr.bf16.mxu0 0
    %4339 = vmatmul.mubr.bf16.gmra.mxu0 %v2145
    %v4340 = vpop.f32.mrf.mxu0
    %v4341 = vadd.f32 %v3796, %v4340
    %v4342 = vpop.f32.mrf.mxu0
    %v4343 = vpop.f32.mrf.mxu0
    %v4344 = vadd.f32 %v3799, %v4343
    %v4345 = vpop.f32.mrf.mxu0
    %4346 = vmatprep.mubr.bf16.mxu0 0
    %4347 = vmatmul.mubr.bf16.gmra.mxu0 %v2146
    %v4348 = vpop.f32.mrf.mxu0
    %v4349 = vadd.f32 %v3804, %v4348
    %v4350 = vpop.f32.mrf.mxu0
    %v4351 = vpop.f32.mrf.mxu0
    %v4352 = vadd.f32 %v3807, %v4351
    %v4353 = vpop.f32.mrf.mxu0
    %4354 = vmatprep.mubr.bf16.mxu0 0
    %4355 = vmatmul.mubr.bf16.gmra.mxu0 %v2147
    %v4356 = vpop.f32.mrf.mxu0
    %v4357 = vadd.f32 %v3812, %v4356
    %v4358 = vpop.f32.mrf.mxu0
    %v4359 = vpop.f32.mrf.mxu0
    %v4360 = vadd.f32 %v3815, %v4359
    %v4361 = vpop.f32.mrf.mxu0
    %4362 = vmatprep.mubr.bf16.mxu0 0
    %4363 = vmatmul.mubr.bf16.gmra.mxu0 %v2148
    %v4364 = vpop.f32.mrf.mxu0
    %v4365 = vadd.f32 %v3820, %v4364
    %v4366 = vpop.f32.mrf.mxu0
    %v4367 = vpop.f32.mrf.mxu0
    %v4368 = vadd.f32 %v3823, %v4367
    %v4369 = vpop.f32.mrf.mxu0
    %4370 = vmatprep.mubr.bf16.mxu0 0
    %4371 = vmatmul.mubr.bf16.gmra.mxu0 %v2149
    %v4372 = vpop.f32.mrf.mxu0
    %v4373 = vadd.f32 %v3828, %v4372
    %v4374 = vpop.f32.mrf.mxu0
    %v4375 = vpop.f32.mrf.mxu0
    %v4376 = vadd.f32 %v3831, %v4375
    %v4377 = vpop.f32.mrf.mxu0
    %4378 = vmatprep.mubr.bf16.mxu0 0
    %4379 = vmatmul.mubr.bf16.gmra.mxu0 %v2150
    %v4380 = vpop.f32.mrf.mxu0
    %v4381 = vadd.f32 %v3836, %v4380
    %v4382 = vpop.f32.mrf.mxu0
    %v4383 = vpop.f32.mrf.mxu0
    %v4384 = vadd.f32 %v3839, %v4383
    %v4385 = vpop.f32.mrf.mxu0
    %4386 = vmatprep.mubr.bf16.mxu0 0
    %4387 = vmatmul.mubr.bf16.gmra.mxu0 %v2151
    %v4388 = vpop.f32.mrf.mxu0
    %v4389 = vadd.f32 %v3844, %v4388
    %v4390 = vpop.f32.mrf.mxu0
    %v4391 = vpop.f32.mrf.mxu0
    %v4392 = vadd.f32 %v3847, %v4391
    %v4393 = vpop.f32.mrf.mxu0
    %4394 = vmatprep.mubr.bf16.mxu0 0
    %4395 = vmatmul.mubr.bf16.gmra.mxu0 %v2152
    %v4396 = vpop.f32.mrf.mxu0
    %v4397 = vadd.f32 %v3852, %v4396
    %v4398 = vpop.f32.mrf.mxu0
    %v4399 = vpop.f32.mrf.mxu0
    %v4400 = vadd.f32 %v3855, %v4399
    %v4401 = vpop.f32.mrf.mxu0
    %4402 = vmatprep.mubr.bf16.mxu0 0
    %4403 = vmatmul.mubr.bf16.gmra.mxu0 %v2153
    %v4404 = vpop.f32.mrf.mxu0
    %v4405 = vadd.f32 %v3860, %v4404
    %v4406 = vpop.f32.mrf.mxu0
    %v4407 = vpop.f32.mrf.mxu0
    %v4408 = vadd.f32 %v3863, %v4407
    %v4409 = vpop.f32.mrf.mxu0
    %4410 = vmatprep.mubr.bf16.mxu0 0
    %4411 = vmatmul.mubr.bf16.gmra.mxu0 %v2154
    %v4412 = vpop.f32.mrf.mxu0
    %v4413 = vadd.f32 %v3868, %v4412
    %v4414 = vpop.f32.mrf.mxu0
    %v4415 = vpop.f32.mrf.mxu0
    %v4416 = vadd.f32 %v3871, %v4415
    %v4417 = vpop.f32.mrf.mxu0
    %4418 = vmatprep.mubr.bf16.mxu0 0
    %4419 = vmatmul.mubr.bf16.gmra.mxu0 %v2155
    %v4420 = vpop.f32.mrf.mxu0
    %v4421 = vadd.f32 %v3876, %v4420
    %v4422 = vpop.f32.mrf.mxu0
    %v4423 = vpop.f32.mrf.mxu0
    %v4424 = vadd.f32 %v3879, %v4423
    %v4425 = vpop.f32.mrf.mxu0
    %4426 = vmatprep.mubr.bf16.mxu0 0
    %4427 = vmatmul.mubr.bf16.gmra.mxu0 %v2156
    %v4428 = vpop.f32.mrf.mxu0
    %v4429 = vadd.f32 %v3884, %v4428
    %v4430 = vpop.f32.mrf.mxu0
    %v4431 = vpop.f32.mrf.mxu0
    %v4432 = vadd.f32 %v3887, %v4431
    %v4433 = vpop.f32.mrf.mxu0
    %4434 = vmatprep.mubr.bf16.mxu0 0
    %4435 = vmatmul.mubr.bf16.gmra.mxu0 %v2141
    %v4436 = vpop.f32.mrf.mxu0
    %v4437 = vadd.f32 %v3892, %v4436
    %v4438 = vpop.f32.mrf.mxu0
    %v4439 = vpop.f32.mrf.mxu0
    %v4440 = vadd.f32 %v3895, %v4439
    %v4441 = vpop.f32.mrf.mxu0
    %4442 = vmatprep.mubr.bf16.mxu0 0
    %4443 = vmatmul.mubr.bf16.gmra.mxu0 %v2157
    %v4444 = vpop.f32.mrf.mxu0
    %v4445 = vadd.f32 %v3900, %v4444
    %v4446 = vpop.f32.mrf.mxu0
    %v4447 = vpop.f32.mrf.mxu0
    %v4448 = vadd.f32 %v3903, %v4447
    %v4449 = vpop.f32.mrf.mxu0
    %4450 = vmatprep.mubr.bf16.mxu0 0
    %4451 = vmatmul.mubr.bf16.gmra.mxu0 %v2158
    %v4452 = vpop.f32.mrf.mxu0
    %v4453 = vadd.f32 %v3908, %v4452
    %v4454 = vpop.f32.mrf.mxu0
    %v4455 = vpop.f32.mrf.mxu0
    %v4456 = vadd.f32 %v3911, %v4455
    %v4457 = vpop.f32.mrf.mxu0
    %4458 = vmatprep.mubr.bf16.mxu0 0
    %4459 = vmatmul.mubr.bf16.gmra.mxu0 %v2159
    %v4460 = vpop.f32.mrf.mxu0
    %v4461 = vadd.f32 %v3916, %v4460
    %v4462 = vpop.f32.mrf.mxu0
    %v4463 = vpop.f32.mrf.mxu0
    %v4464 = vadd.f32 %v3919, %v4463
    %v4465 = vpop.f32.mrf.mxu0
    %4466 = vmatprep.mubr.bf16.mxu0 0
    %4467 = vmatmul.mubr.bf16.gmra.mxu0 %v2160
    %v4468 = vpop.f32.mrf.mxu0
    %v4469 = vadd.f32 %v3924, %v4468
    %v4470 = vpop.f32.mrf.mxu0
    %v4471 = vpop.f32.mrf.mxu0
    %v4472 = vadd.f32 %v3927, %v4471
    %v4473 = vpop.f32.mrf.mxu0
    %4474 = vmatprep.mubr.bf16.mxu0 0
    %4475 = vmatmul.mubr.bf16.gmra.mxu0 %v2161
    %v4476 = vpop.f32.mrf.mxu0
    %v4477 = vadd.f32 %v3932, %v4476
    %v4478 = vpop.f32.mrf.mxu0
    %v4479 = vpop.f32.mrf.mxu0
    %v4480 = vadd.f32 %v3935, %v4479
    %v4481 = vpop.f32.mrf.mxu0
    %4482 = vmatprep.mubr.bf16.mxu0 0
    %4483 = vmatmul.mubr.bf16.gmra.mxu0 %v2162
    %v4484 = vpop.f32.mrf.mxu0
    %v4485 = vadd.f32 %v3940, %v4484
    %v4486 = vpop.f32.mrf.mxu0
    %v4487 = vpop.f32.mrf.mxu0
    %v4488 = vadd.f32 %v3943, %v4487
    %v4489 = vpop.f32.mrf.mxu0
    %4490 = vmatprep.mubr.bf16.mxu0 0
    %4491 = vmatmul.mubr.bf16.gmra.mxu0 %v2163
    %v4492 = vpop.f32.mrf.mxu0
    %v4493 = vadd.f32 %v3948, %v4492
    %v4494 = vpop.f32.mrf.mxu0
    %v4495 = vpop.f32.mrf.mxu0
    %v4496 = vadd.f32 %v3951, %v4495
    %v4497 = vpop.f32.mrf.mxu0
    %4498 = vmatprep.mubr.bf16.mxu0 0
    %4499 = vmatmul.mubr.bf16.gmra.mxu0 %v2164
    %v4500 = vpop.f32.mrf.mxu0
    %v4501 = vadd.f32 %v3956, %v4500
    %v4502 = vpop.f32.mrf.mxu0
    %v4503 = vpop.f32.mrf.mxu0
    %v4504 = vadd.f32 %v3959, %v4503
    %v4505 = vpop.f32.mrf.mxu0
    %4506 = vmatprep.mubr.bf16.mxu0 0
    %4507 = vmatmul.mubr.bf16.gmra.mxu0 %v2165
    %v4508 = vpop.f32.mrf.mxu0
    %v4509 = vadd.f32 %v3964, %v4508
    %v4510 = vpop.f32.mrf.mxu0
    %v4511 = vpop.f32.mrf.mxu0
    %v4512 = vadd.f32 %v3967, %v4511
    %v4513 = vpop.f32.mrf.mxu0
    %4514 = vmatprep.mubr.bf16.mxu0 0
    %4515 = vmatmul.mubr.bf16.gmra.mxu0 %v2166
    %v4516 = vpop.f32.mrf.mxu0
    %v4517 = vadd.f32 %v3972, %v4516
    %v4518 = vpop.f32.mrf.mxu0
    %v4519 = vpop.f32.mrf.mxu0
    %v4520 = vadd.f32 %v3975, %v4519
    %v4521 = vpop.f32.mrf.mxu0
    %4522 = vmatprep.mubr.bf16.mxu0 0
    %4523 = vmatmul.mubr.bf16.gmra.mxu0 %v2167
    %v4524 = vpop.f32.mrf.mxu0
    %v4525 = vadd.f32 %v3980, %v4524
    %v4526 = vpop.f32.mrf.mxu0
    %v4527 = vpop.f32.mrf.mxu0
    %v4528 = vadd.f32 %v3983, %v4527
    %v4529 = vpop.f32.mrf.mxu0
    %4530 = vmatprep.mubr.bf16.mxu0 0
    %4531 = vmatmul.mubr.bf16.gmra.mxu0 %v2168
    %v4532 = vpop.f32.mrf.mxu0
    %v4533 = vadd.f32 %v3988, %v4532
    %v4534 = vpop.f32.mrf.mxu0
    %v4535 = vpop.f32.mrf.mxu0
    %v4536 = vadd.f32 %v3991, %v4535
    %v4537 = vpop.f32.mrf.mxu0
    %4538 = vmatprep.mubr.bf16.mxu0 0
    %4539 = vmatmul.mubr.bf16.gmra.mxu0 %v2169
    %v4540 = vpop.f32.mrf.mxu0
    %v4541 = vadd.f32 %v3996, %v4540
    %v4542 = vpop.f32.mrf.mxu0
    %v4543 = vpop.f32.mrf.mxu0
    %v4544 = vadd.f32 %v3999, %v4543
    %v4545 = vpop.f32.mrf.mxu0
    %4546 = vmatprep.mubr.bf16.mxu0 0
    %4547 = vmatmul.mubr.bf16.gmra.mxu0 %v2170
    %v4548 = vpop.f32.mrf.mxu0
    %v4549 = vadd.f32 %v4004, %v4548
    %v4550 = vpop.f32.mrf.mxu0
    %v4551 = vpop.f32.mrf.mxu0
    %v4552 = vadd.f32 %v4007, %v4551
    %v4553 = vpop.f32.mrf.mxu0
    %4554 = vmatprep.mubr.bf16.mxu0 0
    %4555 = vmatmul.mubr.bf16.gmra.mxu0 %v2171
    %v4556 = vpop.f32.mrf.mxu0
    %v4557 = vadd.f32 %v4012, %v4556
    %v4558 = vpop.f32.mrf.mxu0
    %v4559 = vpop.f32.mrf.mxu0
    %v4560 = vadd.f32 %v4015, %v4559
    %v4561 = vpop.f32.mrf.mxu0
    %4562 = vmatprep.mubr.bf16.mxu0 0
    %4563 = vmatmul.mubr.bf16.gmra.mxu0 %v2141
    %v4564 = vpop.f32.mrf.mxu0
    %v4565 = vadd.f32 %v4020, %v4564
    %v4566 = vpop.f32.mrf.mxu0
    %v4567 = vpop.f32.mrf.mxu0
    %v4568 = vadd.f32 %v4023, %v4567
    %v4569 = vpop.f32.mrf.mxu0
    %4570 = vmatprep.mubr.bf16.mxu0 0
    %4571 = vmatmul.mubr.bf16.gmra.mxu0 %v2172
    %v4572 = vpop.f32.mrf.mxu0
    %v4573 = vadd.f32 %v4028, %v4572
    %v4574 = vpop.f32.mrf.mxu0
    %v4575 = vpop.f32.mrf.mxu0
    %v4576 = vadd.f32 %v4031, %v4575
    %v4577 = vpop.f32.mrf.mxu0
    %4578 = vmatprep.mubr.bf16.mxu0 0
    %4579 = vmatmul.mubr.bf16.gmra.mxu0 %v2173
    %v4580 = vpop.f32.mrf.mxu0
    %v4581 = vadd.f32 %v4036, %v4580
    %v4582 = vpop.f32.mrf.mxu0
    %v4583 = vpop.f32.mrf.mxu0
    %v4584 = vadd.f32 %v4039, %v4583
    %v4585 = vpop.f32.mrf.mxu0
    %4586 = vmatprep.mubr.bf16.mxu0 0
    %4587 = vmatmul.mubr.bf16.gmra.mxu0 %v2174
    %v4588 = vpop.f32.mrf.mxu0
    %v4589 = vadd.f32 %v4044, %v4588
    %v4590 = vpop.f32.mrf.mxu0
    %v4591 = vpop.f32.mrf.mxu0
    %v4592 = vadd.f32 %v4047, %v4591
    %v4593 = vpop.f32.mrf.mxu0
    %4594 = vmatprep.mubr.bf16.mxu0 0
    %4595 = vmatmul.mubr.bf16.gmra.mxu0 %v2175
    %v4596 = vpop.f32.mrf.mxu0
    %v4597 = vadd.f32 %v4052, %v4596
    %v4598 = vpop.f32.mrf.mxu0
    %v4599 = vpop.f32.mrf.mxu0
    %v4600 = vadd.f32 %v4055, %v4599
    %v4601 = vpop.f32.mrf.mxu0
    %4602 = vmatprep.mubr.bf16.mxu0 0
    %4603 = vmatmul.mubr.bf16.gmra.mxu0 %v2176
    %v4604 = vpop.f32.mrf.mxu0
    %v4605 = vadd.f32 %v4060, %v4604
    %v4606 = vpop.f32.mrf.mxu0
    %v4607 = vpop.f32.mrf.mxu0
    %v4608 = vadd.f32 %v4063, %v4607
    %v4609 = vpop.f32.mrf.mxu0
    %4610 = vmatprep.mubr.bf16.mxu0 0
    %4611 = vmatmul.mubr.bf16.gmra.mxu0 %v2177
    %v4612 = vpop.f32.mrf.mxu0
    %v4613 = vadd.f32 %v4068, %v4612
    %v4614 = vpop.f32.mrf.mxu0
    %v4615 = vpop.f32.mrf.mxu0
    %v4616 = vadd.f32 %v4071, %v4615
    %v4617 = vpop.f32.mrf.mxu0
    %4618 = vmatprep.mubr.bf16.mxu0 0
    %4619 = vmatmul.mubr.bf16.gmra.mxu0 %v2178
    %v4620 = vpop.f32.mrf.mxu0
    %v4621 = vadd.f32 %v4076, %v4620
    %v4622 = vpop.f32.mrf.mxu0
    %v4623 = vpop.f32.mrf.mxu0
    %v4624 = vadd.f32 %v4079, %v4623
    %v4625 = vpop.f32.mrf.mxu0
    %4626 = vmatprep.mubr.bf16.mxu0 0
    %4627 = vmatmul.mubr.bf16.gmra.mxu0 %v2179
    %v4628 = vpop.f32.mrf.mxu0
    %v4629 = vadd.f32 %v4084, %v4628
    %v4630 = vpop.f32.mrf.mxu0
    %v4631 = vpop.f32.mrf.mxu0
    %v4632 = vadd.f32 %v4087, %v4631
    %v4633 = vpop.f32.mrf.mxu0
    %4634 = vmatprep.mubr.bf16.mxu0 0
    %4635 = vmatmul.mubr.bf16.gmra.mxu0 %v2180
    %v4636 = vpop.f32.mrf.mxu0
    %v4637 = vadd.f32 %v4092, %v4636
    %v4638 = vpop.f32.mrf.mxu0
    %v4639 = vpop.f32.mrf.mxu0
    %v4640 = vadd.f32 %v4095, %v4639
    %v4641 = vpop.f32.mrf.mxu0
    %4642 = vmatprep.mubr.bf16.mxu0 0
    %4643 = vmatmul.mubr.bf16.gmra.mxu0 %v2181
    %v4644 = vpop.f32.mrf.mxu0
    %v4645 = vadd.f32 %v4100, %v4644
    %v4646 = vpop.f32.mrf.mxu0
    %v4647 = vpop.f32.mrf.mxu0
    %v4648 = vadd.f32 %v4103, %v4647
    %v4649 = vpop.f32.mrf.mxu0
    %4650 = vmatprep.mubr.bf16.mxu0 0
    %4651 = vmatmul.mubr.bf16.gmra.mxu0 %v2182
    %v4652 = vpop.f32.mrf.mxu0
    %v4653 = vadd.f32 %v4108, %v4652
    %v4654 = vpop.f32.mrf.mxu0
    %v4655 = vpop.f32.mrf.mxu0
    %v4656 = vadd.f32 %v4111, %v4655
    %v4657 = vpop.f32.mrf.mxu0
    %4658 = vmatprep.mubr.bf16.mxu0 0
    %4659 = vmatmul.mubr.bf16.gmra.mxu0 %v2183
    %v4660 = vpop.f32.mrf.mxu0
    %v4661 = vadd.f32 %v4116, %v4660
    %v4662 = vpop.f32.mrf.mxu0
    %v4663 = vpop.f32.mrf.mxu0
    %v4664 = vadd.f32 %v4119, %v4663
    %v4665 = vpop.f32.mrf.mxu0
    %4666 = vmatprep.mubr.bf16.mxu0 0
    %4667 = vmatmul.mubr.bf16.gmra.mxu0 %v2184
    %v4668 = vpop.f32.mrf.mxu0
    %v4669 = vadd.f32 %v4124, %v4668
    %v4670 = vpop.f32.mrf.mxu0
    %v4671 = vpop.f32.mrf.mxu0
    %v4672 = vadd.f32 %v4127, %v4671
    %v4673 = vpop.f32.mrf.mxu0
    %4674 = vmatprep.mubr.bf16.mxu0 0
    %4675 = vmatmul.mubr.bf16.gmra.mxu0 %v2185
    %v4676 = vpop.f32.mrf.mxu0
    %v4677 = vadd.f32 %v4132, %v4676
    %v4678 = vpop.f32.mrf.mxu0
    %v4679 = vpop.f32.mrf.mxu0
    %v4680 = vadd.f32 %v4135, %v4679
    %v4681 = vpop.f32.mrf.mxu0
    %4682 = vmatprep.mubr.bf16.mxu0 0
    %4683 = vmatmul.mubr.bf16.gmra.mxu0 %v2186
    %v4684 = vpop.f32.mrf.mxu0
    %v4685 = vadd.f32 %v4140, %v4684
    %v4686 = vpop.f32.mrf.mxu0
    %v4687 = vpop.f32.mrf.mxu0
    %v4688 = vadd.f32 %v4143, %v4687
    %v4689 = vpop.f32.mrf.mxu0
    %4690 = vmatprep.mubr.bf16.mxu0 0
    %4691 = vmatmul.mubr.bf16.gmra.mxu0 %v2141
    %v4692 = vpop.f32.mrf.mxu0
    %v4693 = vadd.f32 %v4148, %v4692
    %v4694 = vpop.f32.mrf.mxu0
    %v4695 = vpop.f32.mrf.mxu0
    %v4696 = vadd.f32 %v4151, %v4695
    %v4697 = vpop.f32.mrf.mxu0
    %4698 = vmatprep.mubr.bf16.mxu0 0
    %4699 = vmatmul.mubr.bf16.gmra.mxu0 %v2187
    %v4700 = vpop.f32.mrf.mxu0
    %v4701 = vadd.f32 %v4156, %v4700
    %v4702 = vpop.f32.mrf.mxu0
    %v4703 = vpop.f32.mrf.mxu0
    %v4704 = vadd.f32 %v4159, %v4703
    %v4705 = vpop.f32.mrf.mxu0
    %4706 = vmatprep.mubr.bf16.mxu0 0
    %4707 = vmatmul.mubr.bf16.gmra.mxu0 %v2188
    %v4708 = vpop.f32.mrf.mxu0
    %v4709 = vadd.f32 %v4164, %v4708
    %v4710 = vpop.f32.mrf.mxu0
    %v4711 = vpop.f32.mrf.mxu0
    %v4712 = vadd.f32 %v4167, %v4711
    %v4713 = vpop.f32.mrf.mxu0
    %4714 = vmatprep.mubr.bf16.mxu0 0
    %4715 = vmatmul.mubr.bf16.gmra.mxu0 %v2189
    %v4716 = vpop.f32.mrf.mxu0
    %v4717 = vadd.f32 %v4172, %v4716
    %v4718 = vpop.f32.mrf.mxu0
    %v4719 = vpop.f32.mrf.mxu0
    %v4720 = vadd.f32 %v4175, %v4719
    %v4721 = vpop.f32.mrf.mxu0
    %4722 = vmatprep.mubr.bf16.mxu0 0
    %4723 = vmatmul.mubr.bf16.gmra.mxu0 %v2190
    %v4724 = vpop.f32.mrf.mxu0
    %v4725 = vadd.f32 %v4180, %v4724
    %v4726 = vpop.f32.mrf.mxu0
    %v4727 = vpop.f32.mrf.mxu0
    %v4728 = vadd.f32 %v4183, %v4727
    %v4729 = vpop.f32.mrf.mxu0
    %4730 = vmatprep.mubr.bf16.mxu0 0
    %4731 = vmatmul.mubr.bf16.gmra.mxu0 %v2191
    %v4732 = vpop.f32.mrf.mxu0
    %v4733 = vadd.f32 %v4188, %v4732
    %v4734 = vpop.f32.mrf.mxu0
    %v4735 = vpop.f32.mrf.mxu0
    %v4736 = vadd.f32 %v4191, %v4735
    %v4737 = vpop.f32.mrf.mxu0
    %4738 = vmatprep.mubr.bf16.mxu0 0
    %4739 = vmatmul.mubr.bf16.gmra.mxu0 %v2192
    %v4740 = vpop.f32.mrf.mxu0
    %v4741 = vadd.f32 %v4196, %v4740
    %v4742 = vpop.f32.mrf.mxu0
    %v4743 = vpop.f32.mrf.mxu0
    %v4744 = vadd.f32 %v4199, %v4743
    %v4745 = vpop.f32.mrf.mxu0
    %4746 = vmatprep.mubr.bf16.mxu0 0
    %4747 = vmatmul.mubr.bf16.gmra.mxu0 %v2193
    %v4748 = vpop.f32.mrf.mxu0
    %v4749 = vadd.f32 %v4204, %v4748
    %v4750 = vpop.f32.mrf.mxu0
    %v4751 = vpop.f32.mrf.mxu0
    %v4752 = vadd.f32 %v4207, %v4751
    %v4753 = vpop.f32.mrf.mxu0
    %4754 = vmatprep.mubr.bf16.mxu0 0
    %4755 = vmatmul.mubr.bf16.gmra.mxu0 %v2194
    %v4756 = vpop.f32.mrf.mxu0
    %v4757 = vadd.f32 %v4212, %v4756
    %v4758 = vpop.f32.mrf.mxu0
    %v4759 = vpop.f32.mrf.mxu0
    %v4760 = vadd.f32 %v4215, %v4759
    %v4761 = vpop.f32.mrf.mxu0
    %4762 = vmatprep.mubr.bf16.mxu0 0
    %4763 = vmatmul.mubr.bf16.gmra.mxu0 %v2195
    %v4764 = vpop.f32.mrf.mxu0
    %v4765 = vadd.f32 %v4220, %v4764
    %v4766 = vpop.f32.mrf.mxu0
    %v4767 = vpop.f32.mrf.mxu0
    %v4768 = vadd.f32 %v4223, %v4767
    %v4769 = vpop.f32.mrf.mxu0
    %4770 = vmatprep.mubr.bf16.mxu0 0
    %4771 = vmatmul.mubr.bf16.gmra.mxu0 %v2196
    %v4772 = vpop.f32.mrf.mxu0
    %v4773 = vadd.f32 %v4228, %v4772
    %v4774 = vpop.f32.mrf.mxu0
    %v4775 = vpop.f32.mrf.mxu0
    %v4776 = vadd.f32 %v4231, %v4775
    %v4777 = vpop.f32.mrf.mxu0
    %4778 = vmatprep.mubr.bf16.mxu0 0
    %4779 = vmatmul.mubr.bf16.gmra.mxu0 %v2197
    %v4780 = vpop.f32.mrf.mxu0
    %v4781 = vadd.f32 %v4236, %v4780
    %v4782 = vpop.f32.mrf.mxu0
    %v4783 = vpop.f32.mrf.mxu0
    %v4784 = vadd.f32 %v4239, %v4783
    %v4785 = vpop.f32.mrf.mxu0
    %4786 = vmatprep.mubr.bf16.mxu0 0
    %4787 = vmatmul.mubr.bf16.gmra.mxu0 %v2198
    %v4788 = vpop.f32.mrf.mxu0
    %v4789 = vadd.f32 %v4244, %v4788
    %v4790 = vpop.f32.mrf.mxu0
    %v4791 = vpop.f32.mrf.mxu0
    %v4792 = vadd.f32 %v4247, %v4791
    %v4793 = vpop.f32.mrf.mxu0
    %4794 = vmatprep.mubr.bf16.mxu0 0
    %4795 = vmatmul.mubr.bf16.gmra.mxu0 %v2199
    %v4796 = vpop.f32.mrf.mxu0
    %v4797 = vadd.f32 %v4252, %v4796
    %v4798 = vpop.f32.mrf.mxu0
    %v4799 = vpop.f32.mrf.mxu0
    %v4800 = vadd.f32 %v4255, %v4799
    %v4801 = vpop.f32.mrf.mxu0
    %4802 = vmatprep.mubr.bf16.mxu0 0
    %4803 = vmatmul.mubr.bf16.gmra.mxu0 %v2200
    %v4804 = vpop.f32.mrf.mxu0
    %v4805 = vadd.f32 %v4260, %v4804
    %v4806 = vpop.f32.mrf.mxu0
    %v4807 = vpop.f32.mrf.mxu0
    %v4808 = vadd.f32 %v4263, %v4807
    %v4809 = vpop.f32.mrf.mxu0
    %4810 = vmatprep.mubr.bf16.mxu0 0
    %4811 = vmatmul.mubr.bf16.gmra.mxu0 %v2201
    %v4812 = vpop.f32.mrf.mxu0
    %v4813 = vadd.f32 %v4268, %v4812
    %v4814 = vpop.f32.mrf.mxu0
    %v4815 = vpop.f32.mrf.mxu0
    %v4816 = vadd.f32 %v4271, %v4815
    %v4817 = vpop.f32.mrf.mxu0
    %4818 = vdwg.mxu0
    %s4819 = scalar_lea.vmem [#allocation7], 384
    %v4820 = vld [vmem:[%s4819] sm:$0xf]
    %v4821 = vld [vmem:[%s4819 + $0x4] sm:$0xf]
    %v4822 = vld [vmem:[%s4819 + $0x8] sm:$0xf]
    %v4823 = vld [vmem:[%s4819 + $0xc] sm:$0xf]
    %v4824 = vld [vmem:[%s4819 + $0x10] sm:$0xf]
    %v4825 = vld [vmem:[%s4819 + $0x14] sm:$0xf]
    %v4826 = vld [vmem:[%s4819 + $0x18] sm:$0xf]
    %v4827 = vld [vmem:[%s4819 + $0x1c] sm:$0xf]
    %v4828 = vld [vmem:[%s4819 + $0x20] sm:$0xf]
    %v4829 = vld [vmem:[%s4819 + $0x24] sm:$0xf]
    %v4830 = vld [vmem:[%s4819 + $0x28] sm:$0xf]
    %v4831 = vld [vmem:[%s4819 + $0x2c] sm:$0xf]
    %v4832 = vld [vmem:[%s4819 + $0x30] sm:$0xf]
    %v4833 = vld [vmem:[%s4819 + $0x34] sm:$0xf]
    %v4834 = vld [vmem:[%s4819 + $0x38] sm:$0xf]
    %v4835 = vld [vmem:[%s4819 + $0x3c] sm:$0xf]
    %v4836 = vld [vmem:[%s4819 + $0x40] sm:$0xf]
    %v4837 = vld [vmem:[%s4819 + $0x44] sm:$0xf]
    %v4838 = vld [vmem:[%s4819 + $0x48] sm:$0xf]
    %v4839 = vld [vmem:[%s4819 + $0x4c] sm:$0xf]
    %v4840 = vld [vmem:[%s4819 + $0x50] sm:$0xf]
    %v4841 = vld [vmem:[%s4819 + $0x54] sm:$0xf]
    %v4842 = vld [vmem:[%s4819 + $0x58] sm:$0xf]
    %v4843 = vld [vmem:[%s4819 + $0x5c] sm:$0xf]
    %v4844 = vld [vmem:[%s4819 + $0x60] sm:$0xf]
    %v4845 = vld [vmem:[%s4819 + $0x64] sm:$0xf]
    %v4846 = vld [vmem:[%s4819 + $0x68] sm:$0xf]
    %v4847 = vld [vmem:[%s4819 + $0x6c] sm:$0xf]
    %v4848 = vld [vmem:[%s4819 + $0x70] sm:$0xf]
    %v4849 = vld [vmem:[%s4819 + $0x74] sm:$0xf]
    %v4850 = vld [vmem:[%s4819 + $0x78] sm:$0xf]
    %v4851 = vld [vmem:[%s4819 + $0x7c] sm:$0xf]
    %v4852 = vld [vmem:[%s4819 + $0x80] sm:$0xf]
    %v4853 = vld [vmem:[%s4819 + $0x84] sm:$0xf]
    %v4854 = vld [vmem:[%s4819 + $0x88] sm:$0xf]
    %v4855 = vld [vmem:[%s4819 + $0x8c] sm:$0xf]
    %v4856 = vld [vmem:[%s4819 + $0x90] sm:$0xf]
    %v4857 = vld [vmem:[%s4819 + $0x94] sm:$0xf]
    %v4858 = vld [vmem:[%s4819 + $0x98] sm:$0xf]
    %v4859 = vld [vmem:[%s4819 + $0x9c] sm:$0xf]
    %v4860 = vld [vmem:[%s4819 + $0xa0] sm:$0xf]
    %v4861 = vld [vmem:[%s4819 + $0xa4] sm:$0xf]
    %v4862 = vld [vmem:[%s4819 + $0xa8] sm:$0xf]
    %v4863 = vld [vmem:[%s4819 + $0xac] sm:$0xf]
    %v4864 = vld [vmem:[%s4819 + $0xb0] sm:$0xf]
    %v4865 = vld [vmem:[%s4819 + $0xb4] sm:$0xf]
    %v4866 = vld [vmem:[%s4819 + $0xb8] sm:$0xf]
    %v4867 = vld [vmem:[%s4819 + $0xbc] sm:$0xf]
    %v4916 = vunpack.c.l.b16 %v4820
    %v4917 = vunpack.c.l.b16 %v4821
    %v4918 = vunpack.c.l.b16 %v4822
    %v4919 = vunpack.c.l.b16 %v4823
    %v4920 = vunpack.c.l.b16 %v4824
    %v4921 = vunpack.c.l.b16 %v4825
    %v4922 = vunpack.c.l.b16 %v4826
    %v4923 = vunpack.c.l.b16 %v4827
    %v4924 = vunpack.c.l.b16 %v4828
    %v4925 = vunpack.c.l.b16 %v4829
    %v4926 = vunpack.c.l.b16 %v4830
    %v4927 = vunpack.c.l.b16 %v4831
    %v4928 = vunpack.c.l.b16 %v4832
    %v4929 = vunpack.c.l.b16 %v4833
    %v4930 = vunpack.c.l.b16 %v4834
    %v4931 = vunpack.c.l.b16 %v4835
    %v4932 = vunpack.c.l.b16 %v4836
    %v4933 = vunpack.c.l.b16 %v4837
    %v4934 = vunpack.c.l.b16 %v4838
    %v4935 = vunpack.c.l.b16 %v4839
    %v4936 = vunpack.c.l.b16 %v4840
    %v4937 = vunpack.c.l.b16 %v4841
    %v4938 = vunpack.c.l.b16 %v4842
    %v4939 = vunpack.c.l.b16 %v4843
    %v4940 = vunpack.c.l.b16 %v4844
    %v4941 = vunpack.c.l.b16 %v4845
    %v4942 = vunpack.c.l.b16 %v4846
    %v4943 = vunpack.c.l.b16 %v4847
    %v4944 = vunpack.c.l.b16 %v4848
    %v4945 = vunpack.c.l.b16 %v4849
    %v4946 = vunpack.c.l.b16 %v4850
    %v4947 = vunpack.c.l.b16 %v4851
    %v4948 = vunpack.c.l.b16 %v4852
    %v4949 = vunpack.c.l.b16 %v4853
    %v4950 = vunpack.c.l.b16 %v4854
    %v4951 = vunpack.c.l.b16 %v4855
    %v4952 = vunpack.c.l.b16 %v4856
    %v4953 = vunpack.c.l.b16 %v4857
    %v4954 = vunpack.c.l.b16 %v4858
    %v4955 = vunpack.c.l.b16 %v4859
    %v4956 = vunpack.c.l.b16 %v4860
    %v4957 = vunpack.c.l.b16 %v4861
    %v4958 = vunpack.c.l.b16 %v4862
    %v4959 = vunpack.c.l.b16 %v4863
    %v4960 = vunpack.c.l.b16 %v4864
    %v4961 = vunpack.c.l.b16 %v4865
    %v4962 = vunpack.c.l.b16 %v4866
    %v4963 = vunpack.c.l.b16 %v4867
    %v4964 = vpack.c.b16 %v4917, %v4916
    %v4965 = vpack.c.b16 %v4919, %v4918
    %v4966 = vpack.c.b16 %v4921, %v4920
    %v4967 = vpack.c.b16 %v4923, %v4922
    %v4968 = vpack.c.b16 %v4925, %v4924
    %v4969 = vpack.c.b16 %v4927, %v4926
    %v4970 = vpack.c.b16 %v4929, %v4928
    %v4971 = vpack.c.b16 %v4931, %v4930
    %v4972 = vpack.c.b16 %v4933, %v4932
    %v4973 = vpack.c.b16 %v4935, %v4934
    %v4974 = vpack.c.b16 %v4937, %v4936
    %v4975 = vpack.c.b16 %v4939, %v4938
    %v4976 = vpack.c.b16 %v4941, %v4940
    %v4977 = vpack.c.b16 %v4943, %v4942
    %v4978 = vpack.c.b16 %v4945, %v4944
    %v4979 = vpack.c.b16 %v4947, %v4946
    %v4980 = vpack.c.b16 %v4949, %v4948
    %v4981 = vpack.c.b16 %v4951, %v4950
    %v4982 = vpack.c.b16 %v4953, %v4952
    %v4983 = vpack.c.b16 %v4955, %v4954
    %v4984 = vpack.c.b16 %v4957, %v4956
    %v4985 = vpack.c.b16 %v4959, %v4958
    %v4986 = vpack.c.b16 %v4961, %v4960
    %v4987 = vpack.c.b16 %v4963, %v4962
    %5012 = vmatprep.subr.bf16.mxu0 0
    %5013 = vmatpush1.bf16.msra.mxu0 %v4971
    %5014 = vmatprep.subr.bf16.mxu0 0
    %5015 = vmatpush1.bf16.msra.mxu0 %v4970
    %5016 = vmatprep.subr.bf16.mxu0 0
    %5017 = vmatpush1.bf16.msra.mxu0 %v4969
    %5018 = vmatprep.subr.bf16.mxu0 0
    %5019 = vmatpush1.bf16.msra.mxu0 %v4968
    %5020 = vmatprep.subr.bf16.mxu0 0
    %5021 = vmatpush1.bf16.msra.mxu0 %v4967
    %5022 = vmatprep.subr.bf16.mxu0 0
    %5023 = vmatpush1.bf16.msra.mxu0 %v4966
    %5024 = vmatprep.subr.bf16.mxu0 0
    %5025 = vmatpush1.bf16.msra.mxu0 %v4965
    %5026 = vmatprep.subr.bf16.mxu0 0
    %5027 = vmatpush1.bf16.msra.mxu0 %v4964
    %5028 = vmatprep.subr.bf16.mxu0 0
    %5029 = vmatpush2.bf16.msra.mxu0 %v4979
    %5030 = vmatprep.subr.bf16.mxu0 0
    %5031 = vmatpush2.bf16.msra.mxu0 %v4978
    %5032 = vmatprep.subr.bf16.mxu0 0
    %5033 = vmatpush2.bf16.msra.mxu0 %v4977
    %5034 = vmatprep.subr.bf16.mxu0 0
    %5035 = vmatpush2.bf16.msra.mxu0 %v4976
    %5036 = vmatprep.subr.bf16.mxu0 0
    %5037 = vmatpush2.bf16.msra.mxu0 %v4975
    %5038 = vmatprep.subr.bf16.mxu0 0
    %5039 = vmatpush2.bf16.msra.mxu0 %v4974
    %5040 = vmatprep.subr.bf16.mxu0 0
    %5041 = vmatpush2.bf16.msra.mxu0 %v4973
    %5042 = vmatprep.subr.bf16.mxu0 0
    %5043 = vmatpush2.bf16.msra.mxu0 %v4972
    %5044 = vmatprep.mubr.bf16.mxu0 %v1340
    %5045 = vmatmul.mubr.bf16.gmra.mxu0 %v1896
    %v5046 = vpop.f32.mrf.mxu0
    %v5047 = vadd.f32 0.0, %v5046
    %v5048 = vpop.f32.mrf.mxu0
    %v5049 = vpop.f32.mrf.mxu0
    %v5050 = vadd.f32 0.0, %v5049
    %v5051 = vpop.f32.mrf.mxu0
    %5052 = vmatprep.mubr.bf16.mxu0 %v1341
    %5053 = vmatmul.mubr.bf16.gmra.mxu0 %v1897
    %v5054 = vpop.f32.mrf.mxu0
    %v5055 = vadd.f32 0.0, %v5054
    %v5056 = vpop.f32.mrf.mxu0
    %v5057 = vpop.f32.mrf.mxu0
    %v5058 = vadd.f32 0.0, %v5057
    %v5059 = vpop.f32.mrf.mxu0
    %5060 = vmatprep.mubr.bf16.mxu0 %v1342
    %5061 = vmatmul.mubr.bf16.gmra.mxu0 %v1898
    %v5062 = vpop.f32.mrf.mxu0
    %v5063 = vadd.f32 0.0, %v5062
    %v5064 = vpop.f32.mrf.mxu0
    %v5065 = vpop.f32.mrf.mxu0
    %v5066 = vadd.f32 0.0, %v5065
    %v5067 = vpop.f32.mrf.mxu0
    %5068 = vmatprep.mubr.bf16.mxu0 %v1343
    %5069 = vmatmul.mubr.bf16.gmra.mxu0 %v1899
    %v5070 = vpop.f32.mrf.mxu0
    %v5071 = vadd.f32 0.0, %v5070
    %v5072 = vpop.f32.mrf.mxu0
    %v5073 = vpop.f32.mrf.mxu0
    %v5074 = vadd.f32 0.0, %v5073
    %v5075 = vpop.f32.mrf.mxu0
    %5076 = vmatprep.mubr.bf16.mxu0 %v1344
    %5077 = vmatmul.mubr.bf16.gmra.mxu0 %v1900
    %v5078 = vpop.f32.mrf.mxu0
    %v5079 = vadd.f32 0.0, %v5078
    %v5080 = vpop.f32.mrf.mxu0
    %v5081 = vpop.f32.mrf.mxu0
    %v5082 = vadd.f32 0.0, %v5081
    %v5083 = vpop.f32.mrf.mxu0
    %5084 = vmatprep.mubr.bf16.mxu0 %v1345
    %5085 = vmatmul.mubr.bf16.gmra.mxu0 %v1901
    %v5086 = vpop.f32.mrf.mxu0
    %v5087 = vadd.f32 0.0, %v5086
    %v5088 = vpop.f32.mrf.mxu0
    %v5089 = vpop.f32.mrf.mxu0
    %v5090 = vadd.f32 0.0, %v5089
    %v5091 = vpop.f32.mrf.mxu0
    %5092 = vmatprep.mubr.bf16.mxu0 %v1346
    %5093 = vmatmul.mubr.bf16.gmra.mxu0 %v1902
    %v5094 = vpop.f32.mrf.mxu0
    %v5095 = vadd.f32 0.0, %v5094
    %v5096 = vpop.f32.mrf.mxu0
    %v5097 = vpop.f32.mrf.mxu0
    %v5098 = vadd.f32 0.0, %v5097
    %v5099 = vpop.f32.mrf.mxu0
    %5100 = vmatprep.mubr.bf16.mxu0 %v1347
    %5101 = vmatmul.mubr.bf16.gmra.mxu0 %v1903
    %v5102 = vpop.f32.mrf.mxu0
    %v5103 = vadd.f32 0.0, %v5102
    %v5104 = vpop.f32.mrf.mxu0
    %v5105 = vpop.f32.mrf.mxu0
    %v5106 = vadd.f32 0.0, %v5105
    %v5107 = vpop.f32.mrf.mxu0
    %5108 = vmatprep.mubr.bf16.mxu0 %v1348
    %5109 = vmatmul.mubr.bf16.gmra.mxu0 %v1904
    %v5110 = vpop.f32.mrf.mxu0
    %v5111 = vadd.f32 0.0, %v5110
    %v5112 = vpop.f32.mrf.mxu0
    %v5113 = vpop.f32.mrf.mxu0
    %v5114 = vadd.f32 0.0, %v5113
    %v5115 = vpop.f32.mrf.mxu0
    %5116 = vmatprep.mubr.bf16.mxu0 %v1349
    %5117 = vmatmul.mubr.bf16.gmra.mxu0 %v1905
    %v5118 = vpop.f32.mrf.mxu0
    %v5119 = vadd.f32 0.0, %v5118
    %v5120 = vpop.f32.mrf.mxu0
    %v5121 = vpop.f32.mrf.mxu0
    %v5122 = vadd.f32 0.0, %v5121
    %v5123 = vpop.f32.mrf.mxu0
    %5124 = vmatprep.mubr.bf16.mxu0 %v1350
    %5125 = vmatmul.mubr.bf16.gmra.mxu0 %v1906
    %v5126 = vpop.f32.mrf.mxu0
    %v5127 = vadd.f32 0.0, %v5126
    %v5128 = vpop.f32.mrf.mxu0
    %v5129 = vpop.f32.mrf.mxu0
    %v5130 = vadd.f32 0.0, %v5129
    %v5131 = vpop.f32.mrf.mxu0
    %5132 = vmatprep.mubr.bf16.mxu0 %v1351
    %5133 = vmatmul.mubr.bf16.gmra.mxu0 %v1907
    %v5134 = vpop.f32.mrf.mxu0
    %v5135 = vadd.f32 0.0, %v5134
    %v5136 = vpop.f32.mrf.mxu0
    %v5137 = vpop.f32.mrf.mxu0
    %v5138 = vadd.f32 0.0, %v5137
    %v5139 = vpop.f32.mrf.mxu0
    %5140 = vmatprep.mubr.bf16.mxu0 %v1352
    %5141 = vmatmul.mubr.bf16.gmra.mxu0 %v1908
    %v5142 = vpop.f32.mrf.mxu0
    %v5143 = vadd.f32 0.0, %v5142
    %v5144 = vpop.f32.mrf.mxu0
    %v5145 = vpop.f32.mrf.mxu0
    %v5146 = vadd.f32 0.0, %v5145
    %v5147 = vpop.f32.mrf.mxu0
    %5148 = vmatprep.mubr.bf16.mxu0 %v1353
    %5149 = vmatmul.mubr.bf16.gmra.mxu0 %v1909
    %v5150 = vpop.f32.mrf.mxu0
    %v5151 = vadd.f32 0.0, %v5150
    %v5152 = vpop.f32.mrf.mxu0
    %v5153 = vpop.f32.mrf.mxu0
    %v5154 = vadd.f32 0.0, %v5153
    %v5155 = vpop.f32.mrf.mxu0
    %5156 = vmatprep.mubr.bf16.mxu0 %v1354
    %5157 = vmatmul.mubr.bf16.gmra.mxu0 %v2282
    %v5158 = vpop.f32.mrf.mxu0
    %v5159 = vadd.f32 0.0, %v5158
    %v5160 = vpop.f32.mrf.mxu0
    %v5161 = vpop.f32.mrf.mxu0
    %v5162 = vadd.f32 0.0, %v5161
    %v5163 = vpop.f32.mrf.mxu0
    %5164 = vmatprep.mubr.bf16.mxu0 0
    %5165 = vmatmul.mubr.bf16.gmra.mxu0 %v1894
    %v5166 = vpop.f32.mrf.mxu0
    %v5167 = vadd.f32 0.0, %v5166
    %v5168 = vpop.f32.mrf.mxu0
    %v5169 = vpop.f32.mrf.mxu0
    %v5170 = vadd.f32 0.0, %v5169
    %v5171 = vpop.f32.mrf.mxu0
    %5172 = vmatprep.mubr.bf16.mxu0 %v1356
    %5173 = vmatmul.mubr.bf16.gmra.mxu0 %v1911
    %v5174 = vpop.f32.mrf.mxu0
    %v5175 = vadd.f32 0.0, %v5174
    %v5176 = vpop.f32.mrf.mxu0
    %v5177 = vpop.f32.mrf.mxu0
    %v5178 = vadd.f32 0.0, %v5177
    %v5179 = vpop.f32.mrf.mxu0
    %5180 = vmatprep.mubr.bf16.mxu0 %v1357
    %5181 = vmatmul.mubr.bf16.gmra.mxu0 %v1912
    %v5182 = vpop.f32.mrf.mxu0
    %v5183 = vadd.f32 0.0, %v5182
    %v5184 = vpop.f32.mrf.mxu0
    %v5185 = vpop.f32.mrf.mxu0
    %v5186 = vadd.f32 0.0, %v5185
    %v5187 = vpop.f32.mrf.mxu0
    %5188 = vmatprep.mubr.bf16.mxu0 %v1358
    %5189 = vmatmul.mubr.bf16.gmra.mxu0 %v1913
    %v5190 = vpop.f32.mrf.mxu0
    %v5191 = vadd.f32 0.0, %v5190
    %v5192 = vpop.f32.mrf.mxu0
    %v5193 = vpop.f32.mrf.mxu0
    %v5194 = vadd.f32 0.0, %v5193
    %v5195 = vpop.f32.mrf.mxu0
    %5196 = vmatprep.mubr.bf16.mxu0 %v1359
    %5197 = vmatmul.mubr.bf16.gmra.mxu0 %v1914
    %v5198 = vpop.f32.mrf.mxu0
    %v5199 = vadd.f32 0.0, %v5198
    %v5200 = vpop.f32.mrf.mxu0
    %v5201 = vpop.f32.mrf.mxu0
    %v5202 = vadd.f32 0.0, %v5201
    %v5203 = vpop.f32.mrf.mxu0
    %5204 = vmatprep.mubr.bf16.mxu0 %v1360
    %5205 = vmatmul.mubr.bf16.gmra.mxu0 %v1915
    %v5206 = vpop.f32.mrf.mxu0
    %v5207 = vadd.f32 0.0, %v5206
    %v5208 = vpop.f32.mrf.mxu0
    %v5209 = vpop.f32.mrf.mxu0
    %v5210 = vadd.f32 0.0, %v5209
    %v5211 = vpop.f32.mrf.mxu0
    %5212 = vmatprep.mubr.bf16.mxu0 %v1361
    %5213 = vmatmul.mubr.bf16.gmra.mxu0 %v1916
    %v5214 = vpop.f32.mrf.mxu0
    %v5215 = vadd.f32 0.0, %v5214
    %v5216 = vpop.f32.mrf.mxu0
    %v5217 = vpop.f32.mrf.mxu0
    %v5218 = vadd.f32 0.0, %v5217
    %v5219 = vpop.f32.mrf.mxu0
    %5220 = vmatprep.mubr.bf16.mxu0 %v1362
    %5221 = vmatmul.mubr.bf16.gmra.mxu0 %v1917
    %v5222 = vpop.f32.mrf.mxu0
    %v5223 = vadd.f32 0.0, %v5222
    %v5224 = vpop.f32.mrf.mxu0
    %v5225 = vpop.f32.mrf.mxu0
    %v5226 = vadd.f32 0.0, %v5225
    %v5227 = vpop.f32.mrf.mxu0
    %5228 = vmatprep.mubr.bf16.mxu0 %v1363
    %5229 = vmatmul.mubr.bf16.gmra.mxu0 %v1918
    %v5230 = vpop.f32.mrf.mxu0
    %v5231 = vadd.f32 0.0, %v5230
    %v5232 = vpop.f32.mrf.mxu0
    %v5233 = vpop.f32.mrf.mxu0
    %v5234 = vadd.f32 0.0, %v5233
    %v5235 = vpop.f32.mrf.mxu0
    %5236 = vmatprep.mubr.bf16.mxu0 %v1364
    %5237 = vmatmul.mubr.bf16.gmra.mxu0 %v1919
    %v5238 = vpop.f32.mrf.mxu0
    %v5239 = vadd.f32 0.0, %v5238
    %v5240 = vpop.f32.mrf.mxu0
    %v5241 = vpop.f32.mrf.mxu0
    %v5242 = vadd.f32 0.0, %v5241
    %v5243 = vpop.f32.mrf.mxu0
    %5244 = vmatprep.mubr.bf16.mxu0 %v1365
    %5245 = vmatmul.mubr.bf16.gmra.mxu0 %v1920
    %v5246 = vpop.f32.mrf.mxu0
    %v5247 = vadd.f32 0.0, %v5246
    %v5248 = vpop.f32.mrf.mxu0
    %v5249 = vpop.f32.mrf.mxu0
    %v5250 = vadd.f32 0.0, %v5249
    %v5251 = vpop.f32.mrf.mxu0
    %5252 = vmatprep.mubr.bf16.mxu0 %v1366
    %5253 = vmatmul.mubr.bf16.gmra.mxu0 %v1921
    %v5254 = vpop.f32.mrf.mxu0
    %v5255 = vadd.f32 0.0, %v5254
    %v5256 = vpop.f32.mrf.mxu0
    %v5257 = vpop.f32.mrf.mxu0
    %v5258 = vadd.f32 0.0, %v5257
    %v5259 = vpop.f32.mrf.mxu0
    %5260 = vmatprep.mubr.bf16.mxu0 %v1367
    %5261 = vmatmul.mubr.bf16.gmra.mxu0 %v1922
    %v5262 = vpop.f32.mrf.mxu0
    %v5263 = vadd.f32 0.0, %v5262
    %v5264 = vpop.f32.mrf.mxu0
    %v5265 = vpop.f32.mrf.mxu0
    %v5266 = vadd.f32 0.0, %v5265
    %v5267 = vpop.f32.mrf.mxu0
    %5268 = vmatprep.mubr.bf16.mxu0 %v1368
    %5269 = vmatmul.mubr.bf16.gmra.mxu0 %v1923
    %v5270 = vpop.f32.mrf.mxu0
    %v5271 = vadd.f32 0.0, %v5270
    %v5272 = vpop.f32.mrf.mxu0
    %v5273 = vpop.f32.mrf.mxu0
    %v5274 = vadd.f32 0.0, %v5273
    %v5275 = vpop.f32.mrf.mxu0
    %5276 = vmatprep.mubr.bf16.mxu0 %v1369
    %5277 = vmatmul.mubr.bf16.gmra.mxu0 %v1924
    %v5278 = vpop.f32.mrf.mxu0
    %v5279 = vadd.f32 0.0, %v5278
    %v5280 = vpop.f32.mrf.mxu0
    %v5281 = vpop.f32.mrf.mxu0
    %v5282 = vadd.f32 0.0, %v5281
    %v5283 = vpop.f32.mrf.mxu0
    %5284 = vmatprep.mubr.bf16.mxu0 %v1370
    %5285 = vmatmul.mubr.bf16.gmra.mxu0 %v2283
    %v5286 = vpop.f32.mrf.mxu0
    %v5287 = vadd.f32 0.0, %v5286
    %v5288 = vpop.f32.mrf.mxu0
    %v5289 = vpop.f32.mrf.mxu0
    %v5290 = vadd.f32 0.0, %v5289
    %v5291 = vpop.f32.mrf.mxu0
    %5292 = vmatprep.mubr.bf16.mxu0 0
    %5293 = vmatmul.mubr.bf16.gmra.mxu0 %v1894
    %v5294 = vpop.f32.mrf.mxu0
    %v5295 = vadd.f32 0.0, %v5294
    %v5296 = vpop.f32.mrf.mxu0
    %v5297 = vpop.f32.mrf.mxu0
    %v5298 = vadd.f32 0.0, %v5297
    %v5299 = vpop.f32.mrf.mxu0
    %5300 = vmatprep.mubr.bf16.mxu0 %v1372
    %5301 = vmatmul.mubr.bf16.gmra.mxu0 %v1926
    %v5302 = vpop.f32.mrf.mxu0
    %v5303 = vadd.f32 0.0, %v5302
    %v5304 = vpop.f32.mrf.mxu0
    %v5305 = vpop.f32.mrf.mxu0
    %v5306 = vadd.f32 0.0, %v5305
    %v5307 = vpop.f32.mrf.mxu0
    %5308 = vmatprep.mubr.bf16.mxu0 %v1373
    %5309 = vmatmul.mubr.bf16.gmra.mxu0 %v1927
    %v5310 = vpop.f32.mrf.mxu0
    %v5311 = vadd.f32 0.0, %v5310
    %v5312 = vpop.f32.mrf.mxu0
    %v5313 = vpop.f32.mrf.mxu0
    %v5314 = vadd.f32 0.0, %v5313
    %v5315 = vpop.f32.mrf.mxu0
    %5316 = vmatprep.mubr.bf16.mxu0 %v1374
    %5317 = vmatmul.mubr.bf16.gmra.mxu0 %v1928
    %v5318 = vpop.f32.mrf.mxu0
    %v5319 = vadd.f32 0.0, %v5318
    %v5320 = vpop.f32.mrf.mxu0
    %v5321 = vpop.f32.mrf.mxu0
    %v5322 = vadd.f32 0.0, %v5321
    %v5323 = vpop.f32.mrf.mxu0
    %5324 = vmatprep.mubr.bf16.mxu0 %v1375
    %5325 = vmatmul.mubr.bf16.gmra.mxu0 %v1929
    %v5326 = vpop.f32.mrf.mxu0
    %v5327 = vadd.f32 0.0, %v5326
    %v5328 = vpop.f32.mrf.mxu0
    %v5329 = vpop.f32.mrf.mxu0
    %v5330 = vadd.f32 0.0, %v5329
    %v5331 = vpop.f32.mrf.mxu0
    %5332 = vmatprep.mubr.bf16.mxu0 %v1376
    %5333 = vmatmul.mubr.bf16.gmra.mxu0 %v1930
    %v5334 = vpop.f32.mrf.mxu0
    %v5335 = vadd.f32 0.0, %v5334
    %v5336 = vpop.f32.mrf.mxu0
    %v5337 = vpop.f32.mrf.mxu0
    %v5338 = vadd.f32 0.0, %v5337
    %v5339 = vpop.f32.mrf.mxu0
    %5340 = vmatprep.mubr.bf16.mxu0 %v1377
    %5341 = vmatmul.mubr.bf16.gmra.mxu0 %v1931
    %v5342 = vpop.f32.mrf.mxu0
    %v5343 = vadd.f32 0.0, %v5342
    %v5344 = vpop.f32.mrf.mxu0
    %v5345 = vpop.f32.mrf.mxu0
    %v5346 = vadd.f32 0.0, %v5345
    %v5347 = vpop.f32.mrf.mxu0
    %5348 = vmatprep.mubr.bf16.mxu0 %v1378
    %5349 = vmatmul.mubr.bf16.gmra.mxu0 %v1932
    %v5350 = vpop.f32.mrf.mxu0
    %v5351 = vadd.f32 0.0, %v5350
    %v5352 = vpop.f32.mrf.mxu0
    %v5353 = vpop.f32.mrf.mxu0
    %v5354 = vadd.f32 0.0, %v5353
    %v5355 = vpop.f32.mrf.mxu0
    %5356 = vmatprep.mubr.bf16.mxu0 %v1379
    %5357 = vmatmul.mubr.bf16.gmra.mxu0 %v1933
    %v5358 = vpop.f32.mrf.mxu0
    %v5359 = vadd.f32 0.0, %v5358
    %v5360 = vpop.f32.mrf.mxu0
    %v5361 = vpop.f32.mrf.mxu0
    %v5362 = vadd.f32 0.0, %v5361
    %v5363 = vpop.f32.mrf.mxu0
    %5364 = vmatprep.mubr.bf16.mxu0 %v1380
    %5365 = vmatmul.mubr.bf16.gmra.mxu0 %v1934
    %v5366 = vpop.f32.mrf.mxu0
    %v5367 = vadd.f32 0.0, %v5366
    %v5368 = vpop.f32.mrf.mxu0
    %v5369 = vpop.f32.mrf.mxu0
    %v5370 = vadd.f32 0.0, %v5369
    %v5371 = vpop.f32.mrf.mxu0
    %5372 = vmatprep.mubr.bf16.mxu0 %v1381
    %5373 = vmatmul.mubr.bf16.gmra.mxu0 %v1935
    %v5374 = vpop.f32.mrf.mxu0
    %v5375 = vadd.f32 0.0, %v5374
    %v5376 = vpop.f32.mrf.mxu0
    %v5377 = vpop.f32.mrf.mxu0
    %v5378 = vadd.f32 0.0, %v5377
    %v5379 = vpop.f32.mrf.mxu0
    %5380 = vmatprep.mubr.bf16.mxu0 %v1382
    %5381 = vmatmul.mubr.bf16.gmra.mxu0 %v1936
    %v5382 = vpop.f32.mrf.mxu0
    %v5383 = vadd.f32 0.0, %v5382
    %v5384 = vpop.f32.mrf.mxu0
    %v5385 = vpop.f32.mrf.mxu0
    %v5386 = vadd.f32 0.0, %v5385
    %v5387 = vpop.f32.mrf.mxu0
    %5388 = vmatprep.mubr.bf16.mxu0 %v1383
    %5389 = vmatmul.mubr.bf16.gmra.mxu0 %v1937
    %v5390 = vpop.f32.mrf.mxu0
    %v5391 = vadd.f32 0.0, %v5390
    %v5392 = vpop.f32.mrf.mxu0
    %v5393 = vpop.f32.mrf.mxu0
    %v5394 = vadd.f32 0.0, %v5393
    %v5395 = vpop.f32.mrf.mxu0
    %5396 = vmatprep.mubr.bf16.mxu0 %v1384
    %5397 = vmatmul.mubr.bf16.gmra.mxu0 %v1938
    %v5398 = vpop.f32.mrf.mxu0
    %v5399 = vadd.f32 0.0, %v5398
    %v5400 = vpop.f32.mrf.mxu0
    %v5401 = vpop.f32.mrf.mxu0
    %v5402 = vadd.f32 0.0, %v5401
    %v5403 = vpop.f32.mrf.mxu0
    %5404 = vmatprep.mubr.bf16.mxu0 %v1385
    %5405 = vmatmul.mubr.bf16.gmra.mxu0 %v1939
    %v5406 = vpop.f32.mrf.mxu0
    %v5407 = vadd.f32 0.0, %v5406
    %v5408 = vpop.f32.mrf.mxu0
    %v5409 = vpop.f32.mrf.mxu0
    %v5410 = vadd.f32 0.0, %v5409
    %v5411 = vpop.f32.mrf.mxu0
    %5412 = vmatprep.mubr.bf16.mxu0 %v1386
    %5413 = vmatmul.mubr.bf16.gmra.mxu0 %v2284
    %v5414 = vpop.f32.mrf.mxu0
    %v5415 = vadd.f32 0.0, %v5414
    %v5416 = vpop.f32.mrf.mxu0
    %v5417 = vpop.f32.mrf.mxu0
    %v5418 = vadd.f32 0.0, %v5417
    %v5419 = vpop.f32.mrf.mxu0
    %5420 = vmatprep.mubr.bf16.mxu0 0
    %5421 = vmatmul.mubr.bf16.gmra.mxu0 %v1894
    %v5422 = vpop.f32.mrf.mxu0
    %v5423 = vadd.f32 0.0, %v5422
    %v5424 = vpop.f32.mrf.mxu0
    %v5425 = vpop.f32.mrf.mxu0
    %v5426 = vadd.f32 0.0, %v5425
    %v5427 = vpop.f32.mrf.mxu0
    %5428 = vmatprep.mubr.bf16.mxu0 %v1388
    %5429 = vmatmul.mubr.bf16.gmra.mxu0 %v1941
    %v5430 = vpop.f32.mrf.mxu0
    %v5431 = vadd.f32 0.0, %v5430
    %v5432 = vpop.f32.mrf.mxu0
    %v5433 = vpop.f32.mrf.mxu0
    %v5434 = vadd.f32 0.0, %v5433
    %v5435 = vpop.f32.mrf.mxu0
    %5436 = vmatprep.mubr.bf16.mxu0 %v1389
    %5437 = vmatmul.mubr.bf16.gmra.mxu0 %v1942
    %v5438 = vpop.f32.mrf.mxu0
    %v5439 = vadd.f32 0.0, %v5438
    %v5440 = vpop.f32.mrf.mxu0
    %v5441 = vpop.f32.mrf.mxu0
    %v5442 = vadd.f32 0.0, %v5441
    %v5443 = vpop.f32.mrf.mxu0
    %5444 = vmatprep.mubr.bf16.mxu0 %v1390
    %5445 = vmatmul.mubr.bf16.gmra.mxu0 %v1943
    %v5446 = vpop.f32.mrf.mxu0
    %v5447 = vadd.f32 0.0, %v5446
    %v5448 = vpop.f32.mrf.mxu0
    %v5449 = vpop.f32.mrf.mxu0
    %v5450 = vadd.f32 0.0, %v5449
    %v5451 = vpop.f32.mrf.mxu0
    %5452 = vmatprep.mubr.bf16.mxu0 %v1391
    %5453 = vmatmul.mubr.bf16.gmra.mxu0 %v1944
    %v5454 = vpop.f32.mrf.mxu0
    %v5455 = vadd.f32 0.0, %v5454
    %v5456 = vpop.f32.mrf.mxu0
    %v5457 = vpop.f32.mrf.mxu0
    %v5458 = vadd.f32 0.0, %v5457
    %v5459 = vpop.f32.mrf.mxu0
    %5460 = vmatprep.mubr.bf16.mxu0 %v1392
    %5461 = vmatmul.mubr.bf16.gmra.mxu0 %v1945
    %v5462 = vpop.f32.mrf.mxu0
    %v5463 = vadd.f32 0.0, %v5462
    %v5464 = vpop.f32.mrf.mxu0
    %v5465 = vpop.f32.mrf.mxu0
    %v5466 = vadd.f32 0.0, %v5465
    %v5467 = vpop.f32.mrf.mxu0
    %5468 = vmatprep.mubr.bf16.mxu0 %v1393
    %5469 = vmatmul.mubr.bf16.gmra.mxu0 %v1946
    %v5470 = vpop.f32.mrf.mxu0
    %v5471 = vadd.f32 0.0, %v5470
    %v5472 = vpop.f32.mrf.mxu0
    %v5473 = vpop.f32.mrf.mxu0
    %v5474 = vadd.f32 0.0, %v5473
    %v5475 = vpop.f32.mrf.mxu0
    %5476 = vmatprep.mubr.bf16.mxu0 %v1394
    %5477 = vmatmul.mubr.bf16.gmra.mxu0 %v1947
    %v5478 = vpop.f32.mrf.mxu0
    %v5479 = vadd.f32 0.0, %v5478
    %v5480 = vpop.f32.mrf.mxu0
    %v5481 = vpop.f32.mrf.mxu0
    %v5482 = vadd.f32 0.0, %v5481
    %v5483 = vpop.f32.mrf.mxu0
    %5484 = vmatprep.mubr.bf16.mxu0 %v1395
    %5485 = vmatmul.mubr.bf16.gmra.mxu0 %v1948
    %v5486 = vpop.f32.mrf.mxu0
    %v5487 = vadd.f32 0.0, %v5486
    %v5488 = vpop.f32.mrf.mxu0
    %v5489 = vpop.f32.mrf.mxu0
    %v5490 = vadd.f32 0.0, %v5489
    %v5491 = vpop.f32.mrf.mxu0
    %5492 = vmatprep.mubr.bf16.mxu0 %v1396
    %5493 = vmatmul.mubr.bf16.gmra.mxu0 %v1949
    %v5494 = vpop.f32.mrf.mxu0
    %v5495 = vadd.f32 0.0, %v5494
    %v5496 = vpop.f32.mrf.mxu0
    %v5497 = vpop.f32.mrf.mxu0
    %v5498 = vadd.f32 0.0, %v5497
    %v5499 = vpop.f32.mrf.mxu0
    %5500 = vmatprep.mubr.bf16.mxu0 %v1397
    %5501 = vmatmul.mubr.bf16.gmra.mxu0 %v1950
    %v5502 = vpop.f32.mrf.mxu0
    %v5503 = vadd.f32 0.0, %v5502
    %v5504 = vpop.f32.mrf.mxu0
    %v5505 = vpop.f32.mrf.mxu0
    %v5506 = vadd.f32 0.0, %v5505
    %v5507 = vpop.f32.mrf.mxu0
    %5508 = vmatprep.mubr.bf16.mxu0 %v1398
    %5509 = vmatmul.mubr.bf16.gmra.mxu0 %v1951
    %v5510 = vpop.f32.mrf.mxu0
    %v5511 = vadd.f32 0.0, %v5510
    %v5512 = vpop.f32.mrf.mxu0
    %v5513 = vpop.f32.mrf.mxu0
    %v5514 = vadd.f32 0.0, %v5513
    %v5515 = vpop.f32.mrf.mxu0
    %5516 = vmatprep.mubr.bf16.mxu0 %v1399
    %5517 = vmatmul.mubr.bf16.gmra.mxu0 %v1952
    %v5518 = vpop.f32.mrf.mxu0
    %v5519 = vadd.f32 0.0, %v5518
    %v5520 = vpop.f32.mrf.mxu0
    %v5521 = vpop.f32.mrf.mxu0
    %v5522 = vadd.f32 0.0, %v5521
    %v5523 = vpop.f32.mrf.mxu0
    %5524 = vmatprep.mubr.bf16.mxu0 %v1400
    %5525 = vmatmul.mubr.bf16.gmra.mxu0 %v1953
    %v5526 = vpop.f32.mrf.mxu0
    %v5527 = vadd.f32 0.0, %v5526
    %v5528 = vpop.f32.mrf.mxu0
    %v5529 = vpop.f32.mrf.mxu0
    %v5530 = vadd.f32 0.0, %v5529
    %v5531 = vpop.f32.mrf.mxu0
    %5532 = vmatprep.mubr.bf16.mxu0 %v1401
    %5533 = vmatmul.mubr.bf16.gmra.mxu0 %v1954
    %v5534 = vpop.f32.mrf.mxu0
    %v5535 = vadd.f32 0.0, %v5534
    %v5536 = vpop.f32.mrf.mxu0
    %v5537 = vpop.f32.mrf.mxu0
    %v5538 = vadd.f32 0.0, %v5537
    %v5539 = vpop.f32.mrf.mxu0
    %5540 = vmatprep.mubr.bf16.mxu0 %v1402
    %5541 = vmatmul.mubr.bf16.gmra.mxu0 %v2285
    %v5542 = vpop.f32.mrf.mxu0
    %v5543 = vadd.f32 0.0, %v5542
    %v5544 = vpop.f32.mrf.mxu0
    %v5545 = vpop.f32.mrf.mxu0
    %v5546 = vadd.f32 0.0, %v5545
    %v5547 = vpop.f32.mrf.mxu0
    %5548 = vmatprep.mubr.bf16.mxu0 0
    %5549 = vmatmul.mubr.bf16.gmra.mxu0 %v1894
    %v5550 = vpop.f32.mrf.mxu0
    %v5551 = vadd.f32 0.0, %v5550
    %v5552 = vpop.f32.mrf.mxu0
    %v5553 = vpop.f32.mrf.mxu0
    %v5554 = vadd.f32 0.0, %v5553
    %v5555 = vpop.f32.mrf.mxu0
    %5556 = vdwg.mxu0
    %5557 = vmatprep.subr.bf16.mxu0 0
    %5558 = vmatpush1.bf16.msra.mxu0 %v4987
    %5559 = vmatprep.subr.bf16.mxu0 0
    %5560 = vmatpush1.bf16.msra.mxu0 %v4986
    %5561 = vmatprep.subr.bf16.mxu0 0
    %5562 = vmatpush1.bf16.msra.mxu0 %v4985
    %5563 = vmatprep.subr.bf16.mxu0 0
    %5564 = vmatpush1.bf16.msra.mxu0 %v4984
    %5565 = vmatprep.subr.bf16.mxu0 0
    %5566 = vmatpush1.bf16.msra.mxu0 %v4983
    %5567 = vmatprep.subr.bf16.mxu0 0
    %5568 = vmatpush1.bf16.msra.mxu0 %v4982
    %5569 = vmatprep.subr.bf16.mxu0 0
    %5570 = vmatpush1.bf16.msra.mxu0 %v4981
    %5571 = vmatprep.subr.bf16.mxu0 0
    %5572 = vmatpush1.bf16.msra.mxu0 %v4980
    %5573 = vmatprep.subr.bf16.mxu0 0
    %5574 = vmatpush2.bf16.msra.mxu0 0
    %5575 = vmatprep.subr.bf16.mxu0 0
    %5576 = vmatpush2.bf16.msra.mxu0 0
    %5577 = vmatprep.subr.bf16.mxu0 0
    %5578 = vmatpush2.bf16.msra.mxu0 0
    %5579 = vmatprep.subr.bf16.mxu0 0
    %5580 = vmatpush2.bf16.msra.mxu0 0
    %5581 = vmatprep.subr.bf16.mxu0 0
    %5582 = vmatpush2.bf16.msra.mxu0 0
    %5583 = vmatprep.subr.bf16.mxu0 0
    %5584 = vmatpush2.bf16.msra.mxu0 0
    %5585 = vmatprep.subr.bf16.mxu0 0
    %5586 = vmatpush2.bf16.msra.mxu0 0
    %5587 = vmatprep.subr.bf16.mxu0 0
    %5588 = vmatpush2.bf16.msra.mxu0 0
    %5589 = vmatprep.mubr.bf16.mxu0 0
    %5590 = vmatmul.mubr.bf16.gmra.mxu0 %v2143
    %v5591 = vpop.f32.mrf.mxu0
    %v5592 = vadd.f32 %v5047, %v5591
    %v5593 = vpop.f32.mrf.mxu0
    %v5594 = vpop.f32.mrf.mxu0
    %v5595 = vadd.f32 %v5050, %v5594
    %v5596 = vpop.f32.mrf.mxu0
    %5597 = vmatprep.mubr.bf16.mxu0 0
    %5598 = vmatmul.mubr.bf16.gmra.mxu0 %v2144
    %v5599 = vpop.f32.mrf.mxu0
    %v5600 = vadd.f32 %v5055, %v5599
    %v5601 = vpop.f32.mrf.mxu0
    %v5602 = vpop.f32.mrf.mxu0
    %v5603 = vadd.f32 %v5058, %v5602
    %v5604 = vpop.f32.mrf.mxu0
    %5605 = vmatprep.mubr.bf16.mxu0 0
    %5606 = vmatmul.mubr.bf16.gmra.mxu0 %v2145
    %v5607 = vpop.f32.mrf.mxu0
    %v5608 = vadd.f32 %v5063, %v5607
    %v5609 = vpop.f32.mrf.mxu0
    %v5610 = vpop.f32.mrf.mxu0
    %v5611 = vadd.f32 %v5066, %v5610
    %v5612 = vpop.f32.mrf.mxu0
    %5613 = vmatprep.mubr.bf16.mxu0 0
    %5614 = vmatmul.mubr.bf16.gmra.mxu0 %v2146
    %v5615 = vpop.f32.mrf.mxu0
    %v5616 = vadd.f32 %v5071, %v5615
    %v5617 = vpop.f32.mrf.mxu0
    %v5618 = vpop.f32.mrf.mxu0
    %v5619 = vadd.f32 %v5074, %v5618
    %v5620 = vpop.f32.mrf.mxu0
    %5621 = vmatprep.mubr.bf16.mxu0 0
    %5622 = vmatmul.mubr.bf16.gmra.mxu0 %v2147
    %v5623 = vpop.f32.mrf.mxu0
    %v5624 = vadd.f32 %v5079, %v5623
    %v5625 = vpop.f32.mrf.mxu0
    %v5626 = vpop.f32.mrf.mxu0
    %v5627 = vadd.f32 %v5082, %v5626
    %v5628 = vpop.f32.mrf.mxu0
    %5629 = vmatprep.mubr.bf16.mxu0 0
    %5630 = vmatmul.mubr.bf16.gmra.mxu0 %v2148
    %v5631 = vpop.f32.mrf.mxu0
    %v5632 = vadd.f32 %v5087, %v5631
    %v5633 = vpop.f32.mrf.mxu0
    %v5634 = vpop.f32.mrf.mxu0
    %v5635 = vadd.f32 %v5090, %v5634
    %v5636 = vpop.f32.mrf.mxu0
    %5637 = vmatprep.mubr.bf16.mxu0 0
    %5638 = vmatmul.mubr.bf16.gmra.mxu0 %v2149
    %v5639 = vpop.f32.mrf.mxu0
    %v5640 = vadd.f32 %v5095, %v5639
    %v5641 = vpop.f32.mrf.mxu0
    %v5642 = vpop.f32.mrf.mxu0
    %v5643 = vadd.f32 %v5098, %v5642
    %v5644 = vpop.f32.mrf.mxu0
    %5645 = vmatprep.mubr.bf16.mxu0 0
    %5646 = vmatmul.mubr.bf16.gmra.mxu0 %v2150
    %v5647 = vpop.f32.mrf.mxu0
    %v5648 = vadd.f32 %v5103, %v5647
    %v5649 = vpop.f32.mrf.mxu0
    %v5650 = vpop.f32.mrf.mxu0
    %v5651 = vadd.f32 %v5106, %v5650
    %v5652 = vpop.f32.mrf.mxu0
    %5653 = vmatprep.mubr.bf16.mxu0 0
    %5654 = vmatmul.mubr.bf16.gmra.mxu0 %v2151
    %v5655 = vpop.f32.mrf.mxu0
    %v5656 = vadd.f32 %v5111, %v5655
    %v5657 = vpop.f32.mrf.mxu0
    %v5658 = vpop.f32.mrf.mxu0
    %v5659 = vadd.f32 %v5114, %v5658
    %v5660 = vpop.f32.mrf.mxu0
    %5661 = vmatprep.mubr.bf16.mxu0 0
    %5662 = vmatmul.mubr.bf16.gmra.mxu0 %v2152
    %v5663 = vpop.f32.mrf.mxu0
    %v5664 = vadd.f32 %v5119, %v5663
    %v5665 = vpop.f32.mrf.mxu0
    %v5666 = vpop.f32.mrf.mxu0
    %v5667 = vadd.f32 %v5122, %v5666
    %v5668 = vpop.f32.mrf.mxu0
    %5669 = vmatprep.mubr.bf16.mxu0 0
    %5670 = vmatmul.mubr.bf16.gmra.mxu0 %v2153
    %v5671 = vpop.f32.mrf.mxu0
    %v5672 = vadd.f32 %v5127, %v5671
    %v5673 = vpop.f32.mrf.mxu0
    %v5674 = vpop.f32.mrf.mxu0
    %v5675 = vadd.f32 %v5130, %v5674
    %v5676 = vpop.f32.mrf.mxu0
    %5677 = vmatprep.mubr.bf16.mxu0 0
    %5678 = vmatmul.mubr.bf16.gmra.mxu0 %v2154
    %v5679 = vpop.f32.mrf.mxu0
    %v5680 = vadd.f32 %v5135, %v5679
    %v5681 = vpop.f32.mrf.mxu0
    %v5682 = vpop.f32.mrf.mxu0
    %v5683 = vadd.f32 %v5138, %v5682
    %v5684 = vpop.f32.mrf.mxu0
    %5685 = vmatprep.mubr.bf16.mxu0 0
    %5686 = vmatmul.mubr.bf16.gmra.mxu0 %v2155
    %v5687 = vpop.f32.mrf.mxu0
    %v5688 = vadd.f32 %v5143, %v5687
    %v5689 = vpop.f32.mrf.mxu0
    %v5690 = vpop.f32.mrf.mxu0
    %v5691 = vadd.f32 %v5146, %v5690
    %v5692 = vpop.f32.mrf.mxu0
    %5693 = vmatprep.mubr.bf16.mxu0 0
    %5694 = vmatmul.mubr.bf16.gmra.mxu0 %v2156
    %v5695 = vpop.f32.mrf.mxu0
    %v5696 = vadd.f32 %v5151, %v5695
    %v5697 = vpop.f32.mrf.mxu0
    %v5698 = vpop.f32.mrf.mxu0
    %v5699 = vadd.f32 %v5154, %v5698
    %v5700 = vpop.f32.mrf.mxu0
    %5701 = vmatprep.mubr.bf16.mxu0 0
    %5702 = vmatmul.mubr.bf16.gmra.mxu0 %v2298
    %v5703 = vpop.f32.mrf.mxu0
    %v5704 = vadd.f32 %v5159, %v5703
    %v5705 = vpop.f32.mrf.mxu0
    %v5706 = vpop.f32.mrf.mxu0
    %v5707 = vadd.f32 %v5162, %v5706
    %v5708 = vpop.f32.mrf.mxu0
    %5709 = vmatprep.mubr.bf16.mxu0 0
    %5710 = vmatmul.mubr.bf16.gmra.mxu0 %v2141
    %v5711 = vpop.f32.mrf.mxu0
    %v5712 = vadd.f32 %v5167, %v5711
    %v5713 = vpop.f32.mrf.mxu0
    %v5714 = vpop.f32.mrf.mxu0
    %v5715 = vadd.f32 %v5170, %v5714
    %v5716 = vpop.f32.mrf.mxu0
    %5717 = vmatprep.mubr.bf16.mxu0 0
    %5718 = vmatmul.mubr.bf16.gmra.mxu0 %v2158
    %v5719 = vpop.f32.mrf.mxu0
    %v5720 = vadd.f32 %v5175, %v5719
    %v5721 = vpop.f32.mrf.mxu0
    %v5722 = vpop.f32.mrf.mxu0
    %v5723 = vadd.f32 %v5178, %v5722
    %v5724 = vpop.f32.mrf.mxu0
    %5725 = vmatprep.mubr.bf16.mxu0 0
    %5726 = vmatmul.mubr.bf16.gmra.mxu0 %v2159
    %v5727 = vpop.f32.mrf.mxu0
    %v5728 = vadd.f32 %v5183, %v5727
    %v5729 = vpop.f32.mrf.mxu0
    %v5730 = vpop.f32.mrf.mxu0
    %v5731 = vadd.f32 %v5186, %v5730
    %v5732 = vpop.f32.mrf.mxu0
    %5733 = vmatprep.mubr.bf16.mxu0 0
    %5734 = vmatmul.mubr.bf16.gmra.mxu0 %v2160
    %v5735 = vpop.f32.mrf.mxu0
    %v5736 = vadd.f32 %v5191, %v5735
    %v5737 = vpop.f32.mrf.mxu0
    %v5738 = vpop.f32.mrf.mxu0
    %v5739 = vadd.f32 %v5194, %v5738
    %v5740 = vpop.f32.mrf.mxu0
    %5741 = vmatprep.mubr.bf16.mxu0 0
    %5742 = vmatmul.mubr.bf16.gmra.mxu0 %v2161
    %v5743 = vpop.f32.mrf.mxu0
    %v5744 = vadd.f32 %v5199, %v5743
    %v5745 = vpop.f32.mrf.mxu0
    %v5746 = vpop.f32.mrf.mxu0
    %v5747 = vadd.f32 %v5202, %v5746
    %v5748 = vpop.f32.mrf.mxu0
    %5749 = vmatprep.mubr.bf16.mxu0 0
    %5750 = vmatmul.mubr.bf16.gmra.mxu0 %v2162
    %v5751 = vpop.f32.mrf.mxu0
    %v5752 = vadd.f32 %v5207, %v5751
    %v5753 = vpop.f32.mrf.mxu0
    %v5754 = vpop.f32.mrf.mxu0
    %v5755 = vadd.f32 %v5210, %v5754
    %v5756 = vpop.f32.mrf.mxu0
    %5757 = vmatprep.mubr.bf16.mxu0 0
    %5758 = vmatmul.mubr.bf16.gmra.mxu0 %v2163
    %v5759 = vpop.f32.mrf.mxu0
    %v5760 = vadd.f32 %v5215, %v5759
    %v5761 = vpop.f32.mrf.mxu0
    %v5762 = vpop.f32.mrf.mxu0
    %v5763 = vadd.f32 %v5218, %v5762
    %v5764 = vpop.f32.mrf.mxu0
    %5765 = vmatprep.mubr.bf16.mxu0 0
    %5766 = vmatmul.mubr.bf16.gmra.mxu0 %v2164
    %v5767 = vpop.f32.mrf.mxu0
    %v5768 = vadd.f32 %v5223, %v5767
    %v5769 = vpop.f32.mrf.mxu0
    %v5770 = vpop.f32.mrf.mxu0
    %v5771 = vadd.f32 %v5226, %v5770
    %v5772 = vpop.f32.mrf.mxu0
    %5773 = vmatprep.mubr.bf16.mxu0 0
    %5774 = vmatmul.mubr.bf16.gmra.mxu0 %v2165
    %v5775 = vpop.f32.mrf.mxu0
    %v5776 = vadd.f32 %v5231, %v5775
    %v5777 = vpop.f32.mrf.mxu0
    %v5778 = vpop.f32.mrf.mxu0
    %v5779 = vadd.f32 %v5234, %v5778
    %v5780 = vpop.f32.mrf.mxu0
    %5781 = vmatprep.mubr.bf16.mxu0 0
    %5782 = vmatmul.mubr.bf16.gmra.mxu0 %v2166
    %v5783 = vpop.f32.mrf.mxu0
    %v5784 = vadd.f32 %v5239, %v5783
    %v5785 = vpop.f32.mrf.mxu0
    %v5786 = vpop.f32.mrf.mxu0
    %v5787 = vadd.f32 %v5242, %v5786
    %v5788 = vpop.f32.mrf.mxu0
    %5789 = vmatprep.mubr.bf16.mxu0 0
    %5790 = vmatmul.mubr.bf16.gmra.mxu0 %v2167
    %v5791 = vpop.f32.mrf.mxu0
    %v5792 = vadd.f32 %v5247, %v5791
    %v5793 = vpop.f32.mrf.mxu0
    %v5794 = vpop.f32.mrf.mxu0
    %v5795 = vadd.f32 %v5250, %v5794
    %v5796 = vpop.f32.mrf.mxu0
    %5797 = vmatprep.mubr.bf16.mxu0 0
    %5798 = vmatmul.mubr.bf16.gmra.mxu0 %v2168
    %v5799 = vpop.f32.mrf.mxu0
    %v5800 = vadd.f32 %v5255, %v5799
    %v5801 = vpop.f32.mrf.mxu0
    %v5802 = vpop.f32.mrf.mxu0
    %v5803 = vadd.f32 %v5258, %v5802
    %v5804 = vpop.f32.mrf.mxu0
    %5805 = vmatprep.mubr.bf16.mxu0 0
    %5806 = vmatmul.mubr.bf16.gmra.mxu0 %v2169
    %v5807 = vpop.f32.mrf.mxu0
    %v5808 = vadd.f32 %v5263, %v5807
    %v5809 = vpop.f32.mrf.mxu0
    %v5810 = vpop.f32.mrf.mxu0
    %v5811 = vadd.f32 %v5266, %v5810
    %v5812 = vpop.f32.mrf.mxu0
    %5813 = vmatprep.mubr.bf16.mxu0 0
    %5814 = vmatmul.mubr.bf16.gmra.mxu0 %v2170
    %v5815 = vpop.f32.mrf.mxu0
    %v5816 = vadd.f32 %v5271, %v5815
    %v5817 = vpop.f32.mrf.mxu0
    %v5818 = vpop.f32.mrf.mxu0
    %v5819 = vadd.f32 %v5274, %v5818
    %v5820 = vpop.f32.mrf.mxu0
    %5821 = vmatprep.mubr.bf16.mxu0 0
    %5822 = vmatmul.mubr.bf16.gmra.mxu0 %v2171
    %v5823 = vpop.f32.mrf.mxu0
    %v5824 = vadd.f32 %v5279, %v5823
    %v5825 = vpop.f32.mrf.mxu0
    %v5826 = vpop.f32.mrf.mxu0
    %v5827 = vadd.f32 %v5282, %v5826
    %v5828 = vpop.f32.mrf.mxu0
    %5829 = vmatprep.mubr.bf16.mxu0 0
    %5830 = vmatmul.mubr.bf16.gmra.mxu0 %v2299
    %v5831 = vpop.f32.mrf.mxu0
    %v5832 = vadd.f32 %v5287, %v5831
    %v5833 = vpop.f32.mrf.mxu0
    %v5834 = vpop.f32.mrf.mxu0
    %v5835 = vadd.f32 %v5290, %v5834
    %v5836 = vpop.f32.mrf.mxu0
    %5837 = vmatprep.mubr.bf16.mxu0 0
    %5838 = vmatmul.mubr.bf16.gmra.mxu0 %v2141
    %v5839 = vpop.f32.mrf.mxu0
    %v5840 = vadd.f32 %v5295, %v5839
    %v5841 = vpop.f32.mrf.mxu0
    %v5842 = vpop.f32.mrf.mxu0
    %v5843 = vadd.f32 %v5298, %v5842
    %v5844 = vpop.f32.mrf.mxu0
    %5845 = vmatprep.mubr.bf16.mxu0 0
    %5846 = vmatmul.mubr.bf16.gmra.mxu0 %v2173
    %v5847 = vpop.f32.mrf.mxu0
    %v5848 = vadd.f32 %v5303, %v5847
    %v5849 = vpop.f32.mrf.mxu0
    %v5850 = vpop.f32.mrf.mxu0
    %v5851 = vadd.f32 %v5306, %v5850
    %v5852 = vpop.f32.mrf.mxu0
    %5853 = vmatprep.mubr.bf16.mxu0 0
    %5854 = vmatmul.mubr.bf16.gmra.mxu0 %v2174
    %v5855 = vpop.f32.mrf.mxu0
    %v5856 = vadd.f32 %v5311, %v5855
    %v5857 = vpop.f32.mrf.mxu0
    %v5858 = vpop.f32.mrf.mxu0
    %v5859 = vadd.f32 %v5314, %v5858
    %v5860 = vpop.f32.mrf.mxu0
    %5861 = vmatprep.mubr.bf16.mxu0 0
    %5862 = vmatmul.mubr.bf16.gmra.mxu0 %v2175
    %v5863 = vpop.f32.mrf.mxu0
    %v5864 = vadd.f32 %v5319, %v5863
    %v5865 = vpop.f32.mrf.mxu0
    %v5866 = vpop.f32.mrf.mxu0
    %v5867 = vadd.f32 %v5322, %v5866
    %v5868 = vpop.f32.mrf.mxu0
    %5869 = vmatprep.mubr.bf16.mxu0 0
    %5870 = vmatmul.mubr.bf16.gmra.mxu0 %v2176
    %v5871 = vpop.f32.mrf.mxu0
    %v5872 = vadd.f32 %v5327, %v5871
    %v5873 = vpop.f32.mrf.mxu0
    %v5874 = vpop.f32.mrf.mxu0
    %v5875 = vadd.f32 %v5330, %v5874
    %v5876 = vpop.f32.mrf.mxu0
    %5877 = vmatprep.mubr.bf16.mxu0 0
    %5878 = vmatmul.mubr.bf16.gmra.mxu0 %v2177
    %v5879 = vpop.f32.mrf.mxu0
    %v5880 = vadd.f32 %v5335, %v5879
    %v5881 = vpop.f32.mrf.mxu0
    %v5882 = vpop.f32.mrf.mxu0
    %v5883 = vadd.f32 %v5338, %v5882
    %v5884 = vpop.f32.mrf.mxu0
    %5885 = vmatprep.mubr.bf16.mxu0 0
    %5886 = vmatmul.mubr.bf16.gmra.mxu0 %v2178
    %v5887 = vpop.f32.mrf.mxu0
    %v5888 = vadd.f32 %v5343, %v5887
    %v5889 = vpop.f32.mrf.mxu0
    %v5890 = vpop.f32.mrf.mxu0
    %v5891 = vadd.f32 %v5346, %v5890
    %v5892 = vpop.f32.mrf.mxu0
    %5893 = vmatprep.mubr.bf16.mxu0 0
    %5894 = vmatmul.mubr.bf16.gmra.mxu0 %v2179
    %v5895 = vpop.f32.mrf.mxu0
    %v5896 = vadd.f32 %v5351, %v5895
    %v5897 = vpop.f32.mrf.mxu0
    %v5898 = vpop.f32.mrf.mxu0
    %v5899 = vadd.f32 %v5354, %v5898
    %v5900 = vpop.f32.mrf.mxu0
    %5901 = vmatprep.mubr.bf16.mxu0 0
    %5902 = vmatmul.mubr.bf16.gmra.mxu0 %v2180
    %v5903 = vpop.f32.mrf.mxu0
    %v5904 = vadd.f32 %v5359, %v5903
    %v5905 = vpop.f32.mrf.mxu0
    %v5906 = vpop.f32.mrf.mxu0
    %v5907 = vadd.f32 %v5362, %v5906
    %v5908 = vpop.f32.mrf.mxu0
    %5909 = vmatprep.mubr.bf16.mxu0 0
    %5910 = vmatmul.mubr.bf16.gmra.mxu0 %v2181
    %v5911 = vpop.f32.mrf.mxu0
    %v5912 = vadd.f32 %v5367, %v5911
    %v5913 = vpop.f32.mrf.mxu0
    %v5914 = vpop.f32.mrf.mxu0
    %v5915 = vadd.f32 %v5370, %v5914
    %v5916 = vpop.f32.mrf.mxu0
    %5917 = vmatprep.mubr.bf16.mxu0 0
    %5918 = vmatmul.mubr.bf16.gmra.mxu0 %v2182
    %v5919 = vpop.f32.mrf.mxu0
    %v5920 = vadd.f32 %v5375, %v5919
    %v5921 = vpop.f32.mrf.mxu0
    %v5922 = vpop.f32.mrf.mxu0
    %v5923 = vadd.f32 %v5378, %v5922
    %v5924 = vpop.f32.mrf.mxu0
    %5925 = vmatprep.mubr.bf16.mxu0 0
    %5926 = vmatmul.mubr.bf16.gmra.mxu0 %v2183
    %v5927 = vpop.f32.mrf.mxu0
    %v5928 = vadd.f32 %v5383, %v5927
    %v5929 = vpop.f32.mrf.mxu0
    %v5930 = vpop.f32.mrf.mxu0
    %v5931 = vadd.f32 %v5386, %v5930
    %v5932 = vpop.f32.mrf.mxu0
    %5933 = vmatprep.mubr.bf16.mxu0 0
    %5934 = vmatmul.mubr.bf16.gmra.mxu0 %v2184
    %v5935 = vpop.f32.mrf.mxu0
    %v5936 = vadd.f32 %v5391, %v5935
    %v5937 = vpop.f32.mrf.mxu0
    %v5938 = vpop.f32.mrf.mxu0
    %v5939 = vadd.f32 %v5394, %v5938
    %v5940 = vpop.f32.mrf.mxu0
    %5941 = vmatprep.mubr.bf16.mxu0 0
    %5942 = vmatmul.mubr.bf16.gmra.mxu0 %v2185
    %v5943 = vpop.f32.mrf.mxu0
    %v5944 = vadd.f32 %v5399, %v5943
    %v5945 = vpop.f32.mrf.mxu0
    %v5946 = vpop.f32.mrf.mxu0
    %v5947 = vadd.f32 %v5402, %v5946
    %v5948 = vpop.f32.mrf.mxu0
    %5949 = vmatprep.mubr.bf16.mxu0 0
    %5950 = vmatmul.mubr.bf16.gmra.mxu0 %v2186
    %v5951 = vpop.f32.mrf.mxu0
    %v5952 = vadd.f32 %v5407, %v5951
    %v5953 = vpop.f32.mrf.mxu0
    %v5954 = vpop.f32.mrf.mxu0
    %v5955 = vadd.f32 %v5410, %v5954
    %v5956 = vpop.f32.mrf.mxu0
    %5957 = vmatprep.mubr.bf16.mxu0 0
    %5958 = vmatmul.mubr.bf16.gmra.mxu0 %v2300
    %v5959 = vpop.f32.mrf.mxu0
    %v5960 = vadd.f32 %v5415, %v5959
    %v5961 = vpop.f32.mrf.mxu0
    %v5962 = vpop.f32.mrf.mxu0
    %v5963 = vadd.f32 %v5418, %v5962
    %v5964 = vpop.f32.mrf.mxu0
    %5965 = vmatprep.mubr.bf16.mxu0 0
    %5966 = vmatmul.mubr.bf16.gmra.mxu0 %v2141
    %v5967 = vpop.f32.mrf.mxu0
    %v5968 = vadd.f32 %v5423, %v5967
    %v5969 = vpop.f32.mrf.mxu0
    %v5970 = vpop.f32.mrf.mxu0
    %v5971 = vadd.f32 %v5426, %v5970
    %v5972 = vpop.f32.mrf.mxu0
    %5973 = vmatprep.mubr.bf16.mxu0 0
    %5974 = vmatmul.mubr.bf16.gmra.mxu0 %v2188
    %v5975 = vpop.f32.mrf.mxu0
    %v5976 = vadd.f32 %v5431, %v5975
    %v5977 = vpop.f32.mrf.mxu0
    %v5978 = vpop.f32.mrf.mxu0
    %v5979 = vadd.f32 %v5434, %v5978
    %v5980 = vpop.f32.mrf.mxu0
    %5981 = vmatprep.mubr.bf16.mxu0 0
    %5982 = vmatmul.mubr.bf16.gmra.mxu0 %v2189
    %v5983 = vpop.f32.mrf.mxu0
    %v5984 = vadd.f32 %v5439, %v5983
    %v5985 = vpop.f32.mrf.mxu0
    %v5986 = vpop.f32.mrf.mxu0
    %v5987 = vadd.f32 %v5442, %v5986
    %v5988 = vpop.f32.mrf.mxu0
    %5989 = vmatprep.mubr.bf16.mxu0 0
    %5990 = vmatmul.mubr.bf16.gmra.mxu0 %v2190
    %v5991 = vpop.f32.mrf.mxu0
    %v5992 = vadd.f32 %v5447, %v5991
    %v5993 = vpop.f32.mrf.mxu0
    %v5994 = vpop.f32.mrf.mxu0
    %v5995 = vadd.f32 %v5450, %v5994
    %v5996 = vpop.f32.mrf.mxu0
    %5997 = vmatprep.mubr.bf16.mxu0 0
    %5998 = vmatmul.mubr.bf16.gmra.mxu0 %v2191
    %v5999 = vpop.f32.mrf.mxu0
    %v6000 = vadd.f32 %v5455, %v5999
    %v6001 = vpop.f32.mrf.mxu0
    %v6002 = vpop.f32.mrf.mxu0
    %v6003 = vadd.f32 %v5458, %v6002
    %v6004 = vpop.f32.mrf.mxu0
    %6005 = vmatprep.mubr.bf16.mxu0 0
    %6006 = vmatmul.mubr.bf16.gmra.mxu0 %v2192
    %v6007 = vpop.f32.mrf.mxu0
    %v6008 = vadd.f32 %v5463, %v6007
    %v6009 = vpop.f32.mrf.mxu0
    %v6010 = vpop.f32.mrf.mxu0
    %v6011 = vadd.f32 %v5466, %v6010
    %v6012 = vpop.f32.mrf.mxu0
    %6013 = vmatprep.mubr.bf16.mxu0 0
    %6014 = vmatmul.mubr.bf16.gmra.mxu0 %v2193
    %v6015 = vpop.f32.mrf.mxu0
    %v6016 = vadd.f32 %v5471, %v6015
    %v6017 = vpop.f32.mrf.mxu0
    %v6018 = vpop.f32.mrf.mxu0
    %v6019 = vadd.f32 %v5474, %v6018
    %v6020 = vpop.f32.mrf.mxu0
    %6021 = vmatprep.mubr.bf16.mxu0 0
    %6022 = vmatmul.mubr.bf16.gmra.mxu0 %v2194
    %v6023 = vpop.f32.mrf.mxu0
    %v6024 = vadd.f32 %v5479, %v6023
    %v6025 = vpop.f32.mrf.mxu0
    %v6026 = vpop.f32.mrf.mxu0
    %v6027 = vadd.f32 %v5482, %v6026
    %v6028 = vpop.f32.mrf.mxu0
    %6029 = vmatprep.mubr.bf16.mxu0 0
    %6030 = vmatmul.mubr.bf16.gmra.mxu0 %v2195
    %v6031 = vpop.f32.mrf.mxu0
    %v6032 = vadd.f32 %v5487, %v6031
    %v6033 = vpop.f32.mrf.mxu0
    %v6034 = vpop.f32.mrf.mxu0
    %v6035 = vadd.f32 %v5490, %v6034
    %v6036 = vpop.f32.mrf.mxu0
    %6037 = vmatprep.mubr.bf16.mxu0 0
    %6038 = vmatmul.mubr.bf16.gmra.mxu0 %v2196
    %v6039 = vpop.f32.mrf.mxu0
    %v6040 = vadd.f32 %v5495, %v6039
    %v6041 = vpop.f32.mrf.mxu0
    %v6042 = vpop.f32.mrf.mxu0
    %v6043 = vadd.f32 %v5498, %v6042
    %v6044 = vpop.f32.mrf.mxu0
    %6045 = vmatprep.mubr.bf16.mxu0 0
    %6046 = vmatmul.mubr.bf16.gmra.mxu0 %v2197
    %v6047 = vpop.f32.mrf.mxu0
    %v6048 = vadd.f32 %v5503, %v6047
    %v6049 = vpop.f32.mrf.mxu0
    %v6050 = vpop.f32.mrf.mxu0
    %v6051 = vadd.f32 %v5506, %v6050
    %v6052 = vpop.f32.mrf.mxu0
    %6053 = vmatprep.mubr.bf16.mxu0 0
    %6054 = vmatmul.mubr.bf16.gmra.mxu0 %v2198
    %v6055 = vpop.f32.mrf.mxu0
    %v6056 = vadd.f32 %v5511, %v6055
    %v6057 = vpop.f32.mrf.mxu0
    %v6058 = vpop.f32.mrf.mxu0
    %v6059 = vadd.f32 %v5514, %v6058
    %v6060 = vpop.f32.mrf.mxu0
    %6061 = vmatprep.mubr.bf16.mxu0 0
    %6062 = vmatmul.mubr.bf16.gmra.mxu0 %v2199
    %v6063 = vpop.f32.mrf.mxu0
    %v6064 = vadd.f32 %v5519, %v6063
    %v6065 = vpop.f32.mrf.mxu0
    %v6066 = vpop.f32.mrf.mxu0
    %v6067 = vadd.f32 %v5522, %v6066
    %v6068 = vpop.f32.mrf.mxu0
    %6069 = vmatprep.mubr.bf16.mxu0 0
    %6070 = vmatmul.mubr.bf16.gmra.mxu0 %v2200
    %v6071 = vpop.f32.mrf.mxu0
    %v6072 = vadd.f32 %v5527, %v6071
    %v6073 = vpop.f32.mrf.mxu0
    %v6074 = vpop.f32.mrf.mxu0
    %v6075 = vadd.f32 %v5530, %v6074
    %v6076 = vpop.f32.mrf.mxu0
    %6077 = vmatprep.mubr.bf16.mxu0 0
    %6078 = vmatmul.mubr.bf16.gmra.mxu0 %v2201
    %v6079 = vpop.f32.mrf.mxu0
    %v6080 = vadd.f32 %v5535, %v6079
    %v6081 = vpop.f32.mrf.mxu0
    %v6082 = vpop.f32.mrf.mxu0
    %v6083 = vadd.f32 %v5538, %v6082
    %v6084 = vpop.f32.mrf.mxu0
    %6085 = vmatprep.mubr.bf16.mxu0 0
    %6086 = vmatmul.mubr.bf16.gmra.mxu0 %v2301
    %v6087 = vpop.f32.mrf.mxu0
    %v6088 = vadd.f32 %v5543, %v6087
    %v6089 = vpop.f32.mrf.mxu0
    %v6090 = vpop.f32.mrf.mxu0
    %v6091 = vadd.f32 %v5546, %v6090
    %v6092 = vpop.f32.mrf.mxu0
    %6093 = vmatprep.mubr.bf16.mxu0 0
    %6094 = vmatmul.mubr.bf16.gmra.mxu0 %v2141
    %v6095 = vpop.f32.mrf.mxu0
    %v6096 = vadd.f32 %v5551, %v6095
    %v6097 = vpop.f32.mrf.mxu0
    %v6098 = vpop.f32.mrf.mxu0
    %v6099 = vadd.f32 %v5554, %v6098
    %v6100 = vpop.f32.mrf.mxu0
    %6101 = vdwg.mxu0
    %v6102 = vadd.f32 %v4309, %v5592
    %v6103 = vadd.f32 %v4312, %v5595
    %v6104 = vadd.f32 %v4317, %v5600
    %v6105 = vadd.f32 %v4320, %v5603
    %v6106 = vadd.f32 %v4325, %v5608
    %v6107 = vadd.f32 %v4328, %v5611
    %v6108 = vadd.f32 %v4333, %v5616
    %v6109 = vadd.f32 %v4336, %v5619
    %v6110 = vadd.f32 %v4341, %v5624
    %v6111 = vadd.f32 %v4344, %v5627
    %v6112 = vadd.f32 %v4349, %v5632
    %v6113 = vadd.f32 %v4352, %v5635
    %v6114 = vadd.f32 %v4357, %v5640
    %v6115 = vadd.f32 %v4360, %v5643
    %v6116 = vadd.f32 %v4365, %v5648
    %v6117 = vadd.f32 %v4368, %v5651
    %v6118 = vadd.f32 %v4373, %v5656
    %v6119 = vadd.f32 %v4376, %v5659
    %v6120 = vadd.f32 %v4381, %v5664
    %v6121 = vadd.f32 %v4384, %v5667
    %v6122 = vadd.f32 %v4389, %v5672
    %v6123 = vadd.f32 %v4392, %v5675
    %v6124 = vadd.f32 %v4397, %v5680
    %v6125 = vadd.f32 %v4400, %v5683
    %v6126 = vadd.f32 %v4405, %v5688
    %v6127 = vadd.f32 %v4408, %v5691
    %v6128 = vadd.f32 %v4413, %v5696
    %v6129 = vadd.f32 %v4416, %v5699
    %v6130 = vadd.f32 %v4421, %v5704
    %v6131 = vadd.f32 %v4424, %v5707
    %v6132 = vadd.f32 %v4429, %v5712
    %v6133 = vadd.f32 %v4432, %v5715
    %v6134 = vadd.f32 %v4437, %v5720
    %v6135 = vadd.f32 %v4440, %v5723
    %v6136 = vadd.f32 %v4445, %v5728
    %v6137 = vadd.f32 %v4448, %v5731
    %v6138 = vadd.f32 %v4453, %v5736
    %v6139 = vadd.f32 %v4456, %v5739
    %v6140 = vadd.f32 %v4461, %v5744
    %v6141 = vadd.f32 %v4464, %v5747
    %v6142 = vadd.f32 %v4469, %v5752
    %v6143 = vadd.f32 %v4472, %v5755
    %v6144 = vadd.f32 %v4477, %v5760
    %v6145 = vadd.f32 %v4480, %v5763
    %v6146 = vadd.f32 %v4485, %v5768
    %v6147 = vadd.f32 %v4488, %v5771
    %v6148 = vadd.f32 %v4493, %v5776
    %v6149 = vadd.f32 %v4496, %v5779
    %v6150 = vadd.f32 %v4501, %v5784
    %v6151 = vadd.f32 %v4504, %v5787
    %v6152 = vadd.f32 %v4509, %v5792
    %v6153 = vadd.f32 %v4512, %v5795
    %v6154 = vadd.f32 %v4517, %v5800
    %v6155 = vadd.f32 %v4520, %v5803
    %v6156 = vadd.f32 %v4525, %v5808
    %v6157 = vadd.f32 %v4528, %v5811
    %v6158 = vadd.f32 %v4533, %v5816
    %v6159 = vadd.f32 %v4536, %v5819
    %v6160 = vadd.f32 %v4541, %v5824
    %v6161 = vadd.f32 %v4544, %v5827
    %v6162 = vadd.f32 %v4549, %v5832
    %v6163 = vadd.f32 %v4552, %v5835
    %v6164 = vadd.f32 %v4557, %v5840
    %v6165 = vadd.f32 %v4560, %v5843
    %v6166 = vadd.f32 %v4565, %v5848
    %v6167 = vadd.f32 %v4568, %v5851
    %v6168 = vadd.f32 %v4573, %v5856
    %v6169 = vadd.f32 %v4576, %v5859
    %v6170 = vadd.f32 %v4581, %v5864
    %v6171 = vadd.f32 %v4584, %v5867
    %v6172 = vadd.f32 %v4589, %v5872
    %v6173 = vadd.f32 %v4592, %v5875
    %v6174 = vadd.f32 %v4597, %v5880
    %v6175 = vadd.f32 %v4600, %v5883
    %v6176 = vadd.f32 %v4605, %v5888
    %v6177 = vadd.f32 %v4608, %v5891
    %v6178 = vadd.f32 %v4613, %v5896
    %v6179 = vadd.f32 %v4616, %v5899
    %v6180 = vadd.f32 %v4621, %v5904
    %v6181 = vadd.f32 %v4624, %v5907
    %v6182 = vadd.f32 %v4629, %v5912
    %v6183 = vadd.f32 %v4632, %v5915
    %v6184 = vadd.f32 %v4637, %v5920
    %v6185 = vadd.f32 %v4640, %v5923
    %v6186 = vadd.f32 %v4645, %v5928
    %v6187 = vadd.f32 %v4648, %v5931
    %v6188 = vadd.f32 %v4653, %v5936
    %v6189 = vadd.f32 %v4656, %v5939
    %v6190 = vadd.f32 %v4661, %v5944
    %v6191 = vadd.f32 %v4664, %v5947
    %v6192 = vadd.f32 %v4669, %v5952
    %v6193 = vadd.f32 %v4672, %v5955
    %v6194 = vadd.f32 %v4677, %v5960
    %v6195 = vadd.f32 %v4680, %v5963
    %v6196 = vadd.f32 %v4685, %v5968
    %v6197 = vadd.f32 %v4688, %v5971
    %v6198 = vadd.f32 %v4693, %v5976
    %v6199 = vadd.f32 %v4696, %v5979
    %v6200 = vadd.f32 %v4701, %v5984
    %v6201 = vadd.f32 %v4704, %v5987
    %v6202 = vadd.f32 %v4709, %v5992
    %v6203 = vadd.f32 %v4712, %v5995
    %v6204 = vadd.f32 %v4717, %v6000
    %v6205 = vadd.f32 %v4720, %v6003
    %v6206 = vadd.f32 %v4725, %v6008
    %v6207 = vadd.f32 %v4728, %v6011
    %v6208 = vadd.f32 %v4733, %v6016
    %v6209 = vadd.f32 %v4736, %v6019
    %v6210 = vadd.f32 %v4741, %v6024
    %v6211 = vadd.f32 %v4744, %v6027
    %v6212 = vadd.f32 %v4749, %v6032
    %v6213 = vadd.f32 %v4752, %v6035
    %v6214 = vadd.f32 %v4757, %v6040
    %v6215 = vadd.f32 %v4760, %v6043
    %v6216 = vadd.f32 %v4765, %v6048
    %v6217 = vadd.f32 %v4768, %v6051
    %v6218 = vadd.f32 %v4773, %v6056
    %v6219 = vadd.f32 %v4776, %v6059
    %v6220 = vadd.f32 %v4781, %v6064
    %v6221 = vadd.f32 %v4784, %v6067
    %v6222 = vadd.f32 %v4789, %v6072
    %v6223 = vadd.f32 %v4792, %v6075
    %v6224 = vadd.f32 %v4797, %v6080
    %v6225 = vadd.f32 %v4800, %v6083
    %v6226 = vadd.f32 %v4805, %v6088
    %v6227 = vadd.f32 %v4808, %v6091
    %v6228 = vadd.f32 %v4813, %v6096
    %v6229 = vadd.f32 %v4816, %v6099
    %v6230 = vld [vmem:[%s4] sm:$0x1]
    %v6232 = vlaneseq
    %v6233 = vshrl.u32 %v6232, 7
    %v6234 = vsub.s32 0, %v6233
    %v6235 = vrot.slane %v6230, %v6234
    %v6237 = vadd.f32 %v6102, %v6235
    %v6238 = vadd.f32 %v6103, %v6235
    %v6239 = vadd.f32 %v6104, %v6235
    %v6240 = vadd.f32 %v6105, %v6235
    %v6241 = vadd.f32 %v6106, %v6235
    %v6242 = vadd.f32 %v6107, %v6235
    %v6243 = vadd.f32 %v6108, %v6235
    %v6244 = vadd.f32 %v6109, %v6235
    %v6245 = vadd.f32 %v6110, %v6235
    %v6246 = vadd.f32 %v6111, %v6235
    %v6247 = vadd.f32 %v6112, %v6235
    %v6248 = vadd.f32 %v6113, %v6235
    %v6249 = vadd.f32 %v6114, %v6235
    %v6250 = vadd.f32 %v6115, %v6235
    %v6251 = vadd.f32 %v6116, %v6235
    %v6252 = vadd.f32 %v6117, %v6235
    %v6253 = vadd.f32 %v6118, %v6235
    %v6254 = vadd.f32 %v6119, %v6235
    %v6255 = vadd.f32 %v6120, %v6235
    %v6256 = vadd.f32 %v6121, %v6235
    %v6257 = vadd.f32 %v6122, %v6235
    %v6258 = vadd.f32 %v6123, %v6235
    %v6259 = vadd.f32 %v6124, %v6235
    %v6260 = vadd.f32 %v6125, %v6235
    %v6261 = vadd.f32 %v6126, %v6235
    %v6262 = vadd.f32 %v6127, %v6235
    %v6263 = vadd.f32 %v6128, %v6235
    %v6264 = vadd.f32 %v6129, %v6235
    %v6265 = vadd.f32 %v6130, %v6235
    %v6266 = vadd.f32 %v6131, %v6235
    %v6267 = vadd.f32 %v6132, %v6235
    %v6268 = vadd.f32 %v6133, %v6235
    %v6269 = vadd.f32 %v6134, %v6235
    %v6270 = vadd.f32 %v6135, %v6235
    %v6271 = vadd.f32 %v6136, %v6235
    %v6272 = vadd.f32 %v6137, %v6235
    %v6273 = vadd.f32 %v6138, %v6235
    %v6274 = vadd.f32 %v6139, %v6235
    %v6275 = vadd.f32 %v6140, %v6235
    %v6276 = vadd.f32 %v6141, %v6235
    %v6277 = vadd.f32 %v6142, %v6235
    %v6278 = vadd.f32 %v6143, %v6235
    %v6279 = vadd.f32 %v6144, %v6235
    %v6280 = vadd.f32 %v6145, %v6235
    %v6281 = vadd.f32 %v6146, %v6235
    %v6282 = vadd.f32 %v6147, %v6235
    %v6283 = vadd.f32 %v6148, %v6235
    %v6284 = vadd.f32 %v6149, %v6235
    %v6285 = vadd.f32 %v6150, %v6235
    %v6286 = vadd.f32 %v6151, %v6235
    %v6287 = vadd.f32 %v6152, %v6235
    %v6288 = vadd.f32 %v6153, %v6235
    %v6289 = vadd.f32 %v6154, %v6235
    %v6290 = vadd.f32 %v6155, %v6235
    %v6291 = vadd.f32 %v6156, %v6235
    %v6292 = vadd.f32 %v6157, %v6235
    %v6293 = vadd.f32 %v6158, %v6235
    %v6294 = vadd.f32 %v6159, %v6235
    %v6295 = vadd.f32 %v6160, %v6235
    %v6296 = vadd.f32 %v6161, %v6235
    %v6297 = vadd.f32 %v6162, %v6235
    %v6298 = vadd.f32 %v6163, %v6235
    %v6299 = vadd.f32 %v6164, %v6235
    %v6300 = vadd.f32 %v6165, %v6235
    %v6301 = vadd.f32 %v6166, %v6235
    %v6302 = vadd.f32 %v6167, %v6235
    %v6303 = vadd.f32 %v6168, %v6235
    %v6304 = vadd.f32 %v6169, %v6235
    %v6305 = vadd.f32 %v6170, %v6235
    %v6306 = vadd.f32 %v6171, %v6235
    %v6307 = vadd.f32 %v6172, %v6235
    %v6308 = vadd.f32 %v6173, %v6235
    %v6309 = vadd.f32 %v6174, %v6235
    %v6310 = vadd.f32 %v6175, %v6235
    %v6311 = vadd.f32 %v6176, %v6235
    %v6312 = vadd.f32 %v6177, %v6235
    %v6313 = vadd.f32 %v6178, %v6235
    %v6314 = vadd.f32 %v6179, %v6235
    %v6315 = vadd.f32 %v6180, %v6235
    %v6316 = vadd.f32 %v6181, %v6235
    %v6317 = vadd.f32 %v6182, %v6235
    %v6318 = vadd.f32 %v6183, %v6235
    %v6319 = vadd.f32 %v6184, %v6235
    %v6320 = vadd.f32 %v6185, %v6235
    %v6321 = vadd.f32 %v6186, %v6235
    %v6322 = vadd.f32 %v6187, %v6235
    %v6323 = vadd.f32 %v6188, %v6235
    %v6324 = vadd.f32 %v6189, %v6235
    %v6325 = vadd.f32 %v6190, %v6235
    %v6326 = vadd.f32 %v6191, %v6235
    %v6327 = vadd.f32 %v6192, %v6235
    %v6328 = vadd.f32 %v6193, %v6235
    %v6329 = vadd.f32 %v6194, %v6235
    %v6330 = vadd.f32 %v6195, %v6235
    %v6331 = vadd.f32 %v6196, %v6235
    %v6332 = vadd.f32 %v6197, %v6235
    %v6333 = vadd.f32 %v6198, %v6235
    %v6334 = vadd.f32 %v6199, %v6235
    %v6335 = vadd.f32 %v6200, %v6235
    %v6336 = vadd.f32 %v6201, %v6235
    %v6337 = vadd.f32 %v6202, %v6235
    %v6338 = vadd.f32 %v6203, %v6235
    %v6339 = vadd.f32 %v6204, %v6235
    %v6340 = vadd.f32 %v6205, %v6235
    %v6341 = vadd.f32 %v6206, %v6235
    %v6342 = vadd.f32 %v6207, %v6235
    %v6343 = vadd.f32 %v6208, %v6235
    %v6344 = vadd.f32 %v6209, %v6235
    %v6345 = vadd.f32 %v6210, %v6235
    %v6346 = vadd.f32 %v6211, %v6235
    %v6347 = vadd.f32 %v6212, %v6235
    %v6348 = vadd.f32 %v6213, %v6235
    %v6349 = vadd.f32 %v6214, %v6235
    %v6350 = vadd.f32 %v6215, %v6235
    %v6351 = vadd.f32 %v6216, %v6235
    %v6352 = vadd.f32 %v6217, %v6235
    %v6353 = vadd.f32 %v6218, %v6235
    %v6354 = vadd.f32 %v6219, %v6235
    %v6355 = vadd.f32 %v6220, %v6235
    %v6356 = vadd.f32 %v6221, %v6235
    %v6357 = vadd.f32 %v6222, %v6235
    %v6358 = vadd.f32 %v6223, %v6235
    %v6359 = vadd.f32 %v6224, %v6235
    %v6360 = vadd.f32 %v6225, %v6235
    %v6361 = vadd.f32 %v6226, %v6235
    %v6362 = vadd.f32 %v6227, %v6235
    %v6363 = vadd.f32 %v6228, %v6235
    %v6364 = vadd.f32 %v6229, %v6235
    %v6365 = vmax.f32 %v6237, 0.0
    %v6366 = vmax.f32 %v6238, 0.0
    %v6367 = vmax.f32 %v6239, 0.0
    %v6368 = vmax.f32 %v6240, 0.0
    %v6369 = vmax.f32 %v6241, 0.0
    %v6370 = vmax.f32 %v6242, 0.0
    %v6371 = vmax.f32 %v6243, 0.0
    %v6372 = vmax.f32 %v6244, 0.0
    %v6373 = vmax.f32 %v6245, 0.0
    %v6374 = vmax.f32 %v6246, 0.0
    %v6375 = vmax.f32 %v6247, 0.0
    %v6376 = vmax.f32 %v6248, 0.0
    %v6377 = vmax.f32 %v6249, 0.0
    %v6378 = vmax.f32 %v6250, 0.0
    %v6379 = vmax.f32 %v6251, 0.0
    %v6380 = vmax.f32 %v6252, 0.0
    %v6381 = vmax.f32 %v6253, 0.0
    %v6382 = vmax.f32 %v6254, 0.0
    %v6383 = vmax.f32 %v6255, 0.0
    %v6384 = vmax.f32 %v6256, 0.0
    %v6385 = vmax.f32 %v6257, 0.0
    %v6386 = vmax.f32 %v6258, 0.0
    %v6387 = vmax.f32 %v6259, 0.0
    %v6388 = vmax.f32 %v6260, 0.0
    %v6389 = vmax.f32 %v6261, 0.0
    %v6390 = vmax.f32 %v6262, 0.0
    %v6391 = vmax.f32 %v6263, 0.0
    %v6392 = vmax.f32 %v6264, 0.0
    %v6393 = vmax.f32 %v6265, 0.0
    %v6394 = vmax.f32 %v6266, 0.0
    %v6395 = vmax.f32 %v6267, 0.0
    %v6396 = vmax.f32 %v6268, 0.0
    %v6397 = vmax.f32 %v6269, 0.0
    %v6398 = vmax.f32 %v6270, 0.0
    %v6399 = vmax.f32 %v6271, 0.0
    %v6400 = vmax.f32 %v6272, 0.0
    %v6401 = vmax.f32 %v6273, 0.0
    %v6402 = vmax.f32 %v6274, 0.0
    %v6403 = vmax.f32 %v6275, 0.0
    %v6404 = vmax.f32 %v6276, 0.0
    %v6405 = vmax.f32 %v6277, 0.0
    %v6406 = vmax.f32 %v6278, 0.0
    %v6407 = vmax.f32 %v6279, 0.0
    %v6408 = vmax.f32 %v6280, 0.0
    %v6409 = vmax.f32 %v6281, 0.0
    %v6410 = vmax.f32 %v6282, 0.0
    %v6411 = vmax.f32 %v6283, 0.0
    %v6412 = vmax.f32 %v6284, 0.0
    %v6413 = vmax.f32 %v6285, 0.0
    %v6414 = vmax.f32 %v6286, 0.0
    %v6415 = vmax.f32 %v6287, 0.0
    %v6416 = vmax.f32 %v6288, 0.0
    %v6417 = vmax.f32 %v6289, 0.0
    %v6418 = vmax.f32 %v6290, 0.0
    %v6419 = vmax.f32 %v6291, 0.0
    %v6420 = vmax.f32 %v6292, 0.0
    %v6421 = vmax.f32 %v6293, 0.0
    %v6422 = vmax.f32 %v6294, 0.0
    %v6423 = vmax.f32 %v6295, 0.0
    %v6424 = vmax.f32 %v6296, 0.0
    %v6425 = vmax.f32 %v6297, 0.0
    %v6426 = vmax.f32 %v6298, 0.0
    %v6427 = vmax.f32 %v6299, 0.0
    %v6428 = vmax.f32 %v6300, 0.0
    %v6429 = vmax.f32 %v6301, 0.0
    %v6430 = vmax.f32 %v6302, 0.0
    %v6431 = vmax.f32 %v6303, 0.0
    %v6432 = vmax.f32 %v6304, 0.0
    %v6433 = vmax.f32 %v6305, 0.0
    %v6434 = vmax.f32 %v6306, 0.0
    %v6435 = vmax.f32 %v6307, 0.0
    %v6436 = vmax.f32 %v6308, 0.0
    %v6437 = vmax.f32 %v6309, 0.0
    %v6438 = vmax.f32 %v6310, 0.0
    %v6439 = vmax.f32 %v6311, 0.0
    %v6440 = vmax.f32 %v6312, 0.0
    %v6441 = vmax.f32 %v6313, 0.0
    %v6442 = vmax.f32 %v6314, 0.0
    %v6443 = vmax.f32 %v6315, 0.0
    %v6444 = vmax.f32 %v6316, 0.0
    %v6445 = vmax.f32 %v6317, 0.0
    %v6446 = vmax.f32 %v6318, 0.0
    %v6447 = vmax.f32 %v6319, 0.0
    %v6448 = vmax.f32 %v6320, 0.0
    %v6449 = vmax.f32 %v6321, 0.0
    %v6450 = vmax.f32 %v6322, 0.0
    %v6451 = vmax.f32 %v6323, 0.0
    %v6452 = vmax.f32 %v6324, 0.0
    %v6453 = vmax.f32 %v6325, 0.0
    %v6454 = vmax.f32 %v6326, 0.0
    %v6455 = vmax.f32 %v6327, 0.0
    %v6456 = vmax.f32 %v6328, 0.0
    %v6457 = vmax.f32 %v6329, 0.0
    %v6458 = vmax.f32 %v6330, 0.0
    %v6459 = vmax.f32 %v6331, 0.0
    %v6460 = vmax.f32 %v6332, 0.0
    %v6461 = vmax.f32 %v6333, 0.0
    %v6462 = vmax.f32 %v6334, 0.0
    %v6463 = vmax.f32 %v6335, 0.0
    %v6464 = vmax.f32 %v6336, 0.0
    %v6465 = vmax.f32 %v6337, 0.0
    %v6466 = vmax.f32 %v6338, 0.0
    %v6467 = vmax.f32 %v6339, 0.0
    %v6468 = vmax.f32 %v6340, 0.0
    %v6469 = vmax.f32 %v6341, 0.0
    %v6470 = vmax.f32 %v6342, 0.0
    %v6471 = vmax.f32 %v6343, 0.0
    %v6472 = vmax.f32 %v6344, 0.0
    %v6473 = vmax.f32 %v6345, 0.0
    %v6474 = vmax.f32 %v6346, 0.0
    %v6475 = vmax.f32 %v6347, 0.0
    %v6476 = vmax.f32 %v6348, 0.0
    %v6477 = vmax.f32 %v6349, 0.0
    %v6478 = vmax.f32 %v6350, 0.0
    %v6479 = vmax.f32 %v6351, 0.0
    %v6480 = vmax.f32 %v6352, 0.0
    %v6481 = vmax.f32 %v6353, 0.0
    %v6482 = vmax.f32 %v6354, 0.0
    %v6483 = vmax.f32 %v6355, 0.0
    %v6484 = vmax.f32 %v6356, 0.0
    %v6485 = vmax.f32 %v6357, 0.0
    %v6486 = vmax.f32 %v6358, 0.0
    %v6487 = vmax.f32 %v6359, 0.0
    %v6488 = vmax.f32 %v6360, 0.0
    %v6489 = vmax.f32 %v6361, 0.0
    %v6490 = vmax.f32 %v6362, 0.0
    %v6491 = vmax.f32 %v6363, 0.0
    %v6492 = vmax.f32 %v6364, 0.0
    %v6493 = vpack.c.bf16 %v6366, %v6365
    %v6494 = vpack.c.bf16 %v6368, %v6367
    %v6495 = vpack.c.bf16 %v6370, %v6369
    %v6496 = vpack.c.bf16 %v6372, %v6371
    %v6497 = vpack.c.bf16 %v6374, %v6373
    %v6498 = vpack.c.bf16 %v6376, %v6375
    %v6499 = vpack.c.bf16 %v6378, %v6377
    %v6500 = vpack.c.bf16 %v6380, %v6379
    %v6501 = vpack.c.bf16 %v6382, %v6381
    %v6502 = vpack.c.bf16 %v6384, %v6383
    %v6503 = vpack.c.bf16 %v6386, %v6385
    %v6504 = vpack.c.bf16 %v6388, %v6387
    %v6505 = vpack.c.bf16 %v6390, %v6389
    %v6506 = vpack.c.bf16 %v6392, %v6391
    %v6507 = vpack.c.bf16 %v6394, %v6393
    %v6508 = vpack.c.bf16 %v6396, %v6395
    %v6509 = vpack.c.bf16 %v6398, %v6397
    %v6510 = vpack.c.bf16 %v6400, %v6399
    %v6511 = vpack.c.bf16 %v6402, %v6401
    %v6512 = vpack.c.bf16 %v6404, %v6403
    %v6513 = vpack.c.bf16 %v6406, %v6405
    %v6514 = vpack.c.bf16 %v6408, %v6407
    %v6515 = vpack.c.bf16 %v6410, %v6409
    %v6516 = vpack.c.bf16 %v6412, %v6411
    %v6517 = vpack.c.bf16 %v6414, %v6413
    %v6518 = vpack.c.bf16 %v6416, %v6415
    %v6519 = vpack.c.bf16 %v6418, %v6417
    %v6520 = vpack.c.bf16 %v6420, %v6419
    %v6521 = vpack.c.bf16 %v6422, %v6421
    %v6522 = vpack.c.bf16 %v6424, %v6423
    %v6523 = vpack.c.bf16 %v6426, %v6425
    %v6524 = vpack.c.bf16 %v6428, %v6427
    %v6525 = vpack.c.bf16 %v6430, %v6429
    %v6526 = vpack.c.bf16 %v6432, %v6431
    %v6527 = vpack.c.bf16 %v6434, %v6433
    %v6528 = vpack.c.bf16 %v6436, %v6435
    %v6529 = vpack.c.bf16 %v6438, %v6437
    %v6530 = vpack.c.bf16 %v6440, %v6439
    %v6531 = vpack.c.bf16 %v6442, %v6441
    %v6532 = vpack.c.bf16 %v6444, %v6443
    %v6533 = vpack.c.bf16 %v6446, %v6445
    %v6534 = vpack.c.bf16 %v6448, %v6447
    %v6535 = vpack.c.bf16 %v6450, %v6449
    %v6536 = vpack.c.bf16 %v6452, %v6451
    %v6537 = vpack.c.bf16 %v6454, %v6453
    %v6538 = vpack.c.bf16 %v6456, %v6455
    %v6539 = vpack.c.bf16 %v6458, %v6457
    %v6540 = vpack.c.bf16 %v6460, %v6459
    %v6541 = vpack.c.bf16 %v6462, %v6461
    %v6542 = vpack.c.bf16 %v6464, %v6463
    %v6543 = vpack.c.bf16 %v6466, %v6465
    %v6544 = vpack.c.bf16 %v6468, %v6467
    %v6545 = vpack.c.bf16 %v6470, %v6469
    %v6546 = vpack.c.bf16 %v6472, %v6471
    %v6547 = vpack.c.bf16 %v6474, %v6473
    %v6548 = vpack.c.bf16 %v6476, %v6475
    %v6549 = vpack.c.bf16 %v6478, %v6477
    %v6550 = vpack.c.bf16 %v6480, %v6479
    %v6551 = vpack.c.bf16 %v6482, %v6481
    %v6552 = vpack.c.bf16 %v6484, %v6483
    %v6553 = vpack.c.bf16 %v6486, %v6485
    %v6554 = vpack.c.bf16 %v6488, %v6487
    %v6555 = vpack.c.bf16 %v6490, %v6489
    %v6556 = vpack.c.bf16 %v6492, %v6491
    %v6557 = vld [vmem:[#allocation8] sm:$0xf]
    %v6558 = vld [vmem:[#allocation8 + $0x4] sm:$0xf]
    %v6559 = vld [vmem:[#allocation8 + $0x8] sm:$0xf]
    %v6560 = vld [vmem:[#allocation8 + $0xc] sm:$0xf]
    %v6561 = vld [vmem:[#allocation8 + $0x10] sm:$0xf]
    %v6562 = vld [vmem:[#allocation8 + $0x14] sm:$0xf]
    %v6563 = vld [vmem:[#allocation8 + $0x18] sm:$0xf]
    %v6564 = vld [vmem:[#allocation8 + $0x1c] sm:$0xf]
    %v6565 = vld [vmem:[#allocation8 + $0x20] sm:$0xf]
    %v6566 = vld [vmem:[#allocation8 + $0x24] sm:$0xf]
    %v6567 = vld [vmem:[#allocation8 + $0x28] sm:$0xf]
    %v6568 = vld [vmem:[#allocation8 + $0x2c] sm:$0xf]
    %v6569 = vld [vmem:[#allocation8 + $0x30] sm:$0xf]
    %v6570 = vld [vmem:[#allocation8 + $0x34] sm:$0xf]
    %v6571 = vld [vmem:[#allocation8 + $0x38] sm:$0xf]
    %v6572 = vld [vmem:[#allocation8 + $0x3c] sm:$0xf]
    %v6573 = vld [vmem:[%s6] sm:$0x1]
    %v6575 = vlaneseq
    %v6576 = vshrl.u32 %v6575, 7
    %v6577 = vsub.s32 0, %v6576
    %v6578 = vrot.slane %v6573, %v6577
    %v6596 = vunpack.c.l.b16 %v6557
    %v6597 = vunpack.c.l.b16 %v6558
    %v6598 = vunpack.c.l.b16 %v6559
    %v6599 = vunpack.c.l.b16 %v6560
    %v6600 = vunpack.c.l.b16 %v6561
    %v6601 = vunpack.c.l.b16 %v6562
    %v6602 = vunpack.c.l.b16 %v6563
    %v6603 = vunpack.c.l.b16 %v6564
    %v6604 = vunpack.c.l.b16 %v6565
    %v6605 = vunpack.c.l.b16 %v6566
    %v6606 = vunpack.c.l.b16 %v6567
    %v6607 = vunpack.c.l.b16 %v6568
    %v6608 = vunpack.c.l.b16 %v6569
    %v6609 = vunpack.c.l.b16 %v6570
    %v6610 = vunpack.c.l.b16 %v6571
    %v6611 = vunpack.c.l.b16 %v6572
    %v6612 = vpack.c.b16 %v6597, %v6596
    %v6613 = vpack.c.b16 %v6599, %v6598
    %v6614 = vpack.c.b16 %v6601, %v6600
    %v6615 = vpack.c.b16 %v6603, %v6602
    %v6616 = vpack.c.b16 %v6605, %v6604
    %v6617 = vpack.c.b16 %v6607, %v6606
    %v6618 = vpack.c.b16 %v6609, %v6608
    %v6619 = vpack.c.b16 %v6611, %v6610
    %6628 = vmatprep.subr.bf16.mxu0 0
    %6629 = vmatpush1.bf16.msra.mxu0 %v6619
    %6630 = vmatprep.subr.bf16.mxu0 0
    %6631 = vmatpush1.bf16.msra.mxu0 %v6618
    %6632 = vmatprep.subr.bf16.mxu0 0
    %6633 = vmatpush1.bf16.msra.mxu0 %v6617
    %6634 = vmatprep.subr.bf16.mxu0 0
    %6635 = vmatpush1.bf16.msra.mxu0 %v6616
    %6636 = vmatprep.subr.bf16.mxu0 0
    %6637 = vmatpush1.bf16.msra.mxu0 %v6615
    %6638 = vmatprep.subr.bf16.mxu0 0
    %6639 = vmatpush1.bf16.msra.mxu0 %v6614
    %6640 = vmatprep.subr.bf16.mxu0 0
    %6641 = vmatpush1.bf16.msra.mxu0 %v6613
    %6642 = vmatprep.subr.bf16.mxu0 0
    %6643 = vmatpush1.bf16.msra.mxu0 %v6612
    %6644 = vmatprep.subr.bf16.mxu0 0
    %6645 = vmatpush2.bf16.msra.mxu0 0
    %6646 = vmatprep.subr.bf16.mxu0 0
    %6647 = vmatpush2.bf16.msra.mxu0 0
    %6648 = vmatprep.subr.bf16.mxu0 0
    %6649 = vmatpush2.bf16.msra.mxu0 0
    %6650 = vmatprep.subr.bf16.mxu0 0
    %6651 = vmatpush2.bf16.msra.mxu0 0
    %6652 = vmatprep.subr.bf16.mxu0 0
    %6653 = vmatpush2.bf16.msra.mxu0 0
    %6654 = vmatprep.subr.bf16.mxu0 0
    %6655 = vmatpush2.bf16.msra.mxu0 0
    %6656 = vmatprep.subr.bf16.mxu0 0
    %6657 = vmatpush2.bf16.msra.mxu0 0
    %6658 = vmatprep.subr.bf16.mxu0 0
    %6659 = vmatpush2.bf16.msra.mxu0 0
    %6660 = vmatprep.mubr.bf16.mxu0 0
    %6661 = vmatmul.mubr.bf16.gmra.mxu0 %v6493
    %v6662 = vpop.f32.mrf.mxu0
    %v6663 = vadd.f32 %v6578, %v6662
    %v6664 = vpop.f32.mrf.mxu0
    %v6665 = vpop.f32.mrf.mxu0
    %v6666 = vadd.f32 %v6578, %v6665
    %v6667 = vpop.f32.mrf.mxu0
    %6668 = vmatprep.mubr.bf16.mxu0 0
    %6669 = vmatmul.mubr.bf16.gmra.mxu0 %v6494
    %v6670 = vpop.f32.mrf.mxu0
    %v6671 = vadd.f32 %v6578, %v6670
    %v6672 = vpop.f32.mrf.mxu0
    %v6673 = vpop.f32.mrf.mxu0
    %v6674 = vadd.f32 %v6578, %v6673
    %v6675 = vpop.f32.mrf.mxu0
    %6676 = vmatprep.mubr.bf16.mxu0 0
    %6677 = vmatmul.mubr.bf16.gmra.mxu0 %v6495
    %v6678 = vpop.f32.mrf.mxu0
    %v6679 = vadd.f32 %v6578, %v6678
    %v6680 = vpop.f32.mrf.mxu0
    %v6681 = vpop.f32.mrf.mxu0
    %v6682 = vadd.f32 %v6578, %v6681
    %v6683 = vpop.f32.mrf.mxu0
    %6684 = vmatprep.mubr.bf16.mxu0 0
    %6685 = vmatmul.mubr.bf16.gmra.mxu0 %v6496
    %v6686 = vpop.f32.mrf.mxu0
    %v6687 = vadd.f32 %v6578, %v6686
    %v6688 = vpop.f32.mrf.mxu0
    %v6689 = vpop.f32.mrf.mxu0
    %v6690 = vadd.f32 %v6578, %v6689
    %v6691 = vpop.f32.mrf.mxu0
    %6692 = vmatprep.mubr.bf16.mxu0 0
    %6693 = vmatmul.mubr.bf16.gmra.mxu0 %v6497
    %v6694 = vpop.f32.mrf.mxu0
    %v6695 = vadd.f32 %v6578, %v6694
    %v6696 = vpop.f32.mrf.mxu0
    %v6697 = vpop.f32.mrf.mxu0
    %v6698 = vadd.f32 %v6578, %v6697
    %v6699 = vpop.f32.mrf.mxu0
    %6700 = vmatprep.mubr.bf16.mxu0 0
    %6701 = vmatmul.mubr.bf16.gmra.mxu0 %v6498
    %v6702 = vpop.f32.mrf.mxu0
    %v6703 = vadd.f32 %v6578, %v6702
    %v6704 = vpop.f32.mrf.mxu0
    %v6705 = vpop.f32.mrf.mxu0
    %v6706 = vadd.f32 %v6578, %v6705
    %v6707 = vpop.f32.mrf.mxu0
    %6708 = vmatprep.mubr.bf16.mxu0 0
    %6709 = vmatmul.mubr.bf16.gmra.mxu0 %v6499
    %v6710 = vpop.f32.mrf.mxu0
    %v6711 = vadd.f32 %v6578, %v6710
    %v6712 = vpop.f32.mrf.mxu0
    %v6713 = vpop.f32.mrf.mxu0
    %v6714 = vadd.f32 %v6578, %v6713
    %v6715 = vpop.f32.mrf.mxu0
    %6716 = vmatprep.mubr.bf16.mxu0 0
    %6717 = vmatmul.mubr.bf16.gmra.mxu0 %v6500
    %v6718 = vpop.f32.mrf.mxu0
    %v6719 = vadd.f32 %v6578, %v6718
    %v6720 = vpop.f32.mrf.mxu0
    %v6721 = vpop.f32.mrf.mxu0
    %v6722 = vadd.f32 %v6578, %v6721
    %v6723 = vpop.f32.mrf.mxu0
    %6724 = vmatprep.mubr.bf16.mxu0 0
    %6725 = vmatmul.mubr.bf16.gmra.mxu0 %v6501
    %v6726 = vpop.f32.mrf.mxu0
    %v6727 = vadd.f32 %v6578, %v6726
    %v6728 = vpop.f32.mrf.mxu0
    %v6729 = vpop.f32.mrf.mxu0
    %v6730 = vadd.f32 %v6578, %v6729
    %v6731 = vpop.f32.mrf.mxu0
    %6732 = vmatprep.mubr.bf16.mxu0 0
    %6733 = vmatmul.mubr.bf16.gmra.mxu0 %v6502
    %v6734 = vpop.f32.mrf.mxu0
    %v6735 = vadd.f32 %v6578, %v6734
    %v6736 = vpop.f32.mrf.mxu0
    %v6737 = vpop.f32.mrf.mxu0
    %v6738 = vadd.f32 %v6578, %v6737
    %v6739 = vpop.f32.mrf.mxu0
    %6740 = vmatprep.mubr.bf16.mxu0 0
    %6741 = vmatmul.mubr.bf16.gmra.mxu0 %v6503
    %v6742 = vpop.f32.mrf.mxu0
    %v6743 = vadd.f32 %v6578, %v6742
    %v6744 = vpop.f32.mrf.mxu0
    %v6745 = vpop.f32.mrf.mxu0
    %v6746 = vadd.f32 %v6578, %v6745
    %v6747 = vpop.f32.mrf.mxu0
    %6748 = vmatprep.mubr.bf16.mxu0 0
    %6749 = vmatmul.mubr.bf16.gmra.mxu0 %v6504
    %v6750 = vpop.f32.mrf.mxu0
    %v6751 = vadd.f32 %v6578, %v6750
    %v6752 = vpop.f32.mrf.mxu0
    %v6753 = vpop.f32.mrf.mxu0
    %v6754 = vadd.f32 %v6578, %v6753
    %v6755 = vpop.f32.mrf.mxu0
    %6756 = vmatprep.mubr.bf16.mxu0 0
    %6757 = vmatmul.mubr.bf16.gmra.mxu0 %v6505
    %v6758 = vpop.f32.mrf.mxu0
    %v6759 = vadd.f32 %v6578, %v6758
    %v6760 = vpop.f32.mrf.mxu0
    %v6761 = vpop.f32.mrf.mxu0
    %v6762 = vadd.f32 %v6578, %v6761
    %v6763 = vpop.f32.mrf.mxu0
    %6764 = vmatprep.mubr.bf16.mxu0 0
    %6765 = vmatmul.mubr.bf16.gmra.mxu0 %v6506
    %v6766 = vpop.f32.mrf.mxu0
    %v6767 = vadd.f32 %v6578, %v6766
    %v6768 = vpop.f32.mrf.mxu0
    %v6769 = vpop.f32.mrf.mxu0
    %v6770 = vadd.f32 %v6578, %v6769
    %v6771 = vpop.f32.mrf.mxu0
    %6772 = vmatprep.mubr.bf16.mxu0 0
    %6773 = vmatmul.mubr.bf16.gmra.mxu0 %v6507
    %v6774 = vpop.f32.mrf.mxu0
    %v6775 = vadd.f32 %v6578, %v6774
    %v6776 = vpop.f32.mrf.mxu0
    %v6777 = vpop.f32.mrf.mxu0
    %v6778 = vadd.f32 %v6578, %v6777
    %v6779 = vpop.f32.mrf.mxu0
    %6780 = vmatprep.mubr.bf16.mxu0 0
    %6781 = vmatmul.mubr.bf16.gmra.mxu0 %v6508
    %v6782 = vpop.f32.mrf.mxu0
    %v6783 = vadd.f32 %v6578, %v6782
    %v6784 = vpop.f32.mrf.mxu0
    %v6785 = vpop.f32.mrf.mxu0
    %v6786 = vadd.f32 %v6578, %v6785
    %v6787 = vpop.f32.mrf.mxu0
    %6788 = vmatprep.mubr.bf16.mxu0 0
    %6789 = vmatmul.mubr.bf16.gmra.mxu0 %v6509
    %v6790 = vpop.f32.mrf.mxu0
    %v6791 = vadd.f32 %v6578, %v6790
    %v6792 = vpop.f32.mrf.mxu0
    %v6793 = vpop.f32.mrf.mxu0
    %v6794 = vadd.f32 %v6578, %v6793
    %v6795 = vpop.f32.mrf.mxu0
    %6796 = vmatprep.mubr.bf16.mxu0 0
    %6797 = vmatmul.mubr.bf16.gmra.mxu0 %v6510
    %v6798 = vpop.f32.mrf.mxu0
    %v6799 = vadd.f32 %v6578, %v6798
    %v6800 = vpop.f32.mrf.mxu0
    %v6801 = vpop.f32.mrf.mxu0
    %v6802 = vadd.f32 %v6578, %v6801
    %v6803 = vpop.f32.mrf.mxu0
    %6804 = vmatprep.mubr.bf16.mxu0 0
    %6805 = vmatmul.mubr.bf16.gmra.mxu0 %v6511
    %v6806 = vpop.f32.mrf.mxu0
    %v6807 = vadd.f32 %v6578, %v6806
    %v6808 = vpop.f32.mrf.mxu0
    %v6809 = vpop.f32.mrf.mxu0
    %v6810 = vadd.f32 %v6578, %v6809
    %v6811 = vpop.f32.mrf.mxu0
    %6812 = vmatprep.mubr.bf16.mxu0 0
    %6813 = vmatmul.mubr.bf16.gmra.mxu0 %v6512
    %v6814 = vpop.f32.mrf.mxu0
    %v6815 = vadd.f32 %v6578, %v6814
    %v6816 = vpop.f32.mrf.mxu0
    %v6817 = vpop.f32.mrf.mxu0
    %v6818 = vadd.f32 %v6578, %v6817
    %v6819 = vpop.f32.mrf.mxu0
    %6820 = vmatprep.mubr.bf16.mxu0 0
    %6821 = vmatmul.mubr.bf16.gmra.mxu0 %v6513
    %v6822 = vpop.f32.mrf.mxu0
    %v6823 = vadd.f32 %v6578, %v6822
    %v6824 = vpop.f32.mrf.mxu0
    %v6825 = vpop.f32.mrf.mxu0
    %v6826 = vadd.f32 %v6578, %v6825
    %v6827 = vpop.f32.mrf.mxu0
    %6828 = vmatprep.mubr.bf16.mxu0 0
    %6829 = vmatmul.mubr.bf16.gmra.mxu0 %v6514
    %v6830 = vpop.f32.mrf.mxu0
    %v6831 = vadd.f32 %v6578, %v6830
    %v6832 = vpop.f32.mrf.mxu0
    %v6833 = vpop.f32.mrf.mxu0
    %v6834 = vadd.f32 %v6578, %v6833
    %v6835 = vpop.f32.mrf.mxu0
    %6836 = vmatprep.mubr.bf16.mxu0 0
    %6837 = vmatmul.mubr.bf16.gmra.mxu0 %v6515
    %v6838 = vpop.f32.mrf.mxu0
    %v6839 = vadd.f32 %v6578, %v6838
    %v6840 = vpop.f32.mrf.mxu0
    %v6841 = vpop.f32.mrf.mxu0
    %v6842 = vadd.f32 %v6578, %v6841
    %v6843 = vpop.f32.mrf.mxu0
    %6844 = vmatprep.mubr.bf16.mxu0 0
    %6845 = vmatmul.mubr.bf16.gmra.mxu0 %v6516
    %v6846 = vpop.f32.mrf.mxu0
    %v6847 = vadd.f32 %v6578, %v6846
    %v6848 = vpop.f32.mrf.mxu0
    %v6849 = vpop.f32.mrf.mxu0
    %v6850 = vadd.f32 %v6578, %v6849
    %v6851 = vpop.f32.mrf.mxu0
    %6852 = vmatprep.mubr.bf16.mxu0 0
    %6853 = vmatmul.mubr.bf16.gmra.mxu0 %v6517
    %v6854 = vpop.f32.mrf.mxu0
    %v6855 = vadd.f32 %v6578, %v6854
    %v6856 = vpop.f32.mrf.mxu0
    %v6857 = vpop.f32.mrf.mxu0
    %v6858 = vadd.f32 %v6578, %v6857
    %v6859 = vpop.f32.mrf.mxu0
    %6860 = vmatprep.mubr.bf16.mxu0 0
    %6861 = vmatmul.mubr.bf16.gmra.mxu0 %v6518
    %v6862 = vpop.f32.mrf.mxu0
    %v6863 = vadd.f32 %v6578, %v6862
    %v6864 = vpop.f32.mrf.mxu0
    %v6865 = vpop.f32.mrf.mxu0
    %v6866 = vadd.f32 %v6578, %v6865
    %v6867 = vpop.f32.mrf.mxu0
    %6868 = vmatprep.mubr.bf16.mxu0 0
    %6869 = vmatmul.mubr.bf16.gmra.mxu0 %v6519
    %v6870 = vpop.f32.mrf.mxu0
    %v6871 = vadd.f32 %v6578, %v6870
    %v6872 = vpop.f32.mrf.mxu0
    %v6873 = vpop.f32.mrf.mxu0
    %v6874 = vadd.f32 %v6578, %v6873
    %v6875 = vpop.f32.mrf.mxu0
    %6876 = vmatprep.mubr.bf16.mxu0 0
    %6877 = vmatmul.mubr.bf16.gmra.mxu0 %v6520
    %v6878 = vpop.f32.mrf.mxu0
    %v6879 = vadd.f32 %v6578, %v6878
    %v6880 = vpop.f32.mrf.mxu0
    %v6881 = vpop.f32.mrf.mxu0
    %v6882 = vadd.f32 %v6578, %v6881
    %v6883 = vpop.f32.mrf.mxu0
    %6884 = vmatprep.mubr.bf16.mxu0 0
    %6885 = vmatmul.mubr.bf16.gmra.mxu0 %v6521
    %v6886 = vpop.f32.mrf.mxu0
    %v6887 = vadd.f32 %v6578, %v6886
    %v6888 = vpop.f32.mrf.mxu0
    %v6889 = vpop.f32.mrf.mxu0
    %v6890 = vadd.f32 %v6578, %v6889
    %v6891 = vpop.f32.mrf.mxu0
    %6892 = vmatprep.mubr.bf16.mxu0 0
    %6893 = vmatmul.mubr.bf16.gmra.mxu0 %v6522
    %v6894 = vpop.f32.mrf.mxu0
    %v6895 = vadd.f32 %v6578, %v6894
    %v6896 = vpop.f32.mrf.mxu0
    %v6897 = vpop.f32.mrf.mxu0
    %v6898 = vadd.f32 %v6578, %v6897
    %v6899 = vpop.f32.mrf.mxu0
    %6900 = vmatprep.mubr.bf16.mxu0 0
    %6901 = vmatmul.mubr.bf16.gmra.mxu0 %v6523
    %v6902 = vpop.f32.mrf.mxu0
    %v6903 = vadd.f32 %v6578, %v6902
    %v6904 = vpop.f32.mrf.mxu0
    %v6905 = vpop.f32.mrf.mxu0
    %v6906 = vadd.f32 %v6578, %v6905
    %v6907 = vpop.f32.mrf.mxu0
    %6908 = vmatprep.mubr.bf16.mxu0 0
    %6909 = vmatmul.mubr.bf16.gmra.mxu0 %v6524
    %v6910 = vpop.f32.mrf.mxu0
    %v6911 = vadd.f32 %v6578, %v6910
    %v6912 = vpop.f32.mrf.mxu0
    %v6913 = vpop.f32.mrf.mxu0
    %v6914 = vadd.f32 %v6578, %v6913
    %v6915 = vpop.f32.mrf.mxu0
    %6916 = vmatprep.mubr.bf16.mxu0 0
    %6917 = vmatmul.mubr.bf16.gmra.mxu0 %v6525
    %v6918 = vpop.f32.mrf.mxu0
    %v6919 = vadd.f32 %v6578, %v6918
    %v6920 = vpop.f32.mrf.mxu0
    %v6921 = vpop.f32.mrf.mxu0
    %v6922 = vadd.f32 %v6578, %v6921
    %v6923 = vpop.f32.mrf.mxu0
    %6924 = vmatprep.mubr.bf16.mxu0 0
    %6925 = vmatmul.mubr.bf16.gmra.mxu0 %v6526
    %v6926 = vpop.f32.mrf.mxu0
    %v6927 = vadd.f32 %v6578, %v6926
    %v6928 = vpop.f32.mrf.mxu0
    %v6929 = vpop.f32.mrf.mxu0
    %v6930 = vadd.f32 %v6578, %v6929
    %v6931 = vpop.f32.mrf.mxu0
    %6932 = vmatprep.mubr.bf16.mxu0 0
    %6933 = vmatmul.mubr.bf16.gmra.mxu0 %v6527
    %v6934 = vpop.f32.mrf.mxu0
    %v6935 = vadd.f32 %v6578, %v6934
    %v6936 = vpop.f32.mrf.mxu0
    %v6937 = vpop.f32.mrf.mxu0
    %v6938 = vadd.f32 %v6578, %v6937
    %v6939 = vpop.f32.mrf.mxu0
    %6940 = vmatprep.mubr.bf16.mxu0 0
    %6941 = vmatmul.mubr.bf16.gmra.mxu0 %v6528
    %v6942 = vpop.f32.mrf.mxu0
    %v6943 = vadd.f32 %v6578, %v6942
    %v6944 = vpop.f32.mrf.mxu0
    %v6945 = vpop.f32.mrf.mxu0
    %v6946 = vadd.f32 %v6578, %v6945
    %v6947 = vpop.f32.mrf.mxu0
    %6948 = vmatprep.mubr.bf16.mxu0 0
    %6949 = vmatmul.mubr.bf16.gmra.mxu0 %v6529
    %v6950 = vpop.f32.mrf.mxu0
    %v6951 = vadd.f32 %v6578, %v6950
    %v6952 = vpop.f32.mrf.mxu0
    %v6953 = vpop.f32.mrf.mxu0
    %v6954 = vadd.f32 %v6578, %v6953
    %v6955 = vpop.f32.mrf.mxu0
    %6956 = vmatprep.mubr.bf16.mxu0 0
    %6957 = vmatmul.mubr.bf16.gmra.mxu0 %v6530
    %v6958 = vpop.f32.mrf.mxu0
    %v6959 = vadd.f32 %v6578, %v6958
    %v6960 = vpop.f32.mrf.mxu0
    %v6961 = vpop.f32.mrf.mxu0
    %v6962 = vadd.f32 %v6578, %v6961
    %v6963 = vpop.f32.mrf.mxu0
    %6964 = vmatprep.mubr.bf16.mxu0 0
    %6965 = vmatmul.mubr.bf16.gmra.mxu0 %v6531
    %v6966 = vpop.f32.mrf.mxu0
    %v6967 = vadd.f32 %v6578, %v6966
    %v6968 = vpop.f32.mrf.mxu0
    %v6969 = vpop.f32.mrf.mxu0
    %v6970 = vadd.f32 %v6578, %v6969
    %v6971 = vpop.f32.mrf.mxu0
    %6972 = vmatprep.mubr.bf16.mxu0 0
    %6973 = vmatmul.mubr.bf16.gmra.mxu0 %v6532
    %v6974 = vpop.f32.mrf.mxu0
    %v6975 = vadd.f32 %v6578, %v6974
    %v6976 = vpop.f32.mrf.mxu0
    %v6977 = vpop.f32.mrf.mxu0
    %v6978 = vadd.f32 %v6578, %v6977
    %v6979 = vpop.f32.mrf.mxu0
    %6980 = vmatprep.mubr.bf16.mxu0 0
    %6981 = vmatmul.mubr.bf16.gmra.mxu0 %v6533
    %v6982 = vpop.f32.mrf.mxu0
    %v6983 = vadd.f32 %v6578, %v6982
    %v6984 = vpop.f32.mrf.mxu0
    %v6985 = vpop.f32.mrf.mxu0
    %v6986 = vadd.f32 %v6578, %v6985
    %v6987 = vpop.f32.mrf.mxu0
    %6988 = vmatprep.mubr.bf16.mxu0 0
    %6989 = vmatmul.mubr.bf16.gmra.mxu0 %v6534
    %v6990 = vpop.f32.mrf.mxu0
    %v6991 = vadd.f32 %v6578, %v6990
    %v6992 = vpop.f32.mrf.mxu0
    %v6993 = vpop.f32.mrf.mxu0
    %v6994 = vadd.f32 %v6578, %v6993
    %v6995 = vpop.f32.mrf.mxu0
    %6996 = vmatprep.mubr.bf16.mxu0 0
    %6997 = vmatmul.mubr.bf16.gmra.mxu0 %v6535
    %v6998 = vpop.f32.mrf.mxu0
    %v6999 = vadd.f32 %v6578, %v6998
    %v7000 = vpop.f32.mrf.mxu0
    %v7001 = vpop.f32.mrf.mxu0
    %v7002 = vadd.f32 %v6578, %v7001
    %v7003 = vpop.f32.mrf.mxu0
    %7004 = vmatprep.mubr.bf16.mxu0 0
    %7005 = vmatmul.mubr.bf16.gmra.mxu0 %v6536
    %v7006 = vpop.f32.mrf.mxu0
    %v7007 = vadd.f32 %v6578, %v7006
    %v7008 = vpop.f32.mrf.mxu0
    %v7009 = vpop.f32.mrf.mxu0
    %v7010 = vadd.f32 %v6578, %v7009
    %v7011 = vpop.f32.mrf.mxu0
    %7012 = vmatprep.mubr.bf16.mxu0 0
    %7013 = vmatmul.mubr.bf16.gmra.mxu0 %v6537
    %v7014 = vpop.f32.mrf.mxu0
    %v7015 = vadd.f32 %v6578, %v7014
    %v7016 = vpop.f32.mrf.mxu0
    %v7017 = vpop.f32.mrf.mxu0
    %v7018 = vadd.f32 %v6578, %v7017
    %v7019 = vpop.f32.mrf.mxu0
    %7020 = vmatprep.mubr.bf16.mxu0 0
    %7021 = vmatmul.mubr.bf16.gmra.mxu0 %v6538
    %v7022 = vpop.f32.mrf.mxu0
    %v7023 = vadd.f32 %v6578, %v7022
    %v7024 = vpop.f32.mrf.mxu0
    %v7025 = vpop.f32.mrf.mxu0
    %v7026 = vadd.f32 %v6578, %v7025
    %v7027 = vpop.f32.mrf.mxu0
    %7028 = vmatprep.mubr.bf16.mxu0 0
    %7029 = vmatmul.mubr.bf16.gmra.mxu0 %v6539
    %v7030 = vpop.f32.mrf.mxu0
    %v7031 = vadd.f32 %v6578, %v7030
    %v7032 = vpop.f32.mrf.mxu0
    %v7033 = vpop.f32.mrf.mxu0
    %v7034 = vadd.f32 %v6578, %v7033
    %v7035 = vpop.f32.mrf.mxu0
    %7036 = vmatprep.mubr.bf16.mxu0 0
    %7037 = vmatmul.mubr.bf16.gmra.mxu0 %v6540
    %v7038 = vpop.f32.mrf.mxu0
    %v7039 = vadd.f32 %v6578, %v7038
    %v7040 = vpop.f32.mrf.mxu0
    %v7041 = vpop.f32.mrf.mxu0
    %v7042 = vadd.f32 %v6578, %v7041
    %v7043 = vpop.f32.mrf.mxu0
    %7044 = vmatprep.mubr.bf16.mxu0 0
    %7045 = vmatmul.mubr.bf16.gmra.mxu0 %v6541
    %v7046 = vpop.f32.mrf.mxu0
    %v7047 = vadd.f32 %v6578, %v7046
    %v7048 = vpop.f32.mrf.mxu0
    %v7049 = vpop.f32.mrf.mxu0
    %v7050 = vadd.f32 %v6578, %v7049
    %v7051 = vpop.f32.mrf.mxu0
    %7052 = vmatprep.mubr.bf16.mxu0 0
    %7053 = vmatmul.mubr.bf16.gmra.mxu0 %v6542
    %v7054 = vpop.f32.mrf.mxu0
    %v7055 = vadd.f32 %v6578, %v7054
    %v7056 = vpop.f32.mrf.mxu0
    %v7057 = vpop.f32.mrf.mxu0
    %v7058 = vadd.f32 %v6578, %v7057
    %v7059 = vpop.f32.mrf.mxu0
    %7060 = vmatprep.mubr.bf16.mxu0 0
    %7061 = vmatmul.mubr.bf16.gmra.mxu0 %v6543
    %v7062 = vpop.f32.mrf.mxu0
    %v7063 = vadd.f32 %v6578, %v7062
    %v7064 = vpop.f32.mrf.mxu0
    %v7065 = vpop.f32.mrf.mxu0
    %v7066 = vadd.f32 %v6578, %v7065
    %v7067 = vpop.f32.mrf.mxu0
    %7068 = vmatprep.mubr.bf16.mxu0 0
    %7069 = vmatmul.mubr.bf16.gmra.mxu0 %v6544
    %v7070 = vpop.f32.mrf.mxu0
    %v7071 = vadd.f32 %v6578, %v7070
    %v7072 = vpop.f32.mrf.mxu0
    %v7073 = vpop.f32.mrf.mxu0
    %v7074 = vadd.f32 %v6578, %v7073
    %v7075 = vpop.f32.mrf.mxu0
    %7076 = vmatprep.mubr.bf16.mxu0 0
    %7077 = vmatmul.mubr.bf16.gmra.mxu0 %v6545
    %v7078 = vpop.f32.mrf.mxu0
    %v7079 = vadd.f32 %v6578, %v7078
    %v7080 = vpop.f32.mrf.mxu0
    %v7081 = vpop.f32.mrf.mxu0
    %v7082 = vadd.f32 %v6578, %v7081
    %v7083 = vpop.f32.mrf.mxu0
    %7084 = vmatprep.mubr.bf16.mxu0 0
    %7085 = vmatmul.mubr.bf16.gmra.mxu0 %v6546
    %v7086 = vpop.f32.mrf.mxu0
    %v7087 = vadd.f32 %v6578, %v7086
    %v7088 = vpop.f32.mrf.mxu0
    %v7089 = vpop.f32.mrf.mxu0
    %v7090 = vadd.f32 %v6578, %v7089
    %v7091 = vpop.f32.mrf.mxu0
    %7092 = vmatprep.mubr.bf16.mxu0 0
    %7093 = vmatmul.mubr.bf16.gmra.mxu0 %v6547
    %v7094 = vpop.f32.mrf.mxu0
    %v7095 = vadd.f32 %v6578, %v7094
    %v7096 = vpop.f32.mrf.mxu0
    %v7097 = vpop.f32.mrf.mxu0
    %v7098 = vadd.f32 %v6578, %v7097
    %v7099 = vpop.f32.mrf.mxu0
    %7100 = vmatprep.mubr.bf16.mxu0 0
    %7101 = vmatmul.mubr.bf16.gmra.mxu0 %v6548
    %v7102 = vpop.f32.mrf.mxu0
    %v7103 = vadd.f32 %v6578, %v7102
    %v7104 = vpop.f32.mrf.mxu0
    %v7105 = vpop.f32.mrf.mxu0
    %v7106 = vadd.f32 %v6578, %v7105
    %v7107 = vpop.f32.mrf.mxu0
    %7108 = vmatprep.mubr.bf16.mxu0 0
    %7109 = vmatmul.mubr.bf16.gmra.mxu0 %v6549
    %v7110 = vpop.f32.mrf.mxu0
    %v7111 = vadd.f32 %v6578, %v7110
    %v7112 = vpop.f32.mrf.mxu0
    %v7113 = vpop.f32.mrf.mxu0
    %v7114 = vadd.f32 %v6578, %v7113
    %v7115 = vpop.f32.mrf.mxu0
    %7116 = vmatprep.mubr.bf16.mxu0 0
    %7117 = vmatmul.mubr.bf16.gmra.mxu0 %v6550
    %v7118 = vpop.f32.mrf.mxu0
    %v7119 = vadd.f32 %v6578, %v7118
    %v7120 = vpop.f32.mrf.mxu0
    %v7121 = vpop.f32.mrf.mxu0
    %v7122 = vadd.f32 %v6578, %v7121
    %v7123 = vpop.f32.mrf.mxu0
    %7124 = vmatprep.mubr.bf16.mxu0 0
    %7125 = vmatmul.mubr.bf16.gmra.mxu0 %v6551
    %v7126 = vpop.f32.mrf.mxu0
    %v7127 = vadd.f32 %v6578, %v7126
    %v7128 = vpop.f32.mrf.mxu0
    %v7129 = vpop.f32.mrf.mxu0
    %v7130 = vadd.f32 %v6578, %v7129
    %v7131 = vpop.f32.mrf.mxu0
    %7132 = vmatprep.mubr.bf16.mxu0 0
    %7133 = vmatmul.mubr.bf16.gmra.mxu0 %v6552
    %v7134 = vpop.f32.mrf.mxu0
    %v7135 = vadd.f32 %v6578, %v7134
    %v7136 = vpop.f32.mrf.mxu0
    %v7137 = vpop.f32.mrf.mxu0
    %v7138 = vadd.f32 %v6578, %v7137
    %v7139 = vpop.f32.mrf.mxu0
    %7140 = vmatprep.mubr.bf16.mxu0 0
    %7141 = vmatmul.mubr.bf16.gmra.mxu0 %v6553
    %v7142 = vpop.f32.mrf.mxu0
    %v7143 = vadd.f32 %v6578, %v7142
    %v7144 = vpop.f32.mrf.mxu0
    %v7145 = vpop.f32.mrf.mxu0
    %v7146 = vadd.f32 %v6578, %v7145
    %v7147 = vpop.f32.mrf.mxu0
    %7148 = vmatprep.mubr.bf16.mxu0 0
    %7149 = vmatmul.mubr.bf16.gmra.mxu0 %v6554
    %v7150 = vpop.f32.mrf.mxu0
    %v7151 = vadd.f32 %v6578, %v7150
    %v7152 = vpop.f32.mrf.mxu0
    %v7153 = vpop.f32.mrf.mxu0
    %v7154 = vadd.f32 %v6578, %v7153
    %v7155 = vpop.f32.mrf.mxu0
    %7156 = vmatprep.mubr.bf16.mxu0 0
    %7157 = vmatmul.mubr.bf16.gmra.mxu0 %v6555
    %v7158 = vpop.f32.mrf.mxu0
    %v7159 = vadd.f32 %v6578, %v7158
    %v7160 = vpop.f32.mrf.mxu0
    %v7161 = vpop.f32.mrf.mxu0
    %v7162 = vadd.f32 %v6578, %v7161
    %v7163 = vpop.f32.mrf.mxu0
    %7164 = vmatprep.mubr.bf16.mxu0 0
    %7165 = vmatmul.mubr.bf16.gmra.mxu0 %v6556
    %v7166 = vpop.f32.mrf.mxu0
    %v7167 = vadd.f32 %v6578, %v7166
    %v7168 = vpop.f32.mrf.mxu0
    %v7169 = vpop.f32.mrf.mxu0
    %v7170 = vadd.f32 %v6578, %v7169
    %v7171 = vpop.f32.mrf.mxu0
    %7172 = vdwg.mxu0
    %v7173 = vunpack.c.l.bf16 %v83
    %v7174 = vunpack.c.l.bf16 %v84
    %v7175 = vunpack.c.l.bf16 %v85
    %v7176 = vunpack.c.l.bf16 %v86
    %v7177 = vunpack.c.l.bf16 %v87
    %v7178 = vunpack.c.l.bf16 %v88
    %v7179 = vunpack.c.l.bf16 %v89
    %v7180 = vunpack.c.l.bf16 %v90
    %v7181 = vunpack.c.l.bf16 %v91
    %v7182 = vunpack.c.l.bf16 %v92
    %v7183 = vunpack.c.l.bf16 %v93
    %v7184 = vunpack.c.l.bf16 %v94
    %v7185 = vunpack.c.l.bf16 %v95
    %v7186 = vunpack.c.l.bf16 %v96
    %v7187 = vunpack.c.l.bf16 %v97
    %v7188 = vunpack.c.l.bf16 %v98
    %v7189 = vunpack.c.l.bf16 %v99
    %v7190 = vunpack.c.l.bf16 %v100
    %v7191 = vunpack.c.l.bf16 %v101
    %v7192 = vunpack.c.l.bf16 %v102
    %v7193 = vunpack.c.l.bf16 %v103
    %v7194 = vunpack.c.l.bf16 %v104
    %v7195 = vunpack.c.l.bf16 %v105
    %v7196 = vunpack.c.l.bf16 %v106
    %v7197 = vunpack.c.l.bf16 %v107
    %v7198 = vunpack.c.l.bf16 %v108
    %v7199 = vunpack.c.l.bf16 %v109
    %v7200 = vunpack.c.l.bf16 %v110
    %v7201 = vunpack.c.l.bf16 %v111
    %v7202 = vunpack.c.l.bf16 %v112
    %v7203 = vunpack.c.l.bf16 %v113
    %v7204 = vunpack.c.l.bf16 %v114
    %v7205 = vunpack.c.l.bf16 %v115
    %v7206 = vunpack.c.l.bf16 %v116
    %v7207 = vunpack.c.l.bf16 %v117
    %v7208 = vunpack.c.l.bf16 %v118
    %v7209 = vunpack.c.l.bf16 %v119
    %v7210 = vunpack.c.l.bf16 %v120
    %v7211 = vunpack.c.l.bf16 %v121
    %v7212 = vunpack.c.l.bf16 %v122
    %v7213 = vunpack.c.l.bf16 %v123
    %v7214 = vunpack.c.l.bf16 %v124
    %v7215 = vunpack.c.l.bf16 %v125
    %v7216 = vunpack.c.l.bf16 %v126
    %v7217 = vunpack.c.l.bf16 %v127
    %v7218 = vunpack.c.l.bf16 %v128
    %v7219 = vunpack.c.l.bf16 %v129
    %v7220 = vunpack.c.l.bf16 %v130
    %v7221 = vunpack.c.l.bf16 %v131
    %v7222 = vunpack.c.l.bf16 %v132
    %v7223 = vunpack.c.l.bf16 %v133
    %v7224 = vunpack.c.l.bf16 %v134
    %v7225 = vunpack.c.l.bf16 %v135
    %v7226 = vunpack.c.l.bf16 %v136
    %v7227 = vunpack.c.l.bf16 %v137
    %v7228 = vunpack.c.l.bf16 %v138
    %v7229 = vunpack.c.l.bf16 %v139
    %v7230 = vunpack.c.l.bf16 %v140
    %v7231 = vunpack.c.l.bf16 %v141
    %v7232 = vunpack.c.l.bf16 %v142
    %v7233 = vunpack.c.l.bf16 %v143
    %v7234 = vunpack.c.l.bf16 %v144
    %v7235 = vunpack.c.l.bf16 %v145
    %v7236 = vunpack.c.l.bf16 %v146
    %v7237 = vunpack.c.l.bf16 %v147
    %v7238 = vunpack.c.l.bf16 %v148
    %v7239 = vunpack.c.l.bf16 %v149
    %v7240 = vunpack.c.l.bf16 %v150
    %v7241 = vunpack.c.l.bf16 %v151
    %v7242 = vunpack.c.l.bf16 %v152
    %v7243 = vunpack.c.l.bf16 %v153
    %v7244 = vunpack.c.l.bf16 %v154
    %v7245 = vunpack.c.l.bf16 %v155
    %v7246 = vunpack.c.l.bf16 %v156
    %v7247 = vunpack.c.l.bf16 %v157
    %v7248 = vunpack.c.l.bf16 %v158
    %v7249 = vunpack.c.l.bf16 %v159
    %v7250 = vunpack.c.l.bf16 %v160
    %v7251 = vunpack.c.l.bf16 %v161
    %v7252 = vunpack.c.l.bf16 %v162
    %v7253 = vunpack.c.l.bf16 %v163
    %v7254 = vunpack.c.l.bf16 %v164
    %v7255 = vunpack.c.l.bf16 %v165
    %v7256 = vunpack.c.l.bf16 %v166
    %v7257 = vunpack.c.l.bf16 %v167
    %v7258 = vunpack.c.l.bf16 %v168
    %v7259 = vunpack.c.l.bf16 %v169
    %v7260 = vunpack.c.l.bf16 %v170
    %v7261 = vunpack.c.l.bf16 %v171
    %v7262 = vunpack.c.l.bf16 %v172
    %v7263 = vunpack.c.l.bf16 %v173
    %v7264 = vunpack.c.l.bf16 %v174
    %v7265 = vunpack.c.l.bf16 %v175
    %v7266 = vunpack.c.l.bf16 %v176
    %v7267 = vunpack.c.l.bf16 %v177
    %v7268 = vunpack.c.l.bf16 %v178
    %v7269 = vunpack.c.l.bf16 %v179
    %v7270 = vunpack.c.l.bf16 %v180
    %v7271 = vunpack.c.l.bf16 %v181
    %v7272 = vunpack.c.l.bf16 %v182
    %v7273 = vunpack.c.l.bf16 %v183
    %v7274 = vunpack.c.l.bf16 %v184
    %v7275 = vunpack.c.l.bf16 %v185
    %v7276 = vunpack.c.l.bf16 %v186
    %v7277 = vunpack.c.l.bf16 %v187
    %v7278 = vunpack.c.l.bf16 %v188
    %v7279 = vunpack.c.l.bf16 %v189
    %v7280 = vunpack.c.l.bf16 %v190
    %v7281 = vunpack.c.l.bf16 %v191
    %v7282 = vunpack.c.l.bf16 %v192
    %v7283 = vunpack.c.l.bf16 %v193
    %v7284 = vunpack.c.l.bf16 %v194
    %v7285 = vunpack.c.l.bf16 %v195
    %v7286 = vunpack.c.l.bf16 %v196
    %v7287 = vunpack.c.l.bf16 %v197
    %v7288 = vunpack.c.l.bf16 %v198
    %v7289 = vunpack.c.l.bf16 %v199
    %v7290 = vunpack.c.l.bf16 %v200
    %v7291 = vunpack.c.l.bf16 %v201
    %v7292 = vunpack.c.l.bf16 %v202
    %v7293 = vunpack.c.l.bf16 %v203
    %v7294 = vunpack.c.l.bf16 %v204
    %v7295 = vunpack.c.l.bf16 %v205
    %v7296 = vunpack.c.l.bf16 %v206
    %v7297 = vunpack.c.l.bf16 %v207
    %v7298 = vunpack.c.l.bf16 %v208
    %v7299 = vunpack.c.l.bf16 %v209
    %v7300 = vunpack.c.l.bf16 %v210
    %v7301 = vadd.f32 %v6663, %v7173
    %v7302 = vadd.f32 %v6666, %v7174
    %v7303 = vadd.f32 %v6671, %v7175
    %v7304 = vadd.f32 %v6674, %v7176
    %v7305 = vadd.f32 %v6679, %v7177
    %v7306 = vadd.f32 %v6682, %v7178
    %v7307 = vadd.f32 %v6687, %v7179
    %v7308 = vadd.f32 %v6690, %v7180
    %v7309 = vadd.f32 %v6695, %v7181
    %v7310 = vadd.f32 %v6698, %v7182
    %v7311 = vadd.f32 %v6703, %v7183
    %v7312 = vadd.f32 %v6706, %v7184
    %v7313 = vadd.f32 %v6711, %v7185
    %v7314 = vadd.f32 %v6714, %v7186
    %v7315 = vadd.f32 %v6719, %v7187
    %v7316 = vadd.f32 %v6722, %v7188
    %v7317 = vadd.f32 %v6727, %v7189
    %v7318 = vadd.f32 %v6730, %v7190
    %v7319 = vadd.f32 %v6735, %v7191
    %v7320 = vadd.f32 %v6738, %v7192
    %v7321 = vadd.f32 %v6743, %v7193
    %v7322 = vadd.f32 %v6746, %v7194
    %v7323 = vadd.f32 %v6751, %v7195
    %v7324 = vadd.f32 %v6754, %v7196
    %v7325 = vadd.f32 %v6759, %v7197
    %v7326 = vadd.f32 %v6762, %v7198
    %v7327 = vadd.f32 %v6767, %v7199
    %v7328 = vadd.f32 %v6770, %v7200
    %v7329 = vadd.f32 %v6775, %v7201
    %v7330 = vadd.f32 %v6778, %v7202
    %v7331 = vadd.f32 %v6783, %v7203
    %v7332 = vadd.f32 %v6786, %v7204
    %v7333 = vadd.f32 %v6791, %v7205
    %v7334 = vadd.f32 %v6794, %v7206
    %v7335 = vadd.f32 %v6799, %v7207
    %v7336 = vadd.f32 %v6802, %v7208
    %v7337 = vadd.f32 %v6807, %v7209
    %v7338 = vadd.f32 %v6810, %v7210
    %v7339 = vadd.f32 %v6815, %v7211
    %v7340 = vadd.f32 %v6818, %v7212
    %v7341 = vadd.f32 %v6823, %v7213
    %v7342 = vadd.f32 %v6826, %v7214
    %v7343 = vadd.f32 %v6831, %v7215
    %v7344 = vadd.f32 %v6834, %v7216
    %v7345 = vadd.f32 %v6839, %v7217
    %v7346 = vadd.f32 %v6842, %v7218
    %v7347 = vadd.f32 %v6847, %v7219
    %v7348 = vadd.f32 %v6850, %v7220
    %v7349 = vadd.f32 %v6855, %v7221
    %v7350 = vadd.f32 %v6858, %v7222
    %v7351 = vadd.f32 %v6863, %v7223
    %v7352 = vadd.f32 %v6866, %v7224
    %v7353 = vadd.f32 %v6871, %v7225
    %v7354 = vadd.f32 %v6874, %v7226
    %v7355 = vadd.f32 %v6879, %v7227
    %v7356 = vadd.f32 %v6882, %v7228
    %v7357 = vadd.f32 %v6887, %v7229
    %v7358 = vadd.f32 %v6890, %v7230
    %v7359 = vadd.f32 %v6895, %v7231
    %v7360 = vadd.f32 %v6898, %v7232
    %v7361 = vadd.f32 %v6903, %v7233
    %v7362 = vadd.f32 %v6906, %v7234
    %v7363 = vadd.f32 %v6911, %v7235
    %v7364 = vadd.f32 %v6914, %v7236
    %v7365 = vadd.f32 %v6919, %v7237
    %v7366 = vadd.f32 %v6922, %v7238
    %v7367 = vadd.f32 %v6927, %v7239
    %v7368 = vadd.f32 %v6930, %v7240
    %v7369 = vadd.f32 %v6935, %v7241
    %v7370 = vadd.f32 %v6938, %v7242
    %v7371 = vadd.f32 %v6943, %v7243
    %v7372 = vadd.f32 %v6946, %v7244
    %v7373 = vadd.f32 %v6951, %v7245
    %v7374 = vadd.f32 %v6954, %v7246
    %v7375 = vadd.f32 %v6959, %v7247
    %v7376 = vadd.f32 %v6962, %v7248
    %v7377 = vadd.f32 %v6967, %v7249
    %v7378 = vadd.f32 %v6970, %v7250
    %v7379 = vadd.f32 %v6975, %v7251
    %v7380 = vadd.f32 %v6978, %v7252
    %v7381 = vadd.f32 %v6983, %v7253
    %v7382 = vadd.f32 %v6986, %v7254
    %v7383 = vadd.f32 %v6991, %v7255
    %v7384 = vadd.f32 %v6994, %v7256
    %v7385 = vadd.f32 %v6999, %v7257
    %v7386 = vadd.f32 %v7002, %v7258
    %v7387 = vadd.f32 %v7007, %v7259
    %v7388 = vadd.f32 %v7010, %v7260
    %v7389 = vadd.f32 %v7015, %v7261
    %v7390 = vadd.f32 %v7018, %v7262
    %v7391 = vadd.f32 %v7023, %v7263
    %v7392 = vadd.f32 %v7026, %v7264
    %v7393 = vadd.f32 %v7031, %v7265
    %v7394 = vadd.f32 %v7034, %v7266
    %v7395 = vadd.f32 %v7039, %v7267
    %v7396 = vadd.f32 %v7042, %v7268
    %v7397 = vadd.f32 %v7047, %v7269
    %v7398 = vadd.f32 %v7050, %v7270
    %v7399 = vadd.f32 %v7055, %v7271
    %v7400 = vadd.f32 %v7058, %v7272
    %v7401 = vadd.f32 %v7063, %v7273
    %v7402 = vadd.f32 %v7066, %v7274
    %v7403 = vadd.f32 %v7071, %v7275
    %v7404 = vadd.f32 %v7074, %v7276
    %v7405 = vadd.f32 %v7079, %v7277
    %v7406 = vadd.f32 %v7082, %v7278
    %v7407 = vadd.f32 %v7087, %v7279
    %v7408 = vadd.f32 %v7090, %v7280
    %v7409 = vadd.f32 %v7095, %v7281
    %v7410 = vadd.f32 %v7098, %v7282
    %v7411 = vadd.f32 %v7103, %v7283
    %v7412 = vadd.f32 %v7106, %v7284
    %v7413 = vadd.f32 %v7111, %v7285
    %v7414 = vadd.f32 %v7114, %v7286
    %v7415 = vadd.f32 %v7119, %v7287
    %v7416 = vadd.f32 %v7122, %v7288
    %v7417 = vadd.f32 %v7127, %v7289
    %v7418 = vadd.f32 %v7130, %v7290
    %v7419 = vadd.f32 %v7135, %v7291
    %v7420 = vadd.f32 %v7138, %v7292
    %v7421 = vadd.f32 %v7143, %v7293
    %v7422 = vadd.f32 %v7146, %v7294
    %v7423 = vadd.f32 %v7151, %v7295
    %v7424 = vadd.f32 %v7154, %v7296
    %v7425 = vadd.f32 %v7159, %v7297
    %v7426 = vadd.f32 %v7162, %v7298
    %v7427 = vadd.f32 %v7167, %v7299
    %v7428 = vadd.f32 %v7170, %v7300
    %v7429 = vmax.f32 %v7301, 0.0
    %v7430 = vmax.f32 %v7302, 0.0
    %v7431 = vmax.f32 %v7303, 0.0
    %v7432 = vmax.f32 %v7304, 0.0
    %v7433 = vmax.f32 %v7305, 0.0
    %v7434 = vmax.f32 %v7306, 0.0
    %v7435 = vmax.f32 %v7307, 0.0
    %v7436 = vmax.f32 %v7308, 0.0
    %v7437 = vmax.f32 %v7309, 0.0
    %v7438 = vmax.f32 %v7310, 0.0
    %v7439 = vmax.f32 %v7311, 0.0
    %v7440 = vmax.f32 %v7312, 0.0
    %v7441 = vmax.f32 %v7313, 0.0
    %v7442 = vmax.f32 %v7314, 0.0
    %v7443 = vmax.f32 %v7315, 0.0
    %v7444 = vmax.f32 %v7316, 0.0
    %v7445 = vmax.f32 %v7317, 0.0
    %v7446 = vmax.f32 %v7318, 0.0
    %v7447 = vmax.f32 %v7319, 0.0
    %v7448 = vmax.f32 %v7320, 0.0
    %v7449 = vmax.f32 %v7321, 0.0
    %v7450 = vmax.f32 %v7322, 0.0
    %v7451 = vmax.f32 %v7323, 0.0
    %v7452 = vmax.f32 %v7324, 0.0
    %v7453 = vmax.f32 %v7325, 0.0
    %v7454 = vmax.f32 %v7326, 0.0
    %v7455 = vmax.f32 %v7327, 0.0
    %v7456 = vmax.f32 %v7328, 0.0
    %v7457 = vmax.f32 %v7329, 0.0
    %v7458 = vmax.f32 %v7330, 0.0
    %v7459 = vmax.f32 %v7331, 0.0
    %v7460 = vmax.f32 %v7332, 0.0
    %v7461 = vmax.f32 %v7333, 0.0
    %v7462 = vmax.f32 %v7334, 0.0
    %v7463 = vmax.f32 %v7335, 0.0
    %v7464 = vmax.f32 %v7336, 0.0
    %v7465 = vmax.f32 %v7337, 0.0
    %v7466 = vmax.f32 %v7338, 0.0
    %v7467 = vmax.f32 %v7339, 0.0
    %v7468 = vmax.f32 %v7340, 0.0
    %v7469 = vmax.f32 %v7341, 0.0
    %v7470 = vmax.f32 %v7342, 0.0
    %v7471 = vmax.f32 %v7343, 0.0
    %v7472 = vmax.f32 %v7344, 0.0
    %v7473 = vmax.f32 %v7345, 0.0
    %v7474 = vmax.f32 %v7346, 0.0
    %v7475 = vmax.f32 %v7347, 0.0
    %v7476 = vmax.f32 %v7348, 0.0
    %v7477 = vmax.f32 %v7349, 0.0
    %v7478 = vmax.f32 %v7350, 0.0
    %v7479 = vmax.f32 %v7351, 0.0
    %v7480 = vmax.f32 %v7352, 0.0
    %v7481 = vmax.f32 %v7353, 0.0
    %v7482 = vmax.f32 %v7354, 0.0
    %v7483 = vmax.f32 %v7355, 0.0
    %v7484 = vmax.f32 %v7356, 0.0
    %v7485 = vmax.f32 %v7357, 0.0
    %v7486 = vmax.f32 %v7358, 0.0
    %v7487 = vmax.f32 %v7359, 0.0
    %v7488 = vmax.f32 %v7360, 0.0
    %v7489 = vmax.f32 %v7361, 0.0
    %v7490 = vmax.f32 %v7362, 0.0
    %v7491 = vmax.f32 %v7363, 0.0
    %v7492 = vmax.f32 %v7364, 0.0
    %v7493 = vmax.f32 %v7365, 0.0
    %v7494 = vmax.f32 %v7366, 0.0
    %v7495 = vmax.f32 %v7367, 0.0
    %v7496 = vmax.f32 %v7368, 0.0
    %v7497 = vmax.f32 %v7369, 0.0
    %v7498 = vmax.f32 %v7370, 0.0
    %v7499 = vmax.f32 %v7371, 0.0
    %v7500 = vmax.f32 %v7372, 0.0
    %v7501 = vmax.f32 %v7373, 0.0
    %v7502 = vmax.f32 %v7374, 0.0
    %v7503 = vmax.f32 %v7375, 0.0
    %v7504 = vmax.f32 %v7376, 0.0
    %v7505 = vmax.f32 %v7377, 0.0
    %v7506 = vmax.f32 %v7378, 0.0
    %v7507 = vmax.f32 %v7379, 0.0
    %v7508 = vmax.f32 %v7380, 0.0
    %v7509 = vmax.f32 %v7381, 0.0
    %v7510 = vmax.f32 %v7382, 0.0
    %v7511 = vmax.f32 %v7383, 0.0
    %v7512 = vmax.f32 %v7384, 0.0
    %v7513 = vmax.f32 %v7385, 0.0
    %v7514 = vmax.f32 %v7386, 0.0
    %v7515 = vmax.f32 %v7387, 0.0
    %v7516 = vmax.f32 %v7388, 0.0
    %v7517 = vmax.f32 %v7389, 0.0
    %v7518 = vmax.f32 %v7390, 0.0
    %v7519 = vmax.f32 %v7391, 0.0
    %v7520 = vmax.f32 %v7392, 0.0
    %v7521 = vmax.f32 %v7393, 0.0
    %v7522 = vmax.f32 %v7394, 0.0
    %v7523 = vmax.f32 %v7395, 0.0
    %v7524 = vmax.f32 %v7396, 0.0
    %v7525 = vmax.f32 %v7397, 0.0
    %v7526 = vmax.f32 %v7398, 0.0
    %v7527 = vmax.f32 %v7399, 0.0
    %v7528 = vmax.f32 %v7400, 0.0
    %v7529 = vmax.f32 %v7401, 0.0
    %v7530 = vmax.f32 %v7402, 0.0
    %v7531 = vmax.f32 %v7403, 0.0
    %v7532 = vmax.f32 %v7404, 0.0
    %v7533 = vmax.f32 %v7405, 0.0
    %v7534 = vmax.f32 %v7406, 0.0
    %v7535 = vmax.f32 %v7407, 0.0
    %v7536 = vmax.f32 %v7408, 0.0
    %v7537 = vmax.f32 %v7409, 0.0
    %v7538 = vmax.f32 %v7410, 0.0
    %v7539 = vmax.f32 %v7411, 0.0
    %v7540 = vmax.f32 %v7412, 0.0
    %v7541 = vmax.f32 %v7413, 0.0
    %v7542 = vmax.f32 %v7414, 0.0
    %v7543 = vmax.f32 %v7415, 0.0
    %v7544 = vmax.f32 %v7416, 0.0
    %v7545 = vmax.f32 %v7417, 0.0
    %v7546 = vmax.f32 %v7418, 0.0
    %v7547 = vmax.f32 %v7419, 0.0
    %v7548 = vmax.f32 %v7420, 0.0
    %v7549 = vmax.f32 %v7421, 0.0
    %v7550 = vmax.f32 %v7422, 0.0
    %v7551 = vmax.f32 %v7423, 0.0
    %v7552 = vmax.f32 %v7424, 0.0
    %v7553 = vmax.f32 %v7425, 0.0
    %v7554 = vmax.f32 %v7426, 0.0
    %v7555 = vmax.f32 %v7427, 0.0
    %v7556 = vmax.f32 %v7428, 0.0
    %v7557 = vpack.c.bf16 %v7430, %v7429
    %v7558 = vpack.c.bf16 %v7432, %v7431
    %v7559 = vpack.c.bf16 %v7434, %v7433
    %v7560 = vpack.c.bf16 %v7436, %v7435
    %v7561 = vpack.c.bf16 %v7438, %v7437
    %v7562 = vpack.c.bf16 %v7440, %v7439
    %v7563 = vpack.c.bf16 %v7442, %v7441
    %v7564 = vpack.c.bf16 %v7444, %v7443
    %v7565 = vpack.c.bf16 %v7446, %v7445
    %v7566 = vpack.c.bf16 %v7448, %v7447
    %v7567 = vpack.c.bf16 %v7450, %v7449
    %v7568 = vpack.c.bf16 %v7452, %v7451
    %v7569 = vpack.c.bf16 %v7454, %v7453
    %v7570 = vpack.c.bf16 %v7456, %v7455
    %v7571 = vpack.c.bf16 %v7458, %v7457
    %v7572 = vpack.c.bf16 %v7460, %v7459
    %v7573 = vpack.c.bf16 %v7462, %v7461
    %v7574 = vpack.c.bf16 %v7464, %v7463
    %v7575 = vpack.c.bf16 %v7466, %v7465
    %v7576 = vpack.c.bf16 %v7468, %v7467
    %v7577 = vpack.c.bf16 %v7470, %v7469
    %v7578 = vpack.c.bf16 %v7472, %v7471
    %v7579 = vpack.c.bf16 %v7474, %v7473
    %v7580 = vpack.c.bf16 %v7476, %v7475
    %v7581 = vpack.c.bf16 %v7478, %v7477
    %v7582 = vpack.c.bf16 %v7480, %v7479
    %v7583 = vpack.c.bf16 %v7482, %v7481
    %v7584 = vpack.c.bf16 %v7484, %v7483
    %v7585 = vpack.c.bf16 %v7486, %v7485
    %v7586 = vpack.c.bf16 %v7488, %v7487
    %v7587 = vpack.c.bf16 %v7490, %v7489
    %v7588 = vpack.c.bf16 %v7492, %v7491
    %v7589 = vpack.c.bf16 %v7494, %v7493
    %v7590 = vpack.c.bf16 %v7496, %v7495
    %v7591 = vpack.c.bf16 %v7498, %v7497
    %v7592 = vpack.c.bf16 %v7500, %v7499
    %v7593 = vpack.c.bf16 %v7502, %v7501
    %v7594 = vpack.c.bf16 %v7504, %v7503
    %v7595 = vpack.c.bf16 %v7506, %v7505
    %v7596 = vpack.c.bf16 %v7508, %v7507
    %v7597 = vpack.c.bf16 %v7510, %v7509
    %v7598 = vpack.c.bf16 %v7512, %v7511
    %v7599 = vpack.c.bf16 %v7514, %v7513
    %v7600 = vpack.c.bf16 %v7516, %v7515
    %v7601 = vpack.c.bf16 %v7518, %v7517
    %v7602 = vpack.c.bf16 %v7520, %v7519
    %v7603 = vpack.c.bf16 %v7522, %v7521
    %v7604 = vpack.c.bf16 %v7524, %v7523
    %v7605 = vpack.c.bf16 %v7526, %v7525
    %v7606 = vpack.c.bf16 %v7528, %v7527
    %v7607 = vpack.c.bf16 %v7530, %v7529
    %v7608 = vpack.c.bf16 %v7532, %v7531
    %v7609 = vpack.c.bf16 %v7534, %v7533
    %v7610 = vpack.c.bf16 %v7536, %v7535
    %v7611 = vpack.c.bf16 %v7538, %v7537
    %v7612 = vpack.c.bf16 %v7540, %v7539
    %v7613 = vpack.c.bf16 %v7542, %v7541
    %v7614 = vpack.c.bf16 %v7544, %v7543
    %v7615 = vpack.c.bf16 %v7546, %v7545
    %v7616 = vpack.c.bf16 %v7548, %v7547
    %v7617 = vpack.c.bf16 %v7550, %v7549
    %v7618 = vpack.c.bf16 %v7552, %v7551
    %v7619 = vpack.c.bf16 %v7554, %v7553
    %v7620 = vpack.c.bf16 %v7556, %v7555
    %v7685 = vunpack.c.l.b16 %v7557
    %v7686 = vunpack.c.h.b16 %v7557
    %v7687 = vunpack.c.l.b16 %v7558
    %v7688 = vunpack.c.h.b16 %v7558
    %v7689 = vunpack.c.l.b16 %v7559
    %v7690 = vunpack.c.h.b16 %v7559
    %v7691 = vunpack.c.l.b16 %v7560
    %v7692 = vunpack.c.h.b16 %v7560
    %v7693 = vunpack.c.l.b16 %v7561
    %v7694 = vunpack.c.h.b16 %v7561
    %v7695 = vunpack.c.l.b16 %v7562
    %v7696 = vunpack.c.h.b16 %v7562
    %v7697 = vunpack.c.l.b16 %v7563
    %v7698 = vunpack.c.h.b16 %v7563
    %v7699 = vunpack.c.l.b16 %v7564
    %v7700 = vunpack.c.h.b16 %v7564
    %v7701 = vunpack.c.l.b16 %v7565
    %v7702 = vunpack.c.h.b16 %v7565
    %v7703 = vunpack.c.l.b16 %v7566
    %v7704 = vunpack.c.h.b16 %v7566
    %v7705 = vunpack.c.l.b16 %v7567
    %v7706 = vunpack.c.h.b16 %v7567
    %v7707 = vunpack.c.l.b16 %v7568
    %v7708 = vunpack.c.h.b16 %v7568
    %v7709 = vunpack.c.l.b16 %v7569
    %v7710 = vunpack.c.h.b16 %v7569
    %v7711 = vunpack.c.l.b16 %v7570
    %v7712 = vunpack.c.h.b16 %v7570
    %v7713 = vunpack.c.l.b16 %v7571
    %v7714 = vunpack.c.h.b16 %v7571
    %v7715 = vunpack.c.l.b16 %v7572
    %v7716 = vunpack.c.h.b16 %v7572
    %v7717 = vunpack.c.l.b16 %v7573
    %v7718 = vunpack.c.h.b16 %v7573
    %v7719 = vunpack.c.l.b16 %v7574
    %v7720 = vunpack.c.h.b16 %v7574
    %v7721 = vunpack.c.l.b16 %v7575
    %v7722 = vunpack.c.h.b16 %v7575
    %v7723 = vunpack.c.l.b16 %v7576
    %v7724 = vunpack.c.h.b16 %v7576
    %v7725 = vunpack.c.l.b16 %v7577
    %v7726 = vunpack.c.h.b16 %v7577
    %v7727 = vunpack.c.l.b16 %v7578
    %v7728 = vunpack.c.h.b16 %v7578
    %v7729 = vunpack.c.l.b16 %v7579
    %v7730 = vunpack.c.h.b16 %v7579
    %v7731 = vunpack.c.l.b16 %v7580
    %v7732 = vunpack.c.h.b16 %v7580
    %v7733 = vunpack.c.l.b16 %v7581
    %v7734 = vunpack.c.h.b16 %v7581
    %v7735 = vunpack.c.l.b16 %v7582
    %v7736 = vunpack.c.h.b16 %v7582
    %v7737 = vunpack.c.l.b16 %v7583
    %v7738 = vunpack.c.h.b16 %v7583
    %v7739 = vunpack.c.l.b16 %v7584
    %v7740 = vunpack.c.h.b16 %v7584
    %v7741 = vunpack.c.l.b16 %v7585
    %v7742 = vunpack.c.h.b16 %v7585
    %v7743 = vunpack.c.l.b16 %v7586
    %v7744 = vunpack.c.h.b16 %v7586
    %v7745 = vunpack.c.l.b16 %v7587
    %v7746 = vunpack.c.h.b16 %v7587
    %v7747 = vunpack.c.l.b16 %v7588
    %v7748 = vunpack.c.h.b16 %v7588
    %v7749 = vunpack.c.l.b16 %v7589
    %v7750 = vunpack.c.h.b16 %v7589
    %v7751 = vunpack.c.l.b16 %v7590
    %v7752 = vunpack.c.h.b16 %v7590
    %v7753 = vunpack.c.l.b16 %v7591
    %v7754 = vunpack.c.h.b16 %v7591
    %v7755 = vunpack.c.l.b16 %v7592
    %v7756 = vunpack.c.h.b16 %v7592
    %v7757 = vunpack.c.l.b16 %v7593
    %v7758 = vunpack.c.h.b16 %v7593
    %v7759 = vunpack.c.l.b16 %v7594
    %v7760 = vunpack.c.h.b16 %v7594
    %v7761 = vunpack.c.l.b16 %v7595
    %v7762 = vunpack.c.h.b16 %v7595
    %v7763 = vunpack.c.l.b16 %v7596
    %v7764 = vunpack.c.h.b16 %v7596
    %v7765 = vunpack.c.l.b16 %v7597
    %v7766 = vunpack.c.h.b16 %v7597
    %v7767 = vunpack.c.l.b16 %v7598
    %v7768 = vunpack.c.h.b16 %v7598
    %v7769 = vunpack.c.l.b16 %v7599
    %v7770 = vunpack.c.h.b16 %v7599
    %v7771 = vunpack.c.l.b16 %v7600
    %v7772 = vunpack.c.h.b16 %v7600
    %v7773 = vunpack.c.l.b16 %v7601
    %v7774 = vunpack.c.h.b16 %v7601
    %v7775 = vunpack.c.l.b16 %v7602
    %v7776 = vunpack.c.h.b16 %v7602
    %v7777 = vunpack.c.l.b16 %v7603
    %v7778 = vunpack.c.h.b16 %v7603
    %v7779 = vunpack.c.l.b16 %v7604
    %v7780 = vunpack.c.h.b16 %v7604
    %v7781 = vunpack.c.l.b16 %v7605
    %v7782 = vunpack.c.h.b16 %v7605
    %v7783 = vunpack.c.l.b16 %v7606
    %v7784 = vunpack.c.h.b16 %v7606
    %v7785 = vunpack.c.l.b16 %v7607
    %v7786 = vunpack.c.h.b16 %v7607
    %v7787 = vunpack.c.l.b16 %v7608
    %v7788 = vunpack.c.h.b16 %v7608
    %v7789 = vunpack.c.l.b16 %v7609
    %v7790 = vunpack.c.h.b16 %v7609
    %v7791 = vunpack.c.l.b16 %v7610
    %v7792 = vunpack.c.h.b16 %v7610
    %v7793 = vunpack.c.l.b16 %v7611
    %v7794 = vunpack.c.h.b16 %v7611
    %v7795 = vunpack.c.l.b16 %v7612
    %v7796 = vunpack.c.h.b16 %v7612
    %v7797 = vunpack.c.l.b16 %v7613
    %v7798 = vunpack.c.h.b16 %v7613
    %v7799 = vunpack.c.l.b16 %v7614
    %v7800 = vunpack.c.h.b16 %v7614
    %v7801 = vunpack.c.l.b16 %v7615
    %v7802 = vunpack.c.h.b16 %v7615
    %v7803 = vunpack.c.l.b16 %v7616
    %v7804 = vunpack.c.h.b16 %v7616
    %v7805 = vunpack.c.l.b16 %v7617
    %v7806 = vunpack.c.h.b16 %v7617
    %v7807 = vunpack.c.l.b16 %v7618
    %v7808 = vunpack.c.h.b16 %v7618
    %v7809 = vunpack.c.l.b16 %v7619
    %v7810 = vunpack.c.h.b16 %v7619
    %v7811 = vunpack.c.l.b16 %v7620
    %v7812 = vunpack.c.h.b16 %v7620
    %v7813 = vpack.c.b16 %v7685, %v7685
    %v7814 = vpack.c.b16 %v7686, %v7686
    %v7815 = vpack.c.b16 %v7687, %v7687
    %v7816 = vpack.c.b16 %v7688, %v7688
    %v7817 = vpack.c.b16 %v7689, %v7689
    %v7818 = vpack.c.b16 %v7690, %v7690
    %v7819 = vpack.c.b16 %v7691, %v7691
    %v7820 = vpack.c.b16 %v7692, %v7692
    %v7821 = vpack.c.b16 %v7693, %v7693
    %v7822 = vpack.c.b16 %v7694, %v7694
    %v7823 = vpack.c.b16 %v7695, %v7695
    %v7824 = vpack.c.b16 %v7696, %v7696
    %v7825 = vpack.c.b16 %v7697, %v7697
    %v7826 = vpack.c.b16 %v7698, %v7698
    %v7827 = vpack.c.b16 %v7699, %v7699
    %v7828 = vpack.c.b16 %v7700, %v7700
    %v7829 = vpack.c.b16 %v7701, %v7701
    %v7830 = vpack.c.b16 %v7702, %v7702
    %v7831 = vpack.c.b16 %v7703, %v7703
    %v7832 = vpack.c.b16 %v7704, %v7704
    %v7833 = vpack.c.b16 %v7705, %v7705
    %v7834 = vpack.c.b16 %v7706, %v7706
    %v7835 = vpack.c.b16 %v7707, %v7707
    %v7836 = vpack.c.b16 %v7708, %v7708
    %v7837 = vpack.c.b16 %v7709, %v7709
    %v7838 = vpack.c.b16 %v7710, %v7710
    %v7839 = vpack.c.b16 %v7711, %v7711
    %v7840 = vpack.c.b16 %v7712, %v7712
    %v7841 = vpack.c.b16 %v7713, %v7713
    %v7842 = vpack.c.b16 %v7714, %v7714
    %v7843 = vpack.c.b16 %v7715, %v7715
    %v7844 = vpack.c.b16 %v7716, %v7716
    %v7845 = vpack.c.b16 %v7717, %v7717
    %v7846 = vpack.c.b16 %v7718, %v7718
    %v7847 = vpack.c.b16 %v7719, %v7719
    %v7848 = vpack.c.b16 %v7720, %v7720
    %v7849 = vpack.c.b16 %v7721, %v7721
    %v7850 = vpack.c.b16 %v7722, %v7722
    %v7851 = vpack.c.b16 %v7723, %v7723
    %v7852 = vpack.c.b16 %v7724, %v7724
    %v7853 = vpack.c.b16 %v7725, %v7725
    %v7854 = vpack.c.b16 %v7726, %v7726
    %v7855 = vpack.c.b16 %v7727, %v7727
    %v7856 = vpack.c.b16 %v7728, %v7728
    %v7857 = vpack.c.b16 %v7729, %v7729
    %v7858 = vpack.c.b16 %v7730, %v7730
    %v7859 = vpack.c.b16 %v7731, %v7731
    %v7860 = vpack.c.b16 %v7732, %v7732
    %v7861 = vpack.c.b16 %v7733, %v7733
    %v7862 = vpack.c.b16 %v7734, %v7734
    %v7863 = vpack.c.b16 %v7735, %v7735
    %v7864 = vpack.c.b16 %v7736, %v7736
    %v7865 = vpack.c.b16 %v7737, %v7737
    %v7866 = vpack.c.b16 %v7738, %v7738
    %v7867 = vpack.c.b16 %v7739, %v7739
    %v7868 = vpack.c.b16 %v7740, %v7740
    %v7869 = vpack.c.b16 %v7741, %v7741
    %v7870 = vpack.c.b16 %v7742, %v7742
    %v7871 = vpack.c.b16 %v7743, %v7743
    %v7872 = vpack.c.b16 %v7744, %v7744
    %v7873 = vpack.c.b16 %v7745, %v7745
    %v7874 = vpack.c.b16 %v7746, %v7746
    %v7875 = vpack.c.b16 %v7747, %v7747
    %v7876 = vpack.c.b16 %v7748, %v7748
    %v7877 = vpack.c.b16 %v7749, %v7749
    %v7878 = vpack.c.b16 %v7750, %v7750
    %v7879 = vpack.c.b16 %v7751, %v7751
    %v7880 = vpack.c.b16 %v7752, %v7752
    %v7881 = vpack.c.b16 %v7753, %v7753
    %v7882 = vpack.c.b16 %v7754, %v7754
    %v7883 = vpack.c.b16 %v7755, %v7755
    %v7884 = vpack.c.b16 %v7756, %v7756
    %v7885 = vpack.c.b16 %v7757, %v7757
    %v7886 = vpack.c.b16 %v7758, %v7758
    %v7887 = vpack.c.b16 %v7759, %v7759
    %v7888 = vpack.c.b16 %v7760, %v7760
    %v7889 = vpack.c.b16 %v7761, %v7761
    %v7890 = vpack.c.b16 %v7762, %v7762
    %v7891 = vpack.c.b16 %v7763, %v7763
    %v7892 = vpack.c.b16 %v7764, %v7764
    %v7893 = vpack.c.b16 %v7765, %v7765
    %v7894 = vpack.c.b16 %v7766, %v7766
    %v7895 = vpack.c.b16 %v7767, %v7767
    %v7896 = vpack.c.b16 %v7768, %v7768
    %v7897 = vpack.c.b16 %v7769, %v7769
    %v7898 = vpack.c.b16 %v7770, %v7770
    %v7899 = vpack.c.b16 %v7771, %v7771
    %v7900 = vpack.c.b16 %v7772, %v7772
    %v7901 = vpack.c.b16 %v7773, %v7773
    %v7902 = vpack.c.b16 %v7774, %v7774
    %v7903 = vpack.c.b16 %v7775, %v7775
    %v7904 = vpack.c.b16 %v7776, %v7776
    %v7905 = vpack.c.b16 %v7777, %v7777
    %v7906 = vpack.c.b16 %v7778, %v7778
    %v7907 = vpack.c.b16 %v7779, %v7779
    %v7908 = vpack.c.b16 %v7780, %v7780
    %v7909 = vpack.c.b16 %v7781, %v7781
    %v7910 = vpack.c.b16 %v7782, %v7782
    %v7911 = vpack.c.b16 %v7783, %v7783
    %v7912 = vpack.c.b16 %v7784, %v7784
    %v7913 = vpack.c.b16 %v7785, %v7785
    %v7914 = vpack.c.b16 %v7786, %v7786
    %v7915 = vpack.c.b16 %v7787, %v7787
    %v7916 = vpack.c.b16 %v7788, %v7788
    %v7917 = vpack.c.b16 %v7789, %v7789
    %v7918 = vpack.c.b16 %v7790, %v7790
    %v7919 = vpack.c.b16 %v7791, %v7791
    %v7920 = vpack.c.b16 %v7792, %v7792
    %v7921 = vpack.c.b16 %v7793, %v7793
    %v7922 = vpack.c.b16 %v7794, %v7794
    %v7923 = vpack.c.b16 %v7795, %v7795
    %v7924 = vpack.c.b16 %v7796, %v7796
    %v7925 = vpack.c.b16 %v7797, %v7797
    %v7926 = vpack.c.b16 %v7798, %v7798
    %v7927 = vpack.c.b16 %v7799, %v7799
    %v7928 = vpack.c.b16 %v7800, %v7800
    %v7929 = vpack.c.b16 %v7801, %v7801
    %v7930 = vpack.c.b16 %v7802, %v7802
    %v7931 = vpack.c.b16 %v7803, %v7803
    %v7932 = vpack.c.b16 %v7804, %v7804
    %v7933 = vpack.c.b16 %v7805, %v7805
    %v7934 = vpack.c.b16 %v7806, %v7806
    %v7935 = vpack.c.b16 %v7807, %v7807
    %v7936 = vpack.c.b16 %v7808, %v7808
    %v7937 = vpack.c.b16 %v7809, %v7809
    %v7938 = vpack.c.b16 %v7810, %v7810
    %v7939 = vpack.c.b16 %v7811, %v7811
    %v7940 = vpack.c.b16 %v7812, %v7812
    %8069 = vst [vmem:[#allocation10] sm:$0xf] %v7813
    %8070 = vst [vmem:[#allocation10 + $0x4] sm:$0xf] %v7814
    %8071 = vst [vmem:[#allocation10 + $0x8] sm:$0xf] %v7815
    %8072 = vst [vmem:[#allocation10 + $0xc] sm:$0xf] %v7816
    %8073 = vst [vmem:[#allocation10 + $0x10] sm:$0xf] %v7817
    %8074 = vst [vmem:[#allocation10 + $0x14] sm:$0xf] %v7818
    %8075 = vst [vmem:[#allocation10 + $0x18] sm:$0xf] %v7819
    %8076 = vst [vmem:[#allocation10 + $0x1c] sm:$0xf] %v7820
    %8077 = vst [vmem:[#allocation10 + $0x20] sm:$0xf] %v7821
    %8078 = vst [vmem:[#allocation10 + $0x24] sm:$0xf] %v7822
    %8079 = vst [vmem:[#allocation10 + $0x28] sm:$0xf] %v7823
    %8080 = vst [vmem:[#allocation10 + $0x2c] sm:$0xf] %v7824
    %8081 = vst [vmem:[#allocation10 + $0x30] sm:$0xf] %v7825
    %8082 = vst [vmem:[#allocation10 + $0x34] sm:$0xf] %v7826
    %8083 = vst [vmem:[#allocation10 + $0x38] sm:$0xf] %v7827
    %8084 = vst [vmem:[#allocation10 + $0x3c] sm:$0xf] %v7828
    %8085 = vst [vmem:[#allocation10 + $0x40] sm:$0xf] %v7829
    %8086 = vst [vmem:[#allocation10 + $0x44] sm:$0xf] %v7830
    %8087 = vst [vmem:[#allocation10 + $0x48] sm:$0xf] %v7831
    %8088 = vst [vmem:[#allocation10 + $0x4c] sm:$0xf] %v7832
    %8089 = vst [vmem:[#allocation10 + $0x50] sm:$0xf] %v7833
    %8090 = vst [vmem:[#allocation10 + $0x54] sm:$0xf] %v7834
    %8091 = vst [vmem:[#allocation10 + $0x58] sm:$0xf] %v7835
    %8092 = vst [vmem:[#allocation10 + $0x5c] sm:$0xf] %v7836
    %8093 = vst [vmem:[#allocation10 + $0x60] sm:$0xf] %v7837
    %8094 = vst [vmem:[#allocation10 + $0x64] sm:$0xf] %v7838
    %8095 = vst [vmem:[#allocation10 + $0x68] sm:$0xf] %v7839
    %8096 = vst [vmem:[#allocation10 + $0x6c] sm:$0xf] %v7840
    %8097 = vst [vmem:[#allocation10 + $0x70] sm:$0xf] %v7841
    %8098 = vst [vmem:[#allocation10 + $0x74] sm:$0xf] %v7842
    %8099 = vst [vmem:[#allocation10 + $0x78] sm:$0xf] %v7843
    %8100 = vst [vmem:[#allocation10 + $0x7c] sm:$0xf] %v7844
    %8101 = vst [vmem:[#allocation10 + $0x80] sm:$0xf] %v7845
    %8102 = vst [vmem:[#allocation10 + $0x84] sm:$0xf] %v7846
    %8103 = vst [vmem:[#allocation10 + $0x88] sm:$0xf] %v7847
    %8104 = vst [vmem:[#allocation10 + $0x8c] sm:$0xf] %v7848
    %8105 = vst [vmem:[#allocation10 + $0x90] sm:$0xf] %v7849
    %8106 = vst [vmem:[#allocation10 + $0x94] sm:$0xf] %v7850
    %8107 = vst [vmem:[#allocation10 + $0x98] sm:$0xf] %v7851
    %8108 = vst [vmem:[#allocation10 + $0x9c] sm:$0xf] %v7852
    %8109 = vst [vmem:[#allocation10 + $0xa0] sm:$0xf] %v7853
    %8110 = vst [vmem:[#allocation10 + $0xa4] sm:$0xf] %v7854
    %8111 = vst [vmem:[#allocation10 + $0xa8] sm:$0xf] %v7855
    %8112 = vst [vmem:[#allocation10 + $0xac] sm:$0xf] %v7856
    %8113 = vst [vmem:[#allocation10 + $0xb0] sm:$0xf] %v7857
    %8114 = vst [vmem:[#allocation10 + $0xb4] sm:$0xf] %v7858
    %8115 = vst [vmem:[#allocation10 + $0xb8] sm:$0xf] %v7859
    %8116 = vst [vmem:[#allocation10 + $0xbc] sm:$0xf] %v7860
    %8117 = vst [vmem:[#allocation10 + $0xc0] sm:$0xf] %v7861
    %8118 = vst [vmem:[#allocation10 + $0xc4] sm:$0xf] %v7862
    %8119 = vst [vmem:[#allocation10 + $0xc8] sm:$0xf] %v7863
    %8120 = vst [vmem:[#allocation10 + $0xcc] sm:$0xf] %v7864
    %8121 = vst [vmem:[#allocation10 + $0xd0] sm:$0xf] %v7865
    %8122 = vst [vmem:[#allocation10 + $0xd4] sm:$0xf] %v7866
    %8123 = vst [vmem:[#allocation10 + $0xd8] sm:$0xf] %v7867
    %8124 = vst [vmem:[#allocation10 + $0xdc] sm:$0xf] %v7868
    %8125 = vst [vmem:[#allocation10 + $0xe0] sm:$0xf] %v7869
    %8126 = vst [vmem:[#allocation10 + $0xe4] sm:$0xf] %v7870
    %8127 = vst [vmem:[#allocation10 + $0xe8] sm:$0xf] %v7871
    %8128 = vst [vmem:[#allocation10 + $0xec] sm:$0xf] %v7872
    %8129 = vst [vmem:[#allocation10 + $0xf0] sm:$0xf] %v7873
    %8130 = vst [vmem:[#allocation10 + $0xf4] sm:$0xf] %v7874
    %8131 = vst [vmem:[#allocation10 + $0xf8] sm:$0xf] %v7875
    %8132 = vst [vmem:[#allocation10 + $0xfc] sm:$0xf] %v7876
    %8133 = vst [vmem:[#allocation10 + $0x100] sm:$0xf] %v7877
    %8134 = vst [vmem:[#allocation10 + $0x104] sm:$0xf] %v7878
    %8135 = vst [vmem:[#allocation10 + $0x108] sm:$0xf] %v7879
    %8136 = vst [vmem:[#allocation10 + $0x10c] sm:$0xf] %v7880
    %8137 = vst [vmem:[#allocation10 + $0x110] sm:$0xf] %v7881
    %8138 = vst [vmem:[#allocation10 + $0x114] sm:$0xf] %v7882
    %8139 = vst [vmem:[#allocation10 + $0x118] sm:$0xf] %v7883
    %8140 = vst [vmem:[#allocation10 + $0x11c] sm:$0xf] %v7884
    %8141 = vst [vmem:[#allocation10 + $0x120] sm:$0xf] %v7885
    %8142 = vst [vmem:[#allocation10 + $0x124] sm:$0xf] %v7886
    %8143 = vst [vmem:[#allocation10 + $0x128] sm:$0xf] %v7887
    %8144 = vst [vmem:[#allocation10 + $0x12c] sm:$0xf] %v7888
    %8145 = vst [vmem:[#allocation10 + $0x130] sm:$0xf] %v7889
    %8146 = vst [vmem:[#allocation10 + $0x134] sm:$0xf] %v7890
    %8147 = vst [vmem:[#allocation10 + $0x138] sm:$0xf] %v7891
    %8148 = vst [vmem:[#allocation10 + $0x13c] sm:$0xf] %v7892
    %8149 = vst [vmem:[#allocation10 + $0x140] sm:$0xf] %v7893
    %8150 = vst [vmem:[#allocation10 + $0x144] sm:$0xf] %v7894
    %8151 = vst [vmem:[#allocation10 + $0x148] sm:$0xf] %v7895
    %8152 = vst [vmem:[#allocation10 + $0x14c] sm:$0xf] %v7896
    %8153 = vst [vmem:[#allocation10 + $0x150] sm:$0xf] %v7897
    %8154 = vst [vmem:[#allocation10 + $0x154] sm:$0xf] %v7898
    %8155 = vst [vmem:[#allocation10 + $0x158] sm:$0xf] %v7899
    %8156 = vst [vmem:[#allocation10 + $0x15c] sm:$0xf] %v7900
    %8157 = vst [vmem:[#allocation10 + $0x160] sm:$0xf] %v7901
    %8158 = vst [vmem:[#allocation10 + $0x164] sm:$0xf] %v7902
    %8159 = vst [vmem:[#allocation10 + $0x168] sm:$0xf] %v7903
    %8160 = vst [vmem:[#allocation10 + $0x16c] sm:$0xf] %v7904
    %8161 = vst [vmem:[#allocation10 + $0x170] sm:$0xf] %v7905
    %8162 = vst [vmem:[#allocation10 + $0x174] sm:$0xf] %v7906
    %8163 = vst [vmem:[#allocation10 + $0x178] sm:$0xf] %v7907
    %8164 = vst [vmem:[#allocation10 + $0x17c] sm:$0xf] %v7908
    %8165 = vst [vmem:[#allocation10 + $0x180] sm:$0xf] %v7909
    %8166 = vst [vmem:[#allocation10 + $0x184] sm:$0xf] %v7910
    %8167 = vst [vmem:[#allocation10 + $0x188] sm:$0xf] %v7911
    %8168 = vst [vmem:[#allocation10 + $0x18c] sm:$0xf] %v7912
    %8169 = vst [vmem:[#allocation10 + $0x190] sm:$0xf] %v7913
    %8170 = vst [vmem:[#allocation10 + $0x194] sm:$0xf] %v7914
    %8171 = vst [vmem:[#allocation10 + $0x198] sm:$0xf] %v7915
    %8172 = vst [vmem:[#allocation10 + $0x19c] sm:$0xf] %v7916
    %8173 = vst [vmem:[#allocation10 + $0x1a0] sm:$0xf] %v7917
    %8174 = vst [vmem:[#allocation10 + $0x1a4] sm:$0xf] %v7918
    %8175 = vst [vmem:[#allocation10 + $0x1a8] sm:$0xf] %v7919
    %8176 = vst [vmem:[#allocation10 + $0x1ac] sm:$0xf] %v7920
    %8177 = vst [vmem:[#allocation10 + $0x1b0] sm:$0xf] %v7921
    %8178 = vst [vmem:[#allocation10 + $0x1b4] sm:$0xf] %v7922
    %8179 = vst [vmem:[#allocation10 + $0x1b8] sm:$0xf] %v7923
    %8180 = vst [vmem:[#allocation10 + $0x1bc] sm:$0xf] %v7924
    %8181 = vst [vmem:[#allocation10 + $0x1c0] sm:$0xf] %v7925
    %8182 = vst [vmem:[#allocation10 + $0x1c4] sm:$0xf] %v7926
    %8183 = vst [vmem:[#allocation10 + $0x1c8] sm:$0xf] %v7927
    %8184 = vst [vmem:[#allocation10 + $0x1cc] sm:$0xf] %v7928
    %8185 = vst [vmem:[#allocation10 + $0x1d0] sm:$0xf] %v7929
    %8186 = vst [vmem:[#allocation10 + $0x1d4] sm:$0xf] %v7930
    %8187 = vst [vmem:[#allocation10 + $0x1d8] sm:$0xf] %v7931
    %8188 = vst [vmem:[#allocation10 + $0x1dc] sm:$0xf] %v7932
    %8189 = vst [vmem:[#allocation10 + $0x1e0] sm:$0xf] %v7933
    %8190 = vst [vmem:[#allocation10 + $0x1e4] sm:$0xf] %v7934
    %8191 = vst [vmem:[#allocation10 + $0x1e8] sm:$0xf] %v7935
    %8192 = vst [vmem:[#allocation10 + $0x1ec] sm:$0xf] %v7936
    %8193 = vst [vmem:[#allocation10 + $0x1f0] sm:$0xf] %v7937
    %8194 = vst [vmem:[#allocation10 + $0x1f4] sm:$0xf] %v7938
    %8195 = vst [vmem:[#allocation10 + $0x1f8] sm:$0xf] %v7939
    %8196 = vst [vmem:[#allocation10 + $0x1fc] sm:$0xf] %v7940
    // Predicated region
    $region46: #{tpu_custom_call.1} parent=1 // pred_check
      _
    $region47: #{tpu_custom_call.1} parent=1 // pred_check_branch
      %8198 = sbr.rel (0) target = $region49
    $region48: #{tpu_custom_call.1} parent=1 // pred_region
      %s8200 = ssub.s32 8192, 8192
      %8201 = vsyncadd [#allocation4], %s8200
      %s8202 = sshll.u32 [#allocation10], 4
      %s8203 = int_to_ptr.vmem [resolvable:$true] %s8202
      %8208 = dma.vmem_to_hbm [thread:$0]  %s8203, 8192, %s7, [#allocation4], 64, 64, 4
    $region49: #{tpu_custom_call.1} parent=1 // pred_fallthru
      _
    // Predicated region
    $region50: #{tpu_custom_call.1} parent=1 // pred_check
      _
    $region51: #{tpu_custom_call.1} parent=1 // pred_check_branch
      %8210 = sbr.rel (0) target = $region53
    $region52: #{tpu_custom_call.1} parent=1 // pred_region
      %8211 = dma.done [#allocation4], 8192
    $region53: #{tpu_custom_call.1} parent=1 // pred_fallthru
      _
    %8212 = vsyncpa [#allocation3], 1
    %8213 = vsyncpa [#allocation6], 1
    %8214 = vsyncpa [#allocation9], 1
    %8215 = vsyncpa [#allocation4], 1

</llo_original>
